<compile_context>
chip_gen: v7x
topology: tpu7x:2x2x1
jax: 0.10.0
libtpu: 0.0.40
codegen_flags: <defaults>
</compile_context>

<pallas_src>
import functools

import numpy as np
import jax
import jax.numpy as jnp
from jax import lax
from jax.experimental import pallas as pl
from jax.experimental.pallas import tpu as pltpu

# ----------------------- scaled-down iresnet-18 config -----------------------
LAYERS = (2, 2, 2, 2)          # r18 block counts
WIDTHS = (8, 16, 32, 64)       # scaled from (64, 128, 256, 512)
STEM = 8                       # scaled from 64
NUM_FEATURES = 32              # scaled from 512
INPUT_HW = 16                  # scaled from 112 ; final spatial = INPUT_HW // 16 = 1
BN_EPS = 1e-5
LANES = 128                    # lane width of every slab / weight matrix


# ============================== fused Pallas kernel ==============================
# Per-image activation format inside the kernel: (sp, 128) f32 "row slab": row = image row,
# lanes = W*Cp flattening (channel fastest), Cp = 128 // W, padded channels are exactly zero.
# Conv inputs get a 1-row zero halo (pure register concat), bf16 only for the MXU operands.

def make_fused_kernel(plan, fcb_idx):
    first = plan[0]
    blocks = plan[1:]

    def kernel(x_ref, wconv_ref, wds_ref, bn_ref, fcw_ref, out_ref):
        f32, bf16 = jnp.float32, jnp.bfloat16

        def row(k):                                        # (1, 128) f32 per-channel row
            return bn_ref[k:k + 1, :]

        def pad_stack(y):                                  # (sp,128) -> (sp+2,128), zero halos
            z = jnp.zeros((1, y.shape[1]), y.dtype)
            return jnp.concatenate([z, y, z], axis=0)

        def conv3(stack, widx):                            # stack (sp+2,128) bf16, zero halos
            sp = stack.shape[0] - 2
            # K=384 tap fold: lane-concat the three row taps, one MXU matmul.
            xcat = jnp.concatenate(
                [stack[0:sp, :], stack[1:sp + 1, :], stack[2:sp + 2, :]], axis=1)
            return jnp.dot(xcat, wconv_ref[widx], preferred_element_type=f32)

        def take_even_rows(v, sp_out):                     # exact 0/1 row pick (f32 matmul)
            sp_in = v.shape[0]
            r = lax.broadcasted_iota(jnp.int32, (sp_out, sp_in), 0)
            c = lax.broadcasted_iota(jnp.int32, (sp_out, sp_in), 1)
            sel = (c == 2 * r).astype(f32)
            return jnp.dot(sel, v, preferred_element_type=f32)

        # ---- stem: fr_conv1 (3x3, s=1) + fr_bn1 + fr_prelu ----
        x = x_ref[0]                                       # (H+2, 128) bf16, zero halos
        y = conv3(x, first["w"])
        y = y * row(first["s"]) + row(first["t"])
        act = jnp.where(y >= 0.0, y, y * row(first["a"]))  # (16, 128) f32

        # ---- 8 IBasicBlocks, fully unrolled (bn1->conv1->bn2->prelu->conv2->bn3 + residual) ----
        for blk in blocks:
            xb = act * row(blk["b1s"]) + row(blk["b1t"])                       # bn1
            y1 = conv3(pad_stack(xb.astype(bf16)), blk["w1"])                  # conv1 (s=1)
            y1 = y1 * row(blk["b2s"]) + row(blk["b2t"])                        # bn2
            y1 = jnp.where(y1 >= 0.0, y1, y1 * row(blk["al"]))                 # prelu
            z = conv3(pad_stack(y1.astype(bf16)), blk["w2"])                   # conv2 (W-stride in slab)
            if blk["stride"] == 2:
                z = take_even_rows(z, blk["sp_out"])                           # H-stride
                idn = take_even_rows(act, blk["sp_out"])                       # 1x1 s=2 downsample
                idn = jnp.dot(idn.astype(bf16), wds_ref[blk["wds"]],
                              preferred_element_type=f32)
                idn = idn * row(blk["dss"]) + row(blk["dst"])                  # downsample BN
            else:
                idn = act
            act = z * row(blk["b3s"]) + row(blk["b3t"]) + idn                  # bn3 + residual

        # ---- fr_bn2 + fr_flatten + fr_dropout(identity at inference) + fr_fc + fr_features ----
        # folded into one f32 matmul + bias (final spatial is 1x1 so flatten order == channel order)
        emb = jnp.dot(act, fcw_ref[...], preferred_element_type=f32) + row(fcb_idx)
        out_ref[0] = jnp.concatenate(
            [emb, jnp.zeros((7, emb.shape[1]), f32)], axis=0)                  # single full store

    return kernel


# ====================== parameter prep (trace-time, NumPy) ====================
def conv_to_slab(w, w_in, cp_in, w_out, cp_out, stride, pad):
    """w: (kh,kw,Cin,Cout) -> (kh, w_in*cp_in, w_out*cp_out) slab weights (W dim + pad folded in)."""
    w = np.asarray(w, np.float32)
    kh, kw, cin, cout = w.shape
    assert w_in * cp_in == LANES and w_out * cp_out == LANES
    out = np.zeros((kh, w_in * cp_in, w_out * cp_out), np.float32)
    for wo in range(w_out):
        for dx in range(kw):
            wi = stride * wo + dx - pad
            if 0 <= wi < w_in:
                out[:, wi * cp_in: wi * cp_in + cin, wo * cp_out: wo * cp_out + cout] = w[:, dx]
    return out


def tile_channels(vec, w, cp):
    """Per-channel vector -> (128,) row (zeros in padded channel slots)."""
    vec = np.asarray(vec, np.float32)
    row = np.zeros((w * cp,), np.float32)
    for i in range(w):
        row[i * cp: i * cp + vec.shape[0]] = vec
    return row


def fold_fc(rp):
    """Fold fr_bn2 + fr_fc + fr_features(BN1d) into one (128,128) f32 matmul + (128,) bias."""
    s2v, t2v = (np.asarray(a, np.float32) for a in rp["bn2"])
    fsv, fshv = (np.asarray(a, np.float32) for a in rp["features"])
    fcw = np.asarray(rp["fc_w"], np.float32)       # (C_last, NUM_FEATURES)
    fcb = np.asarray(rp["fc_b"], np.float32)
    wf = fcw * s2v[:, None] * fsv[None, :]
    bf = (fcb + t2v @ fcw) * fsv + fshv
    wpad = np.zeros((LANES, LANES), np.float32)
    wpad[:wf.shape[0], :wf.shape[1]] = wf
    bpad = np.zeros((LANES,), np.float32)
    bpad[:bf.shape[0]] = bf
    return wpad, bpad


def prepare_kernel_params(rp):
    conv_slabs, bn_rows, wds_slabs, plan = [], [], [], []

    def add_conv(w, w_in, cp_in, w_out, cp_out, stride, pad):
        conv_slabs.append(conv_to_slab(w, w_in, cp_in, w_out, cp_out, stride, pad)
                          .reshape(3 * LANES, LANES))
        return len(conv_slabs) - 1

    def add_row(vec, w, cp):
        bn_rows.append(tile_channels(vec, w, cp))
        return len(bn_rows) - 1

    sp = INPUT_HW
    cp = LANES // sp
    plan.append(dict(kind="stem",
                     w=add_conv(rp["stem_w"], sp, cp, sp, cp, 1, 1),
                     s=add_row(rp["stem_bn"][0], sp, cp),
                     t=add_row(rp["stem_bn"][1], sp, cp),
                     a=add_row(rp["stem_prelu"], sp, cp)))
    for li in range(1, 5):
        for blk in rp[f"layer{li}"]:
            stride = blk["stride"]
            sp_in, cp_in = sp, LANES // sp
            sp_out = sp_in // stride
            cp_out = LANES // sp_out
            cp_mid = cp_in                               # conv1 keeps the spatial size
            entry = dict(kind="block", stride=stride, sp_in=sp_in, sp_out=sp_out,
                         b1s=add_row(blk["bn1"][0], sp_in, cp_in),
                         b1t=add_row(blk["bn1"][1], sp_in, cp_in),
                         w1=add_conv(blk["w1"], sp_in, cp_in, sp_in, cp_mid, 1, 1),
                         b2s=add_row(blk["bn2"][0], sp_in, cp_mid),
                         b2t=add_row(blk["bn2"][1], sp_in, cp_mid),
                         al=add_row(blk["alpha"], sp_in, cp_mid),
                         w2=add_conv(blk["w2"], sp_in, cp_mid, sp_out, cp_out, stride, 1),
                         b3s=add_row(blk["bn3"][0], sp_out, cp_out),
                         b3t=add_row(blk["bn3"][1], sp_out, cp_out))
            if stride != 1:
                wds_slabs.append(conv_to_slab(blk["wds"], sp_in, cp_in, sp_out, cp_out, stride, 0)[0])
                entry["wds"] = len(wds_slabs) - 1
                entry["dss"] = add_row(blk["ds_bn"][0], sp_out, cp_out)
                entry["dst"] = add_row(blk["ds_bn"][1], sp_out, cp_out)
            plan.append(entry)
            sp = sp_out
    assert sp == 1, "fc fold assumes final spatial == 1"

    wf, bf = fold_fc(rp)
    bn_rows.append(bf)
    fcb_idx = len(bn_rows) - 1

    packed = dict(wconv=jnp.asarray(np.stack(conv_slabs, 0), jnp.bfloat16),
                  wds=jnp.asarray(np.stack(wds_slabs, 0), jnp.bfloat16),
                  bn=jnp.asarray(np.stack(bn_rows, 0), jnp.float32),
                  fcw=jnp.asarray(wf, jnp.float32))
    return plan, fcb_idx, packed


# ------------------------------ raw parameters ---------------------------------
def _init_bn(key, c):
    k1, k2, k3, k4 = jax.random.split(key, 4)
    gamma = 1.0 + 0.1 * jax.random.normal(k1, (c,), jnp.float32)
    beta = 0.1 * jax.random.normal(k2, (c,), jnp.float32)
    mean = 0.1 * jax.random.normal(k3, (c,), jnp.float32)
    var = 1.0 + 0.1 * jax.random.uniform(k4, (c,), jnp.float32)
    scale = gamma * jax.lax.rsqrt(var + BN_EPS)
    shift = beta - mean * scale
    return scale, shift


def _conv_w(key, cin, cout, k):
    fan_in = k * k * cin
    return jax.random.normal(key, (k, k, cin, cout), jnp.float32) * (2.0 / fan_in) ** 0.5


def _init_block(key, cin, cout, stride):
    ks = jax.random.split(key, 7)
    blk = dict(stride=stride,
               bn1=_init_bn(ks[0], cin),
               w1=_conv_w(ks[1], cin, cout, 3),
               bn2=_init_bn(ks[2], cout),
               alpha=jnp.full((cout,), 0.25, jnp.float32),    # PyTorch PReLU default
               w2=_conv_w(ks[3], cout, cout, 3),
               bn3=_init_bn(ks[4], cout))
    if stride != 1 or cin != cout:
        blk["wds"] = _conv_w(ks[5], cin, cout, 1)
        blk["ds_bn"] = _init_bn(ks[6], cout)
    return blk


def init_raw_params(key):
    keys = iter(jax.random.split(key, 64))
    rp = {}
    rp["stem_w"] = _conv_w(next(keys), 3, STEM, 3)
    rp["stem_bn"] = _init_bn(next(keys), STEM)
    rp["stem_prelu"] = jnp.full((STEM,), 0.25, jnp.float32)
    inplanes = STEM
    for li, (planes, nb) in enumerate(zip(WIDTHS, LAYERS), start=1):
        blocks = []
        for b in range(nb):
            stride = 2 if b == 0 else 1          # iresnet: every layer starts with stride 2
            blocks.append(_init_block(next(keys), inplanes, planes, stride))
            inplanes = planes
        rp[f"layer{li}"] = blocks
    rp["bn2"] = _init_bn(next(keys), WIDTHS[-1])
    fsp = INPUT_HW // 16
    fin = WIDTHS[-1] * fsp * fsp
    rp["fc_w"] = jax.random.normal(next(keys), (fin, NUM_FEATURES), jnp.float32) / (fin ** 0.5)
    rp["fc_b"] = 0.01 * jax.random.normal(next(keys), (NUM_FEATURES,), jnp.float32)
    rp["features"] = _init_bn(next(keys), NUM_FEATURES)
    return rp
    # TODO(synk): pretrained_path checkpoint loading intentionally not replicated (synthetic params).


# --------------------------------- forward ------------------------------------
def fr_feature_embedder_forward(x_nchw, plan, fcb_idx, packed):
    n, c, h, w = x_nchw.shape
    cp = LANES // w
    # input glue only: NCHW -> NHWC -> channel-pad -> per-image row slab with 1-row zero halo
    x = jnp.transpose(x_nchw, (0, 2, 3, 1)).astype(jnp.float32)
    x = jnp.pad(x, ((0, 0), (0, 0), (0, 0), (0, cp - c)))
    x = x.reshape(n, h, w * cp)
    x = jnp.pad(x, ((0, 0), (1, 1), (0, 0))).astype(jnp.bfloat16)   # (n, h+2, 128)

    wconv, wds, bn, fcw = packed["wconv"], packed["wds"], packed["bn"], packed["fcw"]
    kernel = make_fused_kernel(plan, fcb_idx)
    out = pl.pallas_call(
        kernel,
        out_shape=jax.ShapeDtypeStruct((n, 8, LANES), jnp.float32),
        grid=(n,),
        in_specs=[
            pl.BlockSpec((1, h + 2, LANES), lambda i: (i, 0, 0)),
            pl.BlockSpec(wconv.shape, lambda i: (0, 0, 0)),
            pl.BlockSpec(wds.shape, lambda i: (0, 0, 0)),
            pl.BlockSpec(bn.shape, lambda i: (0, 0)),
            pl.BlockSpec(fcw.shape, lambda i: (0, 0)),
        ],
        out_specs=pl.BlockSpec((1, 8, LANES), lambda i: (i, 0, 0)),
        compiler_params=pltpu.CompilerParams(
            dimension_semantics=("parallel",),          # feed both v7x TensorCores
            vmem_limit_bytes=32 * 1024 * 1024),
    )(x, wconv, wds, bn, fcw)
    return out[:, 0, :NUM_FEATURES]


# --------------------------- plain-JAX reference -------------------------------
def _conv_ref(x, w, stride, pad):
    return lax.conv_general_dilated(x, w, (stride, stride), [(pad, pad), (pad, pad)],
                                    dimension_numbers=("NHWC", "HWIO", "NHWC"))


def reference_forward(x_nchw, rp):
    x = jnp.transpose(x_nchw, (0, 2, 3, 1)).astype(jnp.float32)
    x = _conv_ref(x, rp["stem_w"], 1, 1)
    x = x * rp["stem_bn"][0] + rp["stem_bn"][1]
    x = jnp.where(x >= 0, x, x * rp["stem_prelu"])
    for li in range(1, 5):
        for blk in rp[f"layer{li}"]:
            idn = x
            out = x * blk["bn1"][0] + blk["bn1"][1]
            out = _conv_ref(out, blk["w1"], 1, 1)
            out = out * blk["bn2"][0] + blk["bn2"][1]
            out = jnp.where(out >= 0, out, out * blk["alpha"])
            out = _conv_ref(out, blk["w2"], blk["stride"], 1)
            out = out * blk["bn3"][0] + blk["bn3"][1]
            if "wds" in blk:
                idn = _conv_ref(x, blk["wds"], blk["stride"], 0)
                idn = idn * blk["ds_bn"][0] + blk["ds_bn"][1]
            x = out + idn
    x = x * rp["bn2"][0] + rp["bn2"][1]
    n, hh, ww, c = x.shape
    flat = jnp.transpose(x, (0, 3, 1, 2)).reshape(n, c * hh * ww)
    y = flat @ rp["fc_w"] + rp["fc_b"]
    return y * rp["features"][0] + rp["features"][1]


# ----------------------------------- main --------------------------------------
if __name__ == "__main__":
    key = jax.random.PRNGKey(0)
    pkey, xkey = jax.random.split(key)
    raw = init_raw_params(pkey)
    x = jax.random.normal(xkey, (2, 3, INPUT_HW, INPUT_HW), jnp.float32)  # NCHW like PyTorch

    plan, fcb_idx, packed = prepare_kernel_params(raw)
    fwd = jax.jit(functools.partial(fr_feature_embedder_forward,
                                    plan=plan, fcb_idx=fcb_idx, packed=packed))
    out = jax.block_until_ready(fwd(x))

    assert out.shape == (2, NUM_FEATURES), out.shape
    assert bool(jnp.all(jnp.isfinite(out)))

    # numerical check against a plain-JAX (f32, XLA conv) reference of the same module
    ref = jax.jit(functools.partial(reference_forward, rp=raw))(x)
    rel = float(jnp.linalg.norm(out - ref) / (jnp.linalg.norm(ref) + 1e-6))
    assert rel < 0.05, f"relative L2 error vs reference too large: {rel}"

    print("KERNEL_OK")
</pallas_src>

<mosaic_0001>
module attributes {stable_mosaic.version = 11 : i64} {
  func.func @kernel(%arg0: i32, %arg1: memref<1x18x128xbf16, #tpu.memory_space<vmem>>, %arg2: memref<17x384x128xbf16, #tpu.memory_space<vmem>>, %arg3: memref<4x128x128xbf16, #tpu.memory_space<vmem>>, %arg4: memref<68x128xf32, #tpu.memory_space<vmem>>, %arg5: memref<128x128xf32, #tpu.memory_space<vmem>>, %arg6: memref<1x8x128xf32, #tpu.memory_space<vmem>>) attributes {dimension_semantics = [#tpu.dimension_semantics<parallel>], iteration_bounds = array<i64: 2>, scalar_prefetch = 0 : i64, scratch_operands = 0 : i64, tpu.core_type = #tpu.core_type<tc>, window_params = [{transform_indices = @transform_0, window_bounds = array<i64: 1, 18, 128>}, {pipeline_mode = #tpu.pipeline_mode<synchronous>, transform_indices = @transform_1, window_bounds = array<i64: 17, 384, 128>}, {pipeline_mode = #tpu.pipeline_mode<synchronous>, transform_indices = @transform_2, window_bounds = array<i64: 4, 128, 128>}, {pipeline_mode = #tpu.pipeline_mode<synchronous>, transform_indices = @transform_3, window_bounds = array<i64: 68, 128>}, {pipeline_mode = #tpu.pipeline_mode<synchronous>, transform_indices = @transform_4, window_bounds = array<i64: 128, 128>}, {transform_indices = @transform_5, window_bounds = array<i64: 1, 8, 128>}]} {
    %c0 = arith.constant 0 : index
    %c0_0 = arith.constant 0 : index
    %c0_1 = arith.constant 0 : index
    %0 = vector.load %arg1[%c0, %c0_0, %c0_1] : memref<1x18x128xbf16, #tpu.memory_space<vmem>>, vector<1x18x128xbf16>
    %1 = vector.shape_cast %0 : vector<1x18x128xbf16> to vector<18x128xbf16>
    %2 = vector.extract_strided_slice %1 {offsets = [0, 0], sizes = [16, 128], strides = [1, 1]} : vector<18x128xbf16> to vector<16x128xbf16>
    %3 = vector.extract_strided_slice %1 {offsets = [1, 0], sizes = [16, 128], strides = [1, 1]} : vector<18x128xbf16> to vector<16x128xbf16>
    %4 = vector.extract_strided_slice %1 {offsets = [2, 0], sizes = [16, 128], strides = [1, 1]} : vector<18x128xbf16> to vector<16x128xbf16>
    %5 = tpu.concatenate %2, %3, %4 in 1 : vector<16x128xbf16>, vector<16x128xbf16>, vector<16x128xbf16> -> vector<16x384xbf16>
    %c0_2 = arith.constant 0 : index
    %c0_3 = arith.constant 0 : index
    %c0_4 = arith.constant 0 : index
    %6 = vector.load %arg2[%c0_2, %c0_3, %c0_4] : memref<17x384x128xbf16, #tpu.memory_space<vmem>>, vector<1x384x128xbf16>
    %7 = vector.shape_cast %6 : vector<1x384x128xbf16> to vector<384x128xbf16>
    %cst = arith.constant dense<0.000000e+00> : vector<16x128xf32>
    %8 = tpu.matmul %5, %7, %cst {dimension_numbers = #tpu.dot_dimension_numbers<[1], [0], [0], [1], [0, 0, 1, 1], [], []>} : vector<16x384xbf16>, vector<384x128xbf16>, vector<16x128xf32> -> vector<16x128xf32>
    %c0_5 = arith.constant 0 : index
    %c0_6 = arith.constant 0 : index
    %9 = vector.load %arg4[%c0_5, %c0_6] : memref<68x128xf32, #tpu.memory_space<vmem>>, vector<1x128xf32>
    %10 = vector.broadcast %9 : vector<1x128xf32> to vector<16x128xf32>
    %11 = arith.mulf %8, %10 : vector<16x128xf32>
    %c1 = arith.constant 1 : index
    %c0_7 = arith.constant 0 : index
    %12 = vector.load %arg4[%c1, %c0_7] : memref<68x128xf32, #tpu.memory_space<vmem>>, vector<1x128xf32>
    %13 = vector.broadcast %12 : vector<1x128xf32> to vector<16x128xf32>
    %14 = arith.addf %11, %13 : vector<16x128xf32>
    %cst_8 = arith.constant 0.000000e+00 : f32
    %15 = vector.broadcast %cst_8 : f32 to vector<16x128xf32>
    %16 = arith.cmpf oge, %14, %15 : vector<16x128xf32>
    %c2 = arith.constant 2 : index
    %c0_9 = arith.constant 0 : index
    %17 = vector.load %arg4[%c2, %c0_9] : memref<68x128xf32, #tpu.memory_space<vmem>>, vector<1x128xf32>
    %18 = vector.broadcast %17 : vector<1x128xf32> to vector<16x128xf32>
    %19 = arith.mulf %14, %18 : vector<16x128xf32>
    %20 = arith.select %16, %14, %19 : vector<16x128xi1>, vector<16x128xf32>
    %c3 = arith.constant 3 : index
    %c0_10 = arith.constant 0 : index
    %21 = vector.load %arg4[%c3, %c0_10] : memref<68x128xf32, #tpu.memory_space<vmem>>, vector<1x128xf32>
    %22 = vector.broadcast %21 : vector<1x128xf32> to vector<16x128xf32>
    %23 = arith.mulf %20, %22 : vector<16x128xf32>
    %c4 = arith.constant 4 : index
    %c0_11 = arith.constant 0 : index
    %24 = vector.load %arg4[%c4, %c0_11] : memref<68x128xf32, #tpu.memory_space<vmem>>, vector<1x128xf32>
    %25 = vector.broadcast %24 : vector<1x128xf32> to vector<16x128xf32>
    %26 = arith.addf %23, %25 : vector<16x128xf32>
    %27 = arith.truncf %26 : vector<16x128xf32> to vector<16x128xbf16>
    %cst_12 = arith.constant 0.000000e+00 : bf16
    %28 = vector.broadcast %cst_12 : bf16 to vector<1x128xbf16>
    %29 = tpu.concatenate %28, %27, %28 in 0 : vector<1x128xbf16>, vector<16x128xbf16>, vector<1x128xbf16> -> vector<18x128xbf16>
    %30 = vector.extract_strided_slice %29 {offsets = [0, 0], sizes = [16, 128], strides = [1, 1]} : vector<18x128xbf16> to vector<16x128xbf16>
    %31 = vector.extract_strided_slice %29 {offsets = [1, 0], sizes = [16, 128], strides = [1, 1]} : vector<18x128xbf16> to vector<16x128xbf16>
    %32 = vector.extract_strided_slice %29 {offsets = [2, 0], sizes = [16, 128], strides = [1, 1]} : vector<18x128xbf16> to vector<16x128xbf16>
    %33 = tpu.concatenate %30, %31, %32 in 1 : vector<16x128xbf16>, vector<16x128xbf16>, vector<16x128xbf16> -> vector<16x384xbf16>
    %c1_13 = arith.constant 1 : index
    %c0_14 = arith.constant 0 : index
    %c0_15 = arith.constant 0 : index
    %34 = vector.load %arg2[%c1_13, %c0_14, %c0_15] : memref<17x384x128xbf16, #tpu.memory_space<vmem>>, vector<1x384x128xbf16>
    %35 = vector.shape_cast %34 : vector<1x384x128xbf16> to vector<384x128xbf16>
    %cst_16 = arith.constant dense<0.000000e+00> : vector<16x128xf32>
    %36 = tpu.matmul %33, %35, %cst_16 {dimension_numbers = #tpu.dot_dimension_numbers<[1], [0], [0], [1], [0, 0, 1, 1], [], []>} : vector<16x384xbf16>, vector<384x128xbf16>, vector<16x128xf32> -> vector<16x128xf32>
    %c5 = arith.constant 5 : index
    %c0_17 = arith.constant 0 : index
    %37 = vector.load %arg4[%c5, %c0_17] : memref<68x128xf32, #tpu.memory_space<vmem>>, vector<1x128xf32>
    %38 = vector.broadcast %37 : vector<1x128xf32> to vector<16x128xf32>
    %39 = arith.mulf %36, %38 : vector<16x128xf32>
    %c6 = arith.constant 6 : index
    %c0_18 = arith.constant 0 : index
    %40 = vector.load %arg4[%c6, %c0_18] : memref<68x128xf32, #tpu.memory_space<vmem>>, vector<1x128xf32>
    %41 = vector.broadcast %40 : vector<1x128xf32> to vector<16x128xf32>
    %42 = arith.addf %39, %41 : vector<16x128xf32>
    %cst_19 = arith.constant 0.000000e+00 : f32
    %43 = vector.broadcast %cst_19 : f32 to vector<16x128xf32>
    %44 = arith.cmpf oge, %42, %43 : vector<16x128xf32>
    %c7 = arith.constant 7 : index
    %c0_20 = arith.constant 0 : index
    %45 = vector.load %arg4[%c7, %c0_20] : memref<68x128xf32, #tpu.memory_space<vmem>>, vector<1x128xf32>
    %46 = vector.broadcast %45 : vector<1x128xf32> to vector<16x128xf32>
    %47 = arith.mulf %42, %46 : vector<16x128xf32>
    %48 = arith.select %44, %42, %47 : vector<16x128xi1>, vector<16x128xf32>
    %49 = arith.truncf %48 : vector<16x128xf32> to vector<16x128xbf16>
    %cst_21 = arith.constant 0.000000e+00 : bf16
    %50 = vector.broadcast %cst_21 : bf16 to vector<1x128xbf16>
    %51 = tpu.concatenate %50, %49, %50 in 0 : vector<1x128xbf16>, vector<16x128xbf16>, vector<1x128xbf16> -> vector<18x128xbf16>
    %52 = vector.extract_strided_slice %51 {offsets = [0, 0], sizes = [16, 128], strides = [1, 1]} : vector<18x128xbf16> to vector<16x128xbf16>
    %53 = vector.extract_strided_slice %51 {offsets = [1, 0], sizes = [16, 128], strides = [1, 1]} : vector<18x128xbf16> to vector<16x128xbf16>
    %54 = vector.extract_strided_slice %51 {offsets = [2, 0], sizes = [16, 128], strides = [1, 1]} : vector<18x128xbf16> to vector<16x128xbf16>
    %55 = tpu.concatenate %52, %53, %54 in 1 : vector<16x128xbf16>, vector<16x128xbf16>, vector<16x128xbf16> -> vector<16x384xbf16>
    %c2_22 = arith.constant 2 : index
    %c0_23 = arith.constant 0 : index
    %c0_24 = arith.constant 0 : index
    %56 = vector.load %arg2[%c2_22, %c0_23, %c0_24] : memref<17x384x128xbf16, #tpu.memory_space<vmem>>, vector<1x384x128xbf16>
    %57 = vector.shape_cast %56 : vector<1x384x128xbf16> to vector<384x128xbf16>
    %cst_25 = arith.constant dense<0.000000e+00> : vector<16x128xf32>
    %58 = tpu.matmul %55, %57, %cst_25 {dimension_numbers = #tpu.dot_dimension_numbers<[1], [0], [0], [1], [0, 0, 1, 1], [], []>} : vector<16x384xbf16>, vector<384x128xbf16>, vector<16x128xf32> -> vector<16x128xf32>
    %59 = tpu.iota {dimensions = array<i32: 0>} : vector<8x16xi32>
    %60 = tpu.iota {dimensions = array<i32: 1>} : vector<8x16xi32>
    %c2_i32 = arith.constant 2 : i32
    %61 = vector.broadcast %c2_i32 : i32 to vector<8x16xi32>
    %62 = arith.muli %61, %59 : vector<8x16xi32>
    %63 = arith.cmpi eq, %60, %62 : vector<8x16xi32>
    %64 = arith.extui %63 : vector<8x16xi1> to vector<8x16xi32>
    %65 = arith.sitofp %64 : vector<8x16xi32> to vector<8x16xf32>
    %cst_26 = arith.constant dense<0.000000e+00> : vector<8x128xf32>
    %66 = tpu.matmul %65, %58, %cst_26 {dimension_numbers = #tpu.dot_dimension_numbers<[1], [0], [0], [1], [0, 0, 1, 1], [], []>} : vector<8x16xf32>, vector<16x128xf32>, vector<8x128xf32> -> vector<8x128xf32>
    %67 = tpu.iota {dimensions = array<i32: 0>} : vector<8x16xi32>
    %68 = tpu.iota {dimensions = array<i32: 1>} : vector<8x16xi32>
    %c2_i32_27 = arith.constant 2 : i32
    %69 = vector.broadcast %c2_i32_27 : i32 to vector<8x16xi32>
    %70 = arith.muli %69, %67 : vector<8x16xi32>
    %71 = arith.cmpi eq, %68, %70 : vector<8x16xi32>
    %72 = arith.extui %71 : vector<8x16xi1> to vector<8x16xi32>
    %73 = arith.sitofp %72 : vector<8x16xi32> to vector<8x16xf32>
    %cst_28 = arith.constant dense<0.000000e+00> : vector<8x128xf32>
    %74 = tpu.matmul %73, %20, %cst_28 {dimension_numbers = #tpu.dot_dimension_numbers<[1], [0], [0], [1], [0, 0, 1, 1], [], []>} : vector<8x16xf32>, vector<16x128xf32>, vector<8x128xf32> -> vector<8x128xf32>
    %75 = arith.truncf %74 : vector<8x128xf32> to vector<8x128xbf16>
    %c0_29 = arith.constant 0 : index
    %c0_30 = arith.constant 0 : index
    %c0_31 = arith.constant 0 : index
    %76 = vector.load %arg3[%c0_29, %c0_30, %c0_31] : memref<4x128x128xbf16, #tpu.memory_space<vmem>>, vector<1x128x128xbf16>
    %77 = vector.shape_cast %76 : vector<1x128x128xbf16> to vector<128x128xbf16>
    %cst_32 = arith.constant dense<0.000000e+00> : vector<8x128xf32>
    %78 = tpu.matmul %75, %77, %cst_32 {dimension_numbers = #tpu.dot_dimension_numbers<[1], [0], [0], [1], [0, 0, 1, 1], [], []>} : vector<8x128xbf16>, vector<128x128xbf16>, vector<8x128xf32> -> vector<8x128xf32>
    %c10 = arith.constant 10 : index
    %c0_33 = arith.constant 0 : index
    %79 = vector.load %arg4[%c10, %c0_33] : memref<68x128xf32, #tpu.memory_space<vmem>>, vector<1x128xf32>
    %80 = vector.broadcast %79 : vector<1x128xf32> to vector<8x128xf32>
    %81 = arith.mulf %78, %80 : vector<8x128xf32>
    %c11 = arith.constant 11 : index
    %c0_34 = arith.constant 0 : index
    %82 = vector.load %arg4[%c11, %c0_34] : memref<68x128xf32, #tpu.memory_space<vmem>>, vector<1x128xf32>
    %83 = vector.broadcast %82 : vector<1x128xf32> to vector<8x128xf32>
    %84 = arith.addf %81, %83 : vector<8x128xf32>
    %c8 = arith.constant 8 : index
    %c0_35 = arith.constant 0 : index
    %85 = vector.load %arg4[%c8, %c0_35] : memref<68x128xf32, #tpu.memory_space<vmem>>, vector<1x128xf32>
    %86 = vector.broadcast %85 : vector<1x128xf32> to vector<8x128xf32>
    %87 = arith.mulf %66, %86 : vector<8x128xf32>
    %c9 = arith.constant 9 : index
    %c0_36 = arith.constant 0 : index
    %88 = vector.load %arg4[%c9, %c0_36] : memref<68x128xf32, #tpu.memory_space<vmem>>, vector<1x128xf32>
    %89 = vector.broadcast %88 : vector<1x128xf32> to vector<8x128xf32>
    %90 = arith.addf %87, %89 : vector<8x128xf32>
    %91 = arith.addf %90, %84 : vector<8x128xf32>
    %c12 = arith.constant 12 : index
    %c0_37 = arith.constant 0 : index
    %92 = vector.load %arg4[%c12, %c0_37] : memref<68x128xf32, #tpu.memory_space<vmem>>, vector<1x128xf32>
    %93 = vector.broadcast %92 : vector<1x128xf32> to vector<8x128xf32>
    %94 = arith.mulf %91, %93 : vector<8x128xf32>
    %c13 = arith.constant 13 : index
    %c0_38 = arith.constant 0 : index
    %95 = vector.load %arg4[%c13, %c0_38] : memref<68x128xf32, #tpu.memory_space<vmem>>, vector<1x128xf32>
    %96 = vector.broadcast %95 : vector<1x128xf32> to vector<8x128xf32>
    %97 = arith.addf %94, %96 : vector<8x128xf32>
    %98 = arith.truncf %97 : vector<8x128xf32> to vector<8x128xbf16>
    %cst_39 = arith.constant 0.000000e+00 : bf16
    %99 = vector.broadcast %cst_39 : bf16 to vector<1x128xbf16>
    %100 = tpu.concatenate %99, %98, %99 in 0 : vector<1x128xbf16>, vector<8x128xbf16>, vector<1x128xbf16> -> vector<10x128xbf16>
    %101 = vector.extract_strided_slice %100 {offsets = [0, 0], sizes = [8, 128], strides = [1, 1]} : vector<10x128xbf16> to vector<8x128xbf16>
    %102 = vector.extract_strided_slice %100 {offsets = [1, 0], sizes = [8, 128], strides = [1, 1]} : vector<10x128xbf16> to vector<8x128xbf16>
    %103 = vector.extract_strided_slice %100 {offsets = [2, 0], sizes = [8, 128], strides = [1, 1]} : vector<10x128xbf16> to vector<8x128xbf16>
    %104 = tpu.concatenate %101, %102, %103 in 1 : vector<8x128xbf16>, vector<8x128xbf16>, vector<8x128xbf16> -> vector<8x384xbf16>
    %c3_40 = arith.constant 3 : index
    %c0_41 = arith.constant 0 : index
    %c0_42 = arith.constant 0 : index
    %105 = vector.load %arg2[%c3_40, %c0_41, %c0_42] : memref<17x384x128xbf16, #tpu.memory_space<vmem>>, vector<1x384x128xbf16>
    %106 = vector.shape_cast %105 : vector<1x384x128xbf16> to vector<384x128xbf16>
    %cst_43 = arith.constant dense<0.000000e+00> : vector<8x128xf32>
    %107 = tpu.matmul %104, %106, %cst_43 {dimension_numbers = #tpu.dot_dimension_numbers<[1], [0], [0], [1], [0, 0, 1, 1], [], []>} : vector<8x384xbf16>, vector<384x128xbf16>, vector<8x128xf32> -> vector<8x128xf32>
    %c14 = arith.constant 14 : index
    %c0_44 = arith.constant 0 : index
    %108 = vector.load %arg4[%c14, %c0_44] : memref<68x128xf32, #tpu.memory_space<vmem>>, vector<1x128xf32>
    %109 = vector.broadcast %108 : vector<1x128xf32> to vector<8x128xf32>
    %110 = arith.mulf %107, %109 : vector<8x128xf32>
    %c15 = arith.constant 15 : index
    %c0_45 = arith.constant 0 : index
    %111 = vector.load %arg4[%c15, %c0_45] : memref<68x128xf32, #tpu.memory_space<vmem>>, vector<1x128xf32>
    %112 = vector.broadcast %111 : vector<1x128xf32> to vector<8x128xf32>
    %113 = arith.addf %110, %112 : vector<8x128xf32>
    %cst_46 = arith.constant 0.000000e+00 : f32
    %114 = vector.broadcast %cst_46 : f32 to vector<8x128xf32>
    %115 = arith.cmpf oge, %113, %114 : vector<8x128xf32>
    %c16 = arith.constant 16 : index
    %c0_47 = arith.constant 0 : index
    %116 = vector.load %arg4[%c16, %c0_47] : memref<68x128xf32, #tpu.memory_space<vmem>>, vector<1x128xf32>
    %117 = vector.broadcast %116 : vector<1x128xf32> to vector<8x128xf32>
    %118 = arith.mulf %113, %117 : vector<8x128xf32>
    %119 = arith.select %115, %113, %118 : vector<8x128xi1>, vector<8x128xf32>
    %120 = arith.truncf %119 : vector<8x128xf32> to vector<8x128xbf16>
    %cst_48 = arith.constant 0.000000e+00 : bf16
    %121 = vector.broadcast %cst_48 : bf16 to vector<1x128xbf16>
    %122 = tpu.concatenate %121, %120, %121 in 0 : vector<1x128xbf16>, vector<8x128xbf16>, vector<1x128xbf16> -> vector<10x128xbf16>
    %123 = vector.extract_strided_slice %122 {offsets = [0, 0], sizes = [8, 128], strides = [1, 1]} : vector<10x128xbf16> to vector<8x128xbf16>
    %124 = vector.extract_strided_slice %122 {offsets = [1, 0], sizes = [8, 128], strides = [1, 1]} : vector<10x128xbf16> to vector<8x128xbf16>
    %125 = vector.extract_strided_slice %122 {offsets = [2, 0], sizes = [8, 128], strides = [1, 1]} : vector<10x128xbf16> to vector<8x128xbf16>
    %126 = tpu.concatenate %123, %124, %125 in 1 : vector<8x128xbf16>, vector<8x128xbf16>, vector<8x128xbf16> -> vector<8x384xbf16>
    %c4_49 = arith.constant 4 : index
    %c0_50 = arith.constant 0 : index
    %c0_51 = arith.constant 0 : index
    %127 = vector.load %arg2[%c4_49, %c0_50, %c0_51] : memref<17x384x128xbf16, #tpu.memory_space<vmem>>, vector<1x384x128xbf16>
    %128 = vector.shape_cast %127 : vector<1x384x128xbf16> to vector<384x128xbf16>
    %cst_52 = arith.constant dense<0.000000e+00> : vector<8x128xf32>
    %129 = tpu.matmul %126, %128, %cst_52 {dimension_numbers = #tpu.dot_dimension_numbers<[1], [0], [0], [1], [0, 0, 1, 1], [], []>} : vector<8x384xbf16>, vector<384x128xbf16>, vector<8x128xf32> -> vector<8x128xf32>
    %c17 = arith.constant 17 : index
    %c0_53 = arith.constant 0 : index
    %130 = vector.load %arg4[%c17, %c0_53] : memref<68x128xf32, #tpu.memory_space<vmem>>, vector<1x128xf32>
    %131 = vector.broadcast %130 : vector<1x128xf32> to vector<8x128xf32>
    %132 = arith.mulf %129, %131 : vector<8x128xf32>
    %c18 = arith.constant 18 : index
    %c0_54 = arith.constant 0 : index
    %133 = vector.load %arg4[%c18, %c0_54] : memref<68x128xf32, #tpu.memory_space<vmem>>, vector<1x128xf32>
    %134 = vector.broadcast %133 : vector<1x128xf32> to vector<8x128xf32>
    %135 = arith.addf %132, %134 : vector<8x128xf32>
    %136 = arith.addf %135, %91 : vector<8x128xf32>
    %c19 = arith.constant 19 : index
    %c0_55 = arith.constant 0 : index
    %137 = vector.load %arg4[%c19, %c0_55] : memref<68x128xf32, #tpu.memory_space<vmem>>, vector<1x128xf32>
    %138 = vector.broadcast %137 : vector<1x128xf32> to vector<8x128xf32>
    %139 = arith.mulf %136, %138 : vector<8x128xf32>
    %c20 = arith.constant 20 : index
    %c0_56 = arith.constant 0 : index
    %140 = vector.load %arg4[%c20, %c0_56] : memref<68x128xf32, #tpu.memory_space<vmem>>, vector<1x128xf32>
    %141 = vector.broadcast %140 : vector<1x128xf32> to vector<8x128xf32>
    %142 = arith.addf %139, %141 : vector<8x128xf32>
    %143 = arith.truncf %142 : vector<8x128xf32> to vector<8x128xbf16>
    %cst_57 = arith.constant 0.000000e+00 : bf16
    %144 = vector.broadcast %cst_57 : bf16 to vector<1x128xbf16>
    %145 = tpu.concatenate %144, %143, %144 in 0 : vector<1x128xbf16>, vector<8x128xbf16>, vector<1x128xbf16> -> vector<10x128xbf16>
    %146 = vector.extract_strided_slice %145 {offsets = [0, 0], sizes = [8, 128], strides = [1, 1]} : vector<10x128xbf16> to vector<8x128xbf16>
    %147 = vector.extract_strided_slice %145 {offsets = [1, 0], sizes = [8, 128], strides = [1, 1]} : vector<10x128xbf16> to vector<8x128xbf16>
    %148 = vector.extract_strided_slice %145 {offsets = [2, 0], sizes = [8, 128], strides = [1, 1]} : vector<10x128xbf16> to vector<8x128xbf16>
    %149 = tpu.concatenate %146, %147, %148 in 1 : vector<8x128xbf16>, vector<8x128xbf16>, vector<8x128xbf16> -> vector<8x384xbf16>
    %c5_58 = arith.constant 5 : index
    %c0_59 = arith.constant 0 : index
    %c0_60 = arith.constant 0 : index
    %150 = vector.load %arg2[%c5_58, %c0_59, %c0_60] : memref<17x384x128xbf16, #tpu.memory_space<vmem>>, vector<1x384x128xbf16>
    %151 = vector.shape_cast %150 : vector<1x384x128xbf16> to vector<384x128xbf16>
    %cst_61 = arith.constant dense<0.000000e+00> : vector<8x128xf32>
    %152 = tpu.matmul %149, %151, %cst_61 {dimension_numbers = #tpu.dot_dimension_numbers<[1], [0], [0], [1], [0, 0, 1, 1], [], []>} : vector<8x384xbf16>, vector<384x128xbf16>, vector<8x128xf32> -> vector<8x128xf32>
    %c21 = arith.constant 21 : index
    %c0_62 = arith.constant 0 : index
    %153 = vector.load %arg4[%c21, %c0_62] : memref<68x128xf32, #tpu.memory_space<vmem>>, vector<1x128xf32>
    %154 = vector.broadcast %153 : vector<1x128xf32> to vector<8x128xf32>
    %155 = arith.mulf %152, %154 : vector<8x128xf32>
    %c22 = arith.constant 22 : index
    %c0_63 = arith.constant 0 : index
    %156 = vector.load %arg4[%c22, %c0_63] : memref<68x128xf32, #tpu.memory_space<vmem>>, vector<1x128xf32>
    %157 = vector.broadcast %156 : vector<1x128xf32> to vector<8x128xf32>
    %158 = arith.addf %155, %157 : vector<8x128xf32>
    %cst_64 = arith.constant 0.000000e+00 : f32
    %159 = vector.broadcast %cst_64 : f32 to vector<8x128xf32>
    %160 = arith.cmpf oge, %158, %159 : vector<8x128xf32>
    %c23 = arith.constant 23 : index
    %c0_65 = arith.constant 0 : index
    %161 = vector.load %arg4[%c23, %c0_65] : memref<68x128xf32, #tpu.memory_space<vmem>>, vector<1x128xf32>
    %162 = vector.broadcast %161 : vector<1x128xf32> to vector<8x128xf32>
    %163 = arith.mulf %158, %162 : vector<8x128xf32>
    %164 = arith.select %160, %158, %163 : vector<8x128xi1>, vector<8x128xf32>
    %165 = arith.truncf %164 : vector<8x128xf32> to vector<8x128xbf16>
    %cst_66 = arith.constant 0.000000e+00 : bf16
    %166 = vector.broadcast %cst_66 : bf16 to vector<1x128xbf16>
    %167 = tpu.concatenate %166, %165, %166 in 0 : vector<1x128xbf16>, vector<8x128xbf16>, vector<1x128xbf16> -> vector<10x128xbf16>
    %168 = vector.extract_strided_slice %167 {offsets = [0, 0], sizes = [8, 128], strides = [1, 1]} : vector<10x128xbf16> to vector<8x128xbf16>
    %169 = vector.extract_strided_slice %167 {offsets = [1, 0], sizes = [8, 128], strides = [1, 1]} : vector<10x128xbf16> to vector<8x128xbf16>
    %170 = vector.extract_strided_slice %167 {offsets = [2, 0], sizes = [8, 128], strides = [1, 1]} : vector<10x128xbf16> to vector<8x128xbf16>
    %171 = tpu.concatenate %168, %169, %170 in 1 : vector<8x128xbf16>, vector<8x128xbf16>, vector<8x128xbf16> -> vector<8x384xbf16>
    %c6_67 = arith.constant 6 : index
    %c0_68 = arith.constant 0 : index
    %c0_69 = arith.constant 0 : index
    %172 = vector.load %arg2[%c6_67, %c0_68, %c0_69] : memref<17x384x128xbf16, #tpu.memory_space<vmem>>, vector<1x384x128xbf16>
    %173 = vector.shape_cast %172 : vector<1x384x128xbf16> to vector<384x128xbf16>
    %cst_70 = arith.constant dense<0.000000e+00> : vector<8x128xf32>
    %174 = tpu.matmul %171, %173, %cst_70 {dimension_numbers = #tpu.dot_dimension_numbers<[1], [0], [0], [1], [0, 0, 1, 1], [], []>} : vector<8x384xbf16>, vector<384x128xbf16>, vector<8x128xf32> -> vector<8x128xf32>
    %175 = tpu.iota {dimensions = array<i32: 0>} : vector<4x8xi32>
    %176 = tpu.iota {dimensions = array<i32: 1>} : vector<4x8xi32>
    %c2_i32_71 = arith.constant 2 : i32
    %177 = vector.broadcast %c2_i32_71 : i32 to vector<4x8xi32>
    %178 = arith.muli %177, %175 : vector<4x8xi32>
    %179 = arith.cmpi eq, %176, %178 : vector<4x8xi32>
    %180 = arith.extui %179 : vector<4x8xi1> to vector<4x8xi32>
    %181 = arith.sitofp %180 : vector<4x8xi32> to vector<4x8xf32>
    %cst_72 = arith.constant dense<0.000000e+00> : vector<4x128xf32>
    %182 = tpu.matmul %181, %174, %cst_72 {dimension_numbers = #tpu.dot_dimension_numbers<[1], [0], [0], [1], [0, 0, 1, 1], [], []>} : vector<4x8xf32>, vector<8x128xf32>, vector<4x128xf32> -> vector<4x128xf32>
    %183 = tpu.iota {dimensions = array<i32: 0>} : vector<4x8xi32>
    %184 = tpu.iota {dimensions = array<i32: 1>} : vector<4x8xi32>
    %c2_i32_73 = arith.constant 2 : i32
    %185 = vector.broadcast %c2_i32_73 : i32 to vector<4x8xi32>
    %186 = arith.muli %185, %183 : vector<4x8xi32>
    %187 = arith.cmpi eq, %184, %186 : vector<4x8xi32>
    %188 = arith.extui %187 : vector<4x8xi1> to vector<4x8xi32>
    %189 = arith.sitofp %188 : vector<4x8xi32> to vector<4x8xf32>
    %cst_74 = arith.constant dense<0.000000e+00> : vector<4x128xf32>
    %190 = tpu.matmul %189, %136, %cst_74 {dimension_numbers = #tpu.dot_dimension_numbers<[1], [0], [0], [1], [0, 0, 1, 1], [], []>} : vector<4x8xf32>, vector<8x128xf32>, vector<4x128xf32> -> vector<4x128xf32>
    %191 = arith.truncf %190 : vector<4x128xf32> to vector<4x128xbf16>
    %c1_75 = arith.constant 1 : index
    %c0_76 = arith.constant 0 : index
    %c0_77 = arith.constant 0 : index
    %192 = vector.load %arg3[%c1_75, %c0_76, %c0_77] : memref<4x128x128xbf16, #tpu.memory_space<vmem>>, vector<1x128x128xbf16>
    %193 = vector.shape_cast %192 : vector<1x128x128xbf16> to vector<128x128xbf16>
    %cst_78 = arith.constant dense<0.000000e+00> : vector<4x128xf32>
    %194 = tpu.matmul %191, %193, %cst_78 {dimension_numbers = #tpu.dot_dimension_numbers<[1], [0], [0], [1], [0, 0, 1, 1], [], []>} : vector<4x128xbf16>, vector<128x128xbf16>, vector<4x128xf32> -> vector<4x128xf32>
    %c26 = arith.constant 26 : index
    %c0_79 = arith.constant 0 : index
    %195 = vector.load %arg4[%c26, %c0_79] : memref<68x128xf32, #tpu.memory_space<vmem>>, vector<1x128xf32>
    %196 = vector.broadcast %195 : vector<1x128xf32> to vector<4x128xf32>
    %197 = arith.mulf %194, %196 : vector<4x128xf32>
    %c27 = arith.constant 27 : index
    %c0_80 = arith.constant 0 : index
    %198 = vector.load %arg4[%c27, %c0_80] : memref<68x128xf32, #tpu.memory_space<vmem>>, vector<1x128xf32>
    %199 = vector.broadcast %198 : vector<1x128xf32> to vector<4x128xf32>
    %200 = arith.addf %197, %199 : vector<4x128xf32>
    %c24 = arith.constant 24 : index
    %c0_81 = arith.constant 0 : index
    %201 = vector.load %arg4[%c24, %c0_81] : memref<68x128xf32, #tpu.memory_space<vmem>>, vector<1x128xf32>
    %202 = vector.broadcast %201 : vector<1x128xf32> to vector<4x128xf32>
    %203 = arith.mulf %182, %202 : vector<4x128xf32>
    %c25 = arith.constant 25 : index
    %c0_82 = arith.constant 0 : index
    %204 = vector.load %arg4[%c25, %c0_82] : memref<68x128xf32, #tpu.memory_space<vmem>>, vector<1x128xf32>
    %205 = vector.broadcast %204 : vector<1x128xf32> to vector<4x128xf32>
    %206 = arith.addf %203, %205 : vector<4x128xf32>
    %207 = arith.addf %206, %200 : vector<4x128xf32>
    %c28 = arith.constant 28 : index
    %c0_83 = arith.constant 0 : index
    %208 = vector.load %arg4[%c28, %c0_83] : memref<68x128xf32, #tpu.memory_space<vmem>>, vector<1x128xf32>
    %209 = vector.broadcast %208 : vector<1x128xf32> to vector<4x128xf32>
    %210 = arith.mulf %207, %209 : vector<4x128xf32>
    %c29 = arith.constant 29 : index
    %c0_84 = arith.constant 0 : index
    %211 = vector.load %arg4[%c29, %c0_84] : memref<68x128xf32, #tpu.memory_space<vmem>>, vector<1x128xf32>
    %212 = vector.broadcast %211 : vector<1x128xf32> to vector<4x128xf32>
    %213 = arith.addf %210, %212 : vector<4x128xf32>
    %214 = arith.truncf %213 : vector<4x128xf32> to vector<4x128xbf16>
    %cst_85 = arith.constant 0.000000e+00 : bf16
    %215 = vector.broadcast %cst_85 : bf16 to vector<1x128xbf16>
    %216 = tpu.concatenate %215, %214, %215 in 0 : vector<1x128xbf16>, vector<4x128xbf16>, vector<1x128xbf16> -> vector<6x128xbf16>
    %217 = vector.extract_strided_slice %216 {offsets = [0, 0], sizes = [4, 128], strides = [1, 1]} : vector<6x128xbf16> to vector<4x128xbf16>
    %218 = vector.extract_strided_slice %216 {offsets = [1, 0], sizes = [4, 128], strides = [1, 1]} : vector<6x128xbf16> to vector<4x128xbf16>
    %219 = vector.extract_strided_slice %216 {offsets = [2, 0], sizes = [4, 128], strides = [1, 1]} : vector<6x128xbf16> to vector<4x128xbf16>
    %220 = tpu.concatenate %217, %218, %219 in 1 : vector<4x128xbf16>, vector<4x128xbf16>, vector<4x128xbf16> -> vector<4x384xbf16>
    %c7_86 = arith.constant 7 : index
    %c0_87 = arith.constant 0 : index
    %c0_88 = arith.constant 0 : index
    %221 = vector.load %arg2[%c7_86, %c0_87, %c0_88] : memref<17x384x128xbf16, #tpu.memory_space<vmem>>, vector<1x384x128xbf16>
    %222 = vector.shape_cast %221 : vector<1x384x128xbf16> to vector<384x128xbf16>
    %cst_89 = arith.constant dense<0.000000e+00> : vector<4x128xf32>
    %223 = tpu.matmul %220, %222, %cst_89 {dimension_numbers = #tpu.dot_dimension_numbers<[1], [0], [0], [1], [0, 0, 1, 1], [], []>} : vector<4x384xbf16>, vector<384x128xbf16>, vector<4x128xf32> -> vector<4x128xf32>
    %c30 = arith.constant 30 : index
    %c0_90 = arith.constant 0 : index
    %224 = vector.load %arg4[%c30, %c0_90] : memref<68x128xf32, #tpu.memory_space<vmem>>, vector<1x128xf32>
    %225 = vector.broadcast %224 : vector<1x128xf32> to vector<4x128xf32>
    %226 = arith.mulf %223, %225 : vector<4x128xf32>
    %c31 = arith.constant 31 : index
    %c0_91 = arith.constant 0 : index
    %227 = vector.load %arg4[%c31, %c0_91] : memref<68x128xf32, #tpu.memory_space<vmem>>, vector<1x128xf32>
    %228 = vector.broadcast %227 : vector<1x128xf32> to vector<4x128xf32>
    %229 = arith.addf %226, %228 : vector<4x128xf32>
    %cst_92 = arith.constant 0.000000e+00 : f32
    %230 = vector.broadcast %cst_92 : f32 to vector<4x128xf32>
    %231 = arith.cmpf oge, %229, %230 : vector<4x128xf32>
    %c32 = arith.constant 32 : index
    %c0_93 = arith.constant 0 : index
    %232 = vector.load %arg4[%c32, %c0_93] : memref<68x128xf32, #tpu.memory_space<vmem>>, vector<1x128xf32>
    %233 = vector.broadcast %232 : vector<1x128xf32> to vector<4x128xf32>
    %234 = arith.mulf %229, %233 : vector<4x128xf32>
    %235 = arith.select %231, %229, %234 : vector<4x128xi1>, vector<4x128xf32>
    %236 = arith.truncf %235 : vector<4x128xf32> to vector<4x128xbf16>
    %cst_94 = arith.constant 0.000000e+00 : bf16
    %237 = vector.broadcast %cst_94 : bf16 to vector<1x128xbf16>
    %238 = tpu.concatenate %237, %236, %237 in 0 : vector<1x128xbf16>, vector<4x128xbf16>, vector<1x128xbf16> -> vector<6x128xbf16>
    %239 = vector.extract_strided_slice %238 {offsets = [0, 0], sizes = [4, 128], strides = [1, 1]} : vector<6x128xbf16> to vector<4x128xbf16>
    %240 = vector.extract_strided_slice %238 {offsets = [1, 0], sizes = [4, 128], strides = [1, 1]} : vector<6x128xbf16> to vector<4x128xbf16>
    %241 = vector.extract_strided_slice %238 {offsets = [2, 0], sizes = [4, 128], strides = [1, 1]} : vector<6x128xbf16> to vector<4x128xbf16>
    %242 = tpu.concatenate %239, %240, %241 in 1 : vector<4x128xbf16>, vector<4x128xbf16>, vector<4x128xbf16> -> vector<4x384xbf16>
    %c8_95 = arith.constant 8 : index
    %c0_96 = arith.constant 0 : index
    %c0_97 = arith.constant 0 : index
    %243 = vector.load %arg2[%c8_95, %c0_96, %c0_97] : memref<17x384x128xbf16, #tpu.memory_space<vmem>>, vector<1x384x128xbf16>
    %244 = vector.shape_cast %243 : vector<1x384x128xbf16> to vector<384x128xbf16>
    %cst_98 = arith.constant dense<0.000000e+00> : vector<4x128xf32>
    %245 = tpu.matmul %242, %244, %cst_98 {dimension_numbers = #tpu.dot_dimension_numbers<[1], [0], [0], [1], [0, 0, 1, 1], [], []>} : vector<4x384xbf16>, vector<384x128xbf16>, vector<4x128xf32> -> vector<4x128xf32>
    %c33 = arith.constant 33 : index
    %c0_99 = arith.constant 0 : index
    %246 = vector.load %arg4[%c33, %c0_99] : memref<68x128xf32, #tpu.memory_space<vmem>>, vector<1x128xf32>
    %247 = vector.broadcast %246 : vector<1x128xf32> to vector<4x128xf32>
    %248 = arith.mulf %245, %247 : vector<4x128xf32>
    %c34 = arith.constant 34 : index
    %c0_100 = arith.constant 0 : index
    %249 = vector.load %arg4[%c34, %c0_100] : memref<68x128xf32, #tpu.memory_space<vmem>>, vector<1x128xf32>
    %250 = vector.broadcast %249 : vector<1x128xf32> to vector<4x128xf32>
    %251 = arith.addf %248, %250 : vector<4x128xf32>
    %252 = arith.addf %251, %207 : vector<4x128xf32>
    %c35 = arith.constant 35 : index
    %c0_101 = arith.constant 0 : index
    %253 = vector.load %arg4[%c35, %c0_101] : memref<68x128xf32, #tpu.memory_space<vmem>>, vector<1x128xf32>
    %254 = vector.broadcast %253 : vector<1x128xf32> to vector<4x128xf32>
    %255 = arith.mulf %252, %254 : vector<4x128xf32>
    %c36 = arith.constant 36 : index
    %c0_102 = arith.constant 0 : index
    %256 = vector.load %arg4[%c36, %c0_102] : memref<68x128xf32, #tpu.memory_space<vmem>>, vector<1x128xf32>
    %257 = vector.broadcast %256 : vector<1x128xf32> to vector<4x128xf32>
    %258 = arith.addf %255, %257 : vector<4x128xf32>
    %259 = arith.truncf %258 : vector<4x128xf32> to vector<4x128xbf16>
    %cst_103 = arith.constant 0.000000e+00 : bf16
    %260 = vector.broadcast %cst_103 : bf16 to vector<1x128xbf16>
    %261 = tpu.concatenate %260, %259, %260 in 0 : vector<1x128xbf16>, vector<4x128xbf16>, vector<1x128xbf16> -> vector<6x128xbf16>
    %262 = vector.extract_strided_slice %261 {offsets = [0, 0], sizes = [4, 128], strides = [1, 1]} : vector<6x128xbf16> to vector<4x128xbf16>
    %263 = vector.extract_strided_slice %261 {offsets = [1, 0], sizes = [4, 128], strides = [1, 1]} : vector<6x128xbf16> to vector<4x128xbf16>
    %264 = vector.extract_strided_slice %261 {offsets = [2, 0], sizes = [4, 128], strides = [1, 1]} : vector<6x128xbf16> to vector<4x128xbf16>
    %265 = tpu.concatenate %262, %263, %264 in 1 : vector<4x128xbf16>, vector<4x128xbf16>, vector<4x128xbf16> -> vector<4x384xbf16>
    %c9_104 = arith.constant 9 : index
    %c0_105 = arith.constant 0 : index
    %c0_106 = arith.constant 0 : index
    %266 = vector.load %arg2[%c9_104, %c0_105, %c0_106] : memref<17x384x128xbf16, #tpu.memory_space<vmem>>, vector<1x384x128xbf16>
    %267 = vector.shape_cast %266 : vector<1x384x128xbf16> to vector<384x128xbf16>
    %cst_107 = arith.constant dense<0.000000e+00> : vector<4x128xf32>
    %268 = tpu.matmul %265, %267, %cst_107 {dimension_numbers = #tpu.dot_dimension_numbers<[1], [0], [0], [1], [0, 0, 1, 1], [], []>} : vector<4x384xbf16>, vector<384x128xbf16>, vector<4x128xf32> -> vector<4x128xf32>
    %c37 = arith.constant 37 : index
    %c0_108 = arith.constant 0 : index
    %269 = vector.load %arg4[%c37, %c0_108] : memref<68x128xf32, #tpu.memory_space<vmem>>, vector<1x128xf32>
    %270 = vector.broadcast %269 : vector<1x128xf32> to vector<4x128xf32>
    %271 = arith.mulf %268, %270 : vector<4x128xf32>
    %c38 = arith.constant 38 : index
    %c0_109 = arith.constant 0 : index
    %272 = vector.load %arg4[%c38, %c0_109] : memref<68x128xf32, #tpu.memory_space<vmem>>, vector<1x128xf32>
    %273 = vector.broadcast %272 : vector<1x128xf32> to vector<4x128xf32>
    %274 = arith.addf %271, %273 : vector<4x128xf32>
    %cst_110 = arith.constant 0.000000e+00 : f32
    %275 = vector.broadcast %cst_110 : f32 to vector<4x128xf32>
    %276 = arith.cmpf oge, %274, %275 : vector<4x128xf32>
    %c39 = arith.constant 39 : index
    %c0_111 = arith.constant 0 : index
    %277 = vector.load %arg4[%c39, %c0_111] : memref<68x128xf32, #tpu.memory_space<vmem>>, vector<1x128xf32>
    %278 = vector.broadcast %277 : vector<1x128xf32> to vector<4x128xf32>
    %279 = arith.mulf %274, %278 : vector<4x128xf32>
    %280 = arith.select %276, %274, %279 : vector<4x128xi1>, vector<4x128xf32>
    %281 = arith.truncf %280 : vector<4x128xf32> to vector<4x128xbf16>
    %cst_112 = arith.constant 0.000000e+00 : bf16
    %282 = vector.broadcast %cst_112 : bf16 to vector<1x128xbf16>
    %283 = tpu.concatenate %282, %281, %282 in 0 : vector<1x128xbf16>, vector<4x128xbf16>, vector<1x128xbf16> -> vector<6x128xbf16>
    %284 = vector.extract_strided_slice %283 {offsets = [0, 0], sizes = [4, 128], strides = [1, 1]} : vector<6x128xbf16> to vector<4x128xbf16>
    %285 = vector.extract_strided_slice %283 {offsets = [1, 0], sizes = [4, 128], strides = [1, 1]} : vector<6x128xbf16> to vector<4x128xbf16>
    %286 = vector.extract_strided_slice %283 {offsets = [2, 0], sizes = [4, 128], strides = [1, 1]} : vector<6x128xbf16> to vector<4x128xbf16>
    %287 = tpu.concatenate %284, %285, %286 in 1 : vector<4x128xbf16>, vector<4x128xbf16>, vector<4x128xbf16> -> vector<4x384xbf16>
    %c10_113 = arith.constant 10 : index
    %c0_114 = arith.constant 0 : index
    %c0_115 = arith.constant 0 : index
    %288 = vector.load %arg2[%c10_113, %c0_114, %c0_115] : memref<17x384x128xbf16, #tpu.memory_space<vmem>>, vector<1x384x128xbf16>
    %289 = vector.shape_cast %288 : vector<1x384x128xbf16> to vector<384x128xbf16>
    %cst_116 = arith.constant dense<0.000000e+00> : vector<4x128xf32>
    %290 = tpu.matmul %287, %289, %cst_116 {dimension_numbers = #tpu.dot_dimension_numbers<[1], [0], [0], [1], [0, 0, 1, 1], [], []>} : vector<4x384xbf16>, vector<384x128xbf16>, vector<4x128xf32> -> vector<4x128xf32>
    %291 = tpu.iota {dimensions = array<i32: 0>} : vector<2x4xi32>
    %292 = tpu.iota {dimensions = array<i32: 1>} : vector<2x4xi32>
    %c2_i32_117 = arith.constant 2 : i32
    %293 = vector.broadcast %c2_i32_117 : i32 to vector<2x4xi32>
    %294 = arith.muli %293, %291 : vector<2x4xi32>
    %295 = arith.cmpi eq, %292, %294 : vector<2x4xi32>
    %296 = arith.extui %295 : vector<2x4xi1> to vector<2x4xi32>
    %297 = arith.sitofp %296 : vector<2x4xi32> to vector<2x4xf32>
    %cst_118 = arith.constant dense<0.000000e+00> : vector<2x128xf32>
    %298 = tpu.matmul %297, %290, %cst_118 {dimension_numbers = #tpu.dot_dimension_numbers<[1], [0], [0], [1], [0, 0, 1, 1], [], []>} : vector<2x4xf32>, vector<4x128xf32>, vector<2x128xf32> -> vector<2x128xf32>
    %299 = tpu.iota {dimensions = array<i32: 0>} : vector<2x4xi32>
    %300 = tpu.iota {dimensions = array<i32: 1>} : vector<2x4xi32>
    %c2_i32_119 = arith.constant 2 : i32
    %301 = vector.broadcast %c2_i32_119 : i32 to vector<2x4xi32>
    %302 = arith.muli %301, %299 : vector<2x4xi32>
    %303 = arith.cmpi eq, %300, %302 : vector<2x4xi32>
    %304 = arith.extui %303 : vector<2x4xi1> to vector<2x4xi32>
    %305 = arith.sitofp %304 : vector<2x4xi32> to vector<2x4xf32>
    %cst_120 = arith.constant dense<0.000000e+00> : vector<2x128xf32>
    %306 = tpu.matmul %305, %252, %cst_120 {dimension_numbers = #tpu.dot_dimension_numbers<[1], [0], [0], [1], [0, 0, 1, 1], [], []>} : vector<2x4xf32>, vector<4x128xf32>, vector<2x128xf32> -> vector<2x128xf32>
    %307 = arith.truncf %306 : vector<2x128xf32> to vector<2x128xbf16>
    %c2_121 = arith.constant 2 : index
    %c0_122 = arith.constant 0 : index
    %c0_123 = arith.constant 0 : index
    %308 = vector.load %arg3[%c2_121, %c0_122, %c0_123] : memref<4x128x128xbf16, #tpu.memory_space<vmem>>, vector<1x128x128xbf16>
    %309 = vector.shape_cast %308 : vector<1x128x128xbf16> to vector<128x128xbf16>
    %cst_124 = arith.constant dense<0.000000e+00> : vector<2x128xf32>
    %310 = tpu.matmul %307, %309, %cst_124 {dimension_numbers = #tpu.dot_dimension_numbers<[1], [0], [0], [1], [0, 0, 1, 1], [], []>} : vector<2x128xbf16>, vector<128x128xbf16>, vector<2x128xf32> -> vector<2x128xf32>
    %c42 = arith.constant 42 : index
    %c0_125 = arith.constant 0 : index
    %311 = vector.load %arg4[%c42, %c0_125] : memref<68x128xf32, #tpu.memory_space<vmem>>, vector<1x128xf32>
    %312 = vector.broadcast %311 : vector<1x128xf32> to vector<2x128xf32>
    %313 = arith.mulf %310, %312 : vector<2x128xf32>
    %c43 = arith.constant 43 : index
    %c0_126 = arith.constant 0 : index
    %314 = vector.load %arg4[%c43, %c0_126] : memref<68x128xf32, #tpu.memory_space<vmem>>, vector<1x128xf32>
    %315 = vector.broadcast %314 : vector<1x128xf32> to vector<2x128xf32>
    %316 = arith.addf %313, %315 : vector<2x128xf32>
    %c40 = arith.constant 40 : index
    %c0_127 = arith.constant 0 : index
    %317 = vector.load %arg4[%c40, %c0_127] : memref<68x128xf32, #tpu.memory_space<vmem>>, vector<1x128xf32>
    %318 = vector.broadcast %317 : vector<1x128xf32> to vector<2x128xf32>
    %319 = arith.mulf %298, %318 : vector<2x128xf32>
    %c41 = arith.constant 41 : index
    %c0_128 = arith.constant 0 : index
    %320 = vector.load %arg4[%c41, %c0_128] : memref<68x128xf32, #tpu.memory_space<vmem>>, vector<1x128xf32>
    %321 = vector.broadcast %320 : vector<1x128xf32> to vector<2x128xf32>
    %322 = arith.addf %319, %321 : vector<2x128xf32>
    %323 = arith.addf %322, %316 : vector<2x128xf32>
    %c44 = arith.constant 44 : index
    %c0_129 = arith.constant 0 : index
    %324 = vector.load %arg4[%c44, %c0_129] : memref<68x128xf32, #tpu.memory_space<vmem>>, vector<1x128xf32>
    %325 = vector.broadcast %324 : vector<1x128xf32> to vector<2x128xf32>
    %326 = arith.mulf %323, %325 : vector<2x128xf32>
    %c45 = arith.constant 45 : index
    %c0_130 = arith.constant 0 : index
    %327 = vector.load %arg4[%c45, %c0_130] : memref<68x128xf32, #tpu.memory_space<vmem>>, vector<1x128xf32>
    %328 = vector.broadcast %327 : vector<1x128xf32> to vector<2x128xf32>
    %329 = arith.addf %326, %328 : vector<2x128xf32>
    %330 = arith.truncf %329 : vector<2x128xf32> to vector<2x128xbf16>
    %cst_131 = arith.constant 0.000000e+00 : bf16
    %331 = vector.broadcast %cst_131 : bf16 to vector<1x128xbf16>
    %332 = tpu.concatenate %331, %330, %331 in 0 : vector<1x128xbf16>, vector<2x128xbf16>, vector<1x128xbf16> -> vector<4x128xbf16>
    %333 = vector.extract_strided_slice %332 {offsets = [0, 0], sizes = [2, 128], strides = [1, 1]} : vector<4x128xbf16> to vector<2x128xbf16>
    %334 = vector.extract_strided_slice %332 {offsets = [1, 0], sizes = [2, 128], strides = [1, 1]} : vector<4x128xbf16> to vector<2x128xbf16>
    %335 = vector.extract_strided_slice %332 {offsets = [2, 0], sizes = [2, 128], strides = [1, 1]} : vector<4x128xbf16> to vector<2x128xbf16>
    %336 = tpu.concatenate %333, %334, %335 in 1 : vector<2x128xbf16>, vector<2x128xbf16>, vector<2x128xbf16> -> vector<2x384xbf16>
    %c11_132 = arith.constant 11 : index
    %c0_133 = arith.constant 0 : index
    %c0_134 = arith.constant 0 : index
    %337 = vector.load %arg2[%c11_132, %c0_133, %c0_134] : memref<17x384x128xbf16, #tpu.memory_space<vmem>>, vector<1x384x128xbf16>
    %338 = vector.shape_cast %337 : vector<1x384x128xbf16> to vector<384x128xbf16>
    %cst_135 = arith.constant dense<0.000000e+00> : vector<2x128xf32>
    %339 = tpu.matmul %336, %338, %cst_135 {dimension_numbers = #tpu.dot_dimension_numbers<[1], [0], [0], [1], [0, 0, 1, 1], [], []>} : vector<2x384xbf16>, vector<384x128xbf16>, vector<2x128xf32> -> vector<2x128xf32>
    %c46 = arith.constant 46 : index
    %c0_136 = arith.constant 0 : index
    %340 = vector.load %arg4[%c46, %c0_136] : memref<68x128xf32, #tpu.memory_space<vmem>>, vector<1x128xf32>
    %341 = vector.broadcast %340 : vector<1x128xf32> to vector<2x128xf32>
    %342 = arith.mulf %339, %341 : vector<2x128xf32>
    %c47 = arith.constant 47 : index
    %c0_137 = arith.constant 0 : index
    %343 = vector.load %arg4[%c47, %c0_137] : memref<68x128xf32, #tpu.memory_space<vmem>>, vector<1x128xf32>
    %344 = vector.broadcast %343 : vector<1x128xf32> to vector<2x128xf32>
    %345 = arith.addf %342, %344 : vector<2x128xf32>
    %cst_138 = arith.constant 0.000000e+00 : f32
    %346 = vector.broadcast %cst_138 : f32 to vector<2x128xf32>
    %347 = arith.cmpf oge, %345, %346 : vector<2x128xf32>
    %c48 = arith.constant 48 : index
    %c0_139 = arith.constant 0 : index
    %348 = vector.load %arg4[%c48, %c0_139] : memref<68x128xf32, #tpu.memory_space<vmem>>, vector<1x128xf32>
    %349 = vector.broadcast %348 : vector<1x128xf32> to vector<2x128xf32>
    %350 = arith.mulf %345, %349 : vector<2x128xf32>
    %351 = arith.select %347, %345, %350 : vector<2x128xi1>, vector<2x128xf32>
    %352 = arith.truncf %351 : vector<2x128xf32> to vector<2x128xbf16>
    %cst_140 = arith.constant 0.000000e+00 : bf16
    %353 = vector.broadcast %cst_140 : bf16 to vector<1x128xbf16>
    %354 = tpu.concatenate %353, %352, %353 in 0 : vector<1x128xbf16>, vector<2x128xbf16>, vector<1x128xbf16> -> vector<4x128xbf16>
    %355 = vector.extract_strided_slice %354 {offsets = [0, 0], sizes = [2, 128], strides = [1, 1]} : vector<4x128xbf16> to vector<2x128xbf16>
    %356 = vector.extract_strided_slice %354 {offsets = [1, 0], sizes = [2, 128], strides = [1, 1]} : vector<4x128xbf16> to vector<2x128xbf16>
    %357 = vector.extract_strided_slice %354 {offsets = [2, 0], sizes = [2, 128], strides = [1, 1]} : vector<4x128xbf16> to vector<2x128xbf16>
    %358 = tpu.concatenate %355, %356, %357 in 1 : vector<2x128xbf16>, vector<2x128xbf16>, vector<2x128xbf16> -> vector<2x384xbf16>
    %c12_141 = arith.constant 12 : index
    %c0_142 = arith.constant 0 : index
    %c0_143 = arith.constant 0 : index
    %359 = vector.load %arg2[%c12_141, %c0_142, %c0_143] : memref<17x384x128xbf16, #tpu.memory_space<vmem>>, vector<1x384x128xbf16>
    %360 = vector.shape_cast %359 : vector<1x384x128xbf16> to vector<384x128xbf16>
    %cst_144 = arith.constant dense<0.000000e+00> : vector<2x128xf32>
    %361 = tpu.matmul %358, %360, %cst_144 {dimension_numbers = #tpu.dot_dimension_numbers<[1], [0], [0], [1], [0, 0, 1, 1], [], []>} : vector<2x384xbf16>, vector<384x128xbf16>, vector<2x128xf32> -> vector<2x128xf32>
    %c49 = arith.constant 49 : index
    %c0_145 = arith.constant 0 : index
    %362 = vector.load %arg4[%c49, %c0_145] : memref<68x128xf32, #tpu.memory_space<vmem>>, vector<1x128xf32>
    %363 = vector.broadcast %362 : vector<1x128xf32> to vector<2x128xf32>
    %364 = arith.mulf %361, %363 : vector<2x128xf32>
    %c50 = arith.constant 50 : index
    %c0_146 = arith.constant 0 : index
    %365 = vector.load %arg4[%c50, %c0_146] : memref<68x128xf32, #tpu.memory_space<vmem>>, vector<1x128xf32>
    %366 = vector.broadcast %365 : vector<1x128xf32> to vector<2x128xf32>
    %367 = arith.addf %364, %366 : vector<2x128xf32>
    %368 = arith.addf %367, %323 : vector<2x128xf32>
    %c51 = arith.constant 51 : index
    %c0_147 = arith.constant 0 : index
    %369 = vector.load %arg4[%c51, %c0_147] : memref<68x128xf32, #tpu.memory_space<vmem>>, vector<1x128xf32>
    %370 = vector.broadcast %369 : vector<1x128xf32> to vector<2x128xf32>
    %371 = arith.mulf %368, %370 : vector<2x128xf32>
    %c52 = arith.constant 52 : index
    %c0_148 = arith.constant 0 : index
    %372 = vector.load %arg4[%c52, %c0_148] : memref<68x128xf32, #tpu.memory_space<vmem>>, vector<1x128xf32>
    %373 = vector.broadcast %372 : vector<1x128xf32> to vector<2x128xf32>
    %374 = arith.addf %371, %373 : vector<2x128xf32>
    %375 = arith.truncf %374 : vector<2x128xf32> to vector<2x128xbf16>
    %cst_149 = arith.constant 0.000000e+00 : bf16
    %376 = vector.broadcast %cst_149 : bf16 to vector<1x128xbf16>
    %377 = tpu.concatenate %376, %375, %376 in 0 : vector<1x128xbf16>, vector<2x128xbf16>, vector<1x128xbf16> -> vector<4x128xbf16>
    %378 = vector.extract_strided_slice %377 {offsets = [0, 0], sizes = [2, 128], strides = [1, 1]} : vector<4x128xbf16> to vector<2x128xbf16>
    %379 = vector.extract_strided_slice %377 {offsets = [1, 0], sizes = [2, 128], strides = [1, 1]} : vector<4x128xbf16> to vector<2x128xbf16>
    %380 = vector.extract_strided_slice %377 {offsets = [2, 0], sizes = [2, 128], strides = [1, 1]} : vector<4x128xbf16> to vector<2x128xbf16>
    %381 = tpu.concatenate %378, %379, %380 in 1 : vector<2x128xbf16>, vector<2x128xbf16>, vector<2x128xbf16> -> vector<2x384xbf16>
    %c13_150 = arith.constant 13 : index
    %c0_151 = arith.constant 0 : index
    %c0_152 = arith.constant 0 : index
    %382 = vector.load %arg2[%c13_150, %c0_151, %c0_152] : memref<17x384x128xbf16, #tpu.memory_space<vmem>>, vector<1x384x128xbf16>
    %383 = vector.shape_cast %382 : vector<1x384x128xbf16> to vector<384x128xbf16>
    %cst_153 = arith.constant dense<0.000000e+00> : vector<2x128xf32>
    %384 = tpu.matmul %381, %383, %cst_153 {dimension_numbers = #tpu.dot_dimension_numbers<[1], [0], [0], [1], [0, 0, 1, 1], [], []>} : vector<2x384xbf16>, vector<384x128xbf16>, vector<2x128xf32> -> vector<2x128xf32>
    %c53 = arith.constant 53 : index
    %c0_154 = arith.constant 0 : index
    %385 = vector.load %arg4[%c53, %c0_154] : memref<68x128xf32, #tpu.memory_space<vmem>>, vector<1x128xf32>
    %386 = vector.broadcast %385 : vector<1x128xf32> to vector<2x128xf32>
    %387 = arith.mulf %384, %386 : vector<2x128xf32>
    %c54 = arith.constant 54 : index
    %c0_155 = arith.constant 0 : index
    %388 = vector.load %arg4[%c54, %c0_155] : memref<68x128xf32, #tpu.memory_space<vmem>>, vector<1x128xf32>
    %389 = vector.broadcast %388 : vector<1x128xf32> to vector<2x128xf32>
    %390 = arith.addf %387, %389 : vector<2x128xf32>
    %cst_156 = arith.constant 0.000000e+00 : f32
    %391 = vector.broadcast %cst_156 : f32 to vector<2x128xf32>
    %392 = arith.cmpf oge, %390, %391 : vector<2x128xf32>
    %c55 = arith.constant 55 : index
    %c0_157 = arith.constant 0 : index
    %393 = vector.load %arg4[%c55, %c0_157] : memref<68x128xf32, #tpu.memory_space<vmem>>, vector<1x128xf32>
    %394 = vector.broadcast %393 : vector<1x128xf32> to vector<2x128xf32>
    %395 = arith.mulf %390, %394 : vector<2x128xf32>
    %396 = arith.select %392, %390, %395 : vector<2x128xi1>, vector<2x128xf32>
    %397 = arith.truncf %396 : vector<2x128xf32> to vector<2x128xbf16>
    %cst_158 = arith.constant 0.000000e+00 : bf16
    %398 = vector.broadcast %cst_158 : bf16 to vector<1x128xbf16>
    %399 = tpu.concatenate %398, %397, %398 in 0 : vector<1x128xbf16>, vector<2x128xbf16>, vector<1x128xbf16> -> vector<4x128xbf16>
    %400 = vector.extract_strided_slice %399 {offsets = [0, 0], sizes = [2, 128], strides = [1, 1]} : vector<4x128xbf16> to vector<2x128xbf16>
    %401 = vector.extract_strided_slice %399 {offsets = [1, 0], sizes = [2, 128], strides = [1, 1]} : vector<4x128xbf16> to vector<2x128xbf16>
    %402 = vector.extract_strided_slice %399 {offsets = [2, 0], sizes = [2, 128], strides = [1, 1]} : vector<4x128xbf16> to vector<2x128xbf16>
    %403 = tpu.concatenate %400, %401, %402 in 1 : vector<2x128xbf16>, vector<2x128xbf16>, vector<2x128xbf16> -> vector<2x384xbf16>
    %c14_159 = arith.constant 14 : index
    %c0_160 = arith.constant 0 : index
    %c0_161 = arith.constant 0 : index
    %404 = vector.load %arg2[%c14_159, %c0_160, %c0_161] : memref<17x384x128xbf16, #tpu.memory_space<vmem>>, vector<1x384x128xbf16>
    %405 = vector.shape_cast %404 : vector<1x384x128xbf16> to vector<384x128xbf16>
    %cst_162 = arith.constant dense<0.000000e+00> : vector<2x128xf32>
    %406 = tpu.matmul %403, %405, %cst_162 {dimension_numbers = #tpu.dot_dimension_numbers<[1], [0], [0], [1], [0, 0, 1, 1], [], []>} : vector<2x384xbf16>, vector<384x128xbf16>, vector<2x128xf32> -> vector<2x128xf32>
    %407 = tpu.iota {dimensions = array<i32: 0>} : vector<1x2xi32>
    %408 = tpu.iota {dimensions = array<i32: 1>} : vector<1x2xi32>
    %c2_i32_163 = arith.constant 2 : i32
    %409 = vector.broadcast %c2_i32_163 : i32 to vector<1x2xi32>
    %410 = arith.muli %409, %407 : vector<1x2xi32>
    %411 = arith.cmpi eq, %408, %410 : vector<1x2xi32>
    %412 = arith.extui %411 : vector<1x2xi1> to vector<1x2xi32>
    %413 = arith.sitofp %412 : vector<1x2xi32> to vector<1x2xf32>
    %cst_164 = arith.constant dense<0.000000e+00> : vector<1x128xf32>
    %414 = tpu.matmul %413, %406, %cst_164 {dimension_numbers = #tpu.dot_dimension_numbers<[1], [0], [0], [1], [0, 0, 1, 1], [], []>} : vector<1x2xf32>, vector<2x128xf32>, vector<1x128xf32> -> vector<1x128xf32>
    %415 = tpu.iota {dimensions = array<i32: 0>} : vector<1x2xi32>
    %416 = tpu.iota {dimensions = array<i32: 1>} : vector<1x2xi32>
    %c2_i32_165 = arith.constant 2 : i32
    %417 = vector.broadcast %c2_i32_165 : i32 to vector<1x2xi32>
    %418 = arith.muli %417, %415 : vector<1x2xi32>
    %419 = arith.cmpi eq, %416, %418 : vector<1x2xi32>
    %420 = arith.extui %419 : vector<1x2xi1> to vector<1x2xi32>
    %421 = arith.sitofp %420 : vector<1x2xi32> to vector<1x2xf32>
    %cst_166 = arith.constant dense<0.000000e+00> : vector<1x128xf32>
    %422 = tpu.matmul %421, %368, %cst_166 {dimension_numbers = #tpu.dot_dimension_numbers<[1], [0], [0], [1], [0, 0, 1, 1], [], []>} : vector<1x2xf32>, vector<2x128xf32>, vector<1x128xf32> -> vector<1x128xf32>
    %423 = arith.truncf %422 : vector<1x128xf32> to vector<1x128xbf16>
    %c3_167 = arith.constant 3 : index
    %c0_168 = arith.constant 0 : index
    %c0_169 = arith.constant 0 : index
    %424 = vector.load %arg3[%c3_167, %c0_168, %c0_169] : memref<4x128x128xbf16, #tpu.memory_space<vmem>>, vector<1x128x128xbf16>
    %425 = vector.shape_cast %424 : vector<1x128x128xbf16> to vector<128x128xbf16>
    %cst_170 = arith.constant dense<0.000000e+00> : vector<1x128xf32>
    %426 = tpu.matmul %423, %425, %cst_170 {dimension_numbers = #tpu.dot_dimension_numbers<[1], [0], [0], [1], [0, 0, 1, 1], [], []>} : vector<1x128xbf16>, vector<128x128xbf16>, vector<1x128xf32> -> vector<1x128xf32>
    %c58 = arith.constant 58 : index
    %c0_171 = arith.constant 0 : index
    %427 = vector.load %arg4[%c58, %c0_171] : memref<68x128xf32, #tpu.memory_space<vmem>>, vector<1x128xf32>
    %428 = arith.mulf %426, %427 : vector<1x128xf32>
    %c59 = arith.constant 59 : index
    %c0_172 = arith.constant 0 : index
    %429 = vector.load %arg4[%c59, %c0_172] : memref<68x128xf32, #tpu.memory_space<vmem>>, vector<1x128xf32>
    %430 = arith.addf %428, %429 : vector<1x128xf32>
    %c56 = arith.constant 56 : index
    %c0_173 = arith.constant 0 : index
    %431 = vector.load %arg4[%c56, %c0_173] : memref<68x128xf32, #tpu.memory_space<vmem>>, vector<1x128xf32>
    %432 = arith.mulf %414, %431 : vector<1x128xf32>
    %c57 = arith.constant 57 : index
    %c0_174 = arith.constant 0 : index
    %433 = vector.load %arg4[%c57, %c0_174] : memref<68x128xf32, #tpu.memory_space<vmem>>, vector<1x128xf32>
    %434 = arith.addf %432, %433 : vector<1x128xf32>
    %435 = arith.addf %434, %430 : vector<1x128xf32>
    %c60 = arith.constant 60 : index
    %c0_175 = arith.constant 0 : index
    %436 = vector.load %arg4[%c60, %c0_175] : memref<68x128xf32, #tpu.memory_space<vmem>>, vector<1x128xf32>
    %437 = arith.mulf %435, %436 : vector<1x128xf32>
    %c61 = arith.constant 61 : index
    %c0_176 = arith.constant 0 : index
    %438 = vector.load %arg4[%c61, %c0_176] : memref<68x128xf32, #tpu.memory_space<vmem>>, vector<1x128xf32>
    %439 = arith.addf %437, %438 : vector<1x128xf32>
    %440 = arith.truncf %439 : vector<1x128xf32> to vector<1x128xbf16>
    %cst_177 = arith.constant 0.000000e+00 : bf16
    %441 = vector.broadcast %cst_177 : bf16 to vector<1x128xbf16>
    %442 = tpu.concatenate %441, %440, %441 in 0 : vector<1x128xbf16>, vector<1x128xbf16>, vector<1x128xbf16> -> vector<3x128xbf16>
    %443 = vector.extract_strided_slice %442 {offsets = [0, 0], sizes = [1, 128], strides = [1, 1]} : vector<3x128xbf16> to vector<1x128xbf16>
    %444 = vector.extract_strided_slice %442 {offsets = [1, 0], sizes = [1, 128], strides = [1, 1]} : vector<3x128xbf16> to vector<1x128xbf16>
    %445 = vector.extract_strided_slice %442 {offsets = [2, 0], sizes = [1, 128], strides = [1, 1]} : vector<3x128xbf16> to vector<1x128xbf16>
    %446 = tpu.concatenate %443, %444, %445 in 1 : vector<1x128xbf16>, vector<1x128xbf16>, vector<1x128xbf16> -> vector<1x384xbf16>
    %c15_178 = arith.constant 15 : index
    %c0_179 = arith.constant 0 : index
    %c0_180 = arith.constant 0 : index
    %447 = vector.load %arg2[%c15_178, %c0_179, %c0_180] : memref<17x384x128xbf16, #tpu.memory_space<vmem>>, vector<1x384x128xbf16>
    %448 = vector.shape_cast %447 : vector<1x384x128xbf16> to vector<384x128xbf16>
    %cst_181 = arith.constant dense<0.000000e+00> : vector<1x128xf32>
    %449 = tpu.matmul %446, %448, %cst_181 {dimension_numbers = #tpu.dot_dimension_numbers<[1], [0], [0], [1], [0, 0, 1, 1], [], []>} : vector<1x384xbf16>, vector<384x128xbf16>, vector<1x128xf32> -> vector<1x128xf32>
    %c62 = arith.constant 62 : index
    %c0_182 = arith.constant 0 : index
    %450 = vector.load %arg4[%c62, %c0_182] : memref<68x128xf32, #tpu.memory_space<vmem>>, vector<1x128xf32>
    %451 = arith.mulf %449, %450 : vector<1x128xf32>
    %c63 = arith.constant 63 : index
    %c0_183 = arith.constant 0 : index
    %452 = vector.load %arg4[%c63, %c0_183] : memref<68x128xf32, #tpu.memory_space<vmem>>, vector<1x128xf32>
    %453 = arith.addf %451, %452 : vector<1x128xf32>
    %cst_184 = arith.constant 0.000000e+00 : f32
    %454 = vector.broadcast %cst_184 : f32 to vector<1x128xf32>
    %455 = arith.cmpf oge, %453, %454 : vector<1x128xf32>
    %c64 = arith.constant 64 : index
    %c0_185 = arith.constant 0 : index
    %456 = vector.load %arg4[%c64, %c0_185] : memref<68x128xf32, #tpu.memory_space<vmem>>, vector<1x128xf32>
    %457 = arith.mulf %453, %456 : vector<1x128xf32>
    %458 = arith.select %455, %453, %457 : vector<1x128xi1>, vector<1x128xf32>
    %459 = arith.truncf %458 : vector<1x128xf32> to vector<1x128xbf16>
    %cst_186 = arith.constant 0.000000e+00 : bf16
    %460 = vector.broadcast %cst_186 : bf16 to vector<1x128xbf16>
    %461 = tpu.concatenate %460, %459, %460 in 0 : vector<1x128xbf16>, vector<1x128xbf16>, vector<1x128xbf16> -> vector<3x128xbf16>
    %462 = vector.extract_strided_slice %461 {offsets = [0, 0], sizes = [1, 128], strides = [1, 1]} : vector<3x128xbf16> to vector<1x128xbf16>
    %463 = vector.extract_strided_slice %461 {offsets = [1, 0], sizes = [1, 128], strides = [1, 1]} : vector<3x128xbf16> to vector<1x128xbf16>
    %464 = vector.extract_strided_slice %461 {offsets = [2, 0], sizes = [1, 128], strides = [1, 1]} : vector<3x128xbf16> to vector<1x128xbf16>
    %465 = tpu.concatenate %462, %463, %464 in 1 : vector<1x128xbf16>, vector<1x128xbf16>, vector<1x128xbf16> -> vector<1x384xbf16>
    %c16_187 = arith.constant 16 : index
    %c0_188 = arith.constant 0 : index
    %c0_189 = arith.constant 0 : index
    %466 = vector.load %arg2[%c16_187, %c0_188, %c0_189] : memref<17x384x128xbf16, #tpu.memory_space<vmem>>, vector<1x384x128xbf16>
    %467 = vector.shape_cast %466 : vector<1x384x128xbf16> to vector<384x128xbf16>
    %cst_190 = arith.constant dense<0.000000e+00> : vector<1x128xf32>
    %468 = tpu.matmul %465, %467, %cst_190 {dimension_numbers = #tpu.dot_dimension_numbers<[1], [0], [0], [1], [0, 0, 1, 1], [], []>} : vector<1x384xbf16>, vector<384x128xbf16>, vector<1x128xf32> -> vector<1x128xf32>
    %c65 = arith.constant 65 : index
    %c0_191 = arith.constant 0 : index
    %469 = vector.load %arg4[%c65, %c0_191] : memref<68x128xf32, #tpu.memory_space<vmem>>, vector<1x128xf32>
    %470 = arith.mulf %468, %469 : vector<1x128xf32>
    %c66 = arith.constant 66 : index
    %c0_192 = arith.constant 0 : index
    %471 = vector.load %arg4[%c66, %c0_192] : memref<68x128xf32, #tpu.memory_space<vmem>>, vector<1x128xf32>
    %472 = arith.addf %470, %471 : vector<1x128xf32>
    %473 = arith.addf %472, %435 : vector<1x128xf32>
    %c0_193 = arith.constant 0 : index
    %c0_194 = arith.constant 0 : index
    %474 = vector.load %arg5[%c0_193, %c0_194] : memref<128x128xf32, #tpu.memory_space<vmem>>, vector<128x128xf32>
    %cst_195 = arith.constant dense<0.000000e+00> : vector<1x128xf32>
    %475 = tpu.matmul %473, %474, %cst_195 {dimension_numbers = #tpu.dot_dimension_numbers<[1], [0], [0], [1], [0, 0, 1, 1], [], []>} : vector<1x128xf32>, vector<128x128xf32>, vector<1x128xf32> -> vector<1x128xf32>
    %c67 = arith.constant 67 : index
    %c0_196 = arith.constant 0 : index
    %476 = vector.load %arg4[%c67, %c0_196] : memref<68x128xf32, #tpu.memory_space<vmem>>, vector<1x128xf32>
    %477 = arith.addf %475, %476 : vector<1x128xf32>
    %cst_197 = arith.constant 0.000000e+00 : f32
    %478 = vector.broadcast %cst_197 : f32 to vector<7x128xf32>
    %479 = tpu.concatenate %477, %478 in 0 : vector<1x128xf32>, vector<7x128xf32> -> vector<8x128xf32>
    %c0_198 = arith.constant 0 : index
    %c0_199 = arith.constant 0 : index
    %c0_200 = arith.constant 0 : index
    %480 = vector.load %arg6[%c0_198, %c0_199, %c0_200] : memref<1x8x128xf32, #tpu.memory_space<vmem>>, vector<1x8x128xf32>
    %481 = vector.shape_cast %480 : vector<1x8x128xf32> to vector<8x128xf32>
    %482 = vector.shape_cast %479 : vector<8x128xf32> to vector<1x8x128xf32>
    tpu.vector_store %arg6[%c0_198, %c0_199, %c0_200], %482 {strides = array<i32>} : memref<1x8x128xf32, #tpu.memory_space<vmem>>, vector<1x8x128xf32>,
    return
  }
  func.func @transform_0(%arg0: i32) -> (i32, i32, i32) {
    %c0_i32 = arith.constant 0 : i32
    %c0_i32_0 = arith.constant 0 : i32
    %c0_i32_1 = arith.constant 0 : i32
    return %arg0, %c0_i32, %c0_i32_0 : i32, i32, i32
  }
  func.func @transform_1(%arg0: i32) -> (i32, i32, i32) {
    %c0_i32 = arith.constant 0 : i32
    %c0_i32_0 = arith.constant 0 : i32
    %c0_i32_1 = arith.constant 0 : i32
    %c0_i32_2 = arith.constant 0 : i32
    return %c0_i32, %c0_i32_0, %c0_i32_1 : i32, i32, i32
  }
  func.func @transform_2(%arg0: i32) -> (i32, i32, i32) {
    %c0_i32 = arith.constant 0 : i32
    %c0_i32_0 = arith.constant 0 : i32
    %c0_i32_1 = arith.constant 0 : i32
    %c0_i32_2 = arith.constant 0 : i32
    return %c0_i32, %c0_i32_0, %c0_i32_1 : i32, i32, i32
  }
  func.func @transform_3(%arg0: i32) -> (i32, i32) {
    %c0_i32 = arith.constant 0 : i32
    %c0_i32_0 = arith.constant 0 : i32
    %c0_i32_1 = arith.constant 0 : i32
    return %c0_i32, %c0_i32_0 : i32, i32
  }
  func.func @transform_4(%arg0: i32) -> (i32, i32) {
    %c0_i32 = arith.constant 0 : i32
    %c0_i32_0 = arith.constant 0 : i32
    %c0_i32_1 = arith.constant 0 : i32
    return %c0_i32, %c0_i32_0 : i32, i32
  }
  func.func @transform_5(%arg0: i32) -> (i32, i32, i32) {
    %c0_i32 = arith.constant 0 : i32
    %c0_i32_0 = arith.constant 0 : i32
    %c0_i32_1 = arith.constant 0 : i32
    return %arg0, %c0_i32, %c0_i32_0 : i32, i32, i32
  }
}

</mosaic_0001>

<llo_original>
// kernel: fr_feature_embedder_forward.1
$region0: #{fr_feature_embedder_forward.1}
  #allocation0 [shape = 'u32[]', space=smem, size = 0x4, offset = 0x4, fixed_abs, tag = 'smem constant byte address 0x4 - core index']
  #allocation1 [shape = 'u32[144,128]{1,0:T(1,128)}', space=vmem, size = 0x12000, scoped, tag = 'internal scratch']
  %s0 = inlined_call_operand.vmem [shape: bf16[2,18,128], index: 0, kind: input, shape index: {}]
  %s1 = inlined_call_operand.hbm [shape: bf16[17,384,128], index: 1, kind: input, shape index: {}]
  %s2 = inlined_call_operand.hbm [shape: bf16[4,128,128], index: 2, kind: input, shape index: {}]
  %s3 = inlined_call_operand.hbm [shape: f32[68,128], index: 3, kind: input, shape index: {}]
  %s4 = inlined_call_operand.hbm [shape: f32[128,128], index: 4, kind: input, shape index: {}]
  %s5 = inlined_call_operand.vmem [shape: f32[2,8,128], index: 5, kind: output, shape index: {}]
  %s6 = sld [smem:[#allocation0]]
  $region69: #{fr_feature_embedder_forward.1} parent=0
    _
  %s8 = ssub.s32 1, %s6
  %s9 = scalar_select 0, %s8, %s6
  $region1: #{fr_feature_embedder_forward.1} parent=0
    #allocation2 [shape = 'u8[1671168]{0}', space=vmem, size = 0x198000, scoped, tag = 'input window, operand 1, single buffered']
    #allocation3 [shape = 's32[2]{0}', space=sflag, size = 0x8, scoped, tag = 'scoped memory for fr_feature_embedder_forward.1']
    #allocation4 [shape = 'u8[131072]{0}', space=vmem, size = 0x20000, scoped, tag = 'input window, operand 2, single buffered']
    #allocation5 [shape = 's32[1]{0}', space=sflag, size = 0x4, scoped, tag = 'scoped memory for fr_feature_embedder_forward.1']
    #allocation6 [shape = 'u8[36864]{0}', space=vmem, size = 0x9000, scoped, tag = 'input window, operand 3, single buffered']
    #allocation7 [shape = 'u8[65536]{0}', space=vmem, size = 0x10000, scoped, tag = 'input window, operand 4, single buffered']
    #allocation8 [shape = 's32[1]{0}', space=sflag, size = 0x4, scoped, tag = 'scoped memory for fr_feature_embedder_forward.1']
    %10 = vsyncpa [#allocation3], 0
    %11 = vsyncpa [#allocation5], 0
    %12 = vsyncpa [#allocation8], 0
    loop: start=0, step=1, limit=4
    $region2: #{fr_feature_embedder_forward.1} parent=1 // loop_pre_header
      _
    $region3: #{fr_feature_embedder_forward.1} parent=1 // loop_header
      %s14 = sphi 0, %s18
      %p15 = scmp.ge.s32.totalorder %s14, 4
      %s24 = sphi 0, %s26
      %s27 = sphi 0, %s24
      %s28 = sphi 0, %s27
      %s44 = sphi 0, %s28
      %s48 = sphi 0, %s48
      %s50 = sphi 0, %s48
      %s51 = sphi 0, %s50
      %s65 = sphi 0, %s51
      %s69 = sphi 0, %s69
      %s71 = sphi 0, %s69
      %s72 = sphi 0, %s71
      %s86 = sphi 0, %s72
      %s90 = sphi 0, %s90
      %s92 = sphi 0, %s90
      %s93 = sphi 0, %s92
      %s107 = sphi 0, %s93
      %s111 = sphi 0, %s111
      %s113 = sphi 0, %s111
      %s114 = sphi 0, %s113
      %s128 = sphi 0, %s114
      %s134 = sphi 0, %s136
      %s137 = sphi 0, %s134
      %s138 = sphi 0, %s137
      %s154 = sphi 0, %s138
    $region4: #{fr_feature_embedder_forward.1} parent=1 // loop_header_branch
      %17 = sbr.rel (%p15) target = $region8
    $region5: #{fr_feature_embedder_forward.1} parent=1 // loop_body
      %s19 = ssub.s32 %s14, 1
      %s20 = ssub.s32 %s14, 2
      %s21 = sadd.s32 %s14, 1
      %s22 = ssub.s32 %s14, %s21
      %p23 = scmp.eq.s32.totalorder %s22, 0
      %s25 = sadd.s32 %s24, 1
      %s26 = scalar_select %p23, %s24, %s25
      %p29 = pneg %p23
      %p30 = scmp.eq.s32.totalorder %s14, 1
      %p31 = por %p29, %p30
      %p32 = scmp.ne.s32.totalorder %s24, %s27
      %p33 = scmp.eq.s32.totalorder %s14, 0
      %p34 = por %p32, %p33
      %p35 = scmp.ne.s32.totalorder %s24, %s27
      %p36 = scmp.eq.s32.totalorder %s19, 1
      %p37 = por %p35, %p36
      %p38 = scmp.ne.s32.totalorder %s27, %s28
      %p39 = scmp.eq.s32.totalorder %s19, 0
      %p40 = por %p38, %p39
      %p41 = scmp.ne.s32.totalorder %s27, %s28
      %p42 = scmp.eq.s32.totalorder %s20, 1
      %p43 = por %p41, %p42
      %p45 = scmp.ne.s32.totalorder %s28, %s44
      %p46 = scmp.eq.s32.totalorder %s20, 0
      %p47 = por %p45, %p46
      %s49 = sadd.s32 %s48, 1
      %p52 = scmp.eq.s32.totalorder %s14, 1
      %p53 = scmp.ne.s32.totalorder %s48, %s50
      %p54 = scmp.eq.s32.totalorder %s14, 0
      %p55 = por %p53, %p54
      %p56 = scmp.ne.s32.totalorder %s48, %s50
      %p57 = scmp.eq.s32.totalorder %s19, 1
      %p58 = por %p56, %p57
      %p59 = scmp.ne.s32.totalorder %s50, %s51
      %p60 = scmp.eq.s32.totalorder %s19, 0
      %p61 = por %p59, %p60
      %p62 = scmp.ne.s32.totalorder %s50, %s51
      %p63 = scmp.eq.s32.totalorder %s20, 1
      %p64 = por %p62, %p63
      %p66 = scmp.ne.s32.totalorder %s51, %s65
      %p67 = scmp.eq.s32.totalorder %s20, 0
      %p68 = por %p66, %p67
      %s70 = sadd.s32 %s69, 1
      %p73 = scmp.eq.s32.totalorder %s14, 1
      %p74 = scmp.ne.s32.totalorder %s69, %s71
      %p75 = scmp.eq.s32.totalorder %s14, 0
      %p76 = por %p74, %p75
      %p77 = scmp.ne.s32.totalorder %s69, %s71
      %p78 = scmp.eq.s32.totalorder %s19, 1
      %p79 = por %p77, %p78
      %p80 = scmp.ne.s32.totalorder %s71, %s72
      %p81 = scmp.eq.s32.totalorder %s19, 0
      %p82 = por %p80, %p81
      %p83 = scmp.ne.s32.totalorder %s71, %s72
      %p84 = scmp.eq.s32.totalorder %s20, 1
      %p85 = por %p83, %p84
      %p87 = scmp.ne.s32.totalorder %s72, %s86
      %p88 = scmp.eq.s32.totalorder %s20, 0
      %p89 = por %p87, %p88
      %s91 = sadd.s32 %s90, 1
      %p94 = scmp.eq.s32.totalorder %s14, 1
      %p95 = scmp.ne.s32.totalorder %s90, %s92
      %p96 = scmp.eq.s32.totalorder %s14, 0
      %p97 = por %p95, %p96
      %p98 = scmp.ne.s32.totalorder %s90, %s92
      %p99 = scmp.eq.s32.totalorder %s19, 1
      %p100 = por %p98, %p99
      %p101 = scmp.ne.s32.totalorder %s92, %s93
      %p102 = scmp.eq.s32.totalorder %s19, 0
      %p103 = por %p101, %p102
      %p104 = scmp.ne.s32.totalorder %s92, %s93
      %p105 = scmp.eq.s32.totalorder %s20, 1
      %p106 = por %p104, %p105
      %p108 = scmp.ne.s32.totalorder %s93, %s107
      %p109 = scmp.eq.s32.totalorder %s20, 0
      %p110 = por %p108, %p109
      %s112 = sadd.s32 %s111, 1
      %p115 = scmp.eq.s32.totalorder %s14, 1
      %p116 = scmp.ne.s32.totalorder %s111, %s113
      %p117 = scmp.eq.s32.totalorder %s14, 0
      %p118 = por %p116, %p117
      %p119 = scmp.ne.s32.totalorder %s111, %s113
      %p120 = scmp.eq.s32.totalorder %s19, 1
      %p121 = por %p119, %p120
      %p122 = scmp.ne.s32.totalorder %s113, %s114
      %p123 = scmp.eq.s32.totalorder %s19, 0
      %p124 = por %p122, %p123
      %p125 = scmp.ne.s32.totalorder %s113, %s114
      %p126 = scmp.eq.s32.totalorder %s20, 1
      %p127 = por %p125, %p126
      %p129 = scmp.ne.s32.totalorder %s114, %s128
      %p130 = scmp.eq.s32.totalorder %s20, 0
      %p131 = por %p129, %p130
      %s132 = ssub.s32 %s14, %s21
      %p133 = scmp.eq.s32.totalorder %s132, 0
      %s135 = sadd.s32 %s134, 1
      %s136 = scalar_select %p133, %s134, %s135
      %p139 = pneg %p133
      %p140 = scmp.eq.s32.totalorder %s14, 1
      %p141 = por %p139, %p140
      %p142 = scmp.ne.s32.totalorder %s134, %s137
      %p143 = scmp.eq.s32.totalorder %s14, 0
      %p144 = por %p142, %p143
      %p145 = scmp.ne.s32.totalorder %s134, %s137
      %p146 = scmp.eq.s32.totalorder %s19, 1
      %p147 = por %p145, %p146
      %p148 = scmp.ne.s32.totalorder %s137, %s138
      %p149 = scmp.eq.s32.totalorder %s19, 0
      %p150 = por %p148, %p149
      %p151 = scmp.ne.s32.totalorder %s137, %s138
      %p152 = scmp.eq.s32.totalorder %s20, 1
      %p153 = por %p151, %p152
      %p155 = scmp.ne.s32.totalorder %s138, %s154
      %p156 = scmp.eq.s32.totalorder %s20, 0
      %p157 = por %p155, %p156
      %p158 = scmp.le.s32.totalorder 1, %s14
      %p159 = scmp.lt.s32.totalorder %s14, 3
      %p160 = pnand %p158, %p159
      %p161 = pneg %p160
      // Predicated region
      $region9: #{fr_feature_embedder_forward.1} parent=5 // pred_check
        _
      $region10: #{fr_feature_embedder_forward.1} parent=5 // pred_check_branch
        %163 = sbr.rel (%p160) target = $region12
      $region11: #{fr_feature_embedder_forward.1} parent=5 // pred_region
        %s164 = ssub.s32 %s14, 1
        // Predicated region
        $region13: #{fr_feature_embedder_forward.1} parent=11 // pred_check
          %p165 = pneg %p61
        $region14: #{fr_feature_embedder_forward.1} parent=11 // pred_check_branch
          %167 = sbr.rel (%p165) target = $region16
        $region15: #{fr_feature_embedder_forward.1} parent=11 // pred_region
          %s169 = ssub.s32 52224, 52224
          %170 = vsyncadd [#allocation3], %s169
          %s171 = sshll.u32 [#allocation2], 4
          %s172 = int_to_ptr.vmem [resolvable:$true] %s171
          %177 = dma.hbm_to_vmem [thread:$0]  %s1, 52224, %s172, [#allocation3], 64, 64, 4
        $region16: #{fr_feature_embedder_forward.1} parent=11 // pred_fallthru
          _
        // Predicated region
        $region17: #{fr_feature_embedder_forward.1} parent=11 // pred_check
          %p178 = pneg %p82
        $region18: #{fr_feature_embedder_forward.1} parent=11 // pred_check_branch
          %180 = sbr.rel (%p178) target = $region20
        $region19: #{fr_feature_embedder_forward.1} parent=11 // pred_region
          %s182 = ssub.s32 4096, 4096
          %183 = vsyncadd [#allocation5], %s182
          %s184 = sshll.u32 [#allocation4], 4
          %s185 = int_to_ptr.vmem [resolvable:$true] %s184
          %190 = dma.hbm_to_vmem [thread:$0]  %s2, 4096, %s185, [#allocation5], 64, 64, 4
        $region20: #{fr_feature_embedder_forward.1} parent=11 // pred_fallthru
          _
        // Predicated region
        $region21: #{fr_feature_embedder_forward.1} parent=11 // pred_check
          %p191 = pneg %p103
        $region22: #{fr_feature_embedder_forward.1} parent=11 // pred_check_branch
          %193 = sbr.rel (%p191) target = $region24
        $region23: #{fr_feature_embedder_forward.1} parent=11 // pred_region
          %s195 = ssub.s32 1152, 1152
          %196 = vsyncadd [#allocation5], %s195
          %s197 = sshll.u32 [#allocation6], 4
          %s198 = int_to_ptr.vmem [resolvable:$true] %s197
          %203 = dma.hbm_to_vmem [thread:$0]  %s3, 1152, %s198, [#allocation5], 128, 128, 8
        $region24: #{fr_feature_embedder_forward.1} parent=11 // pred_fallthru
          _
        // Predicated region
        $region25: #{fr_feature_embedder_forward.1} parent=11 // pred_check
          %p204 = pneg %p124
        $region26: #{fr_feature_embedder_forward.1} parent=11 // pred_check_branch
          %206 = sbr.rel (%p204) target = $region28
        $region27: #{fr_feature_embedder_forward.1} parent=11 // pred_region
          %s208 = ssub.s32 2048, 2048
          %209 = vsyncadd [#allocation8], %s208
          %s210 = sshll.u32 [#allocation7], 4
          %s211 = int_to_ptr.vmem [resolvable:$true] %s210
          %216 = dma.hbm_to_vmem [thread:$0]  %s4, 2048, %s211, [#allocation8], 128, 128, 8
        $region28: #{fr_feature_embedder_forward.1} parent=11 // pred_fallthru
          _
      $region12: #{fr_feature_embedder_forward.1} parent=5 // pred_fallthru
        _
      %p217 = scmp.lt.s32.totalorder %s14, 2
      // Predicated region
      $region29: #{fr_feature_embedder_forward.1} parent=5 // pred_check
        %p218 = pneg %p217
      $region30: #{fr_feature_embedder_forward.1} parent=5 // pred_check_branch
        %220 = sbr.rel (%p218) target = $region32
      $region31: #{fr_feature_embedder_forward.1} parent=5 // pred_region
        // Predicated region
        $region33: #{fr_feature_embedder_forward.1} parent=31 // pred_check
          %p221 = pneg %p34
        $region34: #{fr_feature_embedder_forward.1} parent=31 // pred_check_branch
          %223 = sbr.rel (%p221) target = $region36
        $region35: #{fr_feature_embedder_forward.1} parent=31 // pred_region
          %p224 = scmp.lt.s32.totalorder %s14, 1
          %s225 = scalar_select %p224, %s14, 1
          %s226 = smul.addr %s225, 3
          %s227 = smul.addr %s226, 4
          %s228 = scalar_lea.vmem %s0, %s227
        $region36: #{fr_feature_embedder_forward.1} parent=31 // pred_fallthru
          _
      $region32: #{fr_feature_embedder_forward.1} parent=5 // pred_fallthru
        _
      %p229 = scmp.le.s32.totalorder 1, %s14
      %p230 = scmp.lt.s32.totalorder %s14, 3
      %p231 = pnand %p229, %p230
      %p232 = pneg %p231
      // Predicated region
      $region37: #{fr_feature_embedder_forward.1} parent=5 // pred_check
        _
      $region38: #{fr_feature_embedder_forward.1} parent=5 // pred_check_branch
        %234 = sbr.rel (%p231) target = $region40
      $region39: #{fr_feature_embedder_forward.1} parent=5 // pred_region
        %s235 = ssub.s32 %s14, 1
        // Predicated region
        $region41: #{fr_feature_embedder_forward.1} parent=39 // pred_check
          %p236 = pneg %p61
        $region42: #{fr_feature_embedder_forward.1} parent=39 // pred_check_branch
          %238 = sbr.rel (%p236) target = $region44
        $region43: #{fr_feature_embedder_forward.1} parent=39 // pred_region
          %239 = dma.done [#allocation3], 52224
        $region44: #{fr_feature_embedder_forward.1} parent=39 // pred_fallthru
          _
        // Predicated region
        $region45: #{fr_feature_embedder_forward.1} parent=39 // pred_check
          %p240 = pneg %p82
        $region46: #{fr_feature_embedder_forward.1} parent=39 // pred_check_branch
          %242 = sbr.rel (%p240) target = $region48
        $region47: #{fr_feature_embedder_forward.1} parent=39 // pred_region
          %243 = dma.done [#allocation5], 4096
        $region48: #{fr_feature_embedder_forward.1} parent=39 // pred_fallthru
          _
        // Predicated region
        $region49: #{fr_feature_embedder_forward.1} parent=39 // pred_check
          %p244 = pneg %p103
        $region50: #{fr_feature_embedder_forward.1} parent=39 // pred_check_branch
          %246 = sbr.rel (%p244) target = $region52
        $region51: #{fr_feature_embedder_forward.1} parent=39 // pred_region
          %247 = dma.done [#allocation5], 1152
        $region52: #{fr_feature_embedder_forward.1} parent=39 // pred_fallthru
          _
        // Predicated region
        $region53: #{fr_feature_embedder_forward.1} parent=39 // pred_check
          %p248 = pneg %p124
        $region54: #{fr_feature_embedder_forward.1} parent=39 // pred_check_branch
          %250 = sbr.rel (%p248) target = $region56
        $region55: #{fr_feature_embedder_forward.1} parent=39 // pred_region
          %251 = dma.done [#allocation8], 2048
        $region56: #{fr_feature_embedder_forward.1} parent=39 // pred_fallthru
          _
        %p252 = scmp.lt.s32.totalorder %s19, 1
        %s253 = scalar_select %p252, %s19, 1
        %s254 = smul.addr %s253, 3
        %s255 = smul.addr %s254, 4
        %s256 = scalar_lea.vmem %s0, %s255
        %p257 = pneg %p40
        %p258 = pneg %p37
        %p259 = pneg %p61
        %p260 = pneg %p58
        %p261 = pneg %p82
        %p262 = pneg %p79
        %p263 = pneg %p103
        %p264 = pneg %p100
        %p265 = pneg %p124
        %p266 = pneg %p121
        %p267 = pneg %p150
        %p268 = pneg %p147
        %p269 = scmp.lt.s32.totalorder %s19, 1
        %s270 = scalar_select %p269, %s19, 1
        %s271 = smul.addr %s270, 8
        %s272 = scalar_lea.vmem %s5, %s271
        %p273 = scmp.lt.s32.totalorder %s19, 1
        %s274 = scalar_select %p273, %s19, 1
        %s275 = smul.addr %s274, 3
        %s276 = smul.addr %s275, 4
        %s277 = scalar_lea.vmem %s0, %s276
        %p278 = scmp.lt.s32.totalorder %s19, 1
        %s279 = scalar_select %p278, %s19, 1
        %s280 = smul.addr %s279, 8
        %s281 = scalar_lea.vmem %s5, %s280
        %v283 = vld [vmem:[%s277] sm:$0xf]
        %v284 = vld [vmem:[%s277 + $0x4] sm:$0xf]
        %v285 = vld [vmem:[%s277 + $0x8] sm:$0x1]
        %v288 = vunpack.c.l.b16 %v283
        %v289 = vunpack.c.l.b16 %v284
        %v290 = vpack.c.b16 %v289, %v288
        %v293 = vunpack.c.l.b16 %v285
        %v294 = vpack.c.b16 %v293, %v293
        %vm295 = vsmask.f32 7424
        %v297 = vshrl.u32 %v290, 16
        %v299 = vshll.u32 %v290, 16
        %v301 = vrot.slane %v299, 1
        %v302 = vor.u32 %v297, %v301
        %v304 = vshll.u32 %v294, 16
        %v306 = vrot.slane %v304, 1
        %v307 = vsel %vm295, %v302, %v306
        %vm309 = vcmask 1046528
        %v310 = vrot.slane %v290, 1
        %v311 = vrot.slane %v294, 1
        %v312 = vsel %vm309, %v310, %v311
        %v314 = vld [vmem:[#allocation2] sm:$0xf]
        %v315 = vld [vmem:[#allocation2 + $0x4] sm:$0xf]
        %v316 = vld [vmem:[#allocation2 + $0x8] sm:$0xf]
        %v317 = vld [vmem:[#allocation2 + $0xc] sm:$0xf]
        %v318 = vld [vmem:[#allocation2 + $0x10] sm:$0xf]
        %v319 = vld [vmem:[#allocation2 + $0x14] sm:$0xf]
        %v320 = vld [vmem:[#allocation2 + $0x18] sm:$0xf]
        %v321 = vld [vmem:[#allocation2 + $0x1c] sm:$0xf]
        %v322 = vld [vmem:[#allocation2 + $0x20] sm:$0xf]
        %v323 = vld [vmem:[#allocation2 + $0x24] sm:$0xf]
        %v324 = vld [vmem:[#allocation2 + $0x28] sm:$0xf]
        %v325 = vld [vmem:[#allocation2 + $0x2c] sm:$0xf]
        %v326 = vld [vmem:[#allocation2 + $0x30] sm:$0xf]
        %v327 = vld [vmem:[#allocation2 + $0x34] sm:$0xf]
        %v328 = vld [vmem:[#allocation2 + $0x38] sm:$0xf]
        %v329 = vld [vmem:[#allocation2 + $0x3c] sm:$0xf]
        %v330 = vld [vmem:[#allocation2 + $0x40] sm:$0xf]
        %v331 = vld [vmem:[#allocation2 + $0x44] sm:$0xf]
        %v332 = vld [vmem:[#allocation2 + $0x48] sm:$0xf]
        %v333 = vld [vmem:[#allocation2 + $0x4c] sm:$0xf]
        %v334 = vld [vmem:[#allocation2 + $0x50] sm:$0xf]
        %v335 = vld [vmem:[#allocation2 + $0x54] sm:$0xf]
        %v336 = vld [vmem:[#allocation2 + $0x58] sm:$0xf]
        %v337 = vld [vmem:[#allocation2 + $0x5c] sm:$0xf]
        %v338 = vld [vmem:[#allocation2 + $0x60] sm:$0xf]
        %v339 = vld [vmem:[#allocation2 + $0x64] sm:$0xf]
        %v340 = vld [vmem:[#allocation2 + $0x68] sm:$0xf]
        %v341 = vld [vmem:[#allocation2 + $0x6c] sm:$0xf]
        %v342 = vld [vmem:[#allocation2 + $0x70] sm:$0xf]
        %v343 = vld [vmem:[#allocation2 + $0x74] sm:$0xf]
        %v344 = vld [vmem:[#allocation2 + $0x78] sm:$0xf]
        %v345 = vld [vmem:[#allocation2 + $0x7c] sm:$0xf]
        %v346 = vld [vmem:[#allocation2 + $0x80] sm:$0xf]
        %v347 = vld [vmem:[#allocation2 + $0x84] sm:$0xf]
        %v348 = vld [vmem:[#allocation2 + $0x88] sm:$0xf]
        %v349 = vld [vmem:[#allocation2 + $0x8c] sm:$0xf]
        %v350 = vld [vmem:[#allocation2 + $0x90] sm:$0xf]
        %v351 = vld [vmem:[#allocation2 + $0x94] sm:$0xf]
        %v352 = vld [vmem:[#allocation2 + $0x98] sm:$0xf]
        %v353 = vld [vmem:[#allocation2 + $0x9c] sm:$0xf]
        %v354 = vld [vmem:[#allocation2 + $0xa0] sm:$0xf]
        %v355 = vld [vmem:[#allocation2 + $0xa4] sm:$0xf]
        %v356 = vld [vmem:[#allocation2 + $0xa8] sm:$0xf]
        %v357 = vld [vmem:[#allocation2 + $0xac] sm:$0xf]
        %v358 = vld [vmem:[#allocation2 + $0xb0] sm:$0xf]
        %v359 = vld [vmem:[#allocation2 + $0xb4] sm:$0xf]
        %v360 = vld [vmem:[#allocation2 + $0xb8] sm:$0xf]
        %v361 = vld [vmem:[#allocation2 + $0xbc] sm:$0xf]
        %v410 = vunpack.c.l.b16 %v314
        %v411 = vunpack.c.l.b16 %v315
        %v412 = vunpack.c.l.b16 %v316
        %v413 = vunpack.c.l.b16 %v317
        %v414 = vunpack.c.l.b16 %v318
        %v415 = vunpack.c.l.b16 %v319
        %v416 = vunpack.c.l.b16 %v320
        %v417 = vunpack.c.l.b16 %v321
        %v418 = vunpack.c.l.b16 %v322
        %v419 = vunpack.c.l.b16 %v323
        %v420 = vunpack.c.l.b16 %v324
        %v421 = vunpack.c.l.b16 %v325
        %v422 = vunpack.c.l.b16 %v326
        %v423 = vunpack.c.l.b16 %v327
        %v424 = vunpack.c.l.b16 %v328
        %v425 = vunpack.c.l.b16 %v329
        %v426 = vunpack.c.l.b16 %v330
        %v427 = vunpack.c.l.b16 %v331
        %v428 = vunpack.c.l.b16 %v332
        %v429 = vunpack.c.l.b16 %v333
        %v430 = vunpack.c.l.b16 %v334
        %v431 = vunpack.c.l.b16 %v335
        %v432 = vunpack.c.l.b16 %v336
        %v433 = vunpack.c.l.b16 %v337
        %v434 = vunpack.c.l.b16 %v338
        %v435 = vunpack.c.l.b16 %v339
        %v436 = vunpack.c.l.b16 %v340
        %v437 = vunpack.c.l.b16 %v341
        %v438 = vunpack.c.l.b16 %v342
        %v439 = vunpack.c.l.b16 %v343
        %v440 = vunpack.c.l.b16 %v344
        %v441 = vunpack.c.l.b16 %v345
        %v442 = vunpack.c.l.b16 %v346
        %v443 = vunpack.c.l.b16 %v347
        %v444 = vunpack.c.l.b16 %v348
        %v445 = vunpack.c.l.b16 %v349
        %v446 = vunpack.c.l.b16 %v350
        %v447 = vunpack.c.l.b16 %v351
        %v448 = vunpack.c.l.b16 %v352
        %v449 = vunpack.c.l.b16 %v353
        %v450 = vunpack.c.l.b16 %v354
        %v451 = vunpack.c.l.b16 %v355
        %v452 = vunpack.c.l.b16 %v356
        %v453 = vunpack.c.l.b16 %v357
        %v454 = vunpack.c.l.b16 %v358
        %v455 = vunpack.c.l.b16 %v359
        %v456 = vunpack.c.l.b16 %v360
        %v457 = vunpack.c.l.b16 %v361
        %v458 = vpack.c.b16 %v411, %v410
        %v459 = vpack.c.b16 %v413, %v412
        %v460 = vpack.c.b16 %v415, %v414
        %v461 = vpack.c.b16 %v417, %v416
        %v462 = vpack.c.b16 %v419, %v418
        %v463 = vpack.c.b16 %v421, %v420
        %v464 = vpack.c.b16 %v423, %v422
        %v465 = vpack.c.b16 %v425, %v424
        %v466 = vpack.c.b16 %v427, %v426
        %v467 = vpack.c.b16 %v429, %v428
        %v468 = vpack.c.b16 %v431, %v430
        %v469 = vpack.c.b16 %v433, %v432
        %v470 = vpack.c.b16 %v435, %v434
        %v471 = vpack.c.b16 %v437, %v436
        %v472 = vpack.c.b16 %v439, %v438
        %v473 = vpack.c.b16 %v441, %v440
        %v474 = vpack.c.b16 %v443, %v442
        %v475 = vpack.c.b16 %v445, %v444
        %v476 = vpack.c.b16 %v447, %v446
        %v477 = vpack.c.b16 %v449, %v448
        %v478 = vpack.c.b16 %v451, %v450
        %v479 = vpack.c.b16 %v453, %v452
        %v480 = vpack.c.b16 %v455, %v454
        %v481 = vpack.c.b16 %v457, %v456
        %506 = vmatprep.subr.bf16.mxu0 0
        %507 = vmatpush1.bf16.msra.mxu0 %v458
        %508 = vmatprep.subr.bf16.mxu0 0
        %509 = vmatpush1.bf16.msra.mxu0 %v459
        %510 = vmatprep.subr.bf16.mxu0 0
        %511 = vmatpush1.bf16.msra.mxu0 %v460
        %512 = vmatprep.subr.bf16.mxu0 0
        %513 = vmatpush1.bf16.msra.mxu0 %v461
        %514 = vmatprep.subr.bf16.mxu0 0
        %515 = vmatpush1.bf16.msra.mxu0 %v462
        %516 = vmatprep.subr.bf16.mxu0 0
        %517 = vmatpush1.bf16.msra.mxu0 %v463
        %518 = vmatprep.subr.bf16.mxu0 0
        %519 = vmatpush1.bf16.msra.mxu0 %v464
        %520 = vmatprep.subr.bf16.mxu0 0
        %521 = vmatpush1.bf16.msra.mxu0 %v465
        %522 = vmatprep.subr.bf16.mxu0 0
        %523 = vmatpush1.bf16.msra.mxu0 %v466
        %524 = vmatprep.subr.bf16.mxu0 0
        %525 = vmatpush1.bf16.msra.mxu0 %v467
        %526 = vmatprep.subr.bf16.mxu0 0
        %527 = vmatpush1.bf16.msra.mxu0 %v468
        %528 = vmatprep.subr.bf16.mxu0 0
        %529 = vmatpush1.bf16.msra.mxu0 %v469
        %530 = vmatprep.subr.bf16.mxu0 0
        %531 = vmatpush1.bf16.msra.mxu0 %v470
        %532 = vmatprep.subr.bf16.mxu0 0
        %533 = vmatpush1.bf16.msra.mxu0 %v471
        %534 = vmatprep.subr.bf16.mxu0 0
        %535 = vmatpush1.bf16.msra.mxu0 %v472
        %536 = vmatprep.subr.bf16.mxu0 0
        %537 = vmatpush1.bf16.msra.mxu0 %v473
        %538 = vmatprep.mubr.bf16.mxu0 %v307
        %539 = vmatmul.mubr.bf16.gmra.mrb[0].mxu0 %v290
        %v540 = vpop.f32.mrb[0].mxu0
        %v541 = vadd.f32 0.0, %v540
        %v542 = vpop.f32.mrb[0].mxu0
        %v543 = vpop.f32.mrb[0].mxu0
        %v544 = vadd.f32 0.0, %v543
        %v545 = vpop.f32.mrb[0].mxu0
        %546 = vdwg.mxu0
        %547 = vmatprep.subr.bf16.mxu0 0
        %548 = vmatpush1.bf16.msra.mxu0 %v474
        %549 = vmatprep.subr.bf16.mxu0 0
        %550 = vmatpush1.bf16.msra.mxu0 %v475
        %551 = vmatprep.subr.bf16.mxu0 0
        %552 = vmatpush1.bf16.msra.mxu0 %v476
        %553 = vmatprep.subr.bf16.mxu0 0
        %554 = vmatpush1.bf16.msra.mxu0 %v477
        %555 = vmatprep.subr.bf16.mxu0 0
        %556 = vmatpush1.bf16.msra.mxu0 %v478
        %557 = vmatprep.subr.bf16.mxu0 0
        %558 = vmatpush1.bf16.msra.mxu0 %v479
        %559 = vmatprep.subr.bf16.mxu0 0
        %560 = vmatpush1.bf16.msra.mxu0 %v480
        %561 = vmatprep.subr.bf16.mxu0 0
        %562 = vmatpush1.bf16.msra.mxu0 %v481
        %563 = vmatprep.subr.bf16.mxu0 0
        %564 = vmatpush1.bf16.msra.mxu0 0
        %565 = vmatprep.subr.bf16.mxu0 0
        %566 = vmatpush1.bf16.msra.mxu0 0
        %567 = vmatprep.subr.bf16.mxu0 0
        %568 = vmatpush1.bf16.msra.mxu0 0
        %569 = vmatprep.subr.bf16.mxu0 0
        %570 = vmatpush1.bf16.msra.mxu0 0
        %571 = vmatprep.subr.bf16.mxu0 0
        %572 = vmatpush1.bf16.msra.mxu0 0
        %573 = vmatprep.subr.bf16.mxu0 0
        %574 = vmatpush1.bf16.msra.mxu0 0
        %575 = vmatprep.subr.bf16.mxu0 0
        %576 = vmatpush1.bf16.msra.mxu0 0
        %577 = vmatprep.subr.bf16.mxu0 0
        %578 = vmatpush1.bf16.msra.mxu0 0
        %579 = vmatprep.mubr.bf16.mxu0 0
        %580 = vmatmul.mubr.bf16.gmra.mrb[0].mxu0 %v312
        %v581 = vpop.f32.mrb[0].mxu0
        %v582 = vadd.f32 %v541, %v581
        %v583 = vpop.f32.mrb[0].mxu0
        %v584 = vpop.f32.mrb[0].mxu0
        %v585 = vadd.f32 %v544, %v584
        %v586 = vpop.f32.mrb[0].mxu0
        %587 = vdwg.mxu0
        %v588 = vld [vmem:[#allocation6] sm:$0x1]
        %v589 = vlaneseq
        %v590 = vshrl.u32 %v589, 7
        %v591 = vsub.s32 0, %v590
        %v592 = vrot.slane %v588, %v591
        %v593 = vmul.f32 %v582, %v592
        %v594 = vmul.f32 %v585, %v592
        %v595 = vld [vmem:[#allocation6 + $0x1] sm:$0x1]
        %v596 = vlaneseq
        %v597 = vshrl.u32 %v596, 7
        %v598 = vsub.s32 0, %v597
        %v599 = vrot.slane %v595, %v598
        %v600 = vadd.f32 %v593, %v599
        %v601 = vadd.f32 %v594, %v599
        %vm602 = vcmp.ge.f32.partialorder %v600, 0.0
        %vm603 = vcmp.ge.f32.partialorder %v601, 0.0
        %v604 = vld [vmem:[#allocation6 + $0x2] sm:$0x1]
        %v605 = vlaneseq
        %v606 = vshrl.u32 %v605, 7
        %v607 = vsub.s32 0, %v606
        %v608 = vrot.slane %v604, %v607
        %v609 = vmul.f32 %v600, %v608
        %v610 = vmul.f32 %v601, %v608
        %v611 = vsel %vm602, %v600, %v609
        %v612 = vsel %vm603, %v601, %v610
        %v613 = vld [vmem:[#allocation6 + $0x3] sm:$0x1]
        %v614 = vlaneseq
        %v615 = vshrl.u32 %v614, 7
        %v616 = vsub.s32 0, %v615
        %v617 = vrot.slane %v613, %v616
        %v618 = vmul.f32 %v611, %v617
        %v619 = vmul.f32 %v612, %v617
        %v620 = vld [vmem:[#allocation6 + $0x4] sm:$0x1]
        %v621 = vlaneseq
        %v622 = vshrl.u32 %v621, 7
        %v623 = vsub.s32 0, %v622
        %v624 = vrot.slane %v620, %v623
        %v625 = vadd.f32 %v618, %v624
        %v626 = vadd.f32 %v619, %v624
        %v627 = vpack.c.bf16 %v626, %v625
        %v629 = vshrl.u32 %v627, 16
        %v631 = vrot.slane %v629, 7
        %v632 = vshll.u32 %v627, 16
        %v634 = vor.u32 %v631, %v632
        %vm637 = vcmask 1040384
        %vm638 = vsmask.f32 256
        %vm639 = vmand %vm637, %vm638
        %v640 = vsel %vm639, 0, %v634
        %v641 = vsel %vm639, %v631, 0
        %v643 = vshrl.u32 %v640, 16
        %v645 = vshll.u32 %v640, 16
        %v647 = vrot.slane %v645, 1
        %v648 = vor.u32 %v643, %v647
        %v650 = vshll.u32 %v641, 16
        %v652 = vrot.slane %v650, 1
        %v653 = vsel %vm295, %v648, %v652
        %v657 = vrot.slane %v640, 1
        %v658 = vrot.slane %v641, 1
        %v659 = vsel %vm309, %v657, %v658
        %s661 = scalar_lea.vmem [#allocation2], 192
        %v662 = vld [vmem:[%s661] sm:$0xf]
        %v663 = vld [vmem:[%s661 + $0x4] sm:$0xf]
        %v664 = vld [vmem:[%s661 + $0x8] sm:$0xf]
        %v665 = vld [vmem:[%s661 + $0xc] sm:$0xf]
        %v666 = vld [vmem:[%s661 + $0x10] sm:$0xf]
        %v667 = vld [vmem:[%s661 + $0x14] sm:$0xf]
        %v668 = vld [vmem:[%s661 + $0x18] sm:$0xf]
        %v669 = vld [vmem:[%s661 + $0x1c] sm:$0xf]
        %v670 = vld [vmem:[%s661 + $0x20] sm:$0xf]
        %v671 = vld [vmem:[%s661 + $0x24] sm:$0xf]
        %v672 = vld [vmem:[%s661 + $0x28] sm:$0xf]
        %v673 = vld [vmem:[%s661 + $0x2c] sm:$0xf]
        %v674 = vld [vmem:[%s661 + $0x30] sm:$0xf]
        %v675 = vld [vmem:[%s661 + $0x34] sm:$0xf]
        %v676 = vld [vmem:[%s661 + $0x38] sm:$0xf]
        %v677 = vld [vmem:[%s661 + $0x3c] sm:$0xf]
        %v678 = vld [vmem:[%s661 + $0x40] sm:$0xf]
        %v679 = vld [vmem:[%s661 + $0x44] sm:$0xf]
        %v680 = vld [vmem:[%s661 + $0x48] sm:$0xf]
        %v681 = vld [vmem:[%s661 + $0x4c] sm:$0xf]
        %v682 = vld [vmem:[%s661 + $0x50] sm:$0xf]
        %v683 = vld [vmem:[%s661 + $0x54] sm:$0xf]
        %v684 = vld [vmem:[%s661 + $0x58] sm:$0xf]
        %v685 = vld [vmem:[%s661 + $0x5c] sm:$0xf]
        %v686 = vld [vmem:[%s661 + $0x60] sm:$0xf]
        %v687 = vld [vmem:[%s661 + $0x64] sm:$0xf]
        %v688 = vld [vmem:[%s661 + $0x68] sm:$0xf]
        %v689 = vld [vmem:[%s661 + $0x6c] sm:$0xf]
        %v690 = vld [vmem:[%s661 + $0x70] sm:$0xf]
        %v691 = vld [vmem:[%s661 + $0x74] sm:$0xf]
        %v692 = vld [vmem:[%s661 + $0x78] sm:$0xf]
        %v693 = vld [vmem:[%s661 + $0x7c] sm:$0xf]
        %v694 = vld [vmem:[%s661 + $0x80] sm:$0xf]
        %v695 = vld [vmem:[%s661 + $0x84] sm:$0xf]
        %v696 = vld [vmem:[%s661 + $0x88] sm:$0xf]
        %v697 = vld [vmem:[%s661 + $0x8c] sm:$0xf]
        %v698 = vld [vmem:[%s661 + $0x90] sm:$0xf]
        %v699 = vld [vmem:[%s661 + $0x94] sm:$0xf]
        %v700 = vld [vmem:[%s661 + $0x98] sm:$0xf]
        %v701 = vld [vmem:[%s661 + $0x9c] sm:$0xf]
        %v702 = vld [vmem:[%s661 + $0xa0] sm:$0xf]
        %v703 = vld [vmem:[%s661 + $0xa4] sm:$0xf]
        %v704 = vld [vmem:[%s661 + $0xa8] sm:$0xf]
        %v705 = vld [vmem:[%s661 + $0xac] sm:$0xf]
        %v706 = vld [vmem:[%s661 + $0xb0] sm:$0xf]
        %v707 = vld [vmem:[%s661 + $0xb4] sm:$0xf]
        %v708 = vld [vmem:[%s661 + $0xb8] sm:$0xf]
        %v709 = vld [vmem:[%s661 + $0xbc] sm:$0xf]
        %v758 = vunpack.c.l.b16 %v662
        %v759 = vunpack.c.l.b16 %v663
        %v760 = vunpack.c.l.b16 %v664
        %v761 = vunpack.c.l.b16 %v665
        %v762 = vunpack.c.l.b16 %v666
        %v763 = vunpack.c.l.b16 %v667
        %v764 = vunpack.c.l.b16 %v668
        %v765 = vunpack.c.l.b16 %v669
        %v766 = vunpack.c.l.b16 %v670
        %v767 = vunpack.c.l.b16 %v671
        %v768 = vunpack.c.l.b16 %v672
        %v769 = vunpack.c.l.b16 %v673
        %v770 = vunpack.c.l.b16 %v674
        %v771 = vunpack.c.l.b16 %v675
        %v772 = vunpack.c.l.b16 %v676
        %v773 = vunpack.c.l.b16 %v677
        %v774 = vunpack.c.l.b16 %v678
        %v775 = vunpack.c.l.b16 %v679
        %v776 = vunpack.c.l.b16 %v680
        %v777 = vunpack.c.l.b16 %v681
        %v778 = vunpack.c.l.b16 %v682
        %v779 = vunpack.c.l.b16 %v683
        %v780 = vunpack.c.l.b16 %v684
        %v781 = vunpack.c.l.b16 %v685
        %v782 = vunpack.c.l.b16 %v686
        %v783 = vunpack.c.l.b16 %v687
        %v784 = vunpack.c.l.b16 %v688
        %v785 = vunpack.c.l.b16 %v689
        %v786 = vunpack.c.l.b16 %v690
        %v787 = vunpack.c.l.b16 %v691
        %v788 = vunpack.c.l.b16 %v692
        %v789 = vunpack.c.l.b16 %v693
        %v790 = vunpack.c.l.b16 %v694
        %v791 = vunpack.c.l.b16 %v695
        %v792 = vunpack.c.l.b16 %v696
        %v793 = vunpack.c.l.b16 %v697
        %v794 = vunpack.c.l.b16 %v698
        %v795 = vunpack.c.l.b16 %v699
        %v796 = vunpack.c.l.b16 %v700
        %v797 = vunpack.c.l.b16 %v701
        %v798 = vunpack.c.l.b16 %v702
        %v799 = vunpack.c.l.b16 %v703
        %v800 = vunpack.c.l.b16 %v704
        %v801 = vunpack.c.l.b16 %v705
        %v802 = vunpack.c.l.b16 %v706
        %v803 = vunpack.c.l.b16 %v707
        %v804 = vunpack.c.l.b16 %v708
        %v805 = vunpack.c.l.b16 %v709
        %v806 = vpack.c.b16 %v759, %v758
        %v807 = vpack.c.b16 %v761, %v760
        %v808 = vpack.c.b16 %v763, %v762
        %v809 = vpack.c.b16 %v765, %v764
        %v810 = vpack.c.b16 %v767, %v766
        %v811 = vpack.c.b16 %v769, %v768
        %v812 = vpack.c.b16 %v771, %v770
        %v813 = vpack.c.b16 %v773, %v772
        %v814 = vpack.c.b16 %v775, %v774
        %v815 = vpack.c.b16 %v777, %v776
        %v816 = vpack.c.b16 %v779, %v778
        %v817 = vpack.c.b16 %v781, %v780
        %v818 = vpack.c.b16 %v783, %v782
        %v819 = vpack.c.b16 %v785, %v784
        %v820 = vpack.c.b16 %v787, %v786
        %v821 = vpack.c.b16 %v789, %v788
        %v822 = vpack.c.b16 %v791, %v790
        %v823 = vpack.c.b16 %v793, %v792
        %v824 = vpack.c.b16 %v795, %v794
        %v825 = vpack.c.b16 %v797, %v796
        %v826 = vpack.c.b16 %v799, %v798
        %v827 = vpack.c.b16 %v801, %v800
        %v828 = vpack.c.b16 %v803, %v802
        %v829 = vpack.c.b16 %v805, %v804
        %854 = vmatprep.subr.bf16.mxu0 0
        %855 = vmatpush1.bf16.msra.mxu0 %v806
        %856 = vmatprep.subr.bf16.mxu0 0
        %857 = vmatpush1.bf16.msra.mxu0 %v807
        %858 = vmatprep.subr.bf16.mxu0 0
        %859 = vmatpush1.bf16.msra.mxu0 %v808
        %860 = vmatprep.subr.bf16.mxu0 0
        %861 = vmatpush1.bf16.msra.mxu0 %v809
        %862 = vmatprep.subr.bf16.mxu0 0
        %863 = vmatpush1.bf16.msra.mxu0 %v810
        %864 = vmatprep.subr.bf16.mxu0 0
        %865 = vmatpush1.bf16.msra.mxu0 %v811
        %866 = vmatprep.subr.bf16.mxu0 0
        %867 = vmatpush1.bf16.msra.mxu0 %v812
        %868 = vmatprep.subr.bf16.mxu0 0
        %869 = vmatpush1.bf16.msra.mxu0 %v813
        %870 = vmatprep.subr.bf16.mxu0 0
        %871 = vmatpush1.bf16.msra.mxu0 %v814
        %872 = vmatprep.subr.bf16.mxu0 0
        %873 = vmatpush1.bf16.msra.mxu0 %v815
        %874 = vmatprep.subr.bf16.mxu0 0
        %875 = vmatpush1.bf16.msra.mxu0 %v816
        %876 = vmatprep.subr.bf16.mxu0 0
        %877 = vmatpush1.bf16.msra.mxu0 %v817
        %878 = vmatprep.subr.bf16.mxu0 0
        %879 = vmatpush1.bf16.msra.mxu0 %v818
        %880 = vmatprep.subr.bf16.mxu0 0
        %881 = vmatpush1.bf16.msra.mxu0 %v819
        %882 = vmatprep.subr.bf16.mxu0 0
        %883 = vmatpush1.bf16.msra.mxu0 %v820
        %884 = vmatprep.subr.bf16.mxu0 0
        %885 = vmatpush1.bf16.msra.mxu0 %v821
        %886 = vmatprep.mubr.bf16.mxu0 %v653
        %887 = vmatmul.mubr.bf16.gmra.mrb[0].mxu0 %v640
        %v888 = vpop.f32.mrb[0].mxu0
        %v889 = vadd.f32 0.0, %v888
        %v890 = vpop.f32.mrb[0].mxu0
        %v891 = vpop.f32.mrb[0].mxu0
        %v892 = vadd.f32 0.0, %v891
        %v893 = vpop.f32.mrb[0].mxu0
        %894 = vdwg.mxu0
        %895 = vmatprep.subr.bf16.mxu0 0
        %896 = vmatpush1.bf16.msra.mxu0 %v822
        %897 = vmatprep.subr.bf16.mxu0 0
        %898 = vmatpush1.bf16.msra.mxu0 %v823
        %899 = vmatprep.subr.bf16.mxu0 0
        %900 = vmatpush1.bf16.msra.mxu0 %v824
        %901 = vmatprep.subr.bf16.mxu0 0
        %902 = vmatpush1.bf16.msra.mxu0 %v825
        %903 = vmatprep.subr.bf16.mxu0 0
        %904 = vmatpush1.bf16.msra.mxu0 %v826
        %905 = vmatprep.subr.bf16.mxu0 0
        %906 = vmatpush1.bf16.msra.mxu0 %v827
        %907 = vmatprep.subr.bf16.mxu0 0
        %908 = vmatpush1.bf16.msra.mxu0 %v828
        %909 = vmatprep.subr.bf16.mxu0 0
        %910 = vmatpush1.bf16.msra.mxu0 %v829
        %911 = vmatprep.subr.bf16.mxu0 0
        %912 = vmatpush1.bf16.msra.mxu0 0
        %913 = vmatprep.subr.bf16.mxu0 0
        %914 = vmatpush1.bf16.msra.mxu0 0
        %915 = vmatprep.subr.bf16.mxu0 0
        %916 = vmatpush1.bf16.msra.mxu0 0
        %917 = vmatprep.subr.bf16.mxu0 0
        %918 = vmatpush1.bf16.msra.mxu0 0
        %919 = vmatprep.subr.bf16.mxu0 0
        %920 = vmatpush1.bf16.msra.mxu0 0
        %921 = vmatprep.subr.bf16.mxu0 0
        %922 = vmatpush1.bf16.msra.mxu0 0
        %923 = vmatprep.subr.bf16.mxu0 0
        %924 = vmatpush1.bf16.msra.mxu0 0
        %925 = vmatprep.subr.bf16.mxu0 0
        %926 = vmatpush1.bf16.msra.mxu0 0
        %927 = vmatprep.mubr.bf16.mxu0 0
        %928 = vmatmul.mubr.bf16.gmra.mrb[0].mxu0 %v659
        %v929 = vpop.f32.mrb[0].mxu0
        %v930 = vadd.f32 %v889, %v929
        %v931 = vpop.f32.mrb[0].mxu0
        %v932 = vpop.f32.mrb[0].mxu0
        %v933 = vadd.f32 %v892, %v932
        %v934 = vpop.f32.mrb[0].mxu0
        %935 = vdwg.mxu0
        %v936 = vld [vmem:[#allocation6 + $0x5] sm:$0x1]
        %v937 = vlaneseq
        %v938 = vshrl.u32 %v937, 7
        %v939 = vsub.s32 0, %v938
        %v940 = vrot.slane %v936, %v939
        %v941 = vmul.f32 %v930, %v940
        %v942 = vmul.f32 %v933, %v940
        %v943 = vld [vmem:[#allocation6 + $0x6] sm:$0x1]
        %v944 = vlaneseq
        %v945 = vshrl.u32 %v944, 7
        %v946 = vsub.s32 0, %v945
        %v947 = vrot.slane %v943, %v946
        %v948 = vadd.f32 %v941, %v947
        %v949 = vadd.f32 %v942, %v947
        %vm950 = vcmp.ge.f32.partialorder %v948, 0.0
        %vm951 = vcmp.ge.f32.partialorder %v949, 0.0
        %v952 = vld [vmem:[#allocation6 + $0x7] sm:$0x1]
        %v953 = vlaneseq
        %v954 = vshrl.u32 %v953, 7
        %v955 = vsub.s32 0, %v954
        %v956 = vrot.slane %v952, %v955
        %v957 = vmul.f32 %v948, %v956
        %v958 = vmul.f32 %v949, %v956
        %v959 = vsel %vm950, %v948, %v957
        %v960 = vsel %vm951, %v949, %v958
        %v961 = vpack.c.bf16 %v960, %v959
        %v963 = vshrl.u32 %v961, 16
        %v965 = vrot.slane %v963, 7
        %v966 = vshll.u32 %v961, 16
        %v968 = vor.u32 %v965, %v966
        %v971 = vsel %vm639, 0, %v968
        %v972 = vsel %vm639, %v965, 0
        %v974 = vshrl.u32 %v971, 16
        %v976 = vshll.u32 %v971, 16
        %v978 = vrot.slane %v976, 1
        %v979 = vor.u32 %v974, %v978
        %v981 = vshll.u32 %v972, 16
        %v983 = vrot.slane %v981, 1
        %v984 = vsel %vm295, %v979, %v983
        %v988 = vrot.slane %v971, 1
        %v989 = vrot.slane %v972, 1
        %v990 = vsel %vm309, %v988, %v989
        %s992 = scalar_lea.vmem [#allocation2], 384
        %v993 = vld [vmem:[%s992] sm:$0xf]
        %v994 = vld [vmem:[%s992 + $0x4] sm:$0xf]
        %v995 = vld [vmem:[%s992 + $0x8] sm:$0xf]
        %v996 = vld [vmem:[%s992 + $0xc] sm:$0xf]
        %v997 = vld [vmem:[%s992 + $0x10] sm:$0xf]
        %v998 = vld [vmem:[%s992 + $0x14] sm:$0xf]
        %v999 = vld [vmem:[%s992 + $0x18] sm:$0xf]
        %v1000 = vld [vmem:[%s992 + $0x1c] sm:$0xf]
        %v1001 = vld [vmem:[%s992 + $0x20] sm:$0xf]
        %v1002 = vld [vmem:[%s992 + $0x24] sm:$0xf]
        %v1003 = vld [vmem:[%s992 + $0x28] sm:$0xf]
        %v1004 = vld [vmem:[%s992 + $0x2c] sm:$0xf]
        %v1005 = vld [vmem:[%s992 + $0x30] sm:$0xf]
        %v1006 = vld [vmem:[%s992 + $0x34] sm:$0xf]
        %v1007 = vld [vmem:[%s992 + $0x38] sm:$0xf]
        %v1008 = vld [vmem:[%s992 + $0x3c] sm:$0xf]
        %v1009 = vld [vmem:[%s992 + $0x40] sm:$0xf]
        %v1010 = vld [vmem:[%s992 + $0x44] sm:$0xf]
        %v1011 = vld [vmem:[%s992 + $0x48] sm:$0xf]
        %v1012 = vld [vmem:[%s992 + $0x4c] sm:$0xf]
        %v1013 = vld [vmem:[%s992 + $0x50] sm:$0xf]
        %v1014 = vld [vmem:[%s992 + $0x54] sm:$0xf]
        %v1015 = vld [vmem:[%s992 + $0x58] sm:$0xf]
        %v1016 = vld [vmem:[%s992 + $0x5c] sm:$0xf]
        %v1017 = vld [vmem:[%s992 + $0x60] sm:$0xf]
        %v1018 = vld [vmem:[%s992 + $0x64] sm:$0xf]
        %v1019 = vld [vmem:[%s992 + $0x68] sm:$0xf]
        %v1020 = vld [vmem:[%s992 + $0x6c] sm:$0xf]
        %v1021 = vld [vmem:[%s992 + $0x70] sm:$0xf]
        %v1022 = vld [vmem:[%s992 + $0x74] sm:$0xf]
        %v1023 = vld [vmem:[%s992 + $0x78] sm:$0xf]
        %v1024 = vld [vmem:[%s992 + $0x7c] sm:$0xf]
        %v1025 = vld [vmem:[%s992 + $0x80] sm:$0xf]
        %v1026 = vld [vmem:[%s992 + $0x84] sm:$0xf]
        %v1027 = vld [vmem:[%s992 + $0x88] sm:$0xf]
        %v1028 = vld [vmem:[%s992 + $0x8c] sm:$0xf]
        %v1029 = vld [vmem:[%s992 + $0x90] sm:$0xf]
        %v1030 = vld [vmem:[%s992 + $0x94] sm:$0xf]
        %v1031 = vld [vmem:[%s992 + $0x98] sm:$0xf]
        %v1032 = vld [vmem:[%s992 + $0x9c] sm:$0xf]
        %v1033 = vld [vmem:[%s992 + $0xa0] sm:$0xf]
        %v1034 = vld [vmem:[%s992 + $0xa4] sm:$0xf]
        %v1035 = vld [vmem:[%s992 + $0xa8] sm:$0xf]
        %v1036 = vld [vmem:[%s992 + $0xac] sm:$0xf]
        %v1037 = vld [vmem:[%s992 + $0xb0] sm:$0xf]
        %v1038 = vld [vmem:[%s992 + $0xb4] sm:$0xf]
        %v1039 = vld [vmem:[%s992 + $0xb8] sm:$0xf]
        %v1040 = vld [vmem:[%s992 + $0xbc] sm:$0xf]
        %v1089 = vunpack.c.l.b16 %v993
        %v1090 = vunpack.c.l.b16 %v994
        %v1091 = vunpack.c.l.b16 %v995
        %v1092 = vunpack.c.l.b16 %v996
        %v1093 = vunpack.c.l.b16 %v997
        %v1094 = vunpack.c.l.b16 %v998
        %v1095 = vunpack.c.l.b16 %v999
        %v1096 = vunpack.c.l.b16 %v1000
        %v1097 = vunpack.c.l.b16 %v1001
        %v1098 = vunpack.c.l.b16 %v1002
        %v1099 = vunpack.c.l.b16 %v1003
        %v1100 = vunpack.c.l.b16 %v1004
        %v1101 = vunpack.c.l.b16 %v1005
        %v1102 = vunpack.c.l.b16 %v1006
        %v1103 = vunpack.c.l.b16 %v1007
        %v1104 = vunpack.c.l.b16 %v1008
        %v1105 = vunpack.c.l.b16 %v1009
        %v1106 = vunpack.c.l.b16 %v1010
        %v1107 = vunpack.c.l.b16 %v1011
        %v1108 = vunpack.c.l.b16 %v1012
        %v1109 = vunpack.c.l.b16 %v1013
        %v1110 = vunpack.c.l.b16 %v1014
        %v1111 = vunpack.c.l.b16 %v1015
        %v1112 = vunpack.c.l.b16 %v1016
        %v1113 = vunpack.c.l.b16 %v1017
        %v1114 = vunpack.c.l.b16 %v1018
        %v1115 = vunpack.c.l.b16 %v1019
        %v1116 = vunpack.c.l.b16 %v1020
        %v1117 = vunpack.c.l.b16 %v1021
        %v1118 = vunpack.c.l.b16 %v1022
        %v1119 = vunpack.c.l.b16 %v1023
        %v1120 = vunpack.c.l.b16 %v1024
        %v1121 = vunpack.c.l.b16 %v1025
        %v1122 = vunpack.c.l.b16 %v1026
        %v1123 = vunpack.c.l.b16 %v1027
        %v1124 = vunpack.c.l.b16 %v1028
        %v1125 = vunpack.c.l.b16 %v1029
        %v1126 = vunpack.c.l.b16 %v1030
        %v1127 = vunpack.c.l.b16 %v1031
        %v1128 = vunpack.c.l.b16 %v1032
        %v1129 = vunpack.c.l.b16 %v1033
        %v1130 = vunpack.c.l.b16 %v1034
        %v1131 = vunpack.c.l.b16 %v1035
        %v1132 = vunpack.c.l.b16 %v1036
        %v1133 = vunpack.c.l.b16 %v1037
        %v1134 = vunpack.c.l.b16 %v1038
        %v1135 = vunpack.c.l.b16 %v1039
        %v1136 = vunpack.c.l.b16 %v1040
        %v1137 = vpack.c.b16 %v1090, %v1089
        %v1138 = vpack.c.b16 %v1092, %v1091
        %v1139 = vpack.c.b16 %v1094, %v1093
        %v1140 = vpack.c.b16 %v1096, %v1095
        %v1141 = vpack.c.b16 %v1098, %v1097
        %v1142 = vpack.c.b16 %v1100, %v1099
        %v1143 = vpack.c.b16 %v1102, %v1101
        %v1144 = vpack.c.b16 %v1104, %v1103
        %v1145 = vpack.c.b16 %v1106, %v1105
        %v1146 = vpack.c.b16 %v1108, %v1107
        %v1147 = vpack.c.b16 %v1110, %v1109
        %v1148 = vpack.c.b16 %v1112, %v1111
        %v1149 = vpack.c.b16 %v1114, %v1113
        %v1150 = vpack.c.b16 %v1116, %v1115
        %v1151 = vpack.c.b16 %v1118, %v1117
        %v1152 = vpack.c.b16 %v1120, %v1119
        %v1153 = vpack.c.b16 %v1122, %v1121
        %v1154 = vpack.c.b16 %v1124, %v1123
        %v1155 = vpack.c.b16 %v1126, %v1125
        %v1156 = vpack.c.b16 %v1128, %v1127
        %v1157 = vpack.c.b16 %v1130, %v1129
        %v1158 = vpack.c.b16 %v1132, %v1131
        %v1159 = vpack.c.b16 %v1134, %v1133
        %v1160 = vpack.c.b16 %v1136, %v1135
        %1185 = vmatprep.subr.bf16.mxu0 0
        %1186 = vmatpush1.bf16.msra.mxu0 %v1137
        %1187 = vmatprep.subr.bf16.mxu0 0
        %1188 = vmatpush1.bf16.msra.mxu0 %v1138
        %1189 = vmatprep.subr.bf16.mxu0 0
        %1190 = vmatpush1.bf16.msra.mxu0 %v1139
        %1191 = vmatprep.subr.bf16.mxu0 0
        %1192 = vmatpush1.bf16.msra.mxu0 %v1140
        %1193 = vmatprep.subr.bf16.mxu0 0
        %1194 = vmatpush1.bf16.msra.mxu0 %v1141
        %1195 = vmatprep.subr.bf16.mxu0 0
        %1196 = vmatpush1.bf16.msra.mxu0 %v1142
        %1197 = vmatprep.subr.bf16.mxu0 0
        %1198 = vmatpush1.bf16.msra.mxu0 %v1143
        %1199 = vmatprep.subr.bf16.mxu0 0
        %1200 = vmatpush1.bf16.msra.mxu0 %v1144
        %1201 = vmatprep.subr.bf16.mxu0 0
        %1202 = vmatpush1.bf16.msra.mxu0 %v1145
        %1203 = vmatprep.subr.bf16.mxu0 0
        %1204 = vmatpush1.bf16.msra.mxu0 %v1146
        %1205 = vmatprep.subr.bf16.mxu0 0
        %1206 = vmatpush1.bf16.msra.mxu0 %v1147
        %1207 = vmatprep.subr.bf16.mxu0 0
        %1208 = vmatpush1.bf16.msra.mxu0 %v1148
        %1209 = vmatprep.subr.bf16.mxu0 0
        %1210 = vmatpush1.bf16.msra.mxu0 %v1149
        %1211 = vmatprep.subr.bf16.mxu0 0
        %1212 = vmatpush1.bf16.msra.mxu0 %v1150
        %1213 = vmatprep.subr.bf16.mxu0 0
        %1214 = vmatpush1.bf16.msra.mxu0 %v1151
        %1215 = vmatprep.subr.bf16.mxu0 0
        %1216 = vmatpush1.bf16.msra.mxu0 %v1152
        %1217 = vmatprep.mubr.bf16.mxu0 %v984
        %1218 = vmatmul.mubr.bf16.gmra.mrb[0].mxu0 %v971
        %v1219 = vpop.f32.mrb[0].mxu0
        %v1220 = vadd.f32 0.0, %v1219
        %v1221 = vpop.f32.mrb[0].mxu0
        %v1222 = vpop.f32.mrb[0].mxu0
        %v1223 = vadd.f32 0.0, %v1222
        %v1224 = vpop.f32.mrb[0].mxu0
        %1225 = vdwg.mxu0
        %1226 = vmatprep.subr.bf16.mxu0 0
        %1227 = vmatpush1.bf16.msra.mxu0 %v1153
        %1228 = vmatprep.subr.bf16.mxu0 0
        %1229 = vmatpush1.bf16.msra.mxu0 %v1154
        %1230 = vmatprep.subr.bf16.mxu0 0
        %1231 = vmatpush1.bf16.msra.mxu0 %v1155
        %1232 = vmatprep.subr.bf16.mxu0 0
        %1233 = vmatpush1.bf16.msra.mxu0 %v1156
        %1234 = vmatprep.subr.bf16.mxu0 0
        %1235 = vmatpush1.bf16.msra.mxu0 %v1157
        %1236 = vmatprep.subr.bf16.mxu0 0
        %1237 = vmatpush1.bf16.msra.mxu0 %v1158
        %1238 = vmatprep.subr.bf16.mxu0 0
        %1239 = vmatpush1.bf16.msra.mxu0 %v1159
        %1240 = vmatprep.subr.bf16.mxu0 0
        %1241 = vmatpush1.bf16.msra.mxu0 %v1160
        %1242 = vmatprep.subr.bf16.mxu0 0
        %1243 = vmatpush1.bf16.msra.mxu0 0
        %1244 = vmatprep.subr.bf16.mxu0 0
        %1245 = vmatpush1.bf16.msra.mxu0 0
        %1246 = vmatprep.subr.bf16.mxu0 0
        %1247 = vmatpush1.bf16.msra.mxu0 0
        %1248 = vmatprep.subr.bf16.mxu0 0
        %1249 = vmatpush1.bf16.msra.mxu0 0
        %1250 = vmatprep.subr.bf16.mxu0 0
        %1251 = vmatpush1.bf16.msra.mxu0 0
        %1252 = vmatprep.subr.bf16.mxu0 0
        %1253 = vmatpush1.bf16.msra.mxu0 0
        %1254 = vmatprep.subr.bf16.mxu0 0
        %1255 = vmatpush1.bf16.msra.mxu0 0
        %1256 = vmatprep.subr.bf16.mxu0 0
        %1257 = vmatpush1.bf16.msra.mxu0 0
        %1258 = vmatprep.mubr.bf16.mxu0 0
        %1259 = vmatmul.mubr.bf16.gmra.mrb[0].mxu0 %v990
        %v1260 = vpop.f32.mrb[0].mxu0
        %v1261 = vadd.f32 %v1220, %v1260
        %v1262 = vpop.f32.mrb[0].mxu0
        %v1263 = vpop.f32.mrb[0].mxu0
        %v1264 = vadd.f32 %v1223, %v1263
        %v1265 = vpop.f32.mrb[0].mxu0
        %1266 = vdwg.mxu0
        %v1267 = vlaneseq
        %v1268 = vshrl.u32 %v1267, 7
        %v1269 = vlaneseq
        %v1270 = vand.u32 %v1269, 127
        %v1271 = vmul.u32 %v1268, 2
        %vm1272 = vcmp.eq.s32.totalorder %v1270, %v1271
        %v1273 = vsel %vm1272, 1, 0
        %v1274 = vcvt.s32.f32 %v1273
        %vm1275 = vcmask 130048
        %v1277 = vsel %vm1275, %v1274, 0
        %1279 = vmatprep.subr.mxu0 0.0
        %1280 = vmatpush1.msra.mxu0 %v1261
        %1281 = vmatprep.subr.mxu0 0.0
        %1282 = vmatpush1.msra.mxu0 %v1264
        %1283 = vmatprep.subr.mxu0 0.0
        %1284 = vmatpush1.msra.mxu0 0.0
        %1285 = vmatprep.subr.mxu0 0.0
        %1286 = vmatpush1.msra.mxu0 0.0
        %1287 = vmatprep.subr.mxu0 0.0
        %1288 = vmatpush1.msra.mxu0 0.0
        %1289 = vmatprep.subr.mxu0 0.0
        %1290 = vmatpush1.msra.mxu0 0.0
        %1291 = vmatprep.subr.mxu0 0.0
        %1292 = vmatpush1.msra.mxu0 0.0
        %1293 = vmatprep.subr.mxu0 0.0
        %1294 = vmatpush1.msra.mxu0 0.0
        %1295 = vmatprep.subr.mxu0 0.0
        %1296 = vmatpush1.msra.mxu0 0.0
        %1297 = vmatprep.subr.mxu0 0.0
        %1298 = vmatpush1.msra.mxu0 0.0
        %1299 = vmatprep.subr.mxu0 0.0
        %1300 = vmatpush1.msra.mxu0 0.0
        %1301 = vmatprep.subr.mxu0 0.0
        %1302 = vmatpush1.msra.mxu0 0.0
        %1303 = vmatprep.subr.mxu0 0.0
        %1304 = vmatpush1.msra.mxu0 0.0
        %1305 = vmatprep.subr.mxu0 0.0
        %1306 = vmatpush1.msra.mxu0 0.0
        %1307 = vmatprep.subr.mxu0 0.0
        %1308 = vmatpush1.msra.mxu0 0.0
        %1309 = vmatprep.subr.mxu0 0.0
        %1310 = vmatpush1.msra.mxu0 0.0
        %1311 = vmatprep.subr.mxu0 0.0
        %1312 = vmatpush1.msra.mxu0 0.0
        %1313 = vmatprep.subr.mxu0 0.0
        %1314 = vmatpush1.msra.mxu0 0.0
        %1315 = vmatprep.subr.mxu0 0.0
        %1316 = vmatpush1.msra.mxu0 0.0
        %1317 = vmatprep.subr.mxu0 0.0
        %1318 = vmatpush1.msra.mxu0 0.0
        %1319 = vmatprep.subr.mxu0 0.0
        %1320 = vmatpush1.msra.mxu0 0.0
        %1321 = vmatprep.subr.mxu0 0.0
        %1322 = vmatpush1.msra.mxu0 0.0
        %1323 = vmatprep.subr.mxu0 0.0
        %1324 = vmatpush1.msra.mxu0 0.0
        %1325 = vmatprep.subr.mxu0 0.0
        %1326 = vmatpush1.msra.mxu0 0.0
        %1327 = vmatprep.subr.mxu0 0.0
        %1328 = vmatpush1.msra.mxu0 0.0
        %1329 = vmatprep.subr.mxu0 0.0
        %1330 = vmatpush1.msra.mxu0 0.0
        %1331 = vmatprep.subr.mxu0 0.0
        %1332 = vmatpush1.msra.mxu0 0.0
        %1333 = vmatprep.subr.mxu0 0.0
        %1334 = vmatpush1.msra.mxu0 0.0
        %1335 = vmatprep.subr.mxu0 0.0
        %1336 = vmatpush1.msra.mxu0 0.0
        %1337 = vmatprep.subr.mxu0 0.0
        %1338 = vmatpush1.msra.mxu0 0.0
        %1339 = vmatprep.subr.mxu0 0.0
        %1340 = vmatpush1.msra.mxu0 0.0
        %1341 = vmatprep.subr.mxu0 0.0
        %1342 = vmatpush1.msra.mxu0 0.0
        %1343 = vmatprep.mubr.f32.mxu0 0.0
        %1344 = vmatmul.mubr.f32.gmra.mrb[0].mxu0 %v1277
        %v1345 = vpop.f32.mrb[0].mxu0
        %v1346 = vadd.f32 0.0, %v1345
        %v1347 = vpop.f32.mrb[0].mxu0
        %1348 = vdwg.mxu0
        %1349 = vmatprep.subr.mxu0 0.0
        %1350 = vmatpush1.msra.mxu0 %v611
        %1351 = vmatprep.subr.mxu0 0.0
        %1352 = vmatpush1.msra.mxu0 %v612
        %1353 = vmatprep.subr.mxu0 0.0
        %1354 = vmatpush1.msra.mxu0 0.0
        %1355 = vmatprep.subr.mxu0 0.0
        %1356 = vmatpush1.msra.mxu0 0.0
        %1357 = vmatprep.subr.mxu0 0.0
        %1358 = vmatpush1.msra.mxu0 0.0
        %1359 = vmatprep.subr.mxu0 0.0
        %1360 = vmatpush1.msra.mxu0 0.0
        %1361 = vmatprep.subr.mxu0 0.0
        %1362 = vmatpush1.msra.mxu0 0.0
        %1363 = vmatprep.subr.mxu0 0.0
        %1364 = vmatpush1.msra.mxu0 0.0
        %1365 = vmatprep.subr.mxu0 0.0
        %1366 = vmatpush1.msra.mxu0 0.0
        %1367 = vmatprep.subr.mxu0 0.0
        %1368 = vmatpush1.msra.mxu0 0.0
        %1369 = vmatprep.subr.mxu0 0.0
        %1370 = vmatpush1.msra.mxu0 0.0
        %1371 = vmatprep.subr.mxu0 0.0
        %1372 = vmatpush1.msra.mxu0 0.0
        %1373 = vmatprep.subr.mxu0 0.0
        %1374 = vmatpush1.msra.mxu0 0.0
        %1375 = vmatprep.subr.mxu0 0.0
        %1376 = vmatpush1.msra.mxu0 0.0
        %1377 = vmatprep.subr.mxu0 0.0
        %1378 = vmatpush1.msra.mxu0 0.0
        %1379 = vmatprep.subr.mxu0 0.0
        %1380 = vmatpush1.msra.mxu0 0.0
        %1381 = vmatprep.subr.mxu0 0.0
        %1382 = vmatpush1.msra.mxu0 0.0
        %1383 = vmatprep.subr.mxu0 0.0
        %1384 = vmatpush1.msra.mxu0 0.0
        %1385 = vmatprep.subr.mxu0 0.0
        %1386 = vmatpush1.msra.mxu0 0.0
        %1387 = vmatprep.subr.mxu0 0.0
        %1388 = vmatpush1.msra.mxu0 0.0
        %1389 = vmatprep.subr.mxu0 0.0
        %1390 = vmatpush1.msra.mxu0 0.0
        %1391 = vmatprep.subr.mxu0 0.0
        %1392 = vmatpush1.msra.mxu0 0.0
        %1393 = vmatprep.subr.mxu0 0.0
        %1394 = vmatpush1.msra.mxu0 0.0
        %1395 = vmatprep.subr.mxu0 0.0
        %1396 = vmatpush1.msra.mxu0 0.0
        %1397 = vmatprep.subr.mxu0 0.0
        %1398 = vmatpush1.msra.mxu0 0.0
        %1399 = vmatprep.subr.mxu0 0.0
        %1400 = vmatpush1.msra.mxu0 0.0
        %1401 = vmatprep.subr.mxu0 0.0
        %1402 = vmatpush1.msra.mxu0 0.0
        %1403 = vmatprep.subr.mxu0 0.0
        %1404 = vmatpush1.msra.mxu0 0.0
        %1405 = vmatprep.subr.mxu0 0.0
        %1406 = vmatpush1.msra.mxu0 0.0
        %1407 = vmatprep.subr.mxu0 0.0
        %1408 = vmatpush1.msra.mxu0 0.0
        %1409 = vmatprep.subr.mxu0 0.0
        %1410 = vmatpush1.msra.mxu0 0.0
        %1411 = vmatprep.subr.mxu0 0.0
        %1412 = vmatpush1.msra.mxu0 0.0
        %1413 = vmatprep.mubr.f32.mxu0 0.0
        %1414 = vmatmul.mubr.f32.gmra.mrb[0].mxu0 %v1277
        %v1415 = vpop.f32.mrb[0].mxu0
        %v1416 = vadd.f32 0.0, %v1415
        %v1417 = vpop.f32.mrb[0].mxu0
        %1418 = vdwg.mxu0
        %v1419 = vpack.c.bf16 %v1416, %v1416
        %v1420 = vld [vmem:[#allocation4] sm:$0xf]
        %v1421 = vld [vmem:[#allocation4 + $0x4] sm:$0xf]
        %v1422 = vld [vmem:[#allocation4 + $0x8] sm:$0xf]
        %v1423 = vld [vmem:[#allocation4 + $0xc] sm:$0xf]
        %v1424 = vld [vmem:[#allocation4 + $0x10] sm:$0xf]
        %v1425 = vld [vmem:[#allocation4 + $0x14] sm:$0xf]
        %v1426 = vld [vmem:[#allocation4 + $0x18] sm:$0xf]
        %v1427 = vld [vmem:[#allocation4 + $0x1c] sm:$0xf]
        %v1428 = vld [vmem:[#allocation4 + $0x20] sm:$0xf]
        %v1429 = vld [vmem:[#allocation4 + $0x24] sm:$0xf]
        %v1430 = vld [vmem:[#allocation4 + $0x28] sm:$0xf]
        %v1431 = vld [vmem:[#allocation4 + $0x2c] sm:$0xf]
        %v1432 = vld [vmem:[#allocation4 + $0x30] sm:$0xf]
        %v1433 = vld [vmem:[#allocation4 + $0x34] sm:$0xf]
        %v1434 = vld [vmem:[#allocation4 + $0x38] sm:$0xf]
        %v1435 = vld [vmem:[#allocation4 + $0x3c] sm:$0xf]
        %v1452 = vunpack.c.l.b16 %v1420
        %v1453 = vunpack.c.l.b16 %v1421
        %v1454 = vunpack.c.l.b16 %v1422
        %v1455 = vunpack.c.l.b16 %v1423
        %v1456 = vunpack.c.l.b16 %v1424
        %v1457 = vunpack.c.l.b16 %v1425
        %v1458 = vunpack.c.l.b16 %v1426
        %v1459 = vunpack.c.l.b16 %v1427
        %v1460 = vunpack.c.l.b16 %v1428
        %v1461 = vunpack.c.l.b16 %v1429
        %v1462 = vunpack.c.l.b16 %v1430
        %v1463 = vunpack.c.l.b16 %v1431
        %v1464 = vunpack.c.l.b16 %v1432
        %v1465 = vunpack.c.l.b16 %v1433
        %v1466 = vunpack.c.l.b16 %v1434
        %v1467 = vunpack.c.l.b16 %v1435
        %v1468 = vpack.c.b16 %v1453, %v1452
        %v1469 = vpack.c.b16 %v1455, %v1454
        %v1470 = vpack.c.b16 %v1457, %v1456
        %v1471 = vpack.c.b16 %v1459, %v1458
        %v1472 = vpack.c.b16 %v1461, %v1460
        %v1473 = vpack.c.b16 %v1463, %v1462
        %v1474 = vpack.c.b16 %v1465, %v1464
        %v1475 = vpack.c.b16 %v1467, %v1466
        %1484 = vmatprep.subr.bf16.mxu0 0
        %1485 = vmatpush1.bf16.msra.mxu0 %v1468
        %1486 = vmatprep.subr.bf16.mxu0 0
        %1487 = vmatpush1.bf16.msra.mxu0 %v1469
        %1488 = vmatprep.subr.bf16.mxu0 0
        %1489 = vmatpush1.bf16.msra.mxu0 %v1470
        %1490 = vmatprep.subr.bf16.mxu0 0
        %1491 = vmatpush1.bf16.msra.mxu0 %v1471
        %1492 = vmatprep.subr.bf16.mxu0 0
        %1493 = vmatpush1.bf16.msra.mxu0 %v1472
        %1494 = vmatprep.subr.bf16.mxu0 0
        %1495 = vmatpush1.bf16.msra.mxu0 %v1473
        %1496 = vmatprep.subr.bf16.mxu0 0
        %1497 = vmatpush1.bf16.msra.mxu0 %v1474
        %1498 = vmatprep.subr.bf16.mxu0 0
        %1499 = vmatpush1.bf16.msra.mxu0 %v1475
        %1500 = vmatprep.subr.bf16.mxu0 0
        %1501 = vmatpush1.bf16.msra.mxu0 0
        %1502 = vmatprep.subr.bf16.mxu0 0
        %1503 = vmatpush1.bf16.msra.mxu0 0
        %1504 = vmatprep.subr.bf16.mxu0 0
        %1505 = vmatpush1.bf16.msra.mxu0 0
        %1506 = vmatprep.subr.bf16.mxu0 0
        %1507 = vmatpush1.bf16.msra.mxu0 0
        %1508 = vmatprep.subr.bf16.mxu0 0
        %1509 = vmatpush1.bf16.msra.mxu0 0
        %1510 = vmatprep.subr.bf16.mxu0 0
        %1511 = vmatpush1.bf16.msra.mxu0 0
        %1512 = vmatprep.subr.bf16.mxu0 0
        %1513 = vmatpush1.bf16.msra.mxu0 0
        %1514 = vmatprep.subr.bf16.mxu0 0
        %1515 = vmatpush1.bf16.msra.mxu0 0
        %1516 = vmatprep.mubr.bf16.mxu0 0
        %1517 = vmatmul.mubr.bf16.gmra.mrb[0].mxu0 %v1419
        %v1518 = vpop.f32.mrb[0].mxu0
        %v1519 = vadd.f32 0.0, %v1518
        %v1520 = vpop.f32.mrb[0].mxu0
        %v1521 = vpop.f32.mrb[0].mxu0
        %v1522 = vpop.f32.mrb[0].mxu0
        %1523 = vdwg.mxu0
        %v1524 = vld [vmem:[#allocation6 + $0xa] sm:$0x1]
        %v1525 = vlaneseq
        %v1526 = vshrl.u32 %v1525, 7
        %v1527 = vsub.s32 0, %v1526
        %v1528 = vrot.slane %v1524, %v1527
        %v1529 = vmul.f32 %v1519, %v1528
        %v1530 = vld [vmem:[#allocation6 + $0xb] sm:$0x1]
        %v1531 = vlaneseq
        %v1532 = vshrl.u32 %v1531, 7
        %v1533 = vsub.s32 0, %v1532
        %v1534 = vrot.slane %v1530, %v1533
        %v1535 = vadd.f32 %v1529, %v1534
        %v1536 = vld [vmem:[#allocation6 + $0x8] sm:$0x1]
        %v1537 = vlaneseq
        %v1538 = vshrl.u32 %v1537, 7
        %v1539 = vsub.s32 0, %v1538
        %v1540 = vrot.slane %v1536, %v1539
        %v1541 = vmul.f32 %v1346, %v1540
        %v1542 = vld [vmem:[#allocation6 + $0x9] sm:$0x1]
        %v1543 = vlaneseq
        %v1544 = vshrl.u32 %v1543, 7
        %v1545 = vsub.s32 0, %v1544
        %v1546 = vrot.slane %v1542, %v1545
        %v1547 = vadd.f32 %v1541, %v1546
        %v1548 = vadd.f32 %v1547, %v1535
        %v1549 = vld [vmem:[#allocation6 + $0xc] sm:$0x1]
        %v1550 = vlaneseq
        %v1551 = vshrl.u32 %v1550, 7
        %v1552 = vsub.s32 0, %v1551
        %v1553 = vrot.slane %v1549, %v1552
        %v1554 = vmul.f32 %v1548, %v1553
        %v1555 = vld [vmem:[#allocation6 + $0xd] sm:$0x1]
        %v1556 = vlaneseq
        %v1557 = vshrl.u32 %v1556, 7
        %v1558 = vsub.s32 0, %v1557
        %v1559 = vrot.slane %v1555, %v1558
        %v1560 = vadd.f32 %v1554, %v1559
        %v1561 = vpack.c.bf16 %v1560, %v1560
        %v1563 = vshrl.u32 %v1561, 16
        %v1565 = vrot.slane %v1563, 7
        %v1566 = vshll.u32 %v1561, 16
        %v1568 = vor.u32 %v1565, %v1566
        %v1570 = vsel %vm639, 0, %v1568
        %vm1571 = vcmask 1044480
        %vm1572 = vsmask.f32 4352
        %vm1573 = vmand %vm1571, %vm1572
        %v1574 = vsel %vm1573, %v1570, 0
        %v1576 = vshrl.u32 %v1574, 16
        %v1578 = vshll.u32 %v1574, 16
        %v1580 = vrot.slane %v1578, 1
        %v1581 = vor.u32 %v1576, %v1580
        %v1584 = vrot.slane %v1574, 1
        %s1586 = scalar_lea.vmem [#allocation2], 576
        %v1587 = vld [vmem:[%s1586] sm:$0xf]
        %v1588 = vld [vmem:[%s1586 + $0x4] sm:$0xf]
        %v1589 = vld [vmem:[%s1586 + $0x8] sm:$0xf]
        %v1590 = vld [vmem:[%s1586 + $0xc] sm:$0xf]
        %v1591 = vld [vmem:[%s1586 + $0x10] sm:$0xf]
        %v1592 = vld [vmem:[%s1586 + $0x14] sm:$0xf]
        %v1593 = vld [vmem:[%s1586 + $0x18] sm:$0xf]
        %v1594 = vld [vmem:[%s1586 + $0x1c] sm:$0xf]
        %v1595 = vld [vmem:[%s1586 + $0x20] sm:$0xf]
        %v1596 = vld [vmem:[%s1586 + $0x24] sm:$0xf]
        %v1597 = vld [vmem:[%s1586 + $0x28] sm:$0xf]
        %v1598 = vld [vmem:[%s1586 + $0x2c] sm:$0xf]
        %v1599 = vld [vmem:[%s1586 + $0x30] sm:$0xf]
        %v1600 = vld [vmem:[%s1586 + $0x34] sm:$0xf]
        %v1601 = vld [vmem:[%s1586 + $0x38] sm:$0xf]
        %v1602 = vld [vmem:[%s1586 + $0x3c] sm:$0xf]
        %v1603 = vld [vmem:[%s1586 + $0x40] sm:$0xf]
        %v1604 = vld [vmem:[%s1586 + $0x44] sm:$0xf]
        %v1605 = vld [vmem:[%s1586 + $0x48] sm:$0xf]
        %v1606 = vld [vmem:[%s1586 + $0x4c] sm:$0xf]
        %v1607 = vld [vmem:[%s1586 + $0x50] sm:$0xf]
        %v1608 = vld [vmem:[%s1586 + $0x54] sm:$0xf]
        %v1609 = vld [vmem:[%s1586 + $0x58] sm:$0xf]
        %v1610 = vld [vmem:[%s1586 + $0x5c] sm:$0xf]
        %v1611 = vld [vmem:[%s1586 + $0x60] sm:$0xf]
        %v1612 = vld [vmem:[%s1586 + $0x64] sm:$0xf]
        %v1613 = vld [vmem:[%s1586 + $0x68] sm:$0xf]
        %v1614 = vld [vmem:[%s1586 + $0x6c] sm:$0xf]
        %v1615 = vld [vmem:[%s1586 + $0x70] sm:$0xf]
        %v1616 = vld [vmem:[%s1586 + $0x74] sm:$0xf]
        %v1617 = vld [vmem:[%s1586 + $0x78] sm:$0xf]
        %v1618 = vld [vmem:[%s1586 + $0x7c] sm:$0xf]
        %v1619 = vld [vmem:[%s1586 + $0x80] sm:$0xf]
        %v1620 = vld [vmem:[%s1586 + $0x84] sm:$0xf]
        %v1621 = vld [vmem:[%s1586 + $0x88] sm:$0xf]
        %v1622 = vld [vmem:[%s1586 + $0x8c] sm:$0xf]
        %v1623 = vld [vmem:[%s1586 + $0x90] sm:$0xf]
        %v1624 = vld [vmem:[%s1586 + $0x94] sm:$0xf]
        %v1625 = vld [vmem:[%s1586 + $0x98] sm:$0xf]
        %v1626 = vld [vmem:[%s1586 + $0x9c] sm:$0xf]
        %v1627 = vld [vmem:[%s1586 + $0xa0] sm:$0xf]
        %v1628 = vld [vmem:[%s1586 + $0xa4] sm:$0xf]
        %v1629 = vld [vmem:[%s1586 + $0xa8] sm:$0xf]
        %v1630 = vld [vmem:[%s1586 + $0xac] sm:$0xf]
        %v1631 = vld [vmem:[%s1586 + $0xb0] sm:$0xf]
        %v1632 = vld [vmem:[%s1586 + $0xb4] sm:$0xf]
        %v1633 = vld [vmem:[%s1586 + $0xb8] sm:$0xf]
        %v1634 = vld [vmem:[%s1586 + $0xbc] sm:$0xf]
        %v1683 = vunpack.c.l.b16 %v1587
        %v1684 = vunpack.c.l.b16 %v1588
        %v1685 = vunpack.c.l.b16 %v1589
        %v1686 = vunpack.c.l.b16 %v1590
        %v1687 = vunpack.c.l.b16 %v1591
        %v1688 = vunpack.c.l.b16 %v1592
        %v1689 = vunpack.c.l.b16 %v1593
        %v1690 = vunpack.c.l.b16 %v1594
        %v1691 = vunpack.c.l.b16 %v1595
        %v1692 = vunpack.c.l.b16 %v1596
        %v1693 = vunpack.c.l.b16 %v1597
        %v1694 = vunpack.c.l.b16 %v1598
        %v1695 = vunpack.c.l.b16 %v1599
        %v1696 = vunpack.c.l.b16 %v1600
        %v1697 = vunpack.c.l.b16 %v1601
        %v1698 = vunpack.c.l.b16 %v1602
        %v1699 = vunpack.c.l.b16 %v1603
        %v1700 = vunpack.c.l.b16 %v1604
        %v1701 = vunpack.c.l.b16 %v1605
        %v1702 = vunpack.c.l.b16 %v1606
        %v1703 = vunpack.c.l.b16 %v1607
        %v1704 = vunpack.c.l.b16 %v1608
        %v1705 = vunpack.c.l.b16 %v1609
        %v1706 = vunpack.c.l.b16 %v1610
        %v1707 = vunpack.c.l.b16 %v1611
        %v1708 = vunpack.c.l.b16 %v1612
        %v1709 = vunpack.c.l.b16 %v1613
        %v1710 = vunpack.c.l.b16 %v1614
        %v1711 = vunpack.c.l.b16 %v1615
        %v1712 = vunpack.c.l.b16 %v1616
        %v1713 = vunpack.c.l.b16 %v1617
        %v1714 = vunpack.c.l.b16 %v1618
        %v1715 = vunpack.c.l.b16 %v1619
        %v1716 = vunpack.c.l.b16 %v1620
        %v1717 = vunpack.c.l.b16 %v1621
        %v1718 = vunpack.c.l.b16 %v1622
        %v1719 = vunpack.c.l.b16 %v1623
        %v1720 = vunpack.c.l.b16 %v1624
        %v1721 = vunpack.c.l.b16 %v1625
        %v1722 = vunpack.c.l.b16 %v1626
        %v1723 = vunpack.c.l.b16 %v1627
        %v1724 = vunpack.c.l.b16 %v1628
        %v1725 = vunpack.c.l.b16 %v1629
        %v1726 = vunpack.c.l.b16 %v1630
        %v1727 = vunpack.c.l.b16 %v1631
        %v1728 = vunpack.c.l.b16 %v1632
        %v1729 = vunpack.c.l.b16 %v1633
        %v1730 = vunpack.c.l.b16 %v1634
        %v1731 = vpack.c.b16 %v1684, %v1683
        %v1732 = vpack.c.b16 %v1686, %v1685
        %v1733 = vpack.c.b16 %v1688, %v1687
        %v1734 = vpack.c.b16 %v1690, %v1689
        %v1735 = vpack.c.b16 %v1692, %v1691
        %v1736 = vpack.c.b16 %v1694, %v1693
        %v1737 = vpack.c.b16 %v1696, %v1695
        %v1738 = vpack.c.b16 %v1698, %v1697
        %v1739 = vpack.c.b16 %v1700, %v1699
        %v1740 = vpack.c.b16 %v1702, %v1701
        %v1741 = vpack.c.b16 %v1704, %v1703
        %v1742 = vpack.c.b16 %v1706, %v1705
        %v1743 = vpack.c.b16 %v1708, %v1707
        %v1744 = vpack.c.b16 %v1710, %v1709
        %v1745 = vpack.c.b16 %v1712, %v1711
        %v1746 = vpack.c.b16 %v1714, %v1713
        %v1747 = vpack.c.b16 %v1716, %v1715
        %v1748 = vpack.c.b16 %v1718, %v1717
        %v1749 = vpack.c.b16 %v1720, %v1719
        %v1750 = vpack.c.b16 %v1722, %v1721
        %v1751 = vpack.c.b16 %v1724, %v1723
        %v1752 = vpack.c.b16 %v1726, %v1725
        %v1753 = vpack.c.b16 %v1728, %v1727
        %v1754 = vpack.c.b16 %v1730, %v1729
        %1779 = vmatprep.subr.bf16.mxu0 0
        %1780 = vmatpush1.bf16.msra.mxu0 %v1731
        %1781 = vmatprep.subr.bf16.mxu0 0
        %1782 = vmatpush1.bf16.msra.mxu0 %v1732
        %1783 = vmatprep.subr.bf16.mxu0 0
        %1784 = vmatpush1.bf16.msra.mxu0 %v1733
        %1785 = vmatprep.subr.bf16.mxu0 0
        %1786 = vmatpush1.bf16.msra.mxu0 %v1734
        %1787 = vmatprep.subr.bf16.mxu0 0
        %1788 = vmatpush1.bf16.msra.mxu0 %v1735
        %1789 = vmatprep.subr.bf16.mxu0 0
        %1790 = vmatpush1.bf16.msra.mxu0 %v1736
        %1791 = vmatprep.subr.bf16.mxu0 0
        %1792 = vmatpush1.bf16.msra.mxu0 %v1737
        %1793 = vmatprep.subr.bf16.mxu0 0
        %1794 = vmatpush1.bf16.msra.mxu0 %v1738
        %1795 = vmatprep.subr.bf16.mxu0 0
        %1796 = vmatpush1.bf16.msra.mxu0 %v1739
        %1797 = vmatprep.subr.bf16.mxu0 0
        %1798 = vmatpush1.bf16.msra.mxu0 %v1740
        %1799 = vmatprep.subr.bf16.mxu0 0
        %1800 = vmatpush1.bf16.msra.mxu0 %v1741
        %1801 = vmatprep.subr.bf16.mxu0 0
        %1802 = vmatpush1.bf16.msra.mxu0 %v1742
        %1803 = vmatprep.subr.bf16.mxu0 0
        %1804 = vmatpush1.bf16.msra.mxu0 %v1743
        %1805 = vmatprep.subr.bf16.mxu0 0
        %1806 = vmatpush1.bf16.msra.mxu0 %v1744
        %1807 = vmatprep.subr.bf16.mxu0 0
        %1808 = vmatpush1.bf16.msra.mxu0 %v1745
        %1809 = vmatprep.subr.bf16.mxu0 0
        %1810 = vmatpush1.bf16.msra.mxu0 %v1746
        %1811 = vmatprep.mubr.bf16.mxu0 %v1581
        %1812 = vmatmul.mubr.bf16.gmra.mrb[0].mxu0 %v1574
        %v1813 = vpop.f32.mrb[0].mxu0
        %v1814 = vadd.f32 0.0, %v1813
        %v1815 = vpop.f32.mrb[0].mxu0
        %v1816 = vpop.f32.mrb[0].mxu0
        %v1817 = vpop.f32.mrb[0].mxu0
        %1818 = vdwg.mxu0
        %1819 = vmatprep.subr.bf16.mxu0 0
        %1820 = vmatpush1.bf16.msra.mxu0 %v1747
        %1821 = vmatprep.subr.bf16.mxu0 0
        %1822 = vmatpush1.bf16.msra.mxu0 %v1748
        %1823 = vmatprep.subr.bf16.mxu0 0
        %1824 = vmatpush1.bf16.msra.mxu0 %v1749
        %1825 = vmatprep.subr.bf16.mxu0 0
        %1826 = vmatpush1.bf16.msra.mxu0 %v1750
        %1827 = vmatprep.subr.bf16.mxu0 0
        %1828 = vmatpush1.bf16.msra.mxu0 %v1751
        %1829 = vmatprep.subr.bf16.mxu0 0
        %1830 = vmatpush1.bf16.msra.mxu0 %v1752
        %1831 = vmatprep.subr.bf16.mxu0 0
        %1832 = vmatpush1.bf16.msra.mxu0 %v1753
        %1833 = vmatprep.subr.bf16.mxu0 0
        %1834 = vmatpush1.bf16.msra.mxu0 %v1754
        %1835 = vmatprep.subr.bf16.mxu0 0
        %1836 = vmatpush1.bf16.msra.mxu0 0
        %1837 = vmatprep.subr.bf16.mxu0 0
        %1838 = vmatpush1.bf16.msra.mxu0 0
        %1839 = vmatprep.subr.bf16.mxu0 0
        %1840 = vmatpush1.bf16.msra.mxu0 0
        %1841 = vmatprep.subr.bf16.mxu0 0
        %1842 = vmatpush1.bf16.msra.mxu0 0
        %1843 = vmatprep.subr.bf16.mxu0 0
        %1844 = vmatpush1.bf16.msra.mxu0 0
        %1845 = vmatprep.subr.bf16.mxu0 0
        %1846 = vmatpush1.bf16.msra.mxu0 0
        %1847 = vmatprep.subr.bf16.mxu0 0
        %1848 = vmatpush1.bf16.msra.mxu0 0
        %1849 = vmatprep.subr.bf16.mxu0 0
        %1850 = vmatpush1.bf16.msra.mxu0 0
        %1851 = vmatprep.mubr.bf16.mxu0 0
        %1852 = vmatmul.mubr.bf16.gmra.mrb[0].mxu0 %v1584
        %v1853 = vpop.f32.mrb[0].mxu0
        %v1854 = vadd.f32 %v1814, %v1853
        %v1855 = vpop.f32.mrb[0].mxu0
        %v1856 = vpop.f32.mrb[0].mxu0
        %v1857 = vpop.f32.mrb[0].mxu0
        %1858 = vdwg.mxu0
        %v1859 = vld [vmem:[#allocation6 + $0xe] sm:$0x1]
        %v1860 = vlaneseq
        %v1861 = vshrl.u32 %v1860, 7
        %v1862 = vsub.s32 0, %v1861
        %v1863 = vrot.slane %v1859, %v1862
        %v1864 = vmul.f32 %v1854, %v1863
        %v1865 = vld [vmem:[#allocation6 + $0xf] sm:$0x1]
        %v1866 = vlaneseq
        %v1867 = vshrl.u32 %v1866, 7
        %v1868 = vsub.s32 0, %v1867
        %v1869 = vrot.slane %v1865, %v1868
        %v1870 = vadd.f32 %v1864, %v1869
        %vm1871 = vcmp.ge.f32.partialorder %v1870, 0.0
        %v1872 = vld [vmem:[#allocation6 + $0x10] sm:$0x1]
        %v1873 = vlaneseq
        %v1874 = vshrl.u32 %v1873, 7
        %v1875 = vsub.s32 0, %v1874
        %v1876 = vrot.slane %v1872, %v1875
        %v1877 = vmul.f32 %v1870, %v1876
        %v1878 = vsel %vm1871, %v1870, %v1877
        %v1879 = vpack.c.bf16 %v1878, %v1878
        %v1881 = vshrl.u32 %v1879, 16
        %v1883 = vrot.slane %v1881, 7
        %v1884 = vshll.u32 %v1879, 16
        %v1886 = vor.u32 %v1883, %v1884
        %v1888 = vsel %vm639, 0, %v1886
        %v1889 = vsel %vm1573, %v1888, 0
        %v1891 = vshrl.u32 %v1889, 16
        %v1893 = vshll.u32 %v1889, 16
        %v1895 = vrot.slane %v1893, 1
        %v1896 = vor.u32 %v1891, %v1895
        %v1899 = vrot.slane %v1889, 1
        %s1901 = scalar_lea.vmem [#allocation2], 768
        %v1902 = vld [vmem:[%s1901] sm:$0xf]
        %v1903 = vld [vmem:[%s1901 + $0x4] sm:$0xf]
        %v1904 = vld [vmem:[%s1901 + $0x8] sm:$0xf]
        %v1905 = vld [vmem:[%s1901 + $0xc] sm:$0xf]
        %v1906 = vld [vmem:[%s1901 + $0x10] sm:$0xf]
        %v1907 = vld [vmem:[%s1901 + $0x14] sm:$0xf]
        %v1908 = vld [vmem:[%s1901 + $0x18] sm:$0xf]
        %v1909 = vld [vmem:[%s1901 + $0x1c] sm:$0xf]
        %v1910 = vld [vmem:[%s1901 + $0x20] sm:$0xf]
        %v1911 = vld [vmem:[%s1901 + $0x24] sm:$0xf]
        %v1912 = vld [vmem:[%s1901 + $0x28] sm:$0xf]
        %v1913 = vld [vmem:[%s1901 + $0x2c] sm:$0xf]
        %v1914 = vld [vmem:[%s1901 + $0x30] sm:$0xf]
        %v1915 = vld [vmem:[%s1901 + $0x34] sm:$0xf]
        %v1916 = vld [vmem:[%s1901 + $0x38] sm:$0xf]
        %v1917 = vld [vmem:[%s1901 + $0x3c] sm:$0xf]
        %v1918 = vld [vmem:[%s1901 + $0x40] sm:$0xf]
        %v1919 = vld [vmem:[%s1901 + $0x44] sm:$0xf]
        %v1920 = vld [vmem:[%s1901 + $0x48] sm:$0xf]
        %v1921 = vld [vmem:[%s1901 + $0x4c] sm:$0xf]
        %v1922 = vld [vmem:[%s1901 + $0x50] sm:$0xf]
        %v1923 = vld [vmem:[%s1901 + $0x54] sm:$0xf]
        %v1924 = vld [vmem:[%s1901 + $0x58] sm:$0xf]
        %v1925 = vld [vmem:[%s1901 + $0x5c] sm:$0xf]
        %v1926 = vld [vmem:[%s1901 + $0x60] sm:$0xf]
        %v1927 = vld [vmem:[%s1901 + $0x64] sm:$0xf]
        %v1928 = vld [vmem:[%s1901 + $0x68] sm:$0xf]
        %v1929 = vld [vmem:[%s1901 + $0x6c] sm:$0xf]
        %v1930 = vld [vmem:[%s1901 + $0x70] sm:$0xf]
        %v1931 = vld [vmem:[%s1901 + $0x74] sm:$0xf]
        %v1932 = vld [vmem:[%s1901 + $0x78] sm:$0xf]
        %v1933 = vld [vmem:[%s1901 + $0x7c] sm:$0xf]
        %v1934 = vld [vmem:[%s1901 + $0x80] sm:$0xf]
        %v1935 = vld [vmem:[%s1901 + $0x84] sm:$0xf]
        %v1936 = vld [vmem:[%s1901 + $0x88] sm:$0xf]
        %v1937 = vld [vmem:[%s1901 + $0x8c] sm:$0xf]
        %v1938 = vld [vmem:[%s1901 + $0x90] sm:$0xf]
        %v1939 = vld [vmem:[%s1901 + $0x94] sm:$0xf]
        %v1940 = vld [vmem:[%s1901 + $0x98] sm:$0xf]
        %v1941 = vld [vmem:[%s1901 + $0x9c] sm:$0xf]
        %v1942 = vld [vmem:[%s1901 + $0xa0] sm:$0xf]
        %v1943 = vld [vmem:[%s1901 + $0xa4] sm:$0xf]
        %v1944 = vld [vmem:[%s1901 + $0xa8] sm:$0xf]
        %v1945 = vld [vmem:[%s1901 + $0xac] sm:$0xf]
        %v1946 = vld [vmem:[%s1901 + $0xb0] sm:$0xf]
        %v1947 = vld [vmem:[%s1901 + $0xb4] sm:$0xf]
        %v1948 = vld [vmem:[%s1901 + $0xb8] sm:$0xf]
        %v1949 = vld [vmem:[%s1901 + $0xbc] sm:$0xf]
        %v1998 = vunpack.c.l.b16 %v1902
        %v1999 = vunpack.c.l.b16 %v1903
        %v2000 = vunpack.c.l.b16 %v1904
        %v2001 = vunpack.c.l.b16 %v1905
        %v2002 = vunpack.c.l.b16 %v1906
        %v2003 = vunpack.c.l.b16 %v1907
        %v2004 = vunpack.c.l.b16 %v1908
        %v2005 = vunpack.c.l.b16 %v1909
        %v2006 = vunpack.c.l.b16 %v1910
        %v2007 = vunpack.c.l.b16 %v1911
        %v2008 = vunpack.c.l.b16 %v1912
        %v2009 = vunpack.c.l.b16 %v1913
        %v2010 = vunpack.c.l.b16 %v1914
        %v2011 = vunpack.c.l.b16 %v1915
        %v2012 = vunpack.c.l.b16 %v1916
        %v2013 = vunpack.c.l.b16 %v1917
        %v2014 = vunpack.c.l.b16 %v1918
        %v2015 = vunpack.c.l.b16 %v1919
        %v2016 = vunpack.c.l.b16 %v1920
        %v2017 = vunpack.c.l.b16 %v1921
        %v2018 = vunpack.c.l.b16 %v1922
        %v2019 = vunpack.c.l.b16 %v1923
        %v2020 = vunpack.c.l.b16 %v1924
        %v2021 = vunpack.c.l.b16 %v1925
        %v2022 = vunpack.c.l.b16 %v1926
        %v2023 = vunpack.c.l.b16 %v1927
        %v2024 = vunpack.c.l.b16 %v1928
        %v2025 = vunpack.c.l.b16 %v1929
        %v2026 = vunpack.c.l.b16 %v1930
        %v2027 = vunpack.c.l.b16 %v1931
        %v2028 = vunpack.c.l.b16 %v1932
        %v2029 = vunpack.c.l.b16 %v1933
        %v2030 = vunpack.c.l.b16 %v1934
        %v2031 = vunpack.c.l.b16 %v1935
        %v2032 = vunpack.c.l.b16 %v1936
        %v2033 = vunpack.c.l.b16 %v1937
        %v2034 = vunpack.c.l.b16 %v1938
        %v2035 = vunpack.c.l.b16 %v1939
        %v2036 = vunpack.c.l.b16 %v1940
        %v2037 = vunpack.c.l.b16 %v1941
        %v2038 = vunpack.c.l.b16 %v1942
        %v2039 = vunpack.c.l.b16 %v1943
        %v2040 = vunpack.c.l.b16 %v1944
        %v2041 = vunpack.c.l.b16 %v1945
        %v2042 = vunpack.c.l.b16 %v1946
        %v2043 = vunpack.c.l.b16 %v1947
        %v2044 = vunpack.c.l.b16 %v1948
        %v2045 = vunpack.c.l.b16 %v1949
        %v2046 = vpack.c.b16 %v1999, %v1998
        %v2047 = vpack.c.b16 %v2001, %v2000
        %v2048 = vpack.c.b16 %v2003, %v2002
        %v2049 = vpack.c.b16 %v2005, %v2004
        %v2050 = vpack.c.b16 %v2007, %v2006
        %v2051 = vpack.c.b16 %v2009, %v2008
        %v2052 = vpack.c.b16 %v2011, %v2010
        %v2053 = vpack.c.b16 %v2013, %v2012
        %v2054 = vpack.c.b16 %v2015, %v2014
        %v2055 = vpack.c.b16 %v2017, %v2016
        %v2056 = vpack.c.b16 %v2019, %v2018
        %v2057 = vpack.c.b16 %v2021, %v2020
        %v2058 = vpack.c.b16 %v2023, %v2022
        %v2059 = vpack.c.b16 %v2025, %v2024
        %v2060 = vpack.c.b16 %v2027, %v2026
        %v2061 = vpack.c.b16 %v2029, %v2028
        %v2062 = vpack.c.b16 %v2031, %v2030
        %v2063 = vpack.c.b16 %v2033, %v2032
        %v2064 = vpack.c.b16 %v2035, %v2034
        %v2065 = vpack.c.b16 %v2037, %v2036
        %v2066 = vpack.c.b16 %v2039, %v2038
        %v2067 = vpack.c.b16 %v2041, %v2040
        %v2068 = vpack.c.b16 %v2043, %v2042
        %v2069 = vpack.c.b16 %v2045, %v2044
        %2094 = vmatprep.subr.bf16.mxu0 0
        %2095 = vmatpush1.bf16.msra.mxu0 %v2046
        %2096 = vmatprep.subr.bf16.mxu0 0
        %2097 = vmatpush1.bf16.msra.mxu0 %v2047
        %2098 = vmatprep.subr.bf16.mxu0 0
        %2099 = vmatpush1.bf16.msra.mxu0 %v2048
        %2100 = vmatprep.subr.bf16.mxu0 0
        %2101 = vmatpush1.bf16.msra.mxu0 %v2049
        %2102 = vmatprep.subr.bf16.mxu0 0
        %2103 = vmatpush1.bf16.msra.mxu0 %v2050
        %2104 = vmatprep.subr.bf16.mxu0 0
        %2105 = vmatpush1.bf16.msra.mxu0 %v2051
        %2106 = vmatprep.subr.bf16.mxu0 0
        %2107 = vmatpush1.bf16.msra.mxu0 %v2052
        %2108 = vmatprep.subr.bf16.mxu0 0
        %2109 = vmatpush1.bf16.msra.mxu0 %v2053
        %2110 = vmatprep.subr.bf16.mxu0 0
        %2111 = vmatpush1.bf16.msra.mxu0 %v2054
        %2112 = vmatprep.subr.bf16.mxu0 0
        %2113 = vmatpush1.bf16.msra.mxu0 %v2055
        %2114 = vmatprep.subr.bf16.mxu0 0
        %2115 = vmatpush1.bf16.msra.mxu0 %v2056
        %2116 = vmatprep.subr.bf16.mxu0 0
        %2117 = vmatpush1.bf16.msra.mxu0 %v2057
        %2118 = vmatprep.subr.bf16.mxu0 0
        %2119 = vmatpush1.bf16.msra.mxu0 %v2058
        %2120 = vmatprep.subr.bf16.mxu0 0
        %2121 = vmatpush1.bf16.msra.mxu0 %v2059
        %2122 = vmatprep.subr.bf16.mxu0 0
        %2123 = vmatpush1.bf16.msra.mxu0 %v2060
        %2124 = vmatprep.subr.bf16.mxu0 0
        %2125 = vmatpush1.bf16.msra.mxu0 %v2061
        %2126 = vmatprep.mubr.bf16.mxu0 %v1896
        %2127 = vmatmul.mubr.bf16.gmra.mrb[0].mxu0 %v1889
        %v2128 = vpop.f32.mrb[0].mxu0
        %v2129 = vadd.f32 0.0, %v2128
        %v2130 = vpop.f32.mrb[0].mxu0
        %v2131 = vpop.f32.mrb[0].mxu0
        %v2132 = vpop.f32.mrb[0].mxu0
        %2133 = vdwg.mxu0
        %2134 = vmatprep.subr.bf16.mxu0 0
        %2135 = vmatpush1.bf16.msra.mxu0 %v2062
        %2136 = vmatprep.subr.bf16.mxu0 0
        %2137 = vmatpush1.bf16.msra.mxu0 %v2063
        %2138 = vmatprep.subr.bf16.mxu0 0
        %2139 = vmatpush1.bf16.msra.mxu0 %v2064
        %2140 = vmatprep.subr.bf16.mxu0 0
        %2141 = vmatpush1.bf16.msra.mxu0 %v2065
        %2142 = vmatprep.subr.bf16.mxu0 0
        %2143 = vmatpush1.bf16.msra.mxu0 %v2066
        %2144 = vmatprep.subr.bf16.mxu0 0
        %2145 = vmatpush1.bf16.msra.mxu0 %v2067
        %2146 = vmatprep.subr.bf16.mxu0 0
        %2147 = vmatpush1.bf16.msra.mxu0 %v2068
        %2148 = vmatprep.subr.bf16.mxu0 0
        %2149 = vmatpush1.bf16.msra.mxu0 %v2069
        %2150 = vmatprep.subr.bf16.mxu0 0
        %2151 = vmatpush1.bf16.msra.mxu0 0
        %2152 = vmatprep.subr.bf16.mxu0 0
        %2153 = vmatpush1.bf16.msra.mxu0 0
        %2154 = vmatprep.subr.bf16.mxu0 0
        %2155 = vmatpush1.bf16.msra.mxu0 0
        %2156 = vmatprep.subr.bf16.mxu0 0
        %2157 = vmatpush1.bf16.msra.mxu0 0
        %2158 = vmatprep.subr.bf16.mxu0 0
        %2159 = vmatpush1.bf16.msra.mxu0 0
        %2160 = vmatprep.subr.bf16.mxu0 0
        %2161 = vmatpush1.bf16.msra.mxu0 0
        %2162 = vmatprep.subr.bf16.mxu0 0
        %2163 = vmatpush1.bf16.msra.mxu0 0
        %2164 = vmatprep.subr.bf16.mxu0 0
        %2165 = vmatpush1.bf16.msra.mxu0 0
        %2166 = vmatprep.mubr.bf16.mxu0 0
        %2167 = vmatmul.mubr.bf16.gmra.mrb[0].mxu0 %v1899
        %v2168 = vpop.f32.mrb[0].mxu0
        %v2169 = vadd.f32 %v2129, %v2168
        %v2170 = vpop.f32.mrb[0].mxu0
        %v2171 = vpop.f32.mrb[0].mxu0
        %v2172 = vpop.f32.mrb[0].mxu0
        %2173 = vdwg.mxu0
        %v2174 = vld [vmem:[#allocation6 + $0x11] sm:$0x1]
        %v2175 = vlaneseq
        %v2176 = vshrl.u32 %v2175, 7
        %v2177 = vsub.s32 0, %v2176
        %v2178 = vrot.slane %v2174, %v2177
        %v2179 = vmul.f32 %v2169, %v2178
        %v2180 = vld [vmem:[#allocation6 + $0x12] sm:$0x1]
        %v2181 = vlaneseq
        %v2182 = vshrl.u32 %v2181, 7
        %v2183 = vsub.s32 0, %v2182
        %v2184 = vrot.slane %v2180, %v2183
        %v2185 = vadd.f32 %v2179, %v2184
        %v2186 = vadd.f32 %v2185, %v1548
        %v2187 = vld [vmem:[#allocation6 + $0x13] sm:$0x1]
        %v2188 = vlaneseq
        %v2189 = vshrl.u32 %v2188, 7
        %v2190 = vsub.s32 0, %v2189
        %v2191 = vrot.slane %v2187, %v2190
        %v2192 = vmul.f32 %v2186, %v2191
        %v2193 = vld [vmem:[#allocation6 + $0x14] sm:$0x1]
        %v2194 = vlaneseq
        %v2195 = vshrl.u32 %v2194, 7
        %v2196 = vsub.s32 0, %v2195
        %v2197 = vrot.slane %v2193, %v2196
        %v2198 = vadd.f32 %v2192, %v2197
        %v2199 = vpack.c.bf16 %v2198, %v2198
        %v2201 = vshrl.u32 %v2199, 16
        %v2203 = vrot.slane %v2201, 7
        %v2204 = vshll.u32 %v2199, 16
        %v2206 = vor.u32 %v2203, %v2204
        %v2208 = vsel %vm639, 0, %v2206
        %v2209 = vsel %vm1573, %v2208, 0
        %v2211 = vshrl.u32 %v2209, 16
        %v2213 = vshll.u32 %v2209, 16
        %v2215 = vrot.slane %v2213, 1
        %v2216 = vor.u32 %v2211, %v2215
        %v2219 = vrot.slane %v2209, 1
        %s2221 = scalar_lea.vmem [#allocation2], 960
        %v2222 = vld [vmem:[%s2221] sm:$0xf]
        %v2223 = vld [vmem:[%s2221 + $0x4] sm:$0xf]
        %v2224 = vld [vmem:[%s2221 + $0x8] sm:$0xf]
        %v2225 = vld [vmem:[%s2221 + $0xc] sm:$0xf]
        %v2226 = vld [vmem:[%s2221 + $0x10] sm:$0xf]
        %v2227 = vld [vmem:[%s2221 + $0x14] sm:$0xf]
        %v2228 = vld [vmem:[%s2221 + $0x18] sm:$0xf]
        %v2229 = vld [vmem:[%s2221 + $0x1c] sm:$0xf]
        %v2230 = vld [vmem:[%s2221 + $0x20] sm:$0xf]
        %v2231 = vld [vmem:[%s2221 + $0x24] sm:$0xf]
        %v2232 = vld [vmem:[%s2221 + $0x28] sm:$0xf]
        %v2233 = vld [vmem:[%s2221 + $0x2c] sm:$0xf]
        %v2234 = vld [vmem:[%s2221 + $0x30] sm:$0xf]
        %v2235 = vld [vmem:[%s2221 + $0x34] sm:$0xf]
        %v2236 = vld [vmem:[%s2221 + $0x38] sm:$0xf]
        %v2237 = vld [vmem:[%s2221 + $0x3c] sm:$0xf]
        %v2238 = vld [vmem:[%s2221 + $0x40] sm:$0xf]
        %v2239 = vld [vmem:[%s2221 + $0x44] sm:$0xf]
        %v2240 = vld [vmem:[%s2221 + $0x48] sm:$0xf]
        %v2241 = vld [vmem:[%s2221 + $0x4c] sm:$0xf]
        %v2242 = vld [vmem:[%s2221 + $0x50] sm:$0xf]
        %v2243 = vld [vmem:[%s2221 + $0x54] sm:$0xf]
        %v2244 = vld [vmem:[%s2221 + $0x58] sm:$0xf]
        %v2245 = vld [vmem:[%s2221 + $0x5c] sm:$0xf]
        %v2246 = vld [vmem:[%s2221 + $0x60] sm:$0xf]
        %v2247 = vld [vmem:[%s2221 + $0x64] sm:$0xf]
        %v2248 = vld [vmem:[%s2221 + $0x68] sm:$0xf]
        %v2249 = vld [vmem:[%s2221 + $0x6c] sm:$0xf]
        %v2250 = vld [vmem:[%s2221 + $0x70] sm:$0xf]
        %v2251 = vld [vmem:[%s2221 + $0x74] sm:$0xf]
        %v2252 = vld [vmem:[%s2221 + $0x78] sm:$0xf]
        %v2253 = vld [vmem:[%s2221 + $0x7c] sm:$0xf]
        %v2254 = vld [vmem:[%s2221 + $0x80] sm:$0xf]
        %v2255 = vld [vmem:[%s2221 + $0x84] sm:$0xf]
        %v2256 = vld [vmem:[%s2221 + $0x88] sm:$0xf]
        %v2257 = vld [vmem:[%s2221 + $0x8c] sm:$0xf]
        %v2258 = vld [vmem:[%s2221 + $0x90] sm:$0xf]
        %v2259 = vld [vmem:[%s2221 + $0x94] sm:$0xf]
        %v2260 = vld [vmem:[%s2221 + $0x98] sm:$0xf]
        %v2261 = vld [vmem:[%s2221 + $0x9c] sm:$0xf]
        %v2262 = vld [vmem:[%s2221 + $0xa0] sm:$0xf]
        %v2263 = vld [vmem:[%s2221 + $0xa4] sm:$0xf]
        %v2264 = vld [vmem:[%s2221 + $0xa8] sm:$0xf]
        %v2265 = vld [vmem:[%s2221 + $0xac] sm:$0xf]
        %v2266 = vld [vmem:[%s2221 + $0xb0] sm:$0xf]
        %v2267 = vld [vmem:[%s2221 + $0xb4] sm:$0xf]
        %v2268 = vld [vmem:[%s2221 + $0xb8] sm:$0xf]
        %v2269 = vld [vmem:[%s2221 + $0xbc] sm:$0xf]
        %v2318 = vunpack.c.l.b16 %v2222
        %v2319 = vunpack.c.l.b16 %v2223
        %v2320 = vunpack.c.l.b16 %v2224
        %v2321 = vunpack.c.l.b16 %v2225
        %v2322 = vunpack.c.l.b16 %v2226
        %v2323 = vunpack.c.l.b16 %v2227
        %v2324 = vunpack.c.l.b16 %v2228
        %v2325 = vunpack.c.l.b16 %v2229
        %v2326 = vunpack.c.l.b16 %v2230
        %v2327 = vunpack.c.l.b16 %v2231
        %v2328 = vunpack.c.l.b16 %v2232
        %v2329 = vunpack.c.l.b16 %v2233
        %v2330 = vunpack.c.l.b16 %v2234
        %v2331 = vunpack.c.l.b16 %v2235
        %v2332 = vunpack.c.l.b16 %v2236
        %v2333 = vunpack.c.l.b16 %v2237
        %v2334 = vunpack.c.l.b16 %v2238
        %v2335 = vunpack.c.l.b16 %v2239
        %v2336 = vunpack.c.l.b16 %v2240
        %v2337 = vunpack.c.l.b16 %v2241
        %v2338 = vunpack.c.l.b16 %v2242
        %v2339 = vunpack.c.l.b16 %v2243
        %v2340 = vunpack.c.l.b16 %v2244
        %v2341 = vunpack.c.l.b16 %v2245
        %v2342 = vunpack.c.l.b16 %v2246
        %v2343 = vunpack.c.l.b16 %v2247
        %v2344 = vunpack.c.l.b16 %v2248
        %v2345 = vunpack.c.l.b16 %v2249
        %v2346 = vunpack.c.l.b16 %v2250
        %v2347 = vunpack.c.l.b16 %v2251
        %v2348 = vunpack.c.l.b16 %v2252
        %v2349 = vunpack.c.l.b16 %v2253
        %v2350 = vunpack.c.l.b16 %v2254
        %v2351 = vunpack.c.l.b16 %v2255
        %v2352 = vunpack.c.l.b16 %v2256
        %v2353 = vunpack.c.l.b16 %v2257
        %v2354 = vunpack.c.l.b16 %v2258
        %v2355 = vunpack.c.l.b16 %v2259
        %v2356 = vunpack.c.l.b16 %v2260
        %v2357 = vunpack.c.l.b16 %v2261
        %v2358 = vunpack.c.l.b16 %v2262
        %v2359 = vunpack.c.l.b16 %v2263
        %v2360 = vunpack.c.l.b16 %v2264
        %v2361 = vunpack.c.l.b16 %v2265
        %v2362 = vunpack.c.l.b16 %v2266
        %v2363 = vunpack.c.l.b16 %v2267
        %v2364 = vunpack.c.l.b16 %v2268
        %v2365 = vunpack.c.l.b16 %v2269
        %v2366 = vpack.c.b16 %v2319, %v2318
        %v2367 = vpack.c.b16 %v2321, %v2320
        %v2368 = vpack.c.b16 %v2323, %v2322
        %v2369 = vpack.c.b16 %v2325, %v2324
        %v2370 = vpack.c.b16 %v2327, %v2326
        %v2371 = vpack.c.b16 %v2329, %v2328
        %v2372 = vpack.c.b16 %v2331, %v2330
        %v2373 = vpack.c.b16 %v2333, %v2332
        %v2374 = vpack.c.b16 %v2335, %v2334
        %v2375 = vpack.c.b16 %v2337, %v2336
        %v2376 = vpack.c.b16 %v2339, %v2338
        %v2377 = vpack.c.b16 %v2341, %v2340
        %v2378 = vpack.c.b16 %v2343, %v2342
        %v2379 = vpack.c.b16 %v2345, %v2344
        %v2380 = vpack.c.b16 %v2347, %v2346
        %v2381 = vpack.c.b16 %v2349, %v2348
        %v2382 = vpack.c.b16 %v2351, %v2350
        %v2383 = vpack.c.b16 %v2353, %v2352
        %v2384 = vpack.c.b16 %v2355, %v2354
        %v2385 = vpack.c.b16 %v2357, %v2356
        %v2386 = vpack.c.b16 %v2359, %v2358
        %v2387 = vpack.c.b16 %v2361, %v2360
        %v2388 = vpack.c.b16 %v2363, %v2362
        %v2389 = vpack.c.b16 %v2365, %v2364
        %2414 = vmatprep.subr.bf16.mxu0 0
        %2415 = vmatpush1.bf16.msra.mxu0 %v2366
        %2416 = vmatprep.subr.bf16.mxu0 0
        %2417 = vmatpush1.bf16.msra.mxu0 %v2367
        %2418 = vmatprep.subr.bf16.mxu0 0
        %2419 = vmatpush1.bf16.msra.mxu0 %v2368
        %2420 = vmatprep.subr.bf16.mxu0 0
        %2421 = vmatpush1.bf16.msra.mxu0 %v2369
        %2422 = vmatprep.subr.bf16.mxu0 0
        %2423 = vmatpush1.bf16.msra.mxu0 %v2370
        %2424 = vmatprep.subr.bf16.mxu0 0
        %2425 = vmatpush1.bf16.msra.mxu0 %v2371
        %2426 = vmatprep.subr.bf16.mxu0 0
        %2427 = vmatpush1.bf16.msra.mxu0 %v2372
        %2428 = vmatprep.subr.bf16.mxu0 0
        %2429 = vmatpush1.bf16.msra.mxu0 %v2373
        %2430 = vmatprep.subr.bf16.mxu0 0
        %2431 = vmatpush1.bf16.msra.mxu0 %v2374
        %2432 = vmatprep.subr.bf16.mxu0 0
        %2433 = vmatpush1.bf16.msra.mxu0 %v2375
        %2434 = vmatprep.subr.bf16.mxu0 0
        %2435 = vmatpush1.bf16.msra.mxu0 %v2376
        %2436 = vmatprep.subr.bf16.mxu0 0
        %2437 = vmatpush1.bf16.msra.mxu0 %v2377
        %2438 = vmatprep.subr.bf16.mxu0 0
        %2439 = vmatpush1.bf16.msra.mxu0 %v2378
        %2440 = vmatprep.subr.bf16.mxu0 0
        %2441 = vmatpush1.bf16.msra.mxu0 %v2379
        %2442 = vmatprep.subr.bf16.mxu0 0
        %2443 = vmatpush1.bf16.msra.mxu0 %v2380
        %2444 = vmatprep.subr.bf16.mxu0 0
        %2445 = vmatpush1.bf16.msra.mxu0 %v2381
        %2446 = vmatprep.mubr.bf16.mxu0 %v2216
        %2447 = vmatmul.mubr.bf16.gmra.mrb[0].mxu0 %v2209
        %v2448 = vpop.f32.mrb[0].mxu0
        %v2449 = vadd.f32 0.0, %v2448
        %v2450 = vpop.f32.mrb[0].mxu0
        %v2451 = vpop.f32.mrb[0].mxu0
        %v2452 = vpop.f32.mrb[0].mxu0
        %2453 = vdwg.mxu0
        %2454 = vmatprep.subr.bf16.mxu0 0
        %2455 = vmatpush1.bf16.msra.mxu0 %v2382
        %2456 = vmatprep.subr.bf16.mxu0 0
        %2457 = vmatpush1.bf16.msra.mxu0 %v2383
        %2458 = vmatprep.subr.bf16.mxu0 0
        %2459 = vmatpush1.bf16.msra.mxu0 %v2384
        %2460 = vmatprep.subr.bf16.mxu0 0
        %2461 = vmatpush1.bf16.msra.mxu0 %v2385
        %2462 = vmatprep.subr.bf16.mxu0 0
        %2463 = vmatpush1.bf16.msra.mxu0 %v2386
        %2464 = vmatprep.subr.bf16.mxu0 0
        %2465 = vmatpush1.bf16.msra.mxu0 %v2387
        %2466 = vmatprep.subr.bf16.mxu0 0
        %2467 = vmatpush1.bf16.msra.mxu0 %v2388
        %2468 = vmatprep.subr.bf16.mxu0 0
        %2469 = vmatpush1.bf16.msra.mxu0 %v2389
        %2470 = vmatprep.subr.bf16.mxu0 0
        %2471 = vmatpush1.bf16.msra.mxu0 0
        %2472 = vmatprep.subr.bf16.mxu0 0
        %2473 = vmatpush1.bf16.msra.mxu0 0
        %2474 = vmatprep.subr.bf16.mxu0 0
        %2475 = vmatpush1.bf16.msra.mxu0 0
        %2476 = vmatprep.subr.bf16.mxu0 0
        %2477 = vmatpush1.bf16.msra.mxu0 0
        %2478 = vmatprep.subr.bf16.mxu0 0
        %2479 = vmatpush1.bf16.msra.mxu0 0
        %2480 = vmatprep.subr.bf16.mxu0 0
        %2481 = vmatpush1.bf16.msra.mxu0 0
        %2482 = vmatprep.subr.bf16.mxu0 0
        %2483 = vmatpush1.bf16.msra.mxu0 0
        %2484 = vmatprep.subr.bf16.mxu0 0
        %2485 = vmatpush1.bf16.msra.mxu0 0
        %2486 = vmatprep.mubr.bf16.mxu0 0
        %2487 = vmatmul.mubr.bf16.gmra.mrb[0].mxu0 %v2219
        %v2488 = vpop.f32.mrb[0].mxu0
        %v2489 = vadd.f32 %v2449, %v2488
        %v2490 = vpop.f32.mrb[0].mxu0
        %v2491 = vpop.f32.mrb[0].mxu0
        %v2492 = vpop.f32.mrb[0].mxu0
        %2493 = vdwg.mxu0
        %v2494 = vld [vmem:[#allocation6 + $0x15] sm:$0x1]
        %v2495 = vlaneseq
        %v2496 = vshrl.u32 %v2495, 7
        %v2497 = vsub.s32 0, %v2496
        %v2498 = vrot.slane %v2494, %v2497
        %v2499 = vmul.f32 %v2489, %v2498
        %v2500 = vld [vmem:[#allocation6 + $0x16] sm:$0x1]
        %v2501 = vlaneseq
        %v2502 = vshrl.u32 %v2501, 7
        %v2503 = vsub.s32 0, %v2502
        %v2504 = vrot.slane %v2500, %v2503
        %v2505 = vadd.f32 %v2499, %v2504
        %vm2506 = vcmp.ge.f32.partialorder %v2505, 0.0
        %v2507 = vld [vmem:[#allocation6 + $0x17] sm:$0x1]
        %v2508 = vlaneseq
        %v2509 = vshrl.u32 %v2508, 7
        %v2510 = vsub.s32 0, %v2509
        %v2511 = vrot.slane %v2507, %v2510
        %v2512 = vmul.f32 %v2505, %v2511
        %v2513 = vsel %vm2506, %v2505, %v2512
        %v2514 = vpack.c.bf16 %v2513, %v2513
        %v2516 = vshrl.u32 %v2514, 16
        %v2518 = vrot.slane %v2516, 7
        %v2519 = vshll.u32 %v2514, 16
        %v2521 = vor.u32 %v2518, %v2519
        %v2523 = vsel %vm639, 0, %v2521
        %v2524 = vsel %vm1573, %v2523, 0
        %v2526 = vshrl.u32 %v2524, 16
        %v2528 = vshll.u32 %v2524, 16
        %v2530 = vrot.slane %v2528, 1
        %v2531 = vor.u32 %v2526, %v2530
        %v2534 = vrot.slane %v2524, 1
        %s2536 = scalar_lea.vmem [#allocation2], 1152
        %v2537 = vld [vmem:[%s2536] sm:$0xf]
        %v2538 = vld [vmem:[%s2536 + $0x4] sm:$0xf]
        %v2539 = vld [vmem:[%s2536 + $0x8] sm:$0xf]
        %v2540 = vld [vmem:[%s2536 + $0xc] sm:$0xf]
        %v2541 = vld [vmem:[%s2536 + $0x10] sm:$0xf]
        %v2542 = vld [vmem:[%s2536 + $0x14] sm:$0xf]
        %v2543 = vld [vmem:[%s2536 + $0x18] sm:$0xf]
        %v2544 = vld [vmem:[%s2536 + $0x1c] sm:$0xf]
        %v2545 = vld [vmem:[%s2536 + $0x20] sm:$0xf]
        %v2546 = vld [vmem:[%s2536 + $0x24] sm:$0xf]
        %v2547 = vld [vmem:[%s2536 + $0x28] sm:$0xf]
        %v2548 = vld [vmem:[%s2536 + $0x2c] sm:$0xf]
        %v2549 = vld [vmem:[%s2536 + $0x30] sm:$0xf]
        %v2550 = vld [vmem:[%s2536 + $0x34] sm:$0xf]
        %v2551 = vld [vmem:[%s2536 + $0x38] sm:$0xf]
        %v2552 = vld [vmem:[%s2536 + $0x3c] sm:$0xf]
        %v2553 = vld [vmem:[%s2536 + $0x40] sm:$0xf]
        %v2554 = vld [vmem:[%s2536 + $0x44] sm:$0xf]
        %v2555 = vld [vmem:[%s2536 + $0x48] sm:$0xf]
        %v2556 = vld [vmem:[%s2536 + $0x4c] sm:$0xf]
        %v2557 = vld [vmem:[%s2536 + $0x50] sm:$0xf]
        %v2558 = vld [vmem:[%s2536 + $0x54] sm:$0xf]
        %v2559 = vld [vmem:[%s2536 + $0x58] sm:$0xf]
        %v2560 = vld [vmem:[%s2536 + $0x5c] sm:$0xf]
        %v2561 = vld [vmem:[%s2536 + $0x60] sm:$0xf]
        %v2562 = vld [vmem:[%s2536 + $0x64] sm:$0xf]
        %v2563 = vld [vmem:[%s2536 + $0x68] sm:$0xf]
        %v2564 = vld [vmem:[%s2536 + $0x6c] sm:$0xf]
        %v2565 = vld [vmem:[%s2536 + $0x70] sm:$0xf]
        %v2566 = vld [vmem:[%s2536 + $0x74] sm:$0xf]
        %v2567 = vld [vmem:[%s2536 + $0x78] sm:$0xf]
        %v2568 = vld [vmem:[%s2536 + $0x7c] sm:$0xf]
        %v2569 = vld [vmem:[%s2536 + $0x80] sm:$0xf]
        %v2570 = vld [vmem:[%s2536 + $0x84] sm:$0xf]
        %v2571 = vld [vmem:[%s2536 + $0x88] sm:$0xf]
        %v2572 = vld [vmem:[%s2536 + $0x8c] sm:$0xf]
        %v2573 = vld [vmem:[%s2536 + $0x90] sm:$0xf]
        %v2574 = vld [vmem:[%s2536 + $0x94] sm:$0xf]
        %v2575 = vld [vmem:[%s2536 + $0x98] sm:$0xf]
        %v2576 = vld [vmem:[%s2536 + $0x9c] sm:$0xf]
        %v2577 = vld [vmem:[%s2536 + $0xa0] sm:$0xf]
        %v2578 = vld [vmem:[%s2536 + $0xa4] sm:$0xf]
        %v2579 = vld [vmem:[%s2536 + $0xa8] sm:$0xf]
        %v2580 = vld [vmem:[%s2536 + $0xac] sm:$0xf]
        %v2581 = vld [vmem:[%s2536 + $0xb0] sm:$0xf]
        %v2582 = vld [vmem:[%s2536 + $0xb4] sm:$0xf]
        %v2583 = vld [vmem:[%s2536 + $0xb8] sm:$0xf]
        %v2584 = vld [vmem:[%s2536 + $0xbc] sm:$0xf]
        %v2633 = vunpack.c.l.b16 %v2537
        %v2634 = vunpack.c.l.b16 %v2538
        %v2635 = vunpack.c.l.b16 %v2539
        %v2636 = vunpack.c.l.b16 %v2540
        %v2637 = vunpack.c.l.b16 %v2541
        %v2638 = vunpack.c.l.b16 %v2542
        %v2639 = vunpack.c.l.b16 %v2543
        %v2640 = vunpack.c.l.b16 %v2544
        %v2641 = vunpack.c.l.b16 %v2545
        %v2642 = vunpack.c.l.b16 %v2546
        %v2643 = vunpack.c.l.b16 %v2547
        %v2644 = vunpack.c.l.b16 %v2548
        %v2645 = vunpack.c.l.b16 %v2549
        %v2646 = vunpack.c.l.b16 %v2550
        %v2647 = vunpack.c.l.b16 %v2551
        %v2648 = vunpack.c.l.b16 %v2552
        %v2649 = vunpack.c.l.b16 %v2553
        %v2650 = vunpack.c.l.b16 %v2554
        %v2651 = vunpack.c.l.b16 %v2555
        %v2652 = vunpack.c.l.b16 %v2556
        %v2653 = vunpack.c.l.b16 %v2557
        %v2654 = vunpack.c.l.b16 %v2558
        %v2655 = vunpack.c.l.b16 %v2559
        %v2656 = vunpack.c.l.b16 %v2560
        %v2657 = vunpack.c.l.b16 %v2561
        %v2658 = vunpack.c.l.b16 %v2562
        %v2659 = vunpack.c.l.b16 %v2563
        %v2660 = vunpack.c.l.b16 %v2564
        %v2661 = vunpack.c.l.b16 %v2565
        %v2662 = vunpack.c.l.b16 %v2566
        %v2663 = vunpack.c.l.b16 %v2567
        %v2664 = vunpack.c.l.b16 %v2568
        %v2665 = vunpack.c.l.b16 %v2569
        %v2666 = vunpack.c.l.b16 %v2570
        %v2667 = vunpack.c.l.b16 %v2571
        %v2668 = vunpack.c.l.b16 %v2572
        %v2669 = vunpack.c.l.b16 %v2573
        %v2670 = vunpack.c.l.b16 %v2574
        %v2671 = vunpack.c.l.b16 %v2575
        %v2672 = vunpack.c.l.b16 %v2576
        %v2673 = vunpack.c.l.b16 %v2577
        %v2674 = vunpack.c.l.b16 %v2578
        %v2675 = vunpack.c.l.b16 %v2579
        %v2676 = vunpack.c.l.b16 %v2580
        %v2677 = vunpack.c.l.b16 %v2581
        %v2678 = vunpack.c.l.b16 %v2582
        %v2679 = vunpack.c.l.b16 %v2583
        %v2680 = vunpack.c.l.b16 %v2584
        %v2681 = vpack.c.b16 %v2634, %v2633
        %v2682 = vpack.c.b16 %v2636, %v2635
        %v2683 = vpack.c.b16 %v2638, %v2637
        %v2684 = vpack.c.b16 %v2640, %v2639
        %v2685 = vpack.c.b16 %v2642, %v2641
        %v2686 = vpack.c.b16 %v2644, %v2643
        %v2687 = vpack.c.b16 %v2646, %v2645
        %v2688 = vpack.c.b16 %v2648, %v2647
        %v2689 = vpack.c.b16 %v2650, %v2649
        %v2690 = vpack.c.b16 %v2652, %v2651
        %v2691 = vpack.c.b16 %v2654, %v2653
        %v2692 = vpack.c.b16 %v2656, %v2655
        %v2693 = vpack.c.b16 %v2658, %v2657
        %v2694 = vpack.c.b16 %v2660, %v2659
        %v2695 = vpack.c.b16 %v2662, %v2661
        %v2696 = vpack.c.b16 %v2664, %v2663
        %v2697 = vpack.c.b16 %v2666, %v2665
        %v2698 = vpack.c.b16 %v2668, %v2667
        %v2699 = vpack.c.b16 %v2670, %v2669
        %v2700 = vpack.c.b16 %v2672, %v2671
        %v2701 = vpack.c.b16 %v2674, %v2673
        %v2702 = vpack.c.b16 %v2676, %v2675
        %v2703 = vpack.c.b16 %v2678, %v2677
        %v2704 = vpack.c.b16 %v2680, %v2679
        %2729 = vmatprep.subr.bf16.mxu0 0
        %2730 = vmatpush1.bf16.msra.mxu0 %v2681
        %2731 = vmatprep.subr.bf16.mxu0 0
        %2732 = vmatpush1.bf16.msra.mxu0 %v2682
        %2733 = vmatprep.subr.bf16.mxu0 0
        %2734 = vmatpush1.bf16.msra.mxu0 %v2683
        %2735 = vmatprep.subr.bf16.mxu0 0
        %2736 = vmatpush1.bf16.msra.mxu0 %v2684
        %2737 = vmatprep.subr.bf16.mxu0 0
        %2738 = vmatpush1.bf16.msra.mxu0 %v2685
        %2739 = vmatprep.subr.bf16.mxu0 0
        %2740 = vmatpush1.bf16.msra.mxu0 %v2686
        %2741 = vmatprep.subr.bf16.mxu0 0
        %2742 = vmatpush1.bf16.msra.mxu0 %v2687
        %2743 = vmatprep.subr.bf16.mxu0 0
        %2744 = vmatpush1.bf16.msra.mxu0 %v2688
        %2745 = vmatprep.subr.bf16.mxu0 0
        %2746 = vmatpush1.bf16.msra.mxu0 %v2689
        %2747 = vmatprep.subr.bf16.mxu0 0
        %2748 = vmatpush1.bf16.msra.mxu0 %v2690
        %2749 = vmatprep.subr.bf16.mxu0 0
        %2750 = vmatpush1.bf16.msra.mxu0 %v2691
        %2751 = vmatprep.subr.bf16.mxu0 0
        %2752 = vmatpush1.bf16.msra.mxu0 %v2692
        %2753 = vmatprep.subr.bf16.mxu0 0
        %2754 = vmatpush1.bf16.msra.mxu0 %v2693
        %2755 = vmatprep.subr.bf16.mxu0 0
        %2756 = vmatpush1.bf16.msra.mxu0 %v2694
        %2757 = vmatprep.subr.bf16.mxu0 0
        %2758 = vmatpush1.bf16.msra.mxu0 %v2695
        %2759 = vmatprep.subr.bf16.mxu0 0
        %2760 = vmatpush1.bf16.msra.mxu0 %v2696
        %2761 = vmatprep.mubr.bf16.mxu0 %v2531
        %2762 = vmatmul.mubr.bf16.gmra.mrb[0].mxu0 %v2524
        %v2763 = vpop.f32.mrb[0].mxu0
        %v2764 = vadd.f32 0.0, %v2763
        %v2765 = vpop.f32.mrb[0].mxu0
        %v2766 = vpop.f32.mrb[0].mxu0
        %v2767 = vpop.f32.mrb[0].mxu0
        %2768 = vdwg.mxu0
        %2769 = vmatprep.subr.bf16.mxu0 0
        %2770 = vmatpush1.bf16.msra.mxu0 %v2697
        %2771 = vmatprep.subr.bf16.mxu0 0
        %2772 = vmatpush1.bf16.msra.mxu0 %v2698
        %2773 = vmatprep.subr.bf16.mxu0 0
        %2774 = vmatpush1.bf16.msra.mxu0 %v2699
        %2775 = vmatprep.subr.bf16.mxu0 0
        %2776 = vmatpush1.bf16.msra.mxu0 %v2700
        %2777 = vmatprep.subr.bf16.mxu0 0
        %2778 = vmatpush1.bf16.msra.mxu0 %v2701
        %2779 = vmatprep.subr.bf16.mxu0 0
        %2780 = vmatpush1.bf16.msra.mxu0 %v2702
        %2781 = vmatprep.subr.bf16.mxu0 0
        %2782 = vmatpush1.bf16.msra.mxu0 %v2703
        %2783 = vmatprep.subr.bf16.mxu0 0
        %2784 = vmatpush1.bf16.msra.mxu0 %v2704
        %2785 = vmatprep.subr.bf16.mxu0 0
        %2786 = vmatpush1.bf16.msra.mxu0 0
        %2787 = vmatprep.subr.bf16.mxu0 0
        %2788 = vmatpush1.bf16.msra.mxu0 0
        %2789 = vmatprep.subr.bf16.mxu0 0
        %2790 = vmatpush1.bf16.msra.mxu0 0
        %2791 = vmatprep.subr.bf16.mxu0 0
        %2792 = vmatpush1.bf16.msra.mxu0 0
        %2793 = vmatprep.subr.bf16.mxu0 0
        %2794 = vmatpush1.bf16.msra.mxu0 0
        %2795 = vmatprep.subr.bf16.mxu0 0
        %2796 = vmatpush1.bf16.msra.mxu0 0
        %2797 = vmatprep.subr.bf16.mxu0 0
        %2798 = vmatpush1.bf16.msra.mxu0 0
        %2799 = vmatprep.subr.bf16.mxu0 0
        %2800 = vmatpush1.bf16.msra.mxu0 0
        %2801 = vmatprep.mubr.bf16.mxu0 0
        %2802 = vmatmul.mubr.bf16.gmra.mrb[0].mxu0 %v2534
        %v2803 = vpop.f32.mrb[0].mxu0
        %v2804 = vadd.f32 %v2764, %v2803
        %v2805 = vpop.f32.mrb[0].mxu0
        %v2806 = vpop.f32.mrb[0].mxu0
        %v2807 = vpop.f32.mrb[0].mxu0
        %2808 = vdwg.mxu0
        %vm2809 = vcmask 64512
        %v2810 = vsel %vm2809, %v1274, 0
        %2812 = vmatprep.subr.mxu0 0.0
        %2813 = vmatpush1.msra.mxu0 %v2804
        %2814 = vmatprep.subr.mxu0 0.0
        %2815 = vmatpush1.msra.mxu0 0.0
        %2816 = vmatprep.subr.mxu0 0.0
        %2817 = vmatpush1.msra.mxu0 0.0
        %2818 = vmatprep.subr.mxu0 0.0
        %2819 = vmatpush1.msra.mxu0 0.0
        %2820 = vmatprep.subr.mxu0 0.0
        %2821 = vmatpush1.msra.mxu0 0.0
        %2822 = vmatprep.subr.mxu0 0.0
        %2823 = vmatpush1.msra.mxu0 0.0
        %2824 = vmatprep.subr.mxu0 0.0
        %2825 = vmatpush1.msra.mxu0 0.0
        %2826 = vmatprep.subr.mxu0 0.0
        %2827 = vmatpush1.msra.mxu0 0.0
        %2828 = vmatprep.subr.mxu0 0.0
        %2829 = vmatpush1.msra.mxu0 0.0
        %2830 = vmatprep.subr.mxu0 0.0
        %2831 = vmatpush1.msra.mxu0 0.0
        %2832 = vmatprep.subr.mxu0 0.0
        %2833 = vmatpush1.msra.mxu0 0.0
        %2834 = vmatprep.subr.mxu0 0.0
        %2835 = vmatpush1.msra.mxu0 0.0
        %2836 = vmatprep.subr.mxu0 0.0
        %2837 = vmatpush1.msra.mxu0 0.0
        %2838 = vmatprep.subr.mxu0 0.0
        %2839 = vmatpush1.msra.mxu0 0.0
        %2840 = vmatprep.subr.mxu0 0.0
        %2841 = vmatpush1.msra.mxu0 0.0
        %2842 = vmatprep.subr.mxu0 0.0
        %2843 = vmatpush1.msra.mxu0 0.0
        %2844 = vmatprep.subr.mxu0 0.0
        %2845 = vmatpush1.msra.mxu0 0.0
        %2846 = vmatprep.subr.mxu0 0.0
        %2847 = vmatpush1.msra.mxu0 0.0
        %2848 = vmatprep.subr.mxu0 0.0
        %2849 = vmatpush1.msra.mxu0 0.0
        %2850 = vmatprep.subr.mxu0 0.0
        %2851 = vmatpush1.msra.mxu0 0.0
        %2852 = vmatprep.subr.mxu0 0.0
        %2853 = vmatpush1.msra.mxu0 0.0
        %2854 = vmatprep.subr.mxu0 0.0
        %2855 = vmatpush1.msra.mxu0 0.0
        %2856 = vmatprep.subr.mxu0 0.0
        %2857 = vmatpush1.msra.mxu0 0.0
        %2858 = vmatprep.subr.mxu0 0.0
        %2859 = vmatpush1.msra.mxu0 0.0
        %2860 = vmatprep.subr.mxu0 0.0
        %2861 = vmatpush1.msra.mxu0 0.0
        %2862 = vmatprep.subr.mxu0 0.0
        %2863 = vmatpush1.msra.mxu0 0.0
        %2864 = vmatprep.subr.mxu0 0.0
        %2865 = vmatpush1.msra.mxu0 0.0
        %2866 = vmatprep.subr.mxu0 0.0
        %2867 = vmatpush1.msra.mxu0 0.0
        %2868 = vmatprep.subr.mxu0 0.0
        %2869 = vmatpush1.msra.mxu0 0.0
        %2870 = vmatprep.subr.mxu0 0.0
        %2871 = vmatpush1.msra.mxu0 0.0
        %2872 = vmatprep.subr.mxu0 0.0
        %2873 = vmatpush1.msra.mxu0 0.0
        %2874 = vmatprep.subr.mxu0 0.0
        %2875 = vmatpush1.msra.mxu0 0.0
        %2876 = vmatprep.mubr.f32.mxu0 0.0
        %2877 = vmatmul.mubr.f32.gmra.mrb[0].mxu0 %v2810
        %v2878 = vpop.f32.mrb[0].mxu0
        %v2879 = vadd.f32 0.0, %v2878
        %v2880 = vpop.f32.mrb[0].mxu0
        %2881 = vdwg.mxu0
        %2882 = vmatprep.subr.mxu0 0.0
        %2883 = vmatpush1.msra.mxu0 %v2186
        %2884 = vmatprep.subr.mxu0 0.0
        %2885 = vmatpush1.msra.mxu0 0.0
        %2886 = vmatprep.subr.mxu0 0.0
        %2887 = vmatpush1.msra.mxu0 0.0
        %2888 = vmatprep.subr.mxu0 0.0
        %2889 = vmatpush1.msra.mxu0 0.0
        %2890 = vmatprep.subr.mxu0 0.0
        %2891 = vmatpush1.msra.mxu0 0.0
        %2892 = vmatprep.subr.mxu0 0.0
        %2893 = vmatpush1.msra.mxu0 0.0
        %2894 = vmatprep.subr.mxu0 0.0
        %2895 = vmatpush1.msra.mxu0 0.0
        %2896 = vmatprep.subr.mxu0 0.0
        %2897 = vmatpush1.msra.mxu0 0.0
        %2898 = vmatprep.subr.mxu0 0.0
        %2899 = vmatpush1.msra.mxu0 0.0
        %2900 = vmatprep.subr.mxu0 0.0
        %2901 = vmatpush1.msra.mxu0 0.0
        %2902 = vmatprep.subr.mxu0 0.0
        %2903 = vmatpush1.msra.mxu0 0.0
        %2904 = vmatprep.subr.mxu0 0.0
        %2905 = vmatpush1.msra.mxu0 0.0
        %2906 = vmatprep.subr.mxu0 0.0
        %2907 = vmatpush1.msra.mxu0 0.0
        %2908 = vmatprep.subr.mxu0 0.0
        %2909 = vmatpush1.msra.mxu0 0.0
        %2910 = vmatprep.subr.mxu0 0.0
        %2911 = vmatpush1.msra.mxu0 0.0
        %2912 = vmatprep.subr.mxu0 0.0
        %2913 = vmatpush1.msra.mxu0 0.0
        %2914 = vmatprep.subr.mxu0 0.0
        %2915 = vmatpush1.msra.mxu0 0.0
        %2916 = vmatprep.subr.mxu0 0.0
        %2917 = vmatpush1.msra.mxu0 0.0
        %2918 = vmatprep.subr.mxu0 0.0
        %2919 = vmatpush1.msra.mxu0 0.0
        %2920 = vmatprep.subr.mxu0 0.0
        %2921 = vmatpush1.msra.mxu0 0.0
        %2922 = vmatprep.subr.mxu0 0.0
        %2923 = vmatpush1.msra.mxu0 0.0
        %2924 = vmatprep.subr.mxu0 0.0
        %2925 = vmatpush1.msra.mxu0 0.0
        %2926 = vmatprep.subr.mxu0 0.0
        %2927 = vmatpush1.msra.mxu0 0.0
        %2928 = vmatprep.subr.mxu0 0.0
        %2929 = vmatpush1.msra.mxu0 0.0
        %2930 = vmatprep.subr.mxu0 0.0
        %2931 = vmatpush1.msra.mxu0 0.0
        %2932 = vmatprep.subr.mxu0 0.0
        %2933 = vmatpush1.msra.mxu0 0.0
        %2934 = vmatprep.subr.mxu0 0.0
        %2935 = vmatpush1.msra.mxu0 0.0
        %2936 = vmatprep.subr.mxu0 0.0
        %2937 = vmatpush1.msra.mxu0 0.0
        %2938 = vmatprep.subr.mxu0 0.0
        %2939 = vmatpush1.msra.mxu0 0.0
        %2940 = vmatprep.subr.mxu0 0.0
        %2941 = vmatpush1.msra.mxu0 0.0
        %2942 = vmatprep.subr.mxu0 0.0
        %2943 = vmatpush1.msra.mxu0 0.0
        %2944 = vmatprep.subr.mxu0 0.0
        %2945 = vmatpush1.msra.mxu0 0.0
        %2946 = vmatprep.mubr.f32.mxu0 0.0
        %2947 = vmatmul.mubr.f32.gmra.mrb[0].mxu0 %v2810
        %v2948 = vpop.f32.mrb[0].mxu0
        %v2949 = vadd.f32 0.0, %v2948
        %v2950 = vpop.f32.mrb[0].mxu0
        %2951 = vdwg.mxu0
        %v2952 = vpack.c.bf16 %v2949, %v2949
        %s2953 = scalar_lea.vmem [#allocation4], 64
        %v2954 = vld [vmem:[%s2953] sm:$0xf]
        %v2955 = vld [vmem:[%s2953 + $0x4] sm:$0xf]
        %v2956 = vld [vmem:[%s2953 + $0x8] sm:$0xf]
        %v2957 = vld [vmem:[%s2953 + $0xc] sm:$0xf]
        %v2958 = vld [vmem:[%s2953 + $0x10] sm:$0xf]
        %v2959 = vld [vmem:[%s2953 + $0x14] sm:$0xf]
        %v2960 = vld [vmem:[%s2953 + $0x18] sm:$0xf]
        %v2961 = vld [vmem:[%s2953 + $0x1c] sm:$0xf]
        %v2962 = vld [vmem:[%s2953 + $0x20] sm:$0xf]
        %v2963 = vld [vmem:[%s2953 + $0x24] sm:$0xf]
        %v2964 = vld [vmem:[%s2953 + $0x28] sm:$0xf]
        %v2965 = vld [vmem:[%s2953 + $0x2c] sm:$0xf]
        %v2966 = vld [vmem:[%s2953 + $0x30] sm:$0xf]
        %v2967 = vld [vmem:[%s2953 + $0x34] sm:$0xf]
        %v2968 = vld [vmem:[%s2953 + $0x38] sm:$0xf]
        %v2969 = vld [vmem:[%s2953 + $0x3c] sm:$0xf]
        %v2986 = vunpack.c.l.b16 %v2954
        %v2987 = vunpack.c.l.b16 %v2955
        %v2988 = vunpack.c.l.b16 %v2956
        %v2989 = vunpack.c.l.b16 %v2957
        %v2990 = vunpack.c.l.b16 %v2958
        %v2991 = vunpack.c.l.b16 %v2959
        %v2992 = vunpack.c.l.b16 %v2960
        %v2993 = vunpack.c.l.b16 %v2961
        %v2994 = vunpack.c.l.b16 %v2962
        %v2995 = vunpack.c.l.b16 %v2963
        %v2996 = vunpack.c.l.b16 %v2964
        %v2997 = vunpack.c.l.b16 %v2965
        %v2998 = vunpack.c.l.b16 %v2966
        %v2999 = vunpack.c.l.b16 %v2967
        %v3000 = vunpack.c.l.b16 %v2968
        %v3001 = vunpack.c.l.b16 %v2969
        %v3002 = vpack.c.b16 %v2987, %v2986
        %v3003 = vpack.c.b16 %v2989, %v2988
        %v3004 = vpack.c.b16 %v2991, %v2990
        %v3005 = vpack.c.b16 %v2993, %v2992
        %v3006 = vpack.c.b16 %v2995, %v2994
        %v3007 = vpack.c.b16 %v2997, %v2996
        %v3008 = vpack.c.b16 %v2999, %v2998
        %v3009 = vpack.c.b16 %v3001, %v3000
        %3018 = vmatprep.subr.bf16.mxu0 0
        %3019 = vmatpush1.bf16.msra.mxu0 %v3002
        %3020 = vmatprep.subr.bf16.mxu0 0
        %3021 = vmatpush1.bf16.msra.mxu0 %v3003
        %3022 = vmatprep.subr.bf16.mxu0 0
        %3023 = vmatpush1.bf16.msra.mxu0 %v3004
        %3024 = vmatprep.subr.bf16.mxu0 0
        %3025 = vmatpush1.bf16.msra.mxu0 %v3005
        %3026 = vmatprep.subr.bf16.mxu0 0
        %3027 = vmatpush1.bf16.msra.mxu0 %v3006
        %3028 = vmatprep.subr.bf16.mxu0 0
        %3029 = vmatpush1.bf16.msra.mxu0 %v3007
        %3030 = vmatprep.subr.bf16.mxu0 0
        %3031 = vmatpush1.bf16.msra.mxu0 %v3008
        %3032 = vmatprep.subr.bf16.mxu0 0
        %3033 = vmatpush1.bf16.msra.mxu0 %v3009
        %3034 = vmatprep.subr.bf16.mxu0 0
        %3035 = vmatpush1.bf16.msra.mxu0 0
        %3036 = vmatprep.subr.bf16.mxu0 0
        %3037 = vmatpush1.bf16.msra.mxu0 0
        %3038 = vmatprep.subr.bf16.mxu0 0
        %3039 = vmatpush1.bf16.msra.mxu0 0
        %3040 = vmatprep.subr.bf16.mxu0 0
        %3041 = vmatpush1.bf16.msra.mxu0 0
        %3042 = vmatprep.subr.bf16.mxu0 0
        %3043 = vmatpush1.bf16.msra.mxu0 0
        %3044 = vmatprep.subr.bf16.mxu0 0
        %3045 = vmatpush1.bf16.msra.mxu0 0
        %3046 = vmatprep.subr.bf16.mxu0 0
        %3047 = vmatpush1.bf16.msra.mxu0 0
        %3048 = vmatprep.subr.bf16.mxu0 0
        %3049 = vmatpush1.bf16.msra.mxu0 0
        %3050 = vmatprep.mubr.bf16.mxu0 0
        %3051 = vmatmul.mubr.bf16.gmra.mrb[0].mxu0 %v2952
        %v3052 = vpop.f32.mrb[0].mxu0
        %v3053 = vadd.f32 0.0, %v3052
        %v3054 = vpop.f32.mrb[0].mxu0
        %v3055 = vpop.f32.mrb[0].mxu0
        %v3056 = vpop.f32.mrb[0].mxu0
        %3057 = vdwg.mxu0
        %v3058 = vld [vmem:[#allocation6 + $0x1a] sm:$0x1]
        %v3059 = vlaneseq
        %v3060 = vshrl.u32 %v3059, 7
        %v3061 = vsub.s32 0, %v3060
        %v3062 = vrot.slane %v3058, %v3061
        %v3063 = vmul.f32 %v3053, %v3062
        %v3064 = vld [vmem:[#allocation6 + $0x1b] sm:$0x1]
        %v3065 = vlaneseq
        %v3066 = vshrl.u32 %v3065, 7
        %v3067 = vsub.s32 0, %v3066
        %v3068 = vrot.slane %v3064, %v3067
        %v3069 = vadd.f32 %v3063, %v3068
        %v3070 = vld [vmem:[#allocation6 + $0x18] sm:$0x1]
        %v3071 = vlaneseq
        %v3072 = vshrl.u32 %v3071, 7
        %v3073 = vsub.s32 0, %v3072
        %v3074 = vrot.slane %v3070, %v3073
        %v3075 = vmul.f32 %v2879, %v3074
        %v3076 = vld [vmem:[#allocation6 + $0x19] sm:$0x1]
        %v3077 = vlaneseq
        %v3078 = vshrl.u32 %v3077, 7
        %v3079 = vsub.s32 0, %v3078
        %v3080 = vrot.slane %v3076, %v3079
        %v3081 = vadd.f32 %v3075, %v3080
        %v3082 = vadd.f32 %v3081, %v3069
        %v3083 = vld [vmem:[#allocation6 + $0x1c] sm:$0x1]
        %v3084 = vlaneseq
        %v3085 = vshrl.u32 %v3084, 7
        %v3086 = vsub.s32 0, %v3085
        %v3087 = vrot.slane %v3083, %v3086
        %v3088 = vmul.f32 %v3082, %v3087
        %v3089 = vld [vmem:[#allocation6 + $0x1d] sm:$0x1]
        %v3090 = vlaneseq
        %v3091 = vshrl.u32 %v3090, 7
        %v3092 = vsub.s32 0, %v3091
        %v3093 = vrot.slane %v3089, %v3092
        %v3094 = vadd.f32 %v3088, %v3093
        %v3095 = vpack.c.bf16 %v3094, %v3094
        %v3097 = vshrl.u32 %v3095, 16
        %v3099 = vrot.slane %v3097, 7
        %v3100 = vshll.u32 %v3095, 16
        %v3102 = vor.u32 %v3099, %v3100
        %v3104 = vsel %vm639, 0, %v3102
        %vm3105 = vcmask 1042432
        %vm3106 = vsmask.f32 2304
        %vm3107 = vmand %vm3105, %vm3106
        %v3108 = vsel %vm3107, %v3104, 0
        %v3110 = vshrl.u32 %v3108, 16
        %v3112 = vshll.u32 %v3108, 16
        %v3114 = vrot.slane %v3112, 1
        %v3115 = vor.u32 %v3110, %v3114
        %v3118 = vrot.slane %v3108, 1
        %s3120 = scalar_lea.vmem [#allocation2], 1344
        %v3121 = vld [vmem:[%s3120] sm:$0xf]
        %v3122 = vld [vmem:[%s3120 + $0x4] sm:$0xf]
        %v3123 = vld [vmem:[%s3120 + $0x8] sm:$0xf]
        %v3124 = vld [vmem:[%s3120 + $0xc] sm:$0xf]
        %v3125 = vld [vmem:[%s3120 + $0x10] sm:$0xf]
        %v3126 = vld [vmem:[%s3120 + $0x14] sm:$0xf]
        %v3127 = vld [vmem:[%s3120 + $0x18] sm:$0xf]
        %v3128 = vld [vmem:[%s3120 + $0x1c] sm:$0xf]
        %v3129 = vld [vmem:[%s3120 + $0x20] sm:$0xf]
        %v3130 = vld [vmem:[%s3120 + $0x24] sm:$0xf]
        %v3131 = vld [vmem:[%s3120 + $0x28] sm:$0xf]
        %v3132 = vld [vmem:[%s3120 + $0x2c] sm:$0xf]
        %v3133 = vld [vmem:[%s3120 + $0x30] sm:$0xf]
        %v3134 = vld [vmem:[%s3120 + $0x34] sm:$0xf]
        %v3135 = vld [vmem:[%s3120 + $0x38] sm:$0xf]
        %v3136 = vld [vmem:[%s3120 + $0x3c] sm:$0xf]
        %v3137 = vld [vmem:[%s3120 + $0x40] sm:$0xf]
        %v3138 = vld [vmem:[%s3120 + $0x44] sm:$0xf]
        %v3139 = vld [vmem:[%s3120 + $0x48] sm:$0xf]
        %v3140 = vld [vmem:[%s3120 + $0x4c] sm:$0xf]
        %v3141 = vld [vmem:[%s3120 + $0x50] sm:$0xf]
        %v3142 = vld [vmem:[%s3120 + $0x54] sm:$0xf]
        %v3143 = vld [vmem:[%s3120 + $0x58] sm:$0xf]
        %v3144 = vld [vmem:[%s3120 + $0x5c] sm:$0xf]
        %v3145 = vld [vmem:[%s3120 + $0x60] sm:$0xf]
        %v3146 = vld [vmem:[%s3120 + $0x64] sm:$0xf]
        %v3147 = vld [vmem:[%s3120 + $0x68] sm:$0xf]
        %v3148 = vld [vmem:[%s3120 + $0x6c] sm:$0xf]
        %v3149 = vld [vmem:[%s3120 + $0x70] sm:$0xf]
        %v3150 = vld [vmem:[%s3120 + $0x74] sm:$0xf]
        %v3151 = vld [vmem:[%s3120 + $0x78] sm:$0xf]
        %v3152 = vld [vmem:[%s3120 + $0x7c] sm:$0xf]
        %v3153 = vld [vmem:[%s3120 + $0x80] sm:$0xf]
        %v3154 = vld [vmem:[%s3120 + $0x84] sm:$0xf]
        %v3155 = vld [vmem:[%s3120 + $0x88] sm:$0xf]
        %v3156 = vld [vmem:[%s3120 + $0x8c] sm:$0xf]
        %v3157 = vld [vmem:[%s3120 + $0x90] sm:$0xf]
        %v3158 = vld [vmem:[%s3120 + $0x94] sm:$0xf]
        %v3159 = vld [vmem:[%s3120 + $0x98] sm:$0xf]
        %v3160 = vld [vmem:[%s3120 + $0x9c] sm:$0xf]
        %v3161 = vld [vmem:[%s3120 + $0xa0] sm:$0xf]
        %v3162 = vld [vmem:[%s3120 + $0xa4] sm:$0xf]
        %v3163 = vld [vmem:[%s3120 + $0xa8] sm:$0xf]
        %v3164 = vld [vmem:[%s3120 + $0xac] sm:$0xf]
        %v3165 = vld [vmem:[%s3120 + $0xb0] sm:$0xf]
        %v3166 = vld [vmem:[%s3120 + $0xb4] sm:$0xf]
        %v3167 = vld [vmem:[%s3120 + $0xb8] sm:$0xf]
        %v3168 = vld [vmem:[%s3120 + $0xbc] sm:$0xf]
        %v3217 = vunpack.c.l.b16 %v3121
        %v3218 = vunpack.c.l.b16 %v3122
        %v3219 = vunpack.c.l.b16 %v3123
        %v3220 = vunpack.c.l.b16 %v3124
        %v3221 = vunpack.c.l.b16 %v3125
        %v3222 = vunpack.c.l.b16 %v3126
        %v3223 = vunpack.c.l.b16 %v3127
        %v3224 = vunpack.c.l.b16 %v3128
        %v3225 = vunpack.c.l.b16 %v3129
        %v3226 = vunpack.c.l.b16 %v3130
        %v3227 = vunpack.c.l.b16 %v3131
        %v3228 = vunpack.c.l.b16 %v3132
        %v3229 = vunpack.c.l.b16 %v3133
        %v3230 = vunpack.c.l.b16 %v3134
        %v3231 = vunpack.c.l.b16 %v3135
        %v3232 = vunpack.c.l.b16 %v3136
        %v3233 = vunpack.c.l.b16 %v3137
        %v3234 = vunpack.c.l.b16 %v3138
        %v3235 = vunpack.c.l.b16 %v3139
        %v3236 = vunpack.c.l.b16 %v3140
        %v3237 = vunpack.c.l.b16 %v3141
        %v3238 = vunpack.c.l.b16 %v3142
        %v3239 = vunpack.c.l.b16 %v3143
        %v3240 = vunpack.c.l.b16 %v3144
        %v3241 = vunpack.c.l.b16 %v3145
        %v3242 = vunpack.c.l.b16 %v3146
        %v3243 = vunpack.c.l.b16 %v3147
        %v3244 = vunpack.c.l.b16 %v3148
        %v3245 = vunpack.c.l.b16 %v3149
        %v3246 = vunpack.c.l.b16 %v3150
        %v3247 = vunpack.c.l.b16 %v3151
        %v3248 = vunpack.c.l.b16 %v3152
        %v3249 = vunpack.c.l.b16 %v3153
        %v3250 = vunpack.c.l.b16 %v3154
        %v3251 = vunpack.c.l.b16 %v3155
        %v3252 = vunpack.c.l.b16 %v3156
        %v3253 = vunpack.c.l.b16 %v3157
        %v3254 = vunpack.c.l.b16 %v3158
        %v3255 = vunpack.c.l.b16 %v3159
        %v3256 = vunpack.c.l.b16 %v3160
        %v3257 = vunpack.c.l.b16 %v3161
        %v3258 = vunpack.c.l.b16 %v3162
        %v3259 = vunpack.c.l.b16 %v3163
        %v3260 = vunpack.c.l.b16 %v3164
        %v3261 = vunpack.c.l.b16 %v3165
        %v3262 = vunpack.c.l.b16 %v3166
        %v3263 = vunpack.c.l.b16 %v3167
        %v3264 = vunpack.c.l.b16 %v3168
        %v3265 = vpack.c.b16 %v3218, %v3217
        %v3266 = vpack.c.b16 %v3220, %v3219
        %v3267 = vpack.c.b16 %v3222, %v3221
        %v3268 = vpack.c.b16 %v3224, %v3223
        %v3269 = vpack.c.b16 %v3226, %v3225
        %v3270 = vpack.c.b16 %v3228, %v3227
        %v3271 = vpack.c.b16 %v3230, %v3229
        %v3272 = vpack.c.b16 %v3232, %v3231
        %v3273 = vpack.c.b16 %v3234, %v3233
        %v3274 = vpack.c.b16 %v3236, %v3235
        %v3275 = vpack.c.b16 %v3238, %v3237
        %v3276 = vpack.c.b16 %v3240, %v3239
        %v3277 = vpack.c.b16 %v3242, %v3241
        %v3278 = vpack.c.b16 %v3244, %v3243
        %v3279 = vpack.c.b16 %v3246, %v3245
        %v3280 = vpack.c.b16 %v3248, %v3247
        %v3281 = vpack.c.b16 %v3250, %v3249
        %v3282 = vpack.c.b16 %v3252, %v3251
        %v3283 = vpack.c.b16 %v3254, %v3253
        %v3284 = vpack.c.b16 %v3256, %v3255
        %v3285 = vpack.c.b16 %v3258, %v3257
        %v3286 = vpack.c.b16 %v3260, %v3259
        %v3287 = vpack.c.b16 %v3262, %v3261
        %v3288 = vpack.c.b16 %v3264, %v3263
        %3313 = vmatprep.subr.bf16.mxu0 0
        %3314 = vmatpush1.bf16.msra.mxu0 %v3265
        %3315 = vmatprep.subr.bf16.mxu0 0
        %3316 = vmatpush1.bf16.msra.mxu0 %v3266
        %3317 = vmatprep.subr.bf16.mxu0 0
        %3318 = vmatpush1.bf16.msra.mxu0 %v3267
        %3319 = vmatprep.subr.bf16.mxu0 0
        %3320 = vmatpush1.bf16.msra.mxu0 %v3268
        %3321 = vmatprep.subr.bf16.mxu0 0
        %3322 = vmatpush1.bf16.msra.mxu0 %v3269
        %3323 = vmatprep.subr.bf16.mxu0 0
        %3324 = vmatpush1.bf16.msra.mxu0 %v3270
        %3325 = vmatprep.subr.bf16.mxu0 0
        %3326 = vmatpush1.bf16.msra.mxu0 %v3271
        %3327 = vmatprep.subr.bf16.mxu0 0
        %3328 = vmatpush1.bf16.msra.mxu0 %v3272
        %3329 = vmatprep.subr.bf16.mxu0 0
        %3330 = vmatpush1.bf16.msra.mxu0 %v3273
        %3331 = vmatprep.subr.bf16.mxu0 0
        %3332 = vmatpush1.bf16.msra.mxu0 %v3274
        %3333 = vmatprep.subr.bf16.mxu0 0
        %3334 = vmatpush1.bf16.msra.mxu0 %v3275
        %3335 = vmatprep.subr.bf16.mxu0 0
        %3336 = vmatpush1.bf16.msra.mxu0 %v3276
        %3337 = vmatprep.subr.bf16.mxu0 0
        %3338 = vmatpush1.bf16.msra.mxu0 %v3277
        %3339 = vmatprep.subr.bf16.mxu0 0
        %3340 = vmatpush1.bf16.msra.mxu0 %v3278
        %3341 = vmatprep.subr.bf16.mxu0 0
        %3342 = vmatpush1.bf16.msra.mxu0 %v3279
        %3343 = vmatprep.subr.bf16.mxu0 0
        %3344 = vmatpush1.bf16.msra.mxu0 %v3280
        %3345 = vmatprep.mubr.bf16.mxu0 %v3115
        %3346 = vmatmul.mubr.bf16.gmra.mrb[0].mxu0 %v3108
        %v3347 = vpop.f32.mrb[0].mxu0
        %v3348 = vadd.f32 0.0, %v3347
        %v3349 = vpop.f32.mrb[0].mxu0
        %v3350 = vpop.f32.mrb[0].mxu0
        %v3351 = vpop.f32.mrb[0].mxu0
        %3352 = vdwg.mxu0
        %3353 = vmatprep.subr.bf16.mxu0 0
        %3354 = vmatpush1.bf16.msra.mxu0 %v3281
        %3355 = vmatprep.subr.bf16.mxu0 0
        %3356 = vmatpush1.bf16.msra.mxu0 %v3282
        %3357 = vmatprep.subr.bf16.mxu0 0
        %3358 = vmatpush1.bf16.msra.mxu0 %v3283
        %3359 = vmatprep.subr.bf16.mxu0 0
        %3360 = vmatpush1.bf16.msra.mxu0 %v3284
        %3361 = vmatprep.subr.bf16.mxu0 0
        %3362 = vmatpush1.bf16.msra.mxu0 %v3285
        %3363 = vmatprep.subr.bf16.mxu0 0
        %3364 = vmatpush1.bf16.msra.mxu0 %v3286
        %3365 = vmatprep.subr.bf16.mxu0 0
        %3366 = vmatpush1.bf16.msra.mxu0 %v3287
        %3367 = vmatprep.subr.bf16.mxu0 0
        %3368 = vmatpush1.bf16.msra.mxu0 %v3288
        %3369 = vmatprep.subr.bf16.mxu0 0
        %3370 = vmatpush1.bf16.msra.mxu0 0
        %3371 = vmatprep.subr.bf16.mxu0 0
        %3372 = vmatpush1.bf16.msra.mxu0 0
        %3373 = vmatprep.subr.bf16.mxu0 0
        %3374 = vmatpush1.bf16.msra.mxu0 0
        %3375 = vmatprep.subr.bf16.mxu0 0
        %3376 = vmatpush1.bf16.msra.mxu0 0
        %3377 = vmatprep.subr.bf16.mxu0 0
        %3378 = vmatpush1.bf16.msra.mxu0 0
        %3379 = vmatprep.subr.bf16.mxu0 0
        %3380 = vmatpush1.bf16.msra.mxu0 0
        %3381 = vmatprep.subr.bf16.mxu0 0
        %3382 = vmatpush1.bf16.msra.mxu0 0
        %3383 = vmatprep.subr.bf16.mxu0 0
        %3384 = vmatpush1.bf16.msra.mxu0 0
        %3385 = vmatprep.mubr.bf16.mxu0 0
        %3386 = vmatmul.mubr.bf16.gmra.mrb[0].mxu0 %v3118
        %v3387 = vpop.f32.mrb[0].mxu0
        %v3388 = vadd.f32 %v3348, %v3387
        %v3389 = vpop.f32.mrb[0].mxu0
        %v3390 = vpop.f32.mrb[0].mxu0
        %v3391 = vpop.f32.mrb[0].mxu0
        %3392 = vdwg.mxu0
        %v3393 = vld [vmem:[#allocation6 + $0x1e] sm:$0x1]
        %v3394 = vlaneseq
        %v3395 = vshrl.u32 %v3394, 7
        %v3396 = vsub.s32 0, %v3395
        %v3397 = vrot.slane %v3393, %v3396
        %v3398 = vmul.f32 %v3388, %v3397
        %v3399 = vld [vmem:[#allocation6 + $0x1f] sm:$0x1]
        %v3400 = vlaneseq
        %v3401 = vshrl.u32 %v3400, 7
        %v3402 = vsub.s32 0, %v3401
        %v3403 = vrot.slane %v3399, %v3402
        %v3404 = vadd.f32 %v3398, %v3403
        %vm3405 = vcmp.ge.f32.partialorder %v3404, 0.0
        %v3406 = vld [vmem:[#allocation6 + $0x20] sm:$0x1]
        %v3407 = vlaneseq
        %v3408 = vshrl.u32 %v3407, 7
        %v3409 = vsub.s32 0, %v3408
        %v3410 = vrot.slane %v3406, %v3409
        %v3411 = vmul.f32 %v3404, %v3410
        %v3412 = vsel %vm3405, %v3404, %v3411
        %v3413 = vpack.c.bf16 %v3412, %v3412
        %v3415 = vshrl.u32 %v3413, 16
        %v3417 = vrot.slane %v3415, 7
        %v3418 = vshll.u32 %v3413, 16
        %v3420 = vor.u32 %v3417, %v3418
        %v3422 = vsel %vm639, 0, %v3420
        %v3423 = vsel %vm3107, %v3422, 0
        %v3425 = vshrl.u32 %v3423, 16
        %v3427 = vshll.u32 %v3423, 16
        %v3429 = vrot.slane %v3427, 1
        %v3430 = vor.u32 %v3425, %v3429
        %v3433 = vrot.slane %v3423, 1
        %s3435 = scalar_lea.vmem [#allocation2], 1536
        %v3436 = vld [vmem:[%s3435] sm:$0xf]
        %v3437 = vld [vmem:[%s3435 + $0x4] sm:$0xf]
        %v3438 = vld [vmem:[%s3435 + $0x8] sm:$0xf]
        %v3439 = vld [vmem:[%s3435 + $0xc] sm:$0xf]
        %v3440 = vld [vmem:[%s3435 + $0x10] sm:$0xf]
        %v3441 = vld [vmem:[%s3435 + $0x14] sm:$0xf]
        %v3442 = vld [vmem:[%s3435 + $0x18] sm:$0xf]
        %v3443 = vld [vmem:[%s3435 + $0x1c] sm:$0xf]
        %v3444 = vld [vmem:[%s3435 + $0x20] sm:$0xf]
        %v3445 = vld [vmem:[%s3435 + $0x24] sm:$0xf]
        %v3446 = vld [vmem:[%s3435 + $0x28] sm:$0xf]
        %v3447 = vld [vmem:[%s3435 + $0x2c] sm:$0xf]
        %v3448 = vld [vmem:[%s3435 + $0x30] sm:$0xf]
        %v3449 = vld [vmem:[%s3435 + $0x34] sm:$0xf]
        %v3450 = vld [vmem:[%s3435 + $0x38] sm:$0xf]
        %v3451 = vld [vmem:[%s3435 + $0x3c] sm:$0xf]
        %v3452 = vld [vmem:[%s3435 + $0x40] sm:$0xf]
        %v3453 = vld [vmem:[%s3435 + $0x44] sm:$0xf]
        %v3454 = vld [vmem:[%s3435 + $0x48] sm:$0xf]
        %v3455 = vld [vmem:[%s3435 + $0x4c] sm:$0xf]
        %v3456 = vld [vmem:[%s3435 + $0x50] sm:$0xf]
        %v3457 = vld [vmem:[%s3435 + $0x54] sm:$0xf]
        %v3458 = vld [vmem:[%s3435 + $0x58] sm:$0xf]
        %v3459 = vld [vmem:[%s3435 + $0x5c] sm:$0xf]
        %v3460 = vld [vmem:[%s3435 + $0x60] sm:$0xf]
        %v3461 = vld [vmem:[%s3435 + $0x64] sm:$0xf]
        %v3462 = vld [vmem:[%s3435 + $0x68] sm:$0xf]
        %v3463 = vld [vmem:[%s3435 + $0x6c] sm:$0xf]
        %v3464 = vld [vmem:[%s3435 + $0x70] sm:$0xf]
        %v3465 = vld [vmem:[%s3435 + $0x74] sm:$0xf]
        %v3466 = vld [vmem:[%s3435 + $0x78] sm:$0xf]
        %v3467 = vld [vmem:[%s3435 + $0x7c] sm:$0xf]
        %v3468 = vld [vmem:[%s3435 + $0x80] sm:$0xf]
        %v3469 = vld [vmem:[%s3435 + $0x84] sm:$0xf]
        %v3470 = vld [vmem:[%s3435 + $0x88] sm:$0xf]
        %v3471 = vld [vmem:[%s3435 + $0x8c] sm:$0xf]
        %v3472 = vld [vmem:[%s3435 + $0x90] sm:$0xf]
        %v3473 = vld [vmem:[%s3435 + $0x94] sm:$0xf]
        %v3474 = vld [vmem:[%s3435 + $0x98] sm:$0xf]
        %v3475 = vld [vmem:[%s3435 + $0x9c] sm:$0xf]
        %v3476 = vld [vmem:[%s3435 + $0xa0] sm:$0xf]
        %v3477 = vld [vmem:[%s3435 + $0xa4] sm:$0xf]
        %v3478 = vld [vmem:[%s3435 + $0xa8] sm:$0xf]
        %v3479 = vld [vmem:[%s3435 + $0xac] sm:$0xf]
        %v3480 = vld [vmem:[%s3435 + $0xb0] sm:$0xf]
        %v3481 = vld [vmem:[%s3435 + $0xb4] sm:$0xf]
        %v3482 = vld [vmem:[%s3435 + $0xb8] sm:$0xf]
        %v3483 = vld [vmem:[%s3435 + $0xbc] sm:$0xf]
        %v3532 = vunpack.c.l.b16 %v3436
        %v3533 = vunpack.c.l.b16 %v3437
        %v3534 = vunpack.c.l.b16 %v3438
        %v3535 = vunpack.c.l.b16 %v3439
        %v3536 = vunpack.c.l.b16 %v3440
        %v3537 = vunpack.c.l.b16 %v3441
        %v3538 = vunpack.c.l.b16 %v3442
        %v3539 = vunpack.c.l.b16 %v3443
        %v3540 = vunpack.c.l.b16 %v3444
        %v3541 = vunpack.c.l.b16 %v3445
        %v3542 = vunpack.c.l.b16 %v3446
        %v3543 = vunpack.c.l.b16 %v3447
        %v3544 = vunpack.c.l.b16 %v3448
        %v3545 = vunpack.c.l.b16 %v3449
        %v3546 = vunpack.c.l.b16 %v3450
        %v3547 = vunpack.c.l.b16 %v3451
        %v3548 = vunpack.c.l.b16 %v3452
        %v3549 = vunpack.c.l.b16 %v3453
        %v3550 = vunpack.c.l.b16 %v3454
        %v3551 = vunpack.c.l.b16 %v3455
        %v3552 = vunpack.c.l.b16 %v3456
        %v3553 = vunpack.c.l.b16 %v3457
        %v3554 = vunpack.c.l.b16 %v3458
        %v3555 = vunpack.c.l.b16 %v3459
        %v3556 = vunpack.c.l.b16 %v3460
        %v3557 = vunpack.c.l.b16 %v3461
        %v3558 = vunpack.c.l.b16 %v3462
        %v3559 = vunpack.c.l.b16 %v3463
        %v3560 = vunpack.c.l.b16 %v3464
        %v3561 = vunpack.c.l.b16 %v3465
        %v3562 = vunpack.c.l.b16 %v3466
        %v3563 = vunpack.c.l.b16 %v3467
        %v3564 = vunpack.c.l.b16 %v3468
        %v3565 = vunpack.c.l.b16 %v3469
        %v3566 = vunpack.c.l.b16 %v3470
        %v3567 = vunpack.c.l.b16 %v3471
        %v3568 = vunpack.c.l.b16 %v3472
        %v3569 = vunpack.c.l.b16 %v3473
        %v3570 = vunpack.c.l.b16 %v3474
        %v3571 = vunpack.c.l.b16 %v3475
        %v3572 = vunpack.c.l.b16 %v3476
        %v3573 = vunpack.c.l.b16 %v3477
        %v3574 = vunpack.c.l.b16 %v3478
        %v3575 = vunpack.c.l.b16 %v3479
        %v3576 = vunpack.c.l.b16 %v3480
        %v3577 = vunpack.c.l.b16 %v3481
        %v3578 = vunpack.c.l.b16 %v3482
        %v3579 = vunpack.c.l.b16 %v3483
        %v3580 = vpack.c.b16 %v3533, %v3532
        %v3581 = vpack.c.b16 %v3535, %v3534
        %v3582 = vpack.c.b16 %v3537, %v3536
        %v3583 = vpack.c.b16 %v3539, %v3538
        %v3584 = vpack.c.b16 %v3541, %v3540
        %v3585 = vpack.c.b16 %v3543, %v3542
        %v3586 = vpack.c.b16 %v3545, %v3544
        %v3587 = vpack.c.b16 %v3547, %v3546
        %v3588 = vpack.c.b16 %v3549, %v3548
        %v3589 = vpack.c.b16 %v3551, %v3550
        %v3590 = vpack.c.b16 %v3553, %v3552
        %v3591 = vpack.c.b16 %v3555, %v3554
        %v3592 = vpack.c.b16 %v3557, %v3556
        %v3593 = vpack.c.b16 %v3559, %v3558
        %v3594 = vpack.c.b16 %v3561, %v3560
        %v3595 = vpack.c.b16 %v3563, %v3562
        %v3596 = vpack.c.b16 %v3565, %v3564
        %v3597 = vpack.c.b16 %v3567, %v3566
        %v3598 = vpack.c.b16 %v3569, %v3568
        %v3599 = vpack.c.b16 %v3571, %v3570
        %v3600 = vpack.c.b16 %v3573, %v3572
        %v3601 = vpack.c.b16 %v3575, %v3574
        %v3602 = vpack.c.b16 %v3577, %v3576
        %v3603 = vpack.c.b16 %v3579, %v3578
        %3628 = vmatprep.subr.bf16.mxu0 0
        %3629 = vmatpush1.bf16.msra.mxu0 %v3580
        %3630 = vmatprep.subr.bf16.mxu0 0
        %3631 = vmatpush1.bf16.msra.mxu0 %v3581
        %3632 = vmatprep.subr.bf16.mxu0 0
        %3633 = vmatpush1.bf16.msra.mxu0 %v3582
        %3634 = vmatprep.subr.bf16.mxu0 0
        %3635 = vmatpush1.bf16.msra.mxu0 %v3583
        %3636 = vmatprep.subr.bf16.mxu0 0
        %3637 = vmatpush1.bf16.msra.mxu0 %v3584
        %3638 = vmatprep.subr.bf16.mxu0 0
        %3639 = vmatpush1.bf16.msra.mxu0 %v3585
        %3640 = vmatprep.subr.bf16.mxu0 0
        %3641 = vmatpush1.bf16.msra.mxu0 %v3586
        %3642 = vmatprep.subr.bf16.mxu0 0
        %3643 = vmatpush1.bf16.msra.mxu0 %v3587
        %3644 = vmatprep.subr.bf16.mxu0 0
        %3645 = vmatpush1.bf16.msra.mxu0 %v3588
        %3646 = vmatprep.subr.bf16.mxu0 0
        %3647 = vmatpush1.bf16.msra.mxu0 %v3589
        %3648 = vmatprep.subr.bf16.mxu0 0
        %3649 = vmatpush1.bf16.msra.mxu0 %v3590
        %3650 = vmatprep.subr.bf16.mxu0 0
        %3651 = vmatpush1.bf16.msra.mxu0 %v3591
        %3652 = vmatprep.subr.bf16.mxu0 0
        %3653 = vmatpush1.bf16.msra.mxu0 %v3592
        %3654 = vmatprep.subr.bf16.mxu0 0
        %3655 = vmatpush1.bf16.msra.mxu0 %v3593
        %3656 = vmatprep.subr.bf16.mxu0 0
        %3657 = vmatpush1.bf16.msra.mxu0 %v3594
        %3658 = vmatprep.subr.bf16.mxu0 0
        %3659 = vmatpush1.bf16.msra.mxu0 %v3595
        %3660 = vmatprep.mubr.bf16.mxu0 %v3430
        %3661 = vmatmul.mubr.bf16.gmra.mrb[0].mxu0 %v3423
        %v3662 = vpop.f32.mrb[0].mxu0
        %v3663 = vadd.f32 0.0, %v3662
        %v3664 = vpop.f32.mrb[0].mxu0
        %v3665 = vpop.f32.mrb[0].mxu0
        %v3666 = vpop.f32.mrb[0].mxu0
        %3667 = vdwg.mxu0
        %3668 = vmatprep.subr.bf16.mxu0 0
        %3669 = vmatpush1.bf16.msra.mxu0 %v3596
        %3670 = vmatprep.subr.bf16.mxu0 0
        %3671 = vmatpush1.bf16.msra.mxu0 %v3597
        %3672 = vmatprep.subr.bf16.mxu0 0
        %3673 = vmatpush1.bf16.msra.mxu0 %v3598
        %3674 = vmatprep.subr.bf16.mxu0 0
        %3675 = vmatpush1.bf16.msra.mxu0 %v3599
        %3676 = vmatprep.subr.bf16.mxu0 0
        %3677 = vmatpush1.bf16.msra.mxu0 %v3600
        %3678 = vmatprep.subr.bf16.mxu0 0
        %3679 = vmatpush1.bf16.msra.mxu0 %v3601
        %3680 = vmatprep.subr.bf16.mxu0 0
        %3681 = vmatpush1.bf16.msra.mxu0 %v3602
        %3682 = vmatprep.subr.bf16.mxu0 0
        %3683 = vmatpush1.bf16.msra.mxu0 %v3603
        %3684 = vmatprep.subr.bf16.mxu0 0
        %3685 = vmatpush1.bf16.msra.mxu0 0
        %3686 = vmatprep.subr.bf16.mxu0 0
        %3687 = vmatpush1.bf16.msra.mxu0 0
        %3688 = vmatprep.subr.bf16.mxu0 0
        %3689 = vmatpush1.bf16.msra.mxu0 0
        %3690 = vmatprep.subr.bf16.mxu0 0
        %3691 = vmatpush1.bf16.msra.mxu0 0
        %3692 = vmatprep.subr.bf16.mxu0 0
        %3693 = vmatpush1.bf16.msra.mxu0 0
        %3694 = vmatprep.subr.bf16.mxu0 0
        %3695 = vmatpush1.bf16.msra.mxu0 0
        %3696 = vmatprep.subr.bf16.mxu0 0
        %3697 = vmatpush1.bf16.msra.mxu0 0
        %3698 = vmatprep.subr.bf16.mxu0 0
        %3699 = vmatpush1.bf16.msra.mxu0 0
        %3700 = vmatprep.mubr.bf16.mxu0 0
        %3701 = vmatmul.mubr.bf16.gmra.mrb[0].mxu0 %v3433
        %v3702 = vpop.f32.mrb[0].mxu0
        %v3703 = vadd.f32 %v3663, %v3702
        %v3704 = vpop.f32.mrb[0].mxu0
        %v3705 = vpop.f32.mrb[0].mxu0
        %v3706 = vpop.f32.mrb[0].mxu0
        %3707 = vdwg.mxu0
        %v3708 = vld [vmem:[#allocation6 + $0x21] sm:$0x1]
        %v3709 = vlaneseq
        %v3710 = vshrl.u32 %v3709, 7
        %v3711 = vsub.s32 0, %v3710
        %v3712 = vrot.slane %v3708, %v3711
        %v3713 = vmul.f32 %v3703, %v3712
        %v3714 = vld [vmem:[#allocation6 + $0x22] sm:$0x1]
        %v3715 = vlaneseq
        %v3716 = vshrl.u32 %v3715, 7
        %v3717 = vsub.s32 0, %v3716
        %v3718 = vrot.slane %v3714, %v3717
        %v3719 = vadd.f32 %v3713, %v3718
        %v3720 = vadd.f32 %v3719, %v3082
        %v3721 = vld [vmem:[#allocation6 + $0x23] sm:$0x1]
        %v3722 = vlaneseq
        %v3723 = vshrl.u32 %v3722, 7
        %v3724 = vsub.s32 0, %v3723
        %v3725 = vrot.slane %v3721, %v3724
        %v3726 = vmul.f32 %v3720, %v3725
        %v3727 = vld [vmem:[#allocation6 + $0x24] sm:$0x1]
        %v3728 = vlaneseq
        %v3729 = vshrl.u32 %v3728, 7
        %v3730 = vsub.s32 0, %v3729
        %v3731 = vrot.slane %v3727, %v3730
        %v3732 = vadd.f32 %v3726, %v3731
        %v3733 = vpack.c.bf16 %v3732, %v3732
        %v3735 = vshrl.u32 %v3733, 16
        %v3737 = vrot.slane %v3735, 7
        %v3738 = vshll.u32 %v3733, 16
        %v3740 = vor.u32 %v3737, %v3738
        %v3742 = vsel %vm639, 0, %v3740
        %v3743 = vsel %vm3107, %v3742, 0
        %v3745 = vshrl.u32 %v3743, 16
        %v3747 = vshll.u32 %v3743, 16
        %v3749 = vrot.slane %v3747, 1
        %v3750 = vor.u32 %v3745, %v3749
        %v3753 = vrot.slane %v3743, 1
        %s3755 = scalar_lea.vmem [#allocation2], 1728
        %v3756 = vld [vmem:[%s3755] sm:$0xf]
        %v3757 = vld [vmem:[%s3755 + $0x4] sm:$0xf]
        %v3758 = vld [vmem:[%s3755 + $0x8] sm:$0xf]
        %v3759 = vld [vmem:[%s3755 + $0xc] sm:$0xf]
        %v3760 = vld [vmem:[%s3755 + $0x10] sm:$0xf]
        %v3761 = vld [vmem:[%s3755 + $0x14] sm:$0xf]
        %v3762 = vld [vmem:[%s3755 + $0x18] sm:$0xf]
        %v3763 = vld [vmem:[%s3755 + $0x1c] sm:$0xf]
        %v3764 = vld [vmem:[%s3755 + $0x20] sm:$0xf]
        %v3765 = vld [vmem:[%s3755 + $0x24] sm:$0xf]
        %v3766 = vld [vmem:[%s3755 + $0x28] sm:$0xf]
        %v3767 = vld [vmem:[%s3755 + $0x2c] sm:$0xf]
        %v3768 = vld [vmem:[%s3755 + $0x30] sm:$0xf]
        %v3769 = vld [vmem:[%s3755 + $0x34] sm:$0xf]
        %v3770 = vld [vmem:[%s3755 + $0x38] sm:$0xf]
        %v3771 = vld [vmem:[%s3755 + $0x3c] sm:$0xf]
        %v3772 = vld [vmem:[%s3755 + $0x40] sm:$0xf]
        %v3773 = vld [vmem:[%s3755 + $0x44] sm:$0xf]
        %v3774 = vld [vmem:[%s3755 + $0x48] sm:$0xf]
        %v3775 = vld [vmem:[%s3755 + $0x4c] sm:$0xf]
        %v3776 = vld [vmem:[%s3755 + $0x50] sm:$0xf]
        %v3777 = vld [vmem:[%s3755 + $0x54] sm:$0xf]
        %v3778 = vld [vmem:[%s3755 + $0x58] sm:$0xf]
        %v3779 = vld [vmem:[%s3755 + $0x5c] sm:$0xf]
        %v3780 = vld [vmem:[%s3755 + $0x60] sm:$0xf]
        %v3781 = vld [vmem:[%s3755 + $0x64] sm:$0xf]
        %v3782 = vld [vmem:[%s3755 + $0x68] sm:$0xf]
        %v3783 = vld [vmem:[%s3755 + $0x6c] sm:$0xf]
        %v3784 = vld [vmem:[%s3755 + $0x70] sm:$0xf]
        %v3785 = vld [vmem:[%s3755 + $0x74] sm:$0xf]
        %v3786 = vld [vmem:[%s3755 + $0x78] sm:$0xf]
        %v3787 = vld [vmem:[%s3755 + $0x7c] sm:$0xf]
        %v3788 = vld [vmem:[%s3755 + $0x80] sm:$0xf]
        %v3789 = vld [vmem:[%s3755 + $0x84] sm:$0xf]
        %v3790 = vld [vmem:[%s3755 + $0x88] sm:$0xf]
        %v3791 = vld [vmem:[%s3755 + $0x8c] sm:$0xf]
        %v3792 = vld [vmem:[%s3755 + $0x90] sm:$0xf]
        %v3793 = vld [vmem:[%s3755 + $0x94] sm:$0xf]
        %v3794 = vld [vmem:[%s3755 + $0x98] sm:$0xf]
        %v3795 = vld [vmem:[%s3755 + $0x9c] sm:$0xf]
        %v3796 = vld [vmem:[%s3755 + $0xa0] sm:$0xf]
        %v3797 = vld [vmem:[%s3755 + $0xa4] sm:$0xf]
        %v3798 = vld [vmem:[%s3755 + $0xa8] sm:$0xf]
        %v3799 = vld [vmem:[%s3755 + $0xac] sm:$0xf]
        %v3800 = vld [vmem:[%s3755 + $0xb0] sm:$0xf]
        %v3801 = vld [vmem:[%s3755 + $0xb4] sm:$0xf]
        %v3802 = vld [vmem:[%s3755 + $0xb8] sm:$0xf]
        %v3803 = vld [vmem:[%s3755 + $0xbc] sm:$0xf]
        %v3852 = vunpack.c.l.b16 %v3756
        %v3853 = vunpack.c.l.b16 %v3757
        %v3854 = vunpack.c.l.b16 %v3758
        %v3855 = vunpack.c.l.b16 %v3759
        %v3856 = vunpack.c.l.b16 %v3760
        %v3857 = vunpack.c.l.b16 %v3761
        %v3858 = vunpack.c.l.b16 %v3762
        %v3859 = vunpack.c.l.b16 %v3763
        %v3860 = vunpack.c.l.b16 %v3764
        %v3861 = vunpack.c.l.b16 %v3765
        %v3862 = vunpack.c.l.b16 %v3766
        %v3863 = vunpack.c.l.b16 %v3767
        %v3864 = vunpack.c.l.b16 %v3768
        %v3865 = vunpack.c.l.b16 %v3769
        %v3866 = vunpack.c.l.b16 %v3770
        %v3867 = vunpack.c.l.b16 %v3771
        %v3868 = vunpack.c.l.b16 %v3772
        %v3869 = vunpack.c.l.b16 %v3773
        %v3870 = vunpack.c.l.b16 %v3774
        %v3871 = vunpack.c.l.b16 %v3775
        %v3872 = vunpack.c.l.b16 %v3776
        %v3873 = vunpack.c.l.b16 %v3777
        %v3874 = vunpack.c.l.b16 %v3778
        %v3875 = vunpack.c.l.b16 %v3779
        %v3876 = vunpack.c.l.b16 %v3780
        %v3877 = vunpack.c.l.b16 %v3781
        %v3878 = vunpack.c.l.b16 %v3782
        %v3879 = vunpack.c.l.b16 %v3783
        %v3880 = vunpack.c.l.b16 %v3784
        %v3881 = vunpack.c.l.b16 %v3785
        %v3882 = vunpack.c.l.b16 %v3786
        %v3883 = vunpack.c.l.b16 %v3787
        %v3884 = vunpack.c.l.b16 %v3788
        %v3885 = vunpack.c.l.b16 %v3789
        %v3886 = vunpack.c.l.b16 %v3790
        %v3887 = vunpack.c.l.b16 %v3791
        %v3888 = vunpack.c.l.b16 %v3792
        %v3889 = vunpack.c.l.b16 %v3793
        %v3890 = vunpack.c.l.b16 %v3794
        %v3891 = vunpack.c.l.b16 %v3795
        %v3892 = vunpack.c.l.b16 %v3796
        %v3893 = vunpack.c.l.b16 %v3797
        %v3894 = vunpack.c.l.b16 %v3798
        %v3895 = vunpack.c.l.b16 %v3799
        %v3896 = vunpack.c.l.b16 %v3800
        %v3897 = vunpack.c.l.b16 %v3801
        %v3898 = vunpack.c.l.b16 %v3802
        %v3899 = vunpack.c.l.b16 %v3803
        %v3900 = vpack.c.b16 %v3853, %v3852
        %v3901 = vpack.c.b16 %v3855, %v3854
        %v3902 = vpack.c.b16 %v3857, %v3856
        %v3903 = vpack.c.b16 %v3859, %v3858
        %v3904 = vpack.c.b16 %v3861, %v3860
        %v3905 = vpack.c.b16 %v3863, %v3862
        %v3906 = vpack.c.b16 %v3865, %v3864
        %v3907 = vpack.c.b16 %v3867, %v3866
        %v3908 = vpack.c.b16 %v3869, %v3868
        %v3909 = vpack.c.b16 %v3871, %v3870
        %v3910 = vpack.c.b16 %v3873, %v3872
        %v3911 = vpack.c.b16 %v3875, %v3874
        %v3912 = vpack.c.b16 %v3877, %v3876
        %v3913 = vpack.c.b16 %v3879, %v3878
        %v3914 = vpack.c.b16 %v3881, %v3880
        %v3915 = vpack.c.b16 %v3883, %v3882
        %v3916 = vpack.c.b16 %v3885, %v3884
        %v3917 = vpack.c.b16 %v3887, %v3886
        %v3918 = vpack.c.b16 %v3889, %v3888
        %v3919 = vpack.c.b16 %v3891, %v3890
        %v3920 = vpack.c.b16 %v3893, %v3892
        %v3921 = vpack.c.b16 %v3895, %v3894
        %v3922 = vpack.c.b16 %v3897, %v3896
        %v3923 = vpack.c.b16 %v3899, %v3898
        %3948 = vmatprep.subr.bf16.mxu0 0
        %3949 = vmatpush1.bf16.msra.mxu0 %v3900
        %3950 = vmatprep.subr.bf16.mxu0 0
        %3951 = vmatpush1.bf16.msra.mxu0 %v3901
        %3952 = vmatprep.subr.bf16.mxu0 0
        %3953 = vmatpush1.bf16.msra.mxu0 %v3902
        %3954 = vmatprep.subr.bf16.mxu0 0
        %3955 = vmatpush1.bf16.msra.mxu0 %v3903
        %3956 = vmatprep.subr.bf16.mxu0 0
        %3957 = vmatpush1.bf16.msra.mxu0 %v3904
        %3958 = vmatprep.subr.bf16.mxu0 0
        %3959 = vmatpush1.bf16.msra.mxu0 %v3905
        %3960 = vmatprep.subr.bf16.mxu0 0
        %3961 = vmatpush1.bf16.msra.mxu0 %v3906
        %3962 = vmatprep.subr.bf16.mxu0 0
        %3963 = vmatpush1.bf16.msra.mxu0 %v3907
        %3964 = vmatprep.subr.bf16.mxu0 0
        %3965 = vmatpush1.bf16.msra.mxu0 %v3908
        %3966 = vmatprep.subr.bf16.mxu0 0
        %3967 = vmatpush1.bf16.msra.mxu0 %v3909
        %3968 = vmatprep.subr.bf16.mxu0 0
        %3969 = vmatpush1.bf16.msra.mxu0 %v3910
        %3970 = vmatprep.subr.bf16.mxu0 0
        %3971 = vmatpush1.bf16.msra.mxu0 %v3911
        %3972 = vmatprep.subr.bf16.mxu0 0
        %3973 = vmatpush1.bf16.msra.mxu0 %v3912
        %3974 = vmatprep.subr.bf16.mxu0 0
        %3975 = vmatpush1.bf16.msra.mxu0 %v3913
        %3976 = vmatprep.subr.bf16.mxu0 0
        %3977 = vmatpush1.bf16.msra.mxu0 %v3914
        %3978 = vmatprep.subr.bf16.mxu0 0
        %3979 = vmatpush1.bf16.msra.mxu0 %v3915
        %3980 = vmatprep.mubr.bf16.mxu0 %v3750
        %3981 = vmatmul.mubr.bf16.gmra.mrb[0].mxu0 %v3743
        %v3982 = vpop.f32.mrb[0].mxu0
        %v3983 = vadd.f32 0.0, %v3982
        %v3984 = vpop.f32.mrb[0].mxu0
        %v3985 = vpop.f32.mrb[0].mxu0
        %v3986 = vpop.f32.mrb[0].mxu0
        %3987 = vdwg.mxu0
        %3988 = vmatprep.subr.bf16.mxu0 0
        %3989 = vmatpush1.bf16.msra.mxu0 %v3916
        %3990 = vmatprep.subr.bf16.mxu0 0
        %3991 = vmatpush1.bf16.msra.mxu0 %v3917
        %3992 = vmatprep.subr.bf16.mxu0 0
        %3993 = vmatpush1.bf16.msra.mxu0 %v3918
        %3994 = vmatprep.subr.bf16.mxu0 0
        %3995 = vmatpush1.bf16.msra.mxu0 %v3919
        %3996 = vmatprep.subr.bf16.mxu0 0
        %3997 = vmatpush1.bf16.msra.mxu0 %v3920
        %3998 = vmatprep.subr.bf16.mxu0 0
        %3999 = vmatpush1.bf16.msra.mxu0 %v3921
        %4000 = vmatprep.subr.bf16.mxu0 0
        %4001 = vmatpush1.bf16.msra.mxu0 %v3922
        %4002 = vmatprep.subr.bf16.mxu0 0
        %4003 = vmatpush1.bf16.msra.mxu0 %v3923
        %4004 = vmatprep.subr.bf16.mxu0 0
        %4005 = vmatpush1.bf16.msra.mxu0 0
        %4006 = vmatprep.subr.bf16.mxu0 0
        %4007 = vmatpush1.bf16.msra.mxu0 0
        %4008 = vmatprep.subr.bf16.mxu0 0
        %4009 = vmatpush1.bf16.msra.mxu0 0
        %4010 = vmatprep.subr.bf16.mxu0 0
        %4011 = vmatpush1.bf16.msra.mxu0 0
        %4012 = vmatprep.subr.bf16.mxu0 0
        %4013 = vmatpush1.bf16.msra.mxu0 0
        %4014 = vmatprep.subr.bf16.mxu0 0
        %4015 = vmatpush1.bf16.msra.mxu0 0
        %4016 = vmatprep.subr.bf16.mxu0 0
        %4017 = vmatpush1.bf16.msra.mxu0 0
        %4018 = vmatprep.subr.bf16.mxu0 0
        %4019 = vmatpush1.bf16.msra.mxu0 0
        %4020 = vmatprep.mubr.bf16.mxu0 0
        %4021 = vmatmul.mubr.bf16.gmra.mrb[0].mxu0 %v3753
        %v4022 = vpop.f32.mrb[0].mxu0
        %v4023 = vadd.f32 %v3983, %v4022
        %v4024 = vpop.f32.mrb[0].mxu0
        %v4025 = vpop.f32.mrb[0].mxu0
        %v4026 = vpop.f32.mrb[0].mxu0
        %4027 = vdwg.mxu0
        %v4028 = vld [vmem:[#allocation6 + $0x25] sm:$0x1]
        %v4029 = vlaneseq
        %v4030 = vshrl.u32 %v4029, 7
        %v4031 = vsub.s32 0, %v4030
        %v4032 = vrot.slane %v4028, %v4031
        %v4033 = vmul.f32 %v4023, %v4032
        %v4034 = vld [vmem:[#allocation6 + $0x26] sm:$0x1]
        %v4035 = vlaneseq
        %v4036 = vshrl.u32 %v4035, 7
        %v4037 = vsub.s32 0, %v4036
        %v4038 = vrot.slane %v4034, %v4037
        %v4039 = vadd.f32 %v4033, %v4038
        %vm4040 = vcmp.ge.f32.partialorder %v4039, 0.0
        %v4041 = vld [vmem:[#allocation6 + $0x27] sm:$0x1]
        %v4042 = vlaneseq
        %v4043 = vshrl.u32 %v4042, 7
        %v4044 = vsub.s32 0, %v4043
        %v4045 = vrot.slane %v4041, %v4044
        %v4046 = vmul.f32 %v4039, %v4045
        %v4047 = vsel %vm4040, %v4039, %v4046
        %v4048 = vpack.c.bf16 %v4047, %v4047
        %v4050 = vshrl.u32 %v4048, 16
        %v4052 = vrot.slane %v4050, 7
        %v4053 = vshll.u32 %v4048, 16
        %v4055 = vor.u32 %v4052, %v4053
        %v4057 = vsel %vm639, 0, %v4055
        %v4058 = vsel %vm3107, %v4057, 0
        %v4060 = vshrl.u32 %v4058, 16
        %v4062 = vshll.u32 %v4058, 16
        %v4064 = vrot.slane %v4062, 1
        %v4065 = vor.u32 %v4060, %v4064
        %v4068 = vrot.slane %v4058, 1
        %s4070 = scalar_lea.vmem [#allocation2], 1920
        %v4071 = vld [vmem:[%s4070] sm:$0xf]
        %v4072 = vld [vmem:[%s4070 + $0x4] sm:$0xf]
        %v4073 = vld [vmem:[%s4070 + $0x8] sm:$0xf]
        %v4074 = vld [vmem:[%s4070 + $0xc] sm:$0xf]
        %v4075 = vld [vmem:[%s4070 + $0x10] sm:$0xf]
        %v4076 = vld [vmem:[%s4070 + $0x14] sm:$0xf]
        %v4077 = vld [vmem:[%s4070 + $0x18] sm:$0xf]
        %v4078 = vld [vmem:[%s4070 + $0x1c] sm:$0xf]
        %v4079 = vld [vmem:[%s4070 + $0x20] sm:$0xf]
        %v4080 = vld [vmem:[%s4070 + $0x24] sm:$0xf]
        %v4081 = vld [vmem:[%s4070 + $0x28] sm:$0xf]
        %v4082 = vld [vmem:[%s4070 + $0x2c] sm:$0xf]
        %v4083 = vld [vmem:[%s4070 + $0x30] sm:$0xf]
        %v4084 = vld [vmem:[%s4070 + $0x34] sm:$0xf]
        %v4085 = vld [vmem:[%s4070 + $0x38] sm:$0xf]
        %v4086 = vld [vmem:[%s4070 + $0x3c] sm:$0xf]
        %v4087 = vld [vmem:[%s4070 + $0x40] sm:$0xf]
        %v4088 = vld [vmem:[%s4070 + $0x44] sm:$0xf]
        %v4089 = vld [vmem:[%s4070 + $0x48] sm:$0xf]
        %v4090 = vld [vmem:[%s4070 + $0x4c] sm:$0xf]
        %v4091 = vld [vmem:[%s4070 + $0x50] sm:$0xf]
        %v4092 = vld [vmem:[%s4070 + $0x54] sm:$0xf]
        %v4093 = vld [vmem:[%s4070 + $0x58] sm:$0xf]
        %v4094 = vld [vmem:[%s4070 + $0x5c] sm:$0xf]
        %v4095 = vld [vmem:[%s4070 + $0x60] sm:$0xf]
        %v4096 = vld [vmem:[%s4070 + $0x64] sm:$0xf]
        %v4097 = vld [vmem:[%s4070 + $0x68] sm:$0xf]
        %v4098 = vld [vmem:[%s4070 + $0x6c] sm:$0xf]
        %v4099 = vld [vmem:[%s4070 + $0x70] sm:$0xf]
        %v4100 = vld [vmem:[%s4070 + $0x74] sm:$0xf]
        %v4101 = vld [vmem:[%s4070 + $0x78] sm:$0xf]
        %v4102 = vld [vmem:[%s4070 + $0x7c] sm:$0xf]
        %v4103 = vld [vmem:[%s4070 + $0x80] sm:$0xf]
        %v4104 = vld [vmem:[%s4070 + $0x84] sm:$0xf]
        %v4105 = vld [vmem:[%s4070 + $0x88] sm:$0xf]
        %v4106 = vld [vmem:[%s4070 + $0x8c] sm:$0xf]
        %v4107 = vld [vmem:[%s4070 + $0x90] sm:$0xf]
        %v4108 = vld [vmem:[%s4070 + $0x94] sm:$0xf]
        %v4109 = vld [vmem:[%s4070 + $0x98] sm:$0xf]
        %v4110 = vld [vmem:[%s4070 + $0x9c] sm:$0xf]
        %v4111 = vld [vmem:[%s4070 + $0xa0] sm:$0xf]
        %v4112 = vld [vmem:[%s4070 + $0xa4] sm:$0xf]
        %v4113 = vld [vmem:[%s4070 + $0xa8] sm:$0xf]
        %v4114 = vld [vmem:[%s4070 + $0xac] sm:$0xf]
        %v4115 = vld [vmem:[%s4070 + $0xb0] sm:$0xf]
        %v4116 = vld [vmem:[%s4070 + $0xb4] sm:$0xf]
        %v4117 = vld [vmem:[%s4070 + $0xb8] sm:$0xf]
        %v4118 = vld [vmem:[%s4070 + $0xbc] sm:$0xf]
        %v4167 = vunpack.c.l.b16 %v4071
        %v4168 = vunpack.c.l.b16 %v4072
        %v4169 = vunpack.c.l.b16 %v4073
        %v4170 = vunpack.c.l.b16 %v4074
        %v4171 = vunpack.c.l.b16 %v4075
        %v4172 = vunpack.c.l.b16 %v4076
        %v4173 = vunpack.c.l.b16 %v4077
        %v4174 = vunpack.c.l.b16 %v4078
        %v4175 = vunpack.c.l.b16 %v4079
        %v4176 = vunpack.c.l.b16 %v4080
        %v4177 = vunpack.c.l.b16 %v4081
        %v4178 = vunpack.c.l.b16 %v4082
        %v4179 = vunpack.c.l.b16 %v4083
        %v4180 = vunpack.c.l.b16 %v4084
        %v4181 = vunpack.c.l.b16 %v4085
        %v4182 = vunpack.c.l.b16 %v4086
        %v4183 = vunpack.c.l.b16 %v4087
        %v4184 = vunpack.c.l.b16 %v4088
        %v4185 = vunpack.c.l.b16 %v4089
        %v4186 = vunpack.c.l.b16 %v4090
        %v4187 = vunpack.c.l.b16 %v4091
        %v4188 = vunpack.c.l.b16 %v4092
        %v4189 = vunpack.c.l.b16 %v4093
        %v4190 = vunpack.c.l.b16 %v4094
        %v4191 = vunpack.c.l.b16 %v4095
        %v4192 = vunpack.c.l.b16 %v4096
        %v4193 = vunpack.c.l.b16 %v4097
        %v4194 = vunpack.c.l.b16 %v4098
        %v4195 = vunpack.c.l.b16 %v4099
        %v4196 = vunpack.c.l.b16 %v4100
        %v4197 = vunpack.c.l.b16 %v4101
        %v4198 = vunpack.c.l.b16 %v4102
        %v4199 = vunpack.c.l.b16 %v4103
        %v4200 = vunpack.c.l.b16 %v4104
        %v4201 = vunpack.c.l.b16 %v4105
        %v4202 = vunpack.c.l.b16 %v4106
        %v4203 = vunpack.c.l.b16 %v4107
        %v4204 = vunpack.c.l.b16 %v4108
        %v4205 = vunpack.c.l.b16 %v4109
        %v4206 = vunpack.c.l.b16 %v4110
        %v4207 = vunpack.c.l.b16 %v4111
        %v4208 = vunpack.c.l.b16 %v4112
        %v4209 = vunpack.c.l.b16 %v4113
        %v4210 = vunpack.c.l.b16 %v4114
        %v4211 = vunpack.c.l.b16 %v4115
        %v4212 = vunpack.c.l.b16 %v4116
        %v4213 = vunpack.c.l.b16 %v4117
        %v4214 = vunpack.c.l.b16 %v4118
        %v4215 = vpack.c.b16 %v4168, %v4167
        %v4216 = vpack.c.b16 %v4170, %v4169
        %v4217 = vpack.c.b16 %v4172, %v4171
        %v4218 = vpack.c.b16 %v4174, %v4173
        %v4219 = vpack.c.b16 %v4176, %v4175
        %v4220 = vpack.c.b16 %v4178, %v4177
        %v4221 = vpack.c.b16 %v4180, %v4179
        %v4222 = vpack.c.b16 %v4182, %v4181
        %v4223 = vpack.c.b16 %v4184, %v4183
        %v4224 = vpack.c.b16 %v4186, %v4185
        %v4225 = vpack.c.b16 %v4188, %v4187
        %v4226 = vpack.c.b16 %v4190, %v4189
        %v4227 = vpack.c.b16 %v4192, %v4191
        %v4228 = vpack.c.b16 %v4194, %v4193
        %v4229 = vpack.c.b16 %v4196, %v4195
        %v4230 = vpack.c.b16 %v4198, %v4197
        %v4231 = vpack.c.b16 %v4200, %v4199
        %v4232 = vpack.c.b16 %v4202, %v4201
        %v4233 = vpack.c.b16 %v4204, %v4203
        %v4234 = vpack.c.b16 %v4206, %v4205
        %v4235 = vpack.c.b16 %v4208, %v4207
        %v4236 = vpack.c.b16 %v4210, %v4209
        %v4237 = vpack.c.b16 %v4212, %v4211
        %v4238 = vpack.c.b16 %v4214, %v4213
        %4263 = vmatprep.subr.bf16.mxu0 0
        %4264 = vmatpush1.bf16.msra.mxu0 %v4215
        %4265 = vmatprep.subr.bf16.mxu0 0
        %4266 = vmatpush1.bf16.msra.mxu0 %v4216
        %4267 = vmatprep.subr.bf16.mxu0 0
        %4268 = vmatpush1.bf16.msra.mxu0 %v4217
        %4269 = vmatprep.subr.bf16.mxu0 0
        %4270 = vmatpush1.bf16.msra.mxu0 %v4218
        %4271 = vmatprep.subr.bf16.mxu0 0
        %4272 = vmatpush1.bf16.msra.mxu0 %v4219
        %4273 = vmatprep.subr.bf16.mxu0 0
        %4274 = vmatpush1.bf16.msra.mxu0 %v4220
        %4275 = vmatprep.subr.bf16.mxu0 0
        %4276 = vmatpush1.bf16.msra.mxu0 %v4221
        %4277 = vmatprep.subr.bf16.mxu0 0
        %4278 = vmatpush1.bf16.msra.mxu0 %v4222
        %4279 = vmatprep.subr.bf16.mxu0 0
        %4280 = vmatpush1.bf16.msra.mxu0 %v4223
        %4281 = vmatprep.subr.bf16.mxu0 0
        %4282 = vmatpush1.bf16.msra.mxu0 %v4224
        %4283 = vmatprep.subr.bf16.mxu0 0
        %4284 = vmatpush1.bf16.msra.mxu0 %v4225
        %4285 = vmatprep.subr.bf16.mxu0 0
        %4286 = vmatpush1.bf16.msra.mxu0 %v4226
        %4287 = vmatprep.subr.bf16.mxu0 0
        %4288 = vmatpush1.bf16.msra.mxu0 %v4227
        %4289 = vmatprep.subr.bf16.mxu0 0
        %4290 = vmatpush1.bf16.msra.mxu0 %v4228
        %4291 = vmatprep.subr.bf16.mxu0 0
        %4292 = vmatpush1.bf16.msra.mxu0 %v4229
        %4293 = vmatprep.subr.bf16.mxu0 0
        %4294 = vmatpush1.bf16.msra.mxu0 %v4230
        %4295 = vmatprep.mubr.bf16.mxu0 %v4065
        %4296 = vmatmul.mubr.bf16.gmra.mrb[0].mxu0 %v4058
        %v4297 = vpop.f32.mrb[0].mxu0
        %v4298 = vadd.f32 0.0, %v4297
        %v4299 = vpop.f32.mrb[0].mxu0
        %v4300 = vpop.f32.mrb[0].mxu0
        %v4301 = vpop.f32.mrb[0].mxu0
        %4302 = vdwg.mxu0
        %4303 = vmatprep.subr.bf16.mxu0 0
        %4304 = vmatpush1.bf16.msra.mxu0 %v4231
        %4305 = vmatprep.subr.bf16.mxu0 0
        %4306 = vmatpush1.bf16.msra.mxu0 %v4232
        %4307 = vmatprep.subr.bf16.mxu0 0
        %4308 = vmatpush1.bf16.msra.mxu0 %v4233
        %4309 = vmatprep.subr.bf16.mxu0 0
        %4310 = vmatpush1.bf16.msra.mxu0 %v4234
        %4311 = vmatprep.subr.bf16.mxu0 0
        %4312 = vmatpush1.bf16.msra.mxu0 %v4235
        %4313 = vmatprep.subr.bf16.mxu0 0
        %4314 = vmatpush1.bf16.msra.mxu0 %v4236
        %4315 = vmatprep.subr.bf16.mxu0 0
        %4316 = vmatpush1.bf16.msra.mxu0 %v4237
        %4317 = vmatprep.subr.bf16.mxu0 0
        %4318 = vmatpush1.bf16.msra.mxu0 %v4238
        %4319 = vmatprep.subr.bf16.mxu0 0
        %4320 = vmatpush1.bf16.msra.mxu0 0
        %4321 = vmatprep.subr.bf16.mxu0 0
        %4322 = vmatpush1.bf16.msra.mxu0 0
        %4323 = vmatprep.subr.bf16.mxu0 0
        %4324 = vmatpush1.bf16.msra.mxu0 0
        %4325 = vmatprep.subr.bf16.mxu0 0
        %4326 = vmatpush1.bf16.msra.mxu0 0
        %4327 = vmatprep.subr.bf16.mxu0 0
        %4328 = vmatpush1.bf16.msra.mxu0 0
        %4329 = vmatprep.subr.bf16.mxu0 0
        %4330 = vmatpush1.bf16.msra.mxu0 0
        %4331 = vmatprep.subr.bf16.mxu0 0
        %4332 = vmatpush1.bf16.msra.mxu0 0
        %4333 = vmatprep.subr.bf16.mxu0 0
        %4334 = vmatpush1.bf16.msra.mxu0 0
        %4335 = vmatprep.mubr.bf16.mxu0 0
        %4336 = vmatmul.mubr.bf16.gmra.mrb[0].mxu0 %v4068
        %v4337 = vpop.f32.mrb[0].mxu0
        %v4338 = vadd.f32 %v4298, %v4337
        %v4339 = vpop.f32.mrb[0].mxu0
        %v4340 = vpop.f32.mrb[0].mxu0
        %v4341 = vpop.f32.mrb[0].mxu0
        %4342 = vdwg.mxu0
        %vm4343 = vcmask 31744
        %v4344 = vsel %vm4343, %v1274, 0
        %vm4346 = vcmask 1043456
        %v4348 = vsel %vm4346, %v4338, 0
        %4350 = vmatprep.subr.mxu0 0.0
        %4351 = vmatpush1.msra.mxu0 %v4348
        %4352 = vmatprep.subr.mxu0 0.0
        %4353 = vmatpush1.msra.mxu0 0.0
        %4354 = vmatprep.subr.mxu0 0.0
        %4355 = vmatpush1.msra.mxu0 0.0
        %4356 = vmatprep.subr.mxu0 0.0
        %4357 = vmatpush1.msra.mxu0 0.0
        %4358 = vmatprep.subr.mxu0 0.0
        %4359 = vmatpush1.msra.mxu0 0.0
        %4360 = vmatprep.subr.mxu0 0.0
        %4361 = vmatpush1.msra.mxu0 0.0
        %4362 = vmatprep.subr.mxu0 0.0
        %4363 = vmatpush1.msra.mxu0 0.0
        %4364 = vmatprep.subr.mxu0 0.0
        %4365 = vmatpush1.msra.mxu0 0.0
        %4366 = vmatprep.subr.mxu0 0.0
        %4367 = vmatpush1.msra.mxu0 0.0
        %4368 = vmatprep.subr.mxu0 0.0
        %4369 = vmatpush1.msra.mxu0 0.0
        %4370 = vmatprep.subr.mxu0 0.0
        %4371 = vmatpush1.msra.mxu0 0.0
        %4372 = vmatprep.subr.mxu0 0.0
        %4373 = vmatpush1.msra.mxu0 0.0
        %4374 = vmatprep.subr.mxu0 0.0
        %4375 = vmatpush1.msra.mxu0 0.0
        %4376 = vmatprep.subr.mxu0 0.0
        %4377 = vmatpush1.msra.mxu0 0.0
        %4378 = vmatprep.subr.mxu0 0.0
        %4379 = vmatpush1.msra.mxu0 0.0
        %4380 = vmatprep.subr.mxu0 0.0
        %4381 = vmatpush1.msra.mxu0 0.0
        %4382 = vmatprep.subr.mxu0 0.0
        %4383 = vmatpush1.msra.mxu0 0.0
        %4384 = vmatprep.subr.mxu0 0.0
        %4385 = vmatpush1.msra.mxu0 0.0
        %4386 = vmatprep.subr.mxu0 0.0
        %4387 = vmatpush1.msra.mxu0 0.0
        %4388 = vmatprep.subr.mxu0 0.0
        %4389 = vmatpush1.msra.mxu0 0.0
        %4390 = vmatprep.subr.mxu0 0.0
        %4391 = vmatpush1.msra.mxu0 0.0
        %4392 = vmatprep.subr.mxu0 0.0
        %4393 = vmatpush1.msra.mxu0 0.0
        %4394 = vmatprep.subr.mxu0 0.0
        %4395 = vmatpush1.msra.mxu0 0.0
        %4396 = vmatprep.subr.mxu0 0.0
        %4397 = vmatpush1.msra.mxu0 0.0
        %4398 = vmatprep.subr.mxu0 0.0
        %4399 = vmatpush1.msra.mxu0 0.0
        %4400 = vmatprep.subr.mxu0 0.0
        %4401 = vmatpush1.msra.mxu0 0.0
        %4402 = vmatprep.subr.mxu0 0.0
        %4403 = vmatpush1.msra.mxu0 0.0
        %4404 = vmatprep.subr.mxu0 0.0
        %4405 = vmatpush1.msra.mxu0 0.0
        %4406 = vmatprep.subr.mxu0 0.0
        %4407 = vmatpush1.msra.mxu0 0.0
        %4408 = vmatprep.subr.mxu0 0.0
        %4409 = vmatpush1.msra.mxu0 0.0
        %4410 = vmatprep.subr.mxu0 0.0
        %4411 = vmatpush1.msra.mxu0 0.0
        %4412 = vmatprep.subr.mxu0 0.0
        %4413 = vmatpush1.msra.mxu0 0.0
        %4414 = vmatprep.mubr.f32.mxu0 0.0
        %4415 = vmatmul.mubr.f32.gmra.mrb[0].mxu0 %v4344
        %v4416 = vpop.f32.mrb[0].mxu0
        %v4417 = vadd.f32 0.0, %v4416
        %v4418 = vpop.f32.mrb[0].mxu0
        %4419 = vdwg.mxu0
        %v4421 = vsel %vm4346, %v3720, 0
        %4423 = vmatprep.subr.mxu0 0.0
        %4424 = vmatpush1.msra.mxu0 %v4421
        %4425 = vmatprep.subr.mxu0 0.0
        %4426 = vmatpush1.msra.mxu0 0.0
        %4427 = vmatprep.subr.mxu0 0.0
        %4428 = vmatpush1.msra.mxu0 0.0
        %4429 = vmatprep.subr.mxu0 0.0
        %4430 = vmatpush1.msra.mxu0 0.0
        %4431 = vmatprep.subr.mxu0 0.0
        %4432 = vmatpush1.msra.mxu0 0.0
        %4433 = vmatprep.subr.mxu0 0.0
        %4434 = vmatpush1.msra.mxu0 0.0
        %4435 = vmatprep.subr.mxu0 0.0
        %4436 = vmatpush1.msra.mxu0 0.0
        %4437 = vmatprep.subr.mxu0 0.0
        %4438 = vmatpush1.msra.mxu0 0.0
        %4439 = vmatprep.subr.mxu0 0.0
        %4440 = vmatpush1.msra.mxu0 0.0
        %4441 = vmatprep.subr.mxu0 0.0
        %4442 = vmatpush1.msra.mxu0 0.0
        %4443 = vmatprep.subr.mxu0 0.0
        %4444 = vmatpush1.msra.mxu0 0.0
        %4445 = vmatprep.subr.mxu0 0.0
        %4446 = vmatpush1.msra.mxu0 0.0
        %4447 = vmatprep.subr.mxu0 0.0
        %4448 = vmatpush1.msra.mxu0 0.0
        %4449 = vmatprep.subr.mxu0 0.0
        %4450 = vmatpush1.msra.mxu0 0.0
        %4451 = vmatprep.subr.mxu0 0.0
        %4452 = vmatpush1.msra.mxu0 0.0
        %4453 = vmatprep.subr.mxu0 0.0
        %4454 = vmatpush1.msra.mxu0 0.0
        %4455 = vmatprep.subr.mxu0 0.0
        %4456 = vmatpush1.msra.mxu0 0.0
        %4457 = vmatprep.subr.mxu0 0.0
        %4458 = vmatpush1.msra.mxu0 0.0
        %4459 = vmatprep.subr.mxu0 0.0
        %4460 = vmatpush1.msra.mxu0 0.0
        %4461 = vmatprep.subr.mxu0 0.0
        %4462 = vmatpush1.msra.mxu0 0.0
        %4463 = vmatprep.subr.mxu0 0.0
        %4464 = vmatpush1.msra.mxu0 0.0
        %4465 = vmatprep.subr.mxu0 0.0
        %4466 = vmatpush1.msra.mxu0 0.0
        %4467 = vmatprep.subr.mxu0 0.0
        %4468 = vmatpush1.msra.mxu0 0.0
        %4469 = vmatprep.subr.mxu0 0.0
        %4470 = vmatpush1.msra.mxu0 0.0
        %4471 = vmatprep.subr.mxu0 0.0
        %4472 = vmatpush1.msra.mxu0 0.0
        %4473 = vmatprep.subr.mxu0 0.0
        %4474 = vmatpush1.msra.mxu0 0.0
        %4475 = vmatprep.subr.mxu0 0.0
        %4476 = vmatpush1.msra.mxu0 0.0
        %4477 = vmatprep.subr.mxu0 0.0
        %4478 = vmatpush1.msra.mxu0 0.0
        %4479 = vmatprep.subr.mxu0 0.0
        %4480 = vmatpush1.msra.mxu0 0.0
        %4481 = vmatprep.subr.mxu0 0.0
        %4482 = vmatpush1.msra.mxu0 0.0
        %4483 = vmatprep.subr.mxu0 0.0
        %4484 = vmatpush1.msra.mxu0 0.0
        %4485 = vmatprep.subr.mxu0 0.0
        %4486 = vmatpush1.msra.mxu0 0.0
        %4487 = vmatprep.mubr.f32.mxu0 0.0
        %4488 = vmatmul.mubr.f32.gmra.mrb[0].mxu0 %v4344
        %v4489 = vpop.f32.mrb[0].mxu0
        %v4490 = vadd.f32 0.0, %v4489
        %v4491 = vpop.f32.mrb[0].mxu0
        %4492 = vdwg.mxu0
        %v4493 = vpack.c.bf16 %v4490, %v4490
        %s4494 = scalar_lea.vmem [#allocation4], 128
        %v4495 = vld [vmem:[%s4494] sm:$0xf]
        %v4496 = vld [vmem:[%s4494 + $0x4] sm:$0xf]
        %v4497 = vld [vmem:[%s4494 + $0x8] sm:$0xf]
        %v4498 = vld [vmem:[%s4494 + $0xc] sm:$0xf]
        %v4499 = vld [vmem:[%s4494 + $0x10] sm:$0xf]
        %v4500 = vld [vmem:[%s4494 + $0x14] sm:$0xf]
        %v4501 = vld [vmem:[%s4494 + $0x18] sm:$0xf]
        %v4502 = vld [vmem:[%s4494 + $0x1c] sm:$0xf]
        %v4503 = vld [vmem:[%s4494 + $0x20] sm:$0xf]
        %v4504 = vld [vmem:[%s4494 + $0x24] sm:$0xf]
        %v4505 = vld [vmem:[%s4494 + $0x28] sm:$0xf]
        %v4506 = vld [vmem:[%s4494 + $0x2c] sm:$0xf]
        %v4507 = vld [vmem:[%s4494 + $0x30] sm:$0xf]
        %v4508 = vld [vmem:[%s4494 + $0x34] sm:$0xf]
        %v4509 = vld [vmem:[%s4494 + $0x38] sm:$0xf]
        %v4510 = vld [vmem:[%s4494 + $0x3c] sm:$0xf]
        %v4527 = vunpack.c.l.b16 %v4495
        %v4528 = vunpack.c.l.b16 %v4496
        %v4529 = vunpack.c.l.b16 %v4497
        %v4530 = vunpack.c.l.b16 %v4498
        %v4531 = vunpack.c.l.b16 %v4499
        %v4532 = vunpack.c.l.b16 %v4500
        %v4533 = vunpack.c.l.b16 %v4501
        %v4534 = vunpack.c.l.b16 %v4502
        %v4535 = vunpack.c.l.b16 %v4503
        %v4536 = vunpack.c.l.b16 %v4504
        %v4537 = vunpack.c.l.b16 %v4505
        %v4538 = vunpack.c.l.b16 %v4506
        %v4539 = vunpack.c.l.b16 %v4507
        %v4540 = vunpack.c.l.b16 %v4508
        %v4541 = vunpack.c.l.b16 %v4509
        %v4542 = vunpack.c.l.b16 %v4510
        %v4543 = vpack.c.b16 %v4528, %v4527
        %v4544 = vpack.c.b16 %v4530, %v4529
        %v4545 = vpack.c.b16 %v4532, %v4531
        %v4546 = vpack.c.b16 %v4534, %v4533
        %v4547 = vpack.c.b16 %v4536, %v4535
        %v4548 = vpack.c.b16 %v4538, %v4537
        %v4549 = vpack.c.b16 %v4540, %v4539
        %v4550 = vpack.c.b16 %v4542, %v4541
        %4559 = vmatprep.subr.bf16.mxu0 0
        %4560 = vmatpush1.bf16.msra.mxu0 %v4543
        %4561 = vmatprep.subr.bf16.mxu0 0
        %4562 = vmatpush1.bf16.msra.mxu0 %v4544
        %4563 = vmatprep.subr.bf16.mxu0 0
        %4564 = vmatpush1.bf16.msra.mxu0 %v4545
        %4565 = vmatprep.subr.bf16.mxu0 0
        %4566 = vmatpush1.bf16.msra.mxu0 %v4546
        %4567 = vmatprep.subr.bf16.mxu0 0
        %4568 = vmatpush1.bf16.msra.mxu0 %v4547
        %4569 = vmatprep.subr.bf16.mxu0 0
        %4570 = vmatpush1.bf16.msra.mxu0 %v4548
        %4571 = vmatprep.subr.bf16.mxu0 0
        %4572 = vmatpush1.bf16.msra.mxu0 %v4549
        %4573 = vmatprep.subr.bf16.mxu0 0
        %4574 = vmatpush1.bf16.msra.mxu0 %v4550
        %4575 = vmatprep.subr.bf16.mxu0 0
        %4576 = vmatpush1.bf16.msra.mxu0 0
        %4577 = vmatprep.subr.bf16.mxu0 0
        %4578 = vmatpush1.bf16.msra.mxu0 0
        %4579 = vmatprep.subr.bf16.mxu0 0
        %4580 = vmatpush1.bf16.msra.mxu0 0
        %4581 = vmatprep.subr.bf16.mxu0 0
        %4582 = vmatpush1.bf16.msra.mxu0 0
        %4583 = vmatprep.subr.bf16.mxu0 0
        %4584 = vmatpush1.bf16.msra.mxu0 0
        %4585 = vmatprep.subr.bf16.mxu0 0
        %4586 = vmatpush1.bf16.msra.mxu0 0
        %4587 = vmatprep.subr.bf16.mxu0 0
        %4588 = vmatpush1.bf16.msra.mxu0 0
        %4589 = vmatprep.subr.bf16.mxu0 0
        %4590 = vmatpush1.bf16.msra.mxu0 0
        %4591 = vmatprep.mubr.bf16.mxu0 0
        %4592 = vmatmul.mubr.bf16.gmra.mrb[0].mxu0 %v4493
        %v4593 = vpop.f32.mrb[0].mxu0
        %v4594 = vadd.f32 0.0, %v4593
        %v4595 = vpop.f32.mrb[0].mxu0
        %v4596 = vpop.f32.mrb[0].mxu0
        %v4597 = vpop.f32.mrb[0].mxu0
        %4598 = vdwg.mxu0
        %v4599 = vld [vmem:[#allocation6 + $0x2a] sm:$0x1]
        %v4600 = vlaneseq
        %v4601 = vshrl.u32 %v4600, 7
        %v4602 = vsub.s32 0, %v4601
        %v4603 = vrot.slane %v4599, %v4602
        %v4604 = vmul.f32 %v4594, %v4603
        %v4605 = vld [vmem:[#allocation6 + $0x2b] sm:$0x1]
        %v4606 = vlaneseq
        %v4607 = vshrl.u32 %v4606, 7
        %v4608 = vsub.s32 0, %v4607
        %v4609 = vrot.slane %v4605, %v4608
        %v4610 = vadd.f32 %v4604, %v4609
        %v4611 = vld [vmem:[#allocation6 + $0x28] sm:$0x1]
        %v4612 = vlaneseq
        %v4613 = vshrl.u32 %v4612, 7
        %v4614 = vsub.s32 0, %v4613
        %v4615 = vrot.slane %v4611, %v4614
        %v4616 = vmul.f32 %v4417, %v4615
        %v4617 = vld [vmem:[#allocation6 + $0x29] sm:$0x1]
        %v4618 = vlaneseq
        %v4619 = vshrl.u32 %v4618, 7
        %v4620 = vsub.s32 0, %v4619
        %v4621 = vrot.slane %v4617, %v4620
        %v4622 = vadd.f32 %v4616, %v4621
        %v4623 = vadd.f32 %v4622, %v4610
        %v4624 = vld [vmem:[#allocation6 + $0x2c] sm:$0x1]
        %v4625 = vlaneseq
        %v4626 = vshrl.u32 %v4625, 7
        %v4627 = vsub.s32 0, %v4626
        %v4628 = vrot.slane %v4624, %v4627
        %v4629 = vmul.f32 %v4623, %v4628
        %v4630 = vld [vmem:[#allocation6 + $0x2d] sm:$0x1]
        %v4631 = vlaneseq
        %v4632 = vshrl.u32 %v4631, 7
        %v4633 = vsub.s32 0, %v4632
        %v4634 = vrot.slane %v4630, %v4633
        %v4635 = vadd.f32 %v4629, %v4634
        %v4636 = vpack.c.bf16 %v4635, %v4635
        %v4638 = vshrl.u32 %v4636, 16
        %v4640 = vrot.slane %v4638, 7
        %v4641 = vshll.u32 %v4636, 16
        %v4643 = vor.u32 %v4640, %v4641
        %v4645 = vsel %vm639, 0, %v4643
        %vm4646 = vcmask 1041408
        %vm4647 = vsmask.f32 1280
        %vm4648 = vmand %vm4646, %vm4647
        %v4649 = vsel %vm4648, %v4645, 0
        %v4651 = vshrl.u32 %v4649, 16
        %v4653 = vshll.u32 %v4649, 16
        %v4655 = vrot.slane %v4653, 1
        %v4656 = vor.u32 %v4651, %v4655
        %v4659 = vrot.slane %v4649, 1
        %s4661 = scalar_lea.vmem [#allocation2], 2112
        %v4662 = vld [vmem:[%s4661] sm:$0xf]
        %v4663 = vld [vmem:[%s4661 + $0x4] sm:$0xf]
        %v4664 = vld [vmem:[%s4661 + $0x8] sm:$0xf]
        %v4665 = vld [vmem:[%s4661 + $0xc] sm:$0xf]
        %v4666 = vld [vmem:[%s4661 + $0x10] sm:$0xf]
        %v4667 = vld [vmem:[%s4661 + $0x14] sm:$0xf]
        %v4668 = vld [vmem:[%s4661 + $0x18] sm:$0xf]
        %v4669 = vld [vmem:[%s4661 + $0x1c] sm:$0xf]
        %v4670 = vld [vmem:[%s4661 + $0x20] sm:$0xf]
        %v4671 = vld [vmem:[%s4661 + $0x24] sm:$0xf]
        %v4672 = vld [vmem:[%s4661 + $0x28] sm:$0xf]
        %v4673 = vld [vmem:[%s4661 + $0x2c] sm:$0xf]
        %v4674 = vld [vmem:[%s4661 + $0x30] sm:$0xf]
        %v4675 = vld [vmem:[%s4661 + $0x34] sm:$0xf]
        %v4676 = vld [vmem:[%s4661 + $0x38] sm:$0xf]
        %v4677 = vld [vmem:[%s4661 + $0x3c] sm:$0xf]
        %v4678 = vld [vmem:[%s4661 + $0x40] sm:$0xf]
        %v4679 = vld [vmem:[%s4661 + $0x44] sm:$0xf]
        %v4680 = vld [vmem:[%s4661 + $0x48] sm:$0xf]
        %v4681 = vld [vmem:[%s4661 + $0x4c] sm:$0xf]
        %v4682 = vld [vmem:[%s4661 + $0x50] sm:$0xf]
        %v4683 = vld [vmem:[%s4661 + $0x54] sm:$0xf]
        %v4684 = vld [vmem:[%s4661 + $0x58] sm:$0xf]
        %v4685 = vld [vmem:[%s4661 + $0x5c] sm:$0xf]
        %v4686 = vld [vmem:[%s4661 + $0x60] sm:$0xf]
        %v4687 = vld [vmem:[%s4661 + $0x64] sm:$0xf]
        %v4688 = vld [vmem:[%s4661 + $0x68] sm:$0xf]
        %v4689 = vld [vmem:[%s4661 + $0x6c] sm:$0xf]
        %v4690 = vld [vmem:[%s4661 + $0x70] sm:$0xf]
        %v4691 = vld [vmem:[%s4661 + $0x74] sm:$0xf]
        %v4692 = vld [vmem:[%s4661 + $0x78] sm:$0xf]
        %v4693 = vld [vmem:[%s4661 + $0x7c] sm:$0xf]
        %v4694 = vld [vmem:[%s4661 + $0x80] sm:$0xf]
        %v4695 = vld [vmem:[%s4661 + $0x84] sm:$0xf]
        %v4696 = vld [vmem:[%s4661 + $0x88] sm:$0xf]
        %v4697 = vld [vmem:[%s4661 + $0x8c] sm:$0xf]
        %v4698 = vld [vmem:[%s4661 + $0x90] sm:$0xf]
        %v4699 = vld [vmem:[%s4661 + $0x94] sm:$0xf]
        %v4700 = vld [vmem:[%s4661 + $0x98] sm:$0xf]
        %v4701 = vld [vmem:[%s4661 + $0x9c] sm:$0xf]
        %v4702 = vld [vmem:[%s4661 + $0xa0] sm:$0xf]
        %v4703 = vld [vmem:[%s4661 + $0xa4] sm:$0xf]
        %v4704 = vld [vmem:[%s4661 + $0xa8] sm:$0xf]
        %v4705 = vld [vmem:[%s4661 + $0xac] sm:$0xf]
        %v4706 = vld [vmem:[%s4661 + $0xb0] sm:$0xf]
        %v4707 = vld [vmem:[%s4661 + $0xb4] sm:$0xf]
        %v4708 = vld [vmem:[%s4661 + $0xb8] sm:$0xf]
        %v4709 = vld [vmem:[%s4661 + $0xbc] sm:$0xf]
        %v4758 = vunpack.c.l.b16 %v4662
        %v4759 = vunpack.c.l.b16 %v4663
        %v4760 = vunpack.c.l.b16 %v4664
        %v4761 = vunpack.c.l.b16 %v4665
        %v4762 = vunpack.c.l.b16 %v4666
        %v4763 = vunpack.c.l.b16 %v4667
        %v4764 = vunpack.c.l.b16 %v4668
        %v4765 = vunpack.c.l.b16 %v4669
        %v4766 = vunpack.c.l.b16 %v4670
        %v4767 = vunpack.c.l.b16 %v4671
        %v4768 = vunpack.c.l.b16 %v4672
        %v4769 = vunpack.c.l.b16 %v4673
        %v4770 = vunpack.c.l.b16 %v4674
        %v4771 = vunpack.c.l.b16 %v4675
        %v4772 = vunpack.c.l.b16 %v4676
        %v4773 = vunpack.c.l.b16 %v4677
        %v4774 = vunpack.c.l.b16 %v4678
        %v4775 = vunpack.c.l.b16 %v4679
        %v4776 = vunpack.c.l.b16 %v4680
        %v4777 = vunpack.c.l.b16 %v4681
        %v4778 = vunpack.c.l.b16 %v4682
        %v4779 = vunpack.c.l.b16 %v4683
        %v4780 = vunpack.c.l.b16 %v4684
        %v4781 = vunpack.c.l.b16 %v4685
        %v4782 = vunpack.c.l.b16 %v4686
        %v4783 = vunpack.c.l.b16 %v4687
        %v4784 = vunpack.c.l.b16 %v4688
        %v4785 = vunpack.c.l.b16 %v4689
        %v4786 = vunpack.c.l.b16 %v4690
        %v4787 = vunpack.c.l.b16 %v4691
        %v4788 = vunpack.c.l.b16 %v4692
        %v4789 = vunpack.c.l.b16 %v4693
        %v4790 = vunpack.c.l.b16 %v4694
        %v4791 = vunpack.c.l.b16 %v4695
        %v4792 = vunpack.c.l.b16 %v4696
        %v4793 = vunpack.c.l.b16 %v4697
        %v4794 = vunpack.c.l.b16 %v4698
        %v4795 = vunpack.c.l.b16 %v4699
        %v4796 = vunpack.c.l.b16 %v4700
        %v4797 = vunpack.c.l.b16 %v4701
        %v4798 = vunpack.c.l.b16 %v4702
        %v4799 = vunpack.c.l.b16 %v4703
        %v4800 = vunpack.c.l.b16 %v4704
        %v4801 = vunpack.c.l.b16 %v4705
        %v4802 = vunpack.c.l.b16 %v4706
        %v4803 = vunpack.c.l.b16 %v4707
        %v4804 = vunpack.c.l.b16 %v4708
        %v4805 = vunpack.c.l.b16 %v4709
        %v4806 = vpack.c.b16 %v4759, %v4758
        %v4807 = vpack.c.b16 %v4761, %v4760
        %v4808 = vpack.c.b16 %v4763, %v4762
        %v4809 = vpack.c.b16 %v4765, %v4764
        %v4810 = vpack.c.b16 %v4767, %v4766
        %v4811 = vpack.c.b16 %v4769, %v4768
        %v4812 = vpack.c.b16 %v4771, %v4770
        %v4813 = vpack.c.b16 %v4773, %v4772
        %v4814 = vpack.c.b16 %v4775, %v4774
        %v4815 = vpack.c.b16 %v4777, %v4776
        %v4816 = vpack.c.b16 %v4779, %v4778
        %v4817 = vpack.c.b16 %v4781, %v4780
        %v4818 = vpack.c.b16 %v4783, %v4782
        %v4819 = vpack.c.b16 %v4785, %v4784
        %v4820 = vpack.c.b16 %v4787, %v4786
        %v4821 = vpack.c.b16 %v4789, %v4788
        %v4822 = vpack.c.b16 %v4791, %v4790
        %v4823 = vpack.c.b16 %v4793, %v4792
        %v4824 = vpack.c.b16 %v4795, %v4794
        %v4825 = vpack.c.b16 %v4797, %v4796
        %v4826 = vpack.c.b16 %v4799, %v4798
        %v4827 = vpack.c.b16 %v4801, %v4800
        %v4828 = vpack.c.b16 %v4803, %v4802
        %v4829 = vpack.c.b16 %v4805, %v4804
        %4854 = vmatprep.subr.bf16.mxu0 0
        %4855 = vmatpush1.bf16.msra.mxu0 %v4806
        %4856 = vmatprep.subr.bf16.mxu0 0
        %4857 = vmatpush1.bf16.msra.mxu0 %v4807
        %4858 = vmatprep.subr.bf16.mxu0 0
        %4859 = vmatpush1.bf16.msra.mxu0 %v4808
        %4860 = vmatprep.subr.bf16.mxu0 0
        %4861 = vmatpush1.bf16.msra.mxu0 %v4809
        %4862 = vmatprep.subr.bf16.mxu0 0
        %4863 = vmatpush1.bf16.msra.mxu0 %v4810
        %4864 = vmatprep.subr.bf16.mxu0 0
        %4865 = vmatpush1.bf16.msra.mxu0 %v4811
        %4866 = vmatprep.subr.bf16.mxu0 0
        %4867 = vmatpush1.bf16.msra.mxu0 %v4812
        %4868 = vmatprep.subr.bf16.mxu0 0
        %4869 = vmatpush1.bf16.msra.mxu0 %v4813
        %4870 = vmatprep.subr.bf16.mxu0 0
        %4871 = vmatpush1.bf16.msra.mxu0 %v4814
        %4872 = vmatprep.subr.bf16.mxu0 0
        %4873 = vmatpush1.bf16.msra.mxu0 %v4815
        %4874 = vmatprep.subr.bf16.mxu0 0
        %4875 = vmatpush1.bf16.msra.mxu0 %v4816
        %4876 = vmatprep.subr.bf16.mxu0 0
        %4877 = vmatpush1.bf16.msra.mxu0 %v4817
        %4878 = vmatprep.subr.bf16.mxu0 0
        %4879 = vmatpush1.bf16.msra.mxu0 %v4818
        %4880 = vmatprep.subr.bf16.mxu0 0
        %4881 = vmatpush1.bf16.msra.mxu0 %v4819
        %4882 = vmatprep.subr.bf16.mxu0 0
        %4883 = vmatpush1.bf16.msra.mxu0 %v4820
        %4884 = vmatprep.subr.bf16.mxu0 0
        %4885 = vmatpush1.bf16.msra.mxu0 %v4821
        %4886 = vmatprep.mubr.bf16.mxu0 %v4656
        %4887 = vmatmul.mubr.bf16.gmra.mrb[0].mxu0 %v4649
        %v4888 = vpop.f32.mrb[0].mxu0
        %v4889 = vadd.f32 0.0, %v4888
        %v4890 = vpop.f32.mrb[0].mxu0
        %v4891 = vpop.f32.mrb[0].mxu0
        %v4892 = vpop.f32.mrb[0].mxu0
        %4893 = vdwg.mxu0
        %4894 = vmatprep.subr.bf16.mxu0 0
        %4895 = vmatpush1.bf16.msra.mxu0 %v4822
        %4896 = vmatprep.subr.bf16.mxu0 0
        %4897 = vmatpush1.bf16.msra.mxu0 %v4823
        %4898 = vmatprep.subr.bf16.mxu0 0
        %4899 = vmatpush1.bf16.msra.mxu0 %v4824
        %4900 = vmatprep.subr.bf16.mxu0 0
        %4901 = vmatpush1.bf16.msra.mxu0 %v4825
        %4902 = vmatprep.subr.bf16.mxu0 0
        %4903 = vmatpush1.bf16.msra.mxu0 %v4826
        %4904 = vmatprep.subr.bf16.mxu0 0
        %4905 = vmatpush1.bf16.msra.mxu0 %v4827
        %4906 = vmatprep.subr.bf16.mxu0 0
        %4907 = vmatpush1.bf16.msra.mxu0 %v4828
        %4908 = vmatprep.subr.bf16.mxu0 0
        %4909 = vmatpush1.bf16.msra.mxu0 %v4829
        %4910 = vmatprep.subr.bf16.mxu0 0
        %4911 = vmatpush1.bf16.msra.mxu0 0
        %4912 = vmatprep.subr.bf16.mxu0 0
        %4913 = vmatpush1.bf16.msra.mxu0 0
        %4914 = vmatprep.subr.bf16.mxu0 0
        %4915 = vmatpush1.bf16.msra.mxu0 0
        %4916 = vmatprep.subr.bf16.mxu0 0
        %4917 = vmatpush1.bf16.msra.mxu0 0
        %4918 = vmatprep.subr.bf16.mxu0 0
        %4919 = vmatpush1.bf16.msra.mxu0 0
        %4920 = vmatprep.subr.bf16.mxu0 0
        %4921 = vmatpush1.bf16.msra.mxu0 0
        %4922 = vmatprep.subr.bf16.mxu0 0
        %4923 = vmatpush1.bf16.msra.mxu0 0
        %4924 = vmatprep.subr.bf16.mxu0 0
        %4925 = vmatpush1.bf16.msra.mxu0 0
        %4926 = vmatprep.mubr.bf16.mxu0 0
        %4927 = vmatmul.mubr.bf16.gmra.mrb[0].mxu0 %v4659
        %v4928 = vpop.f32.mrb[0].mxu0
        %v4929 = vadd.f32 %v4889, %v4928
        %v4930 = vpop.f32.mrb[0].mxu0
        %v4931 = vpop.f32.mrb[0].mxu0
        %v4932 = vpop.f32.mrb[0].mxu0
        %4933 = vdwg.mxu0
        %v4934 = vld [vmem:[#allocation6 + $0x2e] sm:$0x1]
        %v4935 = vlaneseq
        %v4936 = vshrl.u32 %v4935, 7
        %v4937 = vsub.s32 0, %v4936
        %v4938 = vrot.slane %v4934, %v4937
        %v4939 = vmul.f32 %v4929, %v4938
        %v4940 = vld [vmem:[#allocation6 + $0x2f] sm:$0x1]
        %v4941 = vlaneseq
        %v4942 = vshrl.u32 %v4941, 7
        %v4943 = vsub.s32 0, %v4942
        %v4944 = vrot.slane %v4940, %v4943
        %v4945 = vadd.f32 %v4939, %v4944
        %vm4946 = vcmp.ge.f32.partialorder %v4945, 0.0
        %v4947 = vld [vmem:[#allocation6 + $0x30] sm:$0x1]
        %v4948 = vlaneseq
        %v4949 = vshrl.u32 %v4948, 7
        %v4950 = vsub.s32 0, %v4949
        %v4951 = vrot.slane %v4947, %v4950
        %v4952 = vmul.f32 %v4945, %v4951
        %v4953 = vsel %vm4946, %v4945, %v4952
        %v4954 = vpack.c.bf16 %v4953, %v4953
        %v4956 = vshrl.u32 %v4954, 16
        %v4958 = vrot.slane %v4956, 7
        %v4959 = vshll.u32 %v4954, 16
        %v4961 = vor.u32 %v4958, %v4959
        %v4963 = vsel %vm639, 0, %v4961
        %v4964 = vsel %vm4648, %v4963, 0
        %v4966 = vshrl.u32 %v4964, 16
        %v4968 = vshll.u32 %v4964, 16
        %v4970 = vrot.slane %v4968, 1
        %v4971 = vor.u32 %v4966, %v4970
        %v4974 = vrot.slane %v4964, 1
        %s4976 = scalar_lea.vmem [#allocation2], 2304
        %v4977 = vld [vmem:[%s4976] sm:$0xf]
        %v4978 = vld [vmem:[%s4976 + $0x4] sm:$0xf]
        %v4979 = vld [vmem:[%s4976 + $0x8] sm:$0xf]
        %v4980 = vld [vmem:[%s4976 + $0xc] sm:$0xf]
        %v4981 = vld [vmem:[%s4976 + $0x10] sm:$0xf]
        %v4982 = vld [vmem:[%s4976 + $0x14] sm:$0xf]
        %v4983 = vld [vmem:[%s4976 + $0x18] sm:$0xf]
        %v4984 = vld [vmem:[%s4976 + $0x1c] sm:$0xf]
        %v4985 = vld [vmem:[%s4976 + $0x20] sm:$0xf]
        %v4986 = vld [vmem:[%s4976 + $0x24] sm:$0xf]
        %v4987 = vld [vmem:[%s4976 + $0x28] sm:$0xf]
        %v4988 = vld [vmem:[%s4976 + $0x2c] sm:$0xf]
        %v4989 = vld [vmem:[%s4976 + $0x30] sm:$0xf]
        %v4990 = vld [vmem:[%s4976 + $0x34] sm:$0xf]
        %v4991 = vld [vmem:[%s4976 + $0x38] sm:$0xf]
        %v4992 = vld [vmem:[%s4976 + $0x3c] sm:$0xf]
        %v4993 = vld [vmem:[%s4976 + $0x40] sm:$0xf]
        %v4994 = vld [vmem:[%s4976 + $0x44] sm:$0xf]
        %v4995 = vld [vmem:[%s4976 + $0x48] sm:$0xf]
        %v4996 = vld [vmem:[%s4976 + $0x4c] sm:$0xf]
        %v4997 = vld [vmem:[%s4976 + $0x50] sm:$0xf]
        %v4998 = vld [vmem:[%s4976 + $0x54] sm:$0xf]
        %v4999 = vld [vmem:[%s4976 + $0x58] sm:$0xf]
        %v5000 = vld [vmem:[%s4976 + $0x5c] sm:$0xf]
        %v5001 = vld [vmem:[%s4976 + $0x60] sm:$0xf]
        %v5002 = vld [vmem:[%s4976 + $0x64] sm:$0xf]
        %v5003 = vld [vmem:[%s4976 + $0x68] sm:$0xf]
        %v5004 = vld [vmem:[%s4976 + $0x6c] sm:$0xf]
        %v5005 = vld [vmem:[%s4976 + $0x70] sm:$0xf]
        %v5006 = vld [vmem:[%s4976 + $0x74] sm:$0xf]
        %v5007 = vld [vmem:[%s4976 + $0x78] sm:$0xf]
        %v5008 = vld [vmem:[%s4976 + $0x7c] sm:$0xf]
        %v5009 = vld [vmem:[%s4976 + $0x80] sm:$0xf]
        %v5010 = vld [vmem:[%s4976 + $0x84] sm:$0xf]
        %v5011 = vld [vmem:[%s4976 + $0x88] sm:$0xf]
        %v5012 = vld [vmem:[%s4976 + $0x8c] sm:$0xf]
        %v5013 = vld [vmem:[%s4976 + $0x90] sm:$0xf]
        %v5014 = vld [vmem:[%s4976 + $0x94] sm:$0xf]
        %v5015 = vld [vmem:[%s4976 + $0x98] sm:$0xf]
        %v5016 = vld [vmem:[%s4976 + $0x9c] sm:$0xf]
        %v5017 = vld [vmem:[%s4976 + $0xa0] sm:$0xf]
        %v5018 = vld [vmem:[%s4976 + $0xa4] sm:$0xf]
        %v5019 = vld [vmem:[%s4976 + $0xa8] sm:$0xf]
        %v5020 = vld [vmem:[%s4976 + $0xac] sm:$0xf]
        %v5021 = vld [vmem:[%s4976 + $0xb0] sm:$0xf]
        %v5022 = vld [vmem:[%s4976 + $0xb4] sm:$0xf]
        %v5023 = vld [vmem:[%s4976 + $0xb8] sm:$0xf]
        %v5024 = vld [vmem:[%s4976 + $0xbc] sm:$0xf]
        %v5073 = vunpack.c.l.b16 %v4977
        %v5074 = vunpack.c.l.b16 %v4978
        %v5075 = vunpack.c.l.b16 %v4979
        %v5076 = vunpack.c.l.b16 %v4980
        %v5077 = vunpack.c.l.b16 %v4981
        %v5078 = vunpack.c.l.b16 %v4982
        %v5079 = vunpack.c.l.b16 %v4983
        %v5080 = vunpack.c.l.b16 %v4984
        %v5081 = vunpack.c.l.b16 %v4985
        %v5082 = vunpack.c.l.b16 %v4986
        %v5083 = vunpack.c.l.b16 %v4987
        %v5084 = vunpack.c.l.b16 %v4988
        %v5085 = vunpack.c.l.b16 %v4989
        %v5086 = vunpack.c.l.b16 %v4990
        %v5087 = vunpack.c.l.b16 %v4991
        %v5088 = vunpack.c.l.b16 %v4992
        %v5089 = vunpack.c.l.b16 %v4993
        %v5090 = vunpack.c.l.b16 %v4994
        %v5091 = vunpack.c.l.b16 %v4995
        %v5092 = vunpack.c.l.b16 %v4996
        %v5093 = vunpack.c.l.b16 %v4997
        %v5094 = vunpack.c.l.b16 %v4998
        %v5095 = vunpack.c.l.b16 %v4999
        %v5096 = vunpack.c.l.b16 %v5000
        %v5097 = vunpack.c.l.b16 %v5001
        %v5098 = vunpack.c.l.b16 %v5002
        %v5099 = vunpack.c.l.b16 %v5003
        %v5100 = vunpack.c.l.b16 %v5004
        %v5101 = vunpack.c.l.b16 %v5005
        %v5102 = vunpack.c.l.b16 %v5006
        %v5103 = vunpack.c.l.b16 %v5007
        %v5104 = vunpack.c.l.b16 %v5008
        %v5105 = vunpack.c.l.b16 %v5009
        %v5106 = vunpack.c.l.b16 %v5010
        %v5107 = vunpack.c.l.b16 %v5011
        %v5108 = vunpack.c.l.b16 %v5012
        %v5109 = vunpack.c.l.b16 %v5013
        %v5110 = vunpack.c.l.b16 %v5014
        %v5111 = vunpack.c.l.b16 %v5015
        %v5112 = vunpack.c.l.b16 %v5016
        %v5113 = vunpack.c.l.b16 %v5017
        %v5114 = vunpack.c.l.b16 %v5018
        %v5115 = vunpack.c.l.b16 %v5019
        %v5116 = vunpack.c.l.b16 %v5020
        %v5117 = vunpack.c.l.b16 %v5021
        %v5118 = vunpack.c.l.b16 %v5022
        %v5119 = vunpack.c.l.b16 %v5023
        %v5120 = vunpack.c.l.b16 %v5024
        %v5121 = vpack.c.b16 %v5074, %v5073
        %v5122 = vpack.c.b16 %v5076, %v5075
        %v5123 = vpack.c.b16 %v5078, %v5077
        %v5124 = vpack.c.b16 %v5080, %v5079
        %v5125 = vpack.c.b16 %v5082, %v5081
        %v5126 = vpack.c.b16 %v5084, %v5083
        %v5127 = vpack.c.b16 %v5086, %v5085
        %v5128 = vpack.c.b16 %v5088, %v5087
        %v5129 = vpack.c.b16 %v5090, %v5089
        %v5130 = vpack.c.b16 %v5092, %v5091
        %v5131 = vpack.c.b16 %v5094, %v5093
        %v5132 = vpack.c.b16 %v5096, %v5095
        %v5133 = vpack.c.b16 %v5098, %v5097
        %v5134 = vpack.c.b16 %v5100, %v5099
        %v5135 = vpack.c.b16 %v5102, %v5101
        %v5136 = vpack.c.b16 %v5104, %v5103
        %v5137 = vpack.c.b16 %v5106, %v5105
        %v5138 = vpack.c.b16 %v5108, %v5107
        %v5139 = vpack.c.b16 %v5110, %v5109
        %v5140 = vpack.c.b16 %v5112, %v5111
        %v5141 = vpack.c.b16 %v5114, %v5113
        %v5142 = vpack.c.b16 %v5116, %v5115
        %v5143 = vpack.c.b16 %v5118, %v5117
        %v5144 = vpack.c.b16 %v5120, %v5119
        %5169 = vmatprep.subr.bf16.mxu0 0
        %5170 = vmatpush1.bf16.msra.mxu0 %v5121
        %5171 = vmatprep.subr.bf16.mxu0 0
        %5172 = vmatpush1.bf16.msra.mxu0 %v5122
        %5173 = vmatprep.subr.bf16.mxu0 0
        %5174 = vmatpush1.bf16.msra.mxu0 %v5123
        %5175 = vmatprep.subr.bf16.mxu0 0
        %5176 = vmatpush1.bf16.msra.mxu0 %v5124
        %5177 = vmatprep.subr.bf16.mxu0 0
        %5178 = vmatpush1.bf16.msra.mxu0 %v5125
        %5179 = vmatprep.subr.bf16.mxu0 0
        %5180 = vmatpush1.bf16.msra.mxu0 %v5126
        %5181 = vmatprep.subr.bf16.mxu0 0
        %5182 = vmatpush1.bf16.msra.mxu0 %v5127
        %5183 = vmatprep.subr.bf16.mxu0 0
        %5184 = vmatpush1.bf16.msra.mxu0 %v5128
        %5185 = vmatprep.subr.bf16.mxu0 0
        %5186 = vmatpush1.bf16.msra.mxu0 %v5129
        %5187 = vmatprep.subr.bf16.mxu0 0
        %5188 = vmatpush1.bf16.msra.mxu0 %v5130
        %5189 = vmatprep.subr.bf16.mxu0 0
        %5190 = vmatpush1.bf16.msra.mxu0 %v5131
        %5191 = vmatprep.subr.bf16.mxu0 0
        %5192 = vmatpush1.bf16.msra.mxu0 %v5132
        %5193 = vmatprep.subr.bf16.mxu0 0
        %5194 = vmatpush1.bf16.msra.mxu0 %v5133
        %5195 = vmatprep.subr.bf16.mxu0 0
        %5196 = vmatpush1.bf16.msra.mxu0 %v5134
        %5197 = vmatprep.subr.bf16.mxu0 0
        %5198 = vmatpush1.bf16.msra.mxu0 %v5135
        %5199 = vmatprep.subr.bf16.mxu0 0
        %5200 = vmatpush1.bf16.msra.mxu0 %v5136
        %5201 = vmatprep.mubr.bf16.mxu0 %v4971
        %5202 = vmatmul.mubr.bf16.gmra.mrb[0].mxu0 %v4964
        %v5203 = vpop.f32.mrb[0].mxu0
        %v5204 = vadd.f32 0.0, %v5203
        %v5205 = vpop.f32.mrb[0].mxu0
        %v5206 = vpop.f32.mrb[0].mxu0
        %v5207 = vpop.f32.mrb[0].mxu0
        %5208 = vdwg.mxu0
        %5209 = vmatprep.subr.bf16.mxu0 0
        %5210 = vmatpush1.bf16.msra.mxu0 %v5137
        %5211 = vmatprep.subr.bf16.mxu0 0
        %5212 = vmatpush1.bf16.msra.mxu0 %v5138
        %5213 = vmatprep.subr.bf16.mxu0 0
        %5214 = vmatpush1.bf16.msra.mxu0 %v5139
        %5215 = vmatprep.subr.bf16.mxu0 0
        %5216 = vmatpush1.bf16.msra.mxu0 %v5140
        %5217 = vmatprep.subr.bf16.mxu0 0
        %5218 = vmatpush1.bf16.msra.mxu0 %v5141
        %5219 = vmatprep.subr.bf16.mxu0 0
        %5220 = vmatpush1.bf16.msra.mxu0 %v5142
        %5221 = vmatprep.subr.bf16.mxu0 0
        %5222 = vmatpush1.bf16.msra.mxu0 %v5143
        %5223 = vmatprep.subr.bf16.mxu0 0
        %5224 = vmatpush1.bf16.msra.mxu0 %v5144
        %5225 = vmatprep.subr.bf16.mxu0 0
        %5226 = vmatpush1.bf16.msra.mxu0 0
        %5227 = vmatprep.subr.bf16.mxu0 0
        %5228 = vmatpush1.bf16.msra.mxu0 0
        %5229 = vmatprep.subr.bf16.mxu0 0
        %5230 = vmatpush1.bf16.msra.mxu0 0
        %5231 = vmatprep.subr.bf16.mxu0 0
        %5232 = vmatpush1.bf16.msra.mxu0 0
        %5233 = vmatprep.subr.bf16.mxu0 0
        %5234 = vmatpush1.bf16.msra.mxu0 0
        %5235 = vmatprep.subr.bf16.mxu0 0
        %5236 = vmatpush1.bf16.msra.mxu0 0
        %5237 = vmatprep.subr.bf16.mxu0 0
        %5238 = vmatpush1.bf16.msra.mxu0 0
        %5239 = vmatprep.subr.bf16.mxu0 0
        %5240 = vmatpush1.bf16.msra.mxu0 0
        %5241 = vmatprep.mubr.bf16.mxu0 0
        %5242 = vmatmul.mubr.bf16.gmra.mrb[0].mxu0 %v4974
        %v5243 = vpop.f32.mrb[0].mxu0
        %v5244 = vadd.f32 %v5204, %v5243
        %v5245 = vpop.f32.mrb[0].mxu0
        %v5246 = vpop.f32.mrb[0].mxu0
        %v5247 = vpop.f32.mrb[0].mxu0
        %5248 = vdwg.mxu0
        %v5249 = vld [vmem:[#allocation6 + $0x31] sm:$0x1]
        %v5250 = vlaneseq
        %v5251 = vshrl.u32 %v5250, 7
        %v5252 = vsub.s32 0, %v5251
        %v5253 = vrot.slane %v5249, %v5252
        %v5254 = vmul.f32 %v5244, %v5253
        %v5255 = vld [vmem:[#allocation6 + $0x32] sm:$0x1]
        %v5256 = vlaneseq
        %v5257 = vshrl.u32 %v5256, 7
        %v5258 = vsub.s32 0, %v5257
        %v5259 = vrot.slane %v5255, %v5258
        %v5260 = vadd.f32 %v5254, %v5259
        %v5261 = vadd.f32 %v5260, %v4623
        %v5262 = vld [vmem:[#allocation6 + $0x33] sm:$0x1]
        %v5263 = vlaneseq
        %v5264 = vshrl.u32 %v5263, 7
        %v5265 = vsub.s32 0, %v5264
        %v5266 = vrot.slane %v5262, %v5265
        %v5267 = vmul.f32 %v5261, %v5266
        %v5268 = vld [vmem:[#allocation6 + $0x34] sm:$0x1]
        %v5269 = vlaneseq
        %v5270 = vshrl.u32 %v5269, 7
        %v5271 = vsub.s32 0, %v5270
        %v5272 = vrot.slane %v5268, %v5271
        %v5273 = vadd.f32 %v5267, %v5272
        %v5274 = vpack.c.bf16 %v5273, %v5273
        %v5276 = vshrl.u32 %v5274, 16
        %v5278 = vrot.slane %v5276, 7
        %v5279 = vshll.u32 %v5274, 16
        %v5281 = vor.u32 %v5278, %v5279
        %v5283 = vsel %vm639, 0, %v5281
        %v5284 = vsel %vm4648, %v5283, 0
        %v5286 = vshrl.u32 %v5284, 16
        %v5288 = vshll.u32 %v5284, 16
        %v5290 = vrot.slane %v5288, 1
        %v5291 = vor.u32 %v5286, %v5290
        %v5294 = vrot.slane %v5284, 1
        %s5296 = scalar_lea.vmem [#allocation2], 2496
        %v5297 = vld [vmem:[%s5296] sm:$0xf]
        %v5298 = vld [vmem:[%s5296 + $0x4] sm:$0xf]
        %v5299 = vld [vmem:[%s5296 + $0x8] sm:$0xf]
        %v5300 = vld [vmem:[%s5296 + $0xc] sm:$0xf]
        %v5301 = vld [vmem:[%s5296 + $0x10] sm:$0xf]
        %v5302 = vld [vmem:[%s5296 + $0x14] sm:$0xf]
        %v5303 = vld [vmem:[%s5296 + $0x18] sm:$0xf]
        %v5304 = vld [vmem:[%s5296 + $0x1c] sm:$0xf]
        %v5305 = vld [vmem:[%s5296 + $0x20] sm:$0xf]
        %v5306 = vld [vmem:[%s5296 + $0x24] sm:$0xf]
        %v5307 = vld [vmem:[%s5296 + $0x28] sm:$0xf]
        %v5308 = vld [vmem:[%s5296 + $0x2c] sm:$0xf]
        %v5309 = vld [vmem:[%s5296 + $0x30] sm:$0xf]
        %v5310 = vld [vmem:[%s5296 + $0x34] sm:$0xf]
        %v5311 = vld [vmem:[%s5296 + $0x38] sm:$0xf]
        %v5312 = vld [vmem:[%s5296 + $0x3c] sm:$0xf]
        %v5313 = vld [vmem:[%s5296 + $0x40] sm:$0xf]
        %v5314 = vld [vmem:[%s5296 + $0x44] sm:$0xf]
        %v5315 = vld [vmem:[%s5296 + $0x48] sm:$0xf]
        %v5316 = vld [vmem:[%s5296 + $0x4c] sm:$0xf]
        %v5317 = vld [vmem:[%s5296 + $0x50] sm:$0xf]
        %v5318 = vld [vmem:[%s5296 + $0x54] sm:$0xf]
        %v5319 = vld [vmem:[%s5296 + $0x58] sm:$0xf]
        %v5320 = vld [vmem:[%s5296 + $0x5c] sm:$0xf]
        %v5321 = vld [vmem:[%s5296 + $0x60] sm:$0xf]
        %v5322 = vld [vmem:[%s5296 + $0x64] sm:$0xf]
        %v5323 = vld [vmem:[%s5296 + $0x68] sm:$0xf]
        %v5324 = vld [vmem:[%s5296 + $0x6c] sm:$0xf]
        %v5325 = vld [vmem:[%s5296 + $0x70] sm:$0xf]
        %v5326 = vld [vmem:[%s5296 + $0x74] sm:$0xf]
        %v5327 = vld [vmem:[%s5296 + $0x78] sm:$0xf]
        %v5328 = vld [vmem:[%s5296 + $0x7c] sm:$0xf]
        %v5329 = vld [vmem:[%s5296 + $0x80] sm:$0xf]
        %v5330 = vld [vmem:[%s5296 + $0x84] sm:$0xf]
        %v5331 = vld [vmem:[%s5296 + $0x88] sm:$0xf]
        %v5332 = vld [vmem:[%s5296 + $0x8c] sm:$0xf]
        %v5333 = vld [vmem:[%s5296 + $0x90] sm:$0xf]
        %v5334 = vld [vmem:[%s5296 + $0x94] sm:$0xf]
        %v5335 = vld [vmem:[%s5296 + $0x98] sm:$0xf]
        %v5336 = vld [vmem:[%s5296 + $0x9c] sm:$0xf]
        %v5337 = vld [vmem:[%s5296 + $0xa0] sm:$0xf]
        %v5338 = vld [vmem:[%s5296 + $0xa4] sm:$0xf]
        %v5339 = vld [vmem:[%s5296 + $0xa8] sm:$0xf]
        %v5340 = vld [vmem:[%s5296 + $0xac] sm:$0xf]
        %v5341 = vld [vmem:[%s5296 + $0xb0] sm:$0xf]
        %v5342 = vld [vmem:[%s5296 + $0xb4] sm:$0xf]
        %v5343 = vld [vmem:[%s5296 + $0xb8] sm:$0xf]
        %v5344 = vld [vmem:[%s5296 + $0xbc] sm:$0xf]
        %v5393 = vunpack.c.l.b16 %v5297
        %v5394 = vunpack.c.l.b16 %v5298
        %v5395 = vunpack.c.l.b16 %v5299
        %v5396 = vunpack.c.l.b16 %v5300
        %v5397 = vunpack.c.l.b16 %v5301
        %v5398 = vunpack.c.l.b16 %v5302
        %v5399 = vunpack.c.l.b16 %v5303
        %v5400 = vunpack.c.l.b16 %v5304
        %v5401 = vunpack.c.l.b16 %v5305
        %v5402 = vunpack.c.l.b16 %v5306
        %v5403 = vunpack.c.l.b16 %v5307
        %v5404 = vunpack.c.l.b16 %v5308
        %v5405 = vunpack.c.l.b16 %v5309
        %v5406 = vunpack.c.l.b16 %v5310
        %v5407 = vunpack.c.l.b16 %v5311
        %v5408 = vunpack.c.l.b16 %v5312
        %v5409 = vunpack.c.l.b16 %v5313
        %v5410 = vunpack.c.l.b16 %v5314
        %v5411 = vunpack.c.l.b16 %v5315
        %v5412 = vunpack.c.l.b16 %v5316
        %v5413 = vunpack.c.l.b16 %v5317
        %v5414 = vunpack.c.l.b16 %v5318
        %v5415 = vunpack.c.l.b16 %v5319
        %v5416 = vunpack.c.l.b16 %v5320
        %v5417 = vunpack.c.l.b16 %v5321
        %v5418 = vunpack.c.l.b16 %v5322
        %v5419 = vunpack.c.l.b16 %v5323
        %v5420 = vunpack.c.l.b16 %v5324
        %v5421 = vunpack.c.l.b16 %v5325
        %v5422 = vunpack.c.l.b16 %v5326
        %v5423 = vunpack.c.l.b16 %v5327
        %v5424 = vunpack.c.l.b16 %v5328
        %v5425 = vunpack.c.l.b16 %v5329
        %v5426 = vunpack.c.l.b16 %v5330
        %v5427 = vunpack.c.l.b16 %v5331
        %v5428 = vunpack.c.l.b16 %v5332
        %v5429 = vunpack.c.l.b16 %v5333
        %v5430 = vunpack.c.l.b16 %v5334
        %v5431 = vunpack.c.l.b16 %v5335
        %v5432 = vunpack.c.l.b16 %v5336
        %v5433 = vunpack.c.l.b16 %v5337
        %v5434 = vunpack.c.l.b16 %v5338
        %v5435 = vunpack.c.l.b16 %v5339
        %v5436 = vunpack.c.l.b16 %v5340
        %v5437 = vunpack.c.l.b16 %v5341
        %v5438 = vunpack.c.l.b16 %v5342
        %v5439 = vunpack.c.l.b16 %v5343
        %v5440 = vunpack.c.l.b16 %v5344
        %v5441 = vpack.c.b16 %v5394, %v5393
        %v5442 = vpack.c.b16 %v5396, %v5395
        %v5443 = vpack.c.b16 %v5398, %v5397
        %v5444 = vpack.c.b16 %v5400, %v5399
        %v5445 = vpack.c.b16 %v5402, %v5401
        %v5446 = vpack.c.b16 %v5404, %v5403
        %v5447 = vpack.c.b16 %v5406, %v5405
        %v5448 = vpack.c.b16 %v5408, %v5407
        %v5449 = vpack.c.b16 %v5410, %v5409
        %v5450 = vpack.c.b16 %v5412, %v5411
        %v5451 = vpack.c.b16 %v5414, %v5413
        %v5452 = vpack.c.b16 %v5416, %v5415
        %v5453 = vpack.c.b16 %v5418, %v5417
        %v5454 = vpack.c.b16 %v5420, %v5419
        %v5455 = vpack.c.b16 %v5422, %v5421
        %v5456 = vpack.c.b16 %v5424, %v5423
        %v5457 = vpack.c.b16 %v5426, %v5425
        %v5458 = vpack.c.b16 %v5428, %v5427
        %v5459 = vpack.c.b16 %v5430, %v5429
        %v5460 = vpack.c.b16 %v5432, %v5431
        %v5461 = vpack.c.b16 %v5434, %v5433
        %v5462 = vpack.c.b16 %v5436, %v5435
        %v5463 = vpack.c.b16 %v5438, %v5437
        %v5464 = vpack.c.b16 %v5440, %v5439
        %5489 = vmatprep.subr.bf16.mxu0 0
        %5490 = vmatpush1.bf16.msra.mxu0 %v5441
        %5491 = vmatprep.subr.bf16.mxu0 0
        %5492 = vmatpush1.bf16.msra.mxu0 %v5442
        %5493 = vmatprep.subr.bf16.mxu0 0
        %5494 = vmatpush1.bf16.msra.mxu0 %v5443
        %5495 = vmatprep.subr.bf16.mxu0 0
        %5496 = vmatpush1.bf16.msra.mxu0 %v5444
        %5497 = vmatprep.subr.bf16.mxu0 0
        %5498 = vmatpush1.bf16.msra.mxu0 %v5445
        %5499 = vmatprep.subr.bf16.mxu0 0
        %5500 = vmatpush1.bf16.msra.mxu0 %v5446
        %5501 = vmatprep.subr.bf16.mxu0 0
        %5502 = vmatpush1.bf16.msra.mxu0 %v5447
        %5503 = vmatprep.subr.bf16.mxu0 0
        %5504 = vmatpush1.bf16.msra.mxu0 %v5448
        %5505 = vmatprep.subr.bf16.mxu0 0
        %5506 = vmatpush1.bf16.msra.mxu0 %v5449
        %5507 = vmatprep.subr.bf16.mxu0 0
        %5508 = vmatpush1.bf16.msra.mxu0 %v5450
        %5509 = vmatprep.subr.bf16.mxu0 0
        %5510 = vmatpush1.bf16.msra.mxu0 %v5451
        %5511 = vmatprep.subr.bf16.mxu0 0
        %5512 = vmatpush1.bf16.msra.mxu0 %v5452
        %5513 = vmatprep.subr.bf16.mxu0 0
        %5514 = vmatpush1.bf16.msra.mxu0 %v5453
        %5515 = vmatprep.subr.bf16.mxu0 0
        %5516 = vmatpush1.bf16.msra.mxu0 %v5454
        %5517 = vmatprep.subr.bf16.mxu0 0
        %5518 = vmatpush1.bf16.msra.mxu0 %v5455
        %5519 = vmatprep.subr.bf16.mxu0 0
        %5520 = vmatpush1.bf16.msra.mxu0 %v5456
        %5521 = vmatprep.mubr.bf16.mxu0 %v5291
        %5522 = vmatmul.mubr.bf16.gmra.mrb[0].mxu0 %v5284
        %v5523 = vpop.f32.mrb[0].mxu0
        %v5524 = vadd.f32 0.0, %v5523
        %v5525 = vpop.f32.mrb[0].mxu0
        %v5526 = vpop.f32.mrb[0].mxu0
        %v5527 = vpop.f32.mrb[0].mxu0
        %5528 = vdwg.mxu0
        %5529 = vmatprep.subr.bf16.mxu0 0
        %5530 = vmatpush1.bf16.msra.mxu0 %v5457
        %5531 = vmatprep.subr.bf16.mxu0 0
        %5532 = vmatpush1.bf16.msra.mxu0 %v5458
        %5533 = vmatprep.subr.bf16.mxu0 0
        %5534 = vmatpush1.bf16.msra.mxu0 %v5459
        %5535 = vmatprep.subr.bf16.mxu0 0
        %5536 = vmatpush1.bf16.msra.mxu0 %v5460
        %5537 = vmatprep.subr.bf16.mxu0 0
        %5538 = vmatpush1.bf16.msra.mxu0 %v5461
        %5539 = vmatprep.subr.bf16.mxu0 0
        %5540 = vmatpush1.bf16.msra.mxu0 %v5462
        %5541 = vmatprep.subr.bf16.mxu0 0
        %5542 = vmatpush1.bf16.msra.mxu0 %v5463
        %5543 = vmatprep.subr.bf16.mxu0 0
        %5544 = vmatpush1.bf16.msra.mxu0 %v5464
        %5545 = vmatprep.subr.bf16.mxu0 0
        %5546 = vmatpush1.bf16.msra.mxu0 0
        %5547 = vmatprep.subr.bf16.mxu0 0
        %5548 = vmatpush1.bf16.msra.mxu0 0
        %5549 = vmatprep.subr.bf16.mxu0 0
        %5550 = vmatpush1.bf16.msra.mxu0 0
        %5551 = vmatprep.subr.bf16.mxu0 0
        %5552 = vmatpush1.bf16.msra.mxu0 0
        %5553 = vmatprep.subr.bf16.mxu0 0
        %5554 = vmatpush1.bf16.msra.mxu0 0
        %5555 = vmatprep.subr.bf16.mxu0 0
        %5556 = vmatpush1.bf16.msra.mxu0 0
        %5557 = vmatprep.subr.bf16.mxu0 0
        %5558 = vmatpush1.bf16.msra.mxu0 0
        %5559 = vmatprep.subr.bf16.mxu0 0
        %5560 = vmatpush1.bf16.msra.mxu0 0
        %5561 = vmatprep.mubr.bf16.mxu0 0
        %5562 = vmatmul.mubr.bf16.gmra.mrb[0].mxu0 %v5294
        %v5563 = vpop.f32.mrb[0].mxu0
        %v5564 = vadd.f32 %v5524, %v5563
        %v5565 = vpop.f32.mrb[0].mxu0
        %v5566 = vpop.f32.mrb[0].mxu0
        %v5567 = vpop.f32.mrb[0].mxu0
        %5568 = vdwg.mxu0
        %v5569 = vld [vmem:[#allocation6 + $0x35] sm:$0x1]
        %v5570 = vlaneseq
        %v5571 = vshrl.u32 %v5570, 7
        %v5572 = vsub.s32 0, %v5571
        %v5573 = vrot.slane %v5569, %v5572
        %v5574 = vmul.f32 %v5564, %v5573
        %v5575 = vld [vmem:[#allocation6 + $0x36] sm:$0x1]
        %v5576 = vlaneseq
        %v5577 = vshrl.u32 %v5576, 7
        %v5578 = vsub.s32 0, %v5577
        %v5579 = vrot.slane %v5575, %v5578
        %v5580 = vadd.f32 %v5574, %v5579
        %vm5581 = vcmp.ge.f32.partialorder %v5580, 0.0
        %v5582 = vld [vmem:[#allocation6 + $0x37] sm:$0x1]
        %v5583 = vlaneseq
        %v5584 = vshrl.u32 %v5583, 7
        %v5585 = vsub.s32 0, %v5584
        %v5586 = vrot.slane %v5582, %v5585
        %v5587 = vmul.f32 %v5580, %v5586
        %v5588 = vsel %vm5581, %v5580, %v5587
        %v5589 = vpack.c.bf16 %v5588, %v5588
        %v5591 = vshrl.u32 %v5589, 16
        %v5593 = vrot.slane %v5591, 7
        %v5594 = vshll.u32 %v5589, 16
        %v5596 = vor.u32 %v5593, %v5594
        %v5598 = vsel %vm639, 0, %v5596
        %v5599 = vsel %vm4648, %v5598, 0
        %v5601 = vshrl.u32 %v5599, 16
        %v5603 = vshll.u32 %v5599, 16
        %v5605 = vrot.slane %v5603, 1
        %v5606 = vor.u32 %v5601, %v5605
        %v5609 = vrot.slane %v5599, 1
        %s5611 = scalar_lea.vmem [#allocation2], 2688
        %v5612 = vld [vmem:[%s5611] sm:$0xf]
        %v5613 = vld [vmem:[%s5611 + $0x4] sm:$0xf]
        %v5614 = vld [vmem:[%s5611 + $0x8] sm:$0xf]
        %v5615 = vld [vmem:[%s5611 + $0xc] sm:$0xf]
        %v5616 = vld [vmem:[%s5611 + $0x10] sm:$0xf]
        %v5617 = vld [vmem:[%s5611 + $0x14] sm:$0xf]
        %v5618 = vld [vmem:[%s5611 + $0x18] sm:$0xf]
        %v5619 = vld [vmem:[%s5611 + $0x1c] sm:$0xf]
        %v5620 = vld [vmem:[%s5611 + $0x20] sm:$0xf]
        %v5621 = vld [vmem:[%s5611 + $0x24] sm:$0xf]
        %v5622 = vld [vmem:[%s5611 + $0x28] sm:$0xf]
        %v5623 = vld [vmem:[%s5611 + $0x2c] sm:$0xf]
        %v5624 = vld [vmem:[%s5611 + $0x30] sm:$0xf]
        %v5625 = vld [vmem:[%s5611 + $0x34] sm:$0xf]
        %v5626 = vld [vmem:[%s5611 + $0x38] sm:$0xf]
        %v5627 = vld [vmem:[%s5611 + $0x3c] sm:$0xf]
        %v5628 = vld [vmem:[%s5611 + $0x40] sm:$0xf]
        %v5629 = vld [vmem:[%s5611 + $0x44] sm:$0xf]
        %v5630 = vld [vmem:[%s5611 + $0x48] sm:$0xf]
        %v5631 = vld [vmem:[%s5611 + $0x4c] sm:$0xf]
        %v5632 = vld [vmem:[%s5611 + $0x50] sm:$0xf]
        %v5633 = vld [vmem:[%s5611 + $0x54] sm:$0xf]
        %v5634 = vld [vmem:[%s5611 + $0x58] sm:$0xf]
        %v5635 = vld [vmem:[%s5611 + $0x5c] sm:$0xf]
        %v5636 = vld [vmem:[%s5611 + $0x60] sm:$0xf]
        %v5637 = vld [vmem:[%s5611 + $0x64] sm:$0xf]
        %v5638 = vld [vmem:[%s5611 + $0x68] sm:$0xf]
        %v5639 = vld [vmem:[%s5611 + $0x6c] sm:$0xf]
        %v5640 = vld [vmem:[%s5611 + $0x70] sm:$0xf]
        %v5641 = vld [vmem:[%s5611 + $0x74] sm:$0xf]
        %v5642 = vld [vmem:[%s5611 + $0x78] sm:$0xf]
        %v5643 = vld [vmem:[%s5611 + $0x7c] sm:$0xf]
        %v5644 = vld [vmem:[%s5611 + $0x80] sm:$0xf]
        %v5645 = vld [vmem:[%s5611 + $0x84] sm:$0xf]
        %v5646 = vld [vmem:[%s5611 + $0x88] sm:$0xf]
        %v5647 = vld [vmem:[%s5611 + $0x8c] sm:$0xf]
        %v5648 = vld [vmem:[%s5611 + $0x90] sm:$0xf]
        %v5649 = vld [vmem:[%s5611 + $0x94] sm:$0xf]
        %v5650 = vld [vmem:[%s5611 + $0x98] sm:$0xf]
        %v5651 = vld [vmem:[%s5611 + $0x9c] sm:$0xf]
        %v5652 = vld [vmem:[%s5611 + $0xa0] sm:$0xf]
        %v5653 = vld [vmem:[%s5611 + $0xa4] sm:$0xf]
        %v5654 = vld [vmem:[%s5611 + $0xa8] sm:$0xf]
        %v5655 = vld [vmem:[%s5611 + $0xac] sm:$0xf]
        %v5656 = vld [vmem:[%s5611 + $0xb0] sm:$0xf]
        %v5657 = vld [vmem:[%s5611 + $0xb4] sm:$0xf]
        %v5658 = vld [vmem:[%s5611 + $0xb8] sm:$0xf]
        %v5659 = vld [vmem:[%s5611 + $0xbc] sm:$0xf]
        %v5708 = vunpack.c.l.b16 %v5612
        %v5709 = vunpack.c.l.b16 %v5613
        %v5710 = vunpack.c.l.b16 %v5614
        %v5711 = vunpack.c.l.b16 %v5615
        %v5712 = vunpack.c.l.b16 %v5616
        %v5713 = vunpack.c.l.b16 %v5617
        %v5714 = vunpack.c.l.b16 %v5618
        %v5715 = vunpack.c.l.b16 %v5619
        %v5716 = vunpack.c.l.b16 %v5620
        %v5717 = vunpack.c.l.b16 %v5621
        %v5718 = vunpack.c.l.b16 %v5622
        %v5719 = vunpack.c.l.b16 %v5623
        %v5720 = vunpack.c.l.b16 %v5624
        %v5721 = vunpack.c.l.b16 %v5625
        %v5722 = vunpack.c.l.b16 %v5626
        %v5723 = vunpack.c.l.b16 %v5627
        %v5724 = vunpack.c.l.b16 %v5628
        %v5725 = vunpack.c.l.b16 %v5629
        %v5726 = vunpack.c.l.b16 %v5630
        %v5727 = vunpack.c.l.b16 %v5631
        %v5728 = vunpack.c.l.b16 %v5632
        %v5729 = vunpack.c.l.b16 %v5633
        %v5730 = vunpack.c.l.b16 %v5634
        %v5731 = vunpack.c.l.b16 %v5635
        %v5732 = vunpack.c.l.b16 %v5636
        %v5733 = vunpack.c.l.b16 %v5637
        %v5734 = vunpack.c.l.b16 %v5638
        %v5735 = vunpack.c.l.b16 %v5639
        %v5736 = vunpack.c.l.b16 %v5640
        %v5737 = vunpack.c.l.b16 %v5641
        %v5738 = vunpack.c.l.b16 %v5642
        %v5739 = vunpack.c.l.b16 %v5643
        %v5740 = vunpack.c.l.b16 %v5644
        %v5741 = vunpack.c.l.b16 %v5645
        %v5742 = vunpack.c.l.b16 %v5646
        %v5743 = vunpack.c.l.b16 %v5647
        %v5744 = vunpack.c.l.b16 %v5648
        %v5745 = vunpack.c.l.b16 %v5649
        %v5746 = vunpack.c.l.b16 %v5650
        %v5747 = vunpack.c.l.b16 %v5651
        %v5748 = vunpack.c.l.b16 %v5652
        %v5749 = vunpack.c.l.b16 %v5653
        %v5750 = vunpack.c.l.b16 %v5654
        %v5751 = vunpack.c.l.b16 %v5655
        %v5752 = vunpack.c.l.b16 %v5656
        %v5753 = vunpack.c.l.b16 %v5657
        %v5754 = vunpack.c.l.b16 %v5658
        %v5755 = vunpack.c.l.b16 %v5659
        %v5756 = vpack.c.b16 %v5709, %v5708
        %v5757 = vpack.c.b16 %v5711, %v5710
        %v5758 = vpack.c.b16 %v5713, %v5712
        %v5759 = vpack.c.b16 %v5715, %v5714
        %v5760 = vpack.c.b16 %v5717, %v5716
        %v5761 = vpack.c.b16 %v5719, %v5718
        %v5762 = vpack.c.b16 %v5721, %v5720
        %v5763 = vpack.c.b16 %v5723, %v5722
        %v5764 = vpack.c.b16 %v5725, %v5724
        %v5765 = vpack.c.b16 %v5727, %v5726
        %v5766 = vpack.c.b16 %v5729, %v5728
        %v5767 = vpack.c.b16 %v5731, %v5730
        %v5768 = vpack.c.b16 %v5733, %v5732
        %v5769 = vpack.c.b16 %v5735, %v5734
        %v5770 = vpack.c.b16 %v5737, %v5736
        %v5771 = vpack.c.b16 %v5739, %v5738
        %v5772 = vpack.c.b16 %v5741, %v5740
        %v5773 = vpack.c.b16 %v5743, %v5742
        %v5774 = vpack.c.b16 %v5745, %v5744
        %v5775 = vpack.c.b16 %v5747, %v5746
        %v5776 = vpack.c.b16 %v5749, %v5748
        %v5777 = vpack.c.b16 %v5751, %v5750
        %v5778 = vpack.c.b16 %v5753, %v5752
        %v5779 = vpack.c.b16 %v5755, %v5754
        %5804 = vmatprep.subr.bf16.mxu0 0
        %5805 = vmatpush1.bf16.msra.mxu0 %v5756
        %5806 = vmatprep.subr.bf16.mxu0 0
        %5807 = vmatpush1.bf16.msra.mxu0 %v5757
        %5808 = vmatprep.subr.bf16.mxu0 0
        %5809 = vmatpush1.bf16.msra.mxu0 %v5758
        %5810 = vmatprep.subr.bf16.mxu0 0
        %5811 = vmatpush1.bf16.msra.mxu0 %v5759
        %5812 = vmatprep.subr.bf16.mxu0 0
        %5813 = vmatpush1.bf16.msra.mxu0 %v5760
        %5814 = vmatprep.subr.bf16.mxu0 0
        %5815 = vmatpush1.bf16.msra.mxu0 %v5761
        %5816 = vmatprep.subr.bf16.mxu0 0
        %5817 = vmatpush1.bf16.msra.mxu0 %v5762
        %5818 = vmatprep.subr.bf16.mxu0 0
        %5819 = vmatpush1.bf16.msra.mxu0 %v5763
        %5820 = vmatprep.subr.bf16.mxu0 0
        %5821 = vmatpush1.bf16.msra.mxu0 %v5764
        %5822 = vmatprep.subr.bf16.mxu0 0
        %5823 = vmatpush1.bf16.msra.mxu0 %v5765
        %5824 = vmatprep.subr.bf16.mxu0 0
        %5825 = vmatpush1.bf16.msra.mxu0 %v5766
        %5826 = vmatprep.subr.bf16.mxu0 0
        %5827 = vmatpush1.bf16.msra.mxu0 %v5767
        %5828 = vmatprep.subr.bf16.mxu0 0
        %5829 = vmatpush1.bf16.msra.mxu0 %v5768
        %5830 = vmatprep.subr.bf16.mxu0 0
        %5831 = vmatpush1.bf16.msra.mxu0 %v5769
        %5832 = vmatprep.subr.bf16.mxu0 0
        %5833 = vmatpush1.bf16.msra.mxu0 %v5770
        %5834 = vmatprep.subr.bf16.mxu0 0
        %5835 = vmatpush1.bf16.msra.mxu0 %v5771
        %5836 = vmatprep.mubr.bf16.mxu0 %v5606
        %5837 = vmatmul.mubr.bf16.gmra.mrb[0].mxu0 %v5599
        %v5838 = vpop.f32.mrb[0].mxu0
        %v5839 = vadd.f32 0.0, %v5838
        %v5840 = vpop.f32.mrb[0].mxu0
        %v5841 = vpop.f32.mrb[0].mxu0
        %v5842 = vpop.f32.mrb[0].mxu0
        %5843 = vdwg.mxu0
        %5844 = vmatprep.subr.bf16.mxu0 0
        %5845 = vmatpush1.bf16.msra.mxu0 %v5772
        %5846 = vmatprep.subr.bf16.mxu0 0
        %5847 = vmatpush1.bf16.msra.mxu0 %v5773
        %5848 = vmatprep.subr.bf16.mxu0 0
        %5849 = vmatpush1.bf16.msra.mxu0 %v5774
        %5850 = vmatprep.subr.bf16.mxu0 0
        %5851 = vmatpush1.bf16.msra.mxu0 %v5775
        %5852 = vmatprep.subr.bf16.mxu0 0
        %5853 = vmatpush1.bf16.msra.mxu0 %v5776
        %5854 = vmatprep.subr.bf16.mxu0 0
        %5855 = vmatpush1.bf16.msra.mxu0 %v5777
        %5856 = vmatprep.subr.bf16.mxu0 0
        %5857 = vmatpush1.bf16.msra.mxu0 %v5778
        %5858 = vmatprep.subr.bf16.mxu0 0
        %5859 = vmatpush1.bf16.msra.mxu0 %v5779
        %5860 = vmatprep.subr.bf16.mxu0 0
        %5861 = vmatpush1.bf16.msra.mxu0 0
        %5862 = vmatprep.subr.bf16.mxu0 0
        %5863 = vmatpush1.bf16.msra.mxu0 0
        %5864 = vmatprep.subr.bf16.mxu0 0
        %5865 = vmatpush1.bf16.msra.mxu0 0
        %5866 = vmatprep.subr.bf16.mxu0 0
        %5867 = vmatpush1.bf16.msra.mxu0 0
        %5868 = vmatprep.subr.bf16.mxu0 0
        %5869 = vmatpush1.bf16.msra.mxu0 0
        %5870 = vmatprep.subr.bf16.mxu0 0
        %5871 = vmatpush1.bf16.msra.mxu0 0
        %5872 = vmatprep.subr.bf16.mxu0 0
        %5873 = vmatpush1.bf16.msra.mxu0 0
        %5874 = vmatprep.subr.bf16.mxu0 0
        %5875 = vmatpush1.bf16.msra.mxu0 0
        %5876 = vmatprep.mubr.bf16.mxu0 0
        %5877 = vmatmul.mubr.bf16.gmra.mrb[0].mxu0 %v5609
        %v5878 = vpop.f32.mrb[0].mxu0
        %v5879 = vadd.f32 %v5839, %v5878
        %v5880 = vpop.f32.mrb[0].mxu0
        %v5881 = vpop.f32.mrb[0].mxu0
        %v5882 = vpop.f32.mrb[0].mxu0
        %5883 = vdwg.mxu0
        %vm5884 = vcmask 15360
        %v5885 = vsel %vm5884, %v1274, 0
        %vm5887 = vcmask 1041408
        %v5889 = vsel %vm5887, %v5879, 0
        %5891 = vmatprep.subr.mxu0 0.0
        %5892 = vmatpush1.msra.mxu0 %v5889
        %5893 = vmatprep.subr.mxu0 0.0
        %5894 = vmatpush1.msra.mxu0 0.0
        %5895 = vmatprep.subr.mxu0 0.0
        %5896 = vmatpush1.msra.mxu0 0.0
        %5897 = vmatprep.subr.mxu0 0.0
        %5898 = vmatpush1.msra.mxu0 0.0
        %5899 = vmatprep.subr.mxu0 0.0
        %5900 = vmatpush1.msra.mxu0 0.0
        %5901 = vmatprep.subr.mxu0 0.0
        %5902 = vmatpush1.msra.mxu0 0.0
        %5903 = vmatprep.subr.mxu0 0.0
        %5904 = vmatpush1.msra.mxu0 0.0
        %5905 = vmatprep.subr.mxu0 0.0
        %5906 = vmatpush1.msra.mxu0 0.0
        %5907 = vmatprep.subr.mxu0 0.0
        %5908 = vmatpush1.msra.mxu0 0.0
        %5909 = vmatprep.subr.mxu0 0.0
        %5910 = vmatpush1.msra.mxu0 0.0
        %5911 = vmatprep.subr.mxu0 0.0
        %5912 = vmatpush1.msra.mxu0 0.0
        %5913 = vmatprep.subr.mxu0 0.0
        %5914 = vmatpush1.msra.mxu0 0.0
        %5915 = vmatprep.subr.mxu0 0.0
        %5916 = vmatpush1.msra.mxu0 0.0
        %5917 = vmatprep.subr.mxu0 0.0
        %5918 = vmatpush1.msra.mxu0 0.0
        %5919 = vmatprep.subr.mxu0 0.0
        %5920 = vmatpush1.msra.mxu0 0.0
        %5921 = vmatprep.subr.mxu0 0.0
        %5922 = vmatpush1.msra.mxu0 0.0
        %5923 = vmatprep.subr.mxu0 0.0
        %5924 = vmatpush1.msra.mxu0 0.0
        %5925 = vmatprep.subr.mxu0 0.0
        %5926 = vmatpush1.msra.mxu0 0.0
        %5927 = vmatprep.subr.mxu0 0.0
        %5928 = vmatpush1.msra.mxu0 0.0
        %5929 = vmatprep.subr.mxu0 0.0
        %5930 = vmatpush1.msra.mxu0 0.0
        %5931 = vmatprep.subr.mxu0 0.0
        %5932 = vmatpush1.msra.mxu0 0.0
        %5933 = vmatprep.subr.mxu0 0.0
        %5934 = vmatpush1.msra.mxu0 0.0
        %5935 = vmatprep.subr.mxu0 0.0
        %5936 = vmatpush1.msra.mxu0 0.0
        %5937 = vmatprep.subr.mxu0 0.0
        %5938 = vmatpush1.msra.mxu0 0.0
        %5939 = vmatprep.subr.mxu0 0.0
        %5940 = vmatpush1.msra.mxu0 0.0
        %5941 = vmatprep.subr.mxu0 0.0
        %5942 = vmatpush1.msra.mxu0 0.0
        %5943 = vmatprep.subr.mxu0 0.0
        %5944 = vmatpush1.msra.mxu0 0.0
        %5945 = vmatprep.subr.mxu0 0.0
        %5946 = vmatpush1.msra.mxu0 0.0
        %5947 = vmatprep.subr.mxu0 0.0
        %5948 = vmatpush1.msra.mxu0 0.0
        %5949 = vmatprep.subr.mxu0 0.0
        %5950 = vmatpush1.msra.mxu0 0.0
        %5951 = vmatprep.subr.mxu0 0.0
        %5952 = vmatpush1.msra.mxu0 0.0
        %5953 = vmatprep.subr.mxu0 0.0
        %5954 = vmatpush1.msra.mxu0 0.0
        %5955 = vmatprep.mubr.f32.mxu0 0.0
        %5956 = vmatmul.mubr.f32.gmra.mrb[0].mxu0 %v5885
        %v5957 = vpop.f32.mrb[0].mxu0
        %v5958 = vadd.f32 0.0, %v5957
        %v5959 = vpop.f32.mrb[0].mxu0
        %5960 = vdwg.mxu0
        %v5962 = vsel %vm5887, %v5261, 0
        %5964 = vmatprep.subr.mxu0 0.0
        %5965 = vmatpush1.msra.mxu0 %v5962
        %5966 = vmatprep.subr.mxu0 0.0
        %5967 = vmatpush1.msra.mxu0 0.0
        %5968 = vmatprep.subr.mxu0 0.0
        %5969 = vmatpush1.msra.mxu0 0.0
        %5970 = vmatprep.subr.mxu0 0.0
        %5971 = vmatpush1.msra.mxu0 0.0
        %5972 = vmatprep.subr.mxu0 0.0
        %5973 = vmatpush1.msra.mxu0 0.0
        %5974 = vmatprep.subr.mxu0 0.0
        %5975 = vmatpush1.msra.mxu0 0.0
        %5976 = vmatprep.subr.mxu0 0.0
        %5977 = vmatpush1.msra.mxu0 0.0
        %5978 = vmatprep.subr.mxu0 0.0
        %5979 = vmatpush1.msra.mxu0 0.0
        %5980 = vmatprep.subr.mxu0 0.0
        %5981 = vmatpush1.msra.mxu0 0.0
        %5982 = vmatprep.subr.mxu0 0.0
        %5983 = vmatpush1.msra.mxu0 0.0
        %5984 = vmatprep.subr.mxu0 0.0
        %5985 = vmatpush1.msra.mxu0 0.0
        %5986 = vmatprep.subr.mxu0 0.0
        %5987 = vmatpush1.msra.mxu0 0.0
        %5988 = vmatprep.subr.mxu0 0.0
        %5989 = vmatpush1.msra.mxu0 0.0
        %5990 = vmatprep.subr.mxu0 0.0
        %5991 = vmatpush1.msra.mxu0 0.0
        %5992 = vmatprep.subr.mxu0 0.0
        %5993 = vmatpush1.msra.mxu0 0.0
        %5994 = vmatprep.subr.mxu0 0.0
        %5995 = vmatpush1.msra.mxu0 0.0
        %5996 = vmatprep.subr.mxu0 0.0
        %5997 = vmatpush1.msra.mxu0 0.0
        %5998 = vmatprep.subr.mxu0 0.0
        %5999 = vmatpush1.msra.mxu0 0.0
        %6000 = vmatprep.subr.mxu0 0.0
        %6001 = vmatpush1.msra.mxu0 0.0
        %6002 = vmatprep.subr.mxu0 0.0
        %6003 = vmatpush1.msra.mxu0 0.0
        %6004 = vmatprep.subr.mxu0 0.0
        %6005 = vmatpush1.msra.mxu0 0.0
        %6006 = vmatprep.subr.mxu0 0.0
        %6007 = vmatpush1.msra.mxu0 0.0
        %6008 = vmatprep.subr.mxu0 0.0
        %6009 = vmatpush1.msra.mxu0 0.0
        %6010 = vmatprep.subr.mxu0 0.0
        %6011 = vmatpush1.msra.mxu0 0.0
        %6012 = vmatprep.subr.mxu0 0.0
        %6013 = vmatpush1.msra.mxu0 0.0
        %6014 = vmatprep.subr.mxu0 0.0
        %6015 = vmatpush1.msra.mxu0 0.0
        %6016 = vmatprep.subr.mxu0 0.0
        %6017 = vmatpush1.msra.mxu0 0.0
        %6018 = vmatprep.subr.mxu0 0.0
        %6019 = vmatpush1.msra.mxu0 0.0
        %6020 = vmatprep.subr.mxu0 0.0
        %6021 = vmatpush1.msra.mxu0 0.0
        %6022 = vmatprep.subr.mxu0 0.0
        %6023 = vmatpush1.msra.mxu0 0.0
        %6024 = vmatprep.subr.mxu0 0.0
        %6025 = vmatpush1.msra.mxu0 0.0
        %6026 = vmatprep.subr.mxu0 0.0
        %6027 = vmatpush1.msra.mxu0 0.0
        %6028 = vmatprep.mubr.f32.mxu0 0.0
        %6029 = vmatmul.mubr.f32.gmra.mrb[0].mxu0 %v5885
        %v6030 = vpop.f32.mrb[0].mxu0
        %v6031 = vadd.f32 0.0, %v6030
        %v6032 = vpop.f32.mrb[0].mxu0
        %6033 = vdwg.mxu0
        %v6034 = vpack.c.bf16 %v6031, %v6031
        %s6035 = scalar_lea.vmem [#allocation4], 192
        %v6036 = vld [vmem:[%s6035] sm:$0xf]
        %v6037 = vld [vmem:[%s6035 + $0x4] sm:$0xf]
        %v6038 = vld [vmem:[%s6035 + $0x8] sm:$0xf]
        %v6039 = vld [vmem:[%s6035 + $0xc] sm:$0xf]
        %v6040 = vld [vmem:[%s6035 + $0x10] sm:$0xf]
        %v6041 = vld [vmem:[%s6035 + $0x14] sm:$0xf]
        %v6042 = vld [vmem:[%s6035 + $0x18] sm:$0xf]
        %v6043 = vld [vmem:[%s6035 + $0x1c] sm:$0xf]
        %v6044 = vld [vmem:[%s6035 + $0x20] sm:$0xf]
        %v6045 = vld [vmem:[%s6035 + $0x24] sm:$0xf]
        %v6046 = vld [vmem:[%s6035 + $0x28] sm:$0xf]
        %v6047 = vld [vmem:[%s6035 + $0x2c] sm:$0xf]
        %v6048 = vld [vmem:[%s6035 + $0x30] sm:$0xf]
        %v6049 = vld [vmem:[%s6035 + $0x34] sm:$0xf]
        %v6050 = vld [vmem:[%s6035 + $0x38] sm:$0xf]
        %v6051 = vld [vmem:[%s6035 + $0x3c] sm:$0xf]
        %v6068 = vunpack.c.l.b16 %v6036
        %v6069 = vunpack.c.l.b16 %v6037
        %v6070 = vunpack.c.l.b16 %v6038
        %v6071 = vunpack.c.l.b16 %v6039
        %v6072 = vunpack.c.l.b16 %v6040
        %v6073 = vunpack.c.l.b16 %v6041
        %v6074 = vunpack.c.l.b16 %v6042
        %v6075 = vunpack.c.l.b16 %v6043
        %v6076 = vunpack.c.l.b16 %v6044
        %v6077 = vunpack.c.l.b16 %v6045
        %v6078 = vunpack.c.l.b16 %v6046
        %v6079 = vunpack.c.l.b16 %v6047
        %v6080 = vunpack.c.l.b16 %v6048
        %v6081 = vunpack.c.l.b16 %v6049
        %v6082 = vunpack.c.l.b16 %v6050
        %v6083 = vunpack.c.l.b16 %v6051
        %v6084 = vpack.c.b16 %v6069, %v6068
        %v6085 = vpack.c.b16 %v6071, %v6070
        %v6086 = vpack.c.b16 %v6073, %v6072
        %v6087 = vpack.c.b16 %v6075, %v6074
        %v6088 = vpack.c.b16 %v6077, %v6076
        %v6089 = vpack.c.b16 %v6079, %v6078
        %v6090 = vpack.c.b16 %v6081, %v6080
        %v6091 = vpack.c.b16 %v6083, %v6082
        %6100 = vmatprep.subr.bf16.mxu0 0
        %6101 = vmatpush1.bf16.msra.mxu0 %v6084
        %6102 = vmatprep.subr.bf16.mxu0 0
        %6103 = vmatpush1.bf16.msra.mxu0 %v6085
        %6104 = vmatprep.subr.bf16.mxu0 0
        %6105 = vmatpush1.bf16.msra.mxu0 %v6086
        %6106 = vmatprep.subr.bf16.mxu0 0
        %6107 = vmatpush1.bf16.msra.mxu0 %v6087
        %6108 = vmatprep.subr.bf16.mxu0 0
        %6109 = vmatpush1.bf16.msra.mxu0 %v6088
        %6110 = vmatprep.subr.bf16.mxu0 0
        %6111 = vmatpush1.bf16.msra.mxu0 %v6089
        %6112 = vmatprep.subr.bf16.mxu0 0
        %6113 = vmatpush1.bf16.msra.mxu0 %v6090
        %6114 = vmatprep.subr.bf16.mxu0 0
        %6115 = vmatpush1.bf16.msra.mxu0 %v6091
        %6116 = vmatprep.subr.bf16.mxu0 0
        %6117 = vmatpush1.bf16.msra.mxu0 0
        %6118 = vmatprep.subr.bf16.mxu0 0
        %6119 = vmatpush1.bf16.msra.mxu0 0
        %6120 = vmatprep.subr.bf16.mxu0 0
        %6121 = vmatpush1.bf16.msra.mxu0 0
        %6122 = vmatprep.subr.bf16.mxu0 0
        %6123 = vmatpush1.bf16.msra.mxu0 0
        %6124 = vmatprep.subr.bf16.mxu0 0
        %6125 = vmatpush1.bf16.msra.mxu0 0
        %6126 = vmatprep.subr.bf16.mxu0 0
        %6127 = vmatpush1.bf16.msra.mxu0 0
        %6128 = vmatprep.subr.bf16.mxu0 0
        %6129 = vmatpush1.bf16.msra.mxu0 0
        %6130 = vmatprep.subr.bf16.mxu0 0
        %6131 = vmatpush1.bf16.msra.mxu0 0
        %6132 = vmatprep.mubr.bf16.mxu0 0
        %6133 = vmatmul.mubr.bf16.gmra.mrb[0].mxu0 %v6034
        %v6134 = vpop.f32.mrb[0].mxu0
        %v6135 = vadd.f32 0.0, %v6134
        %v6136 = vpop.f32.mrb[0].mxu0
        %v6137 = vpop.f32.mrb[0].mxu0
        %v6138 = vpop.f32.mrb[0].mxu0
        %6139 = vdwg.mxu0
        %v6140 = vld [vmem:[#allocation6 + $0x3a] sm:$0x1]
        %v6141 = vmul.f32 %v6135, %v6140
        %v6142 = vld [vmem:[#allocation6 + $0x3b] sm:$0x1]
        %v6143 = vadd.f32 %v6141, %v6142
        %v6144 = vld [vmem:[#allocation6 + $0x38] sm:$0x1]
        %v6145 = vmul.f32 %v5958, %v6144
        %v6146 = vld [vmem:[#allocation6 + $0x39] sm:$0x1]
        %v6147 = vadd.f32 %v6145, %v6146
        %v6148 = vadd.f32 %v6147, %v6143
        %v6149 = vld [vmem:[#allocation6 + $0x3c] sm:$0x1]
        %v6150 = vmul.f32 %v6148, %v6149
        %v6151 = vld [vmem:[#allocation6 + $0x3d] sm:$0x1]
        %v6152 = vadd.f32 %v6150, %v6151
        %v6153 = vpack.c.bf16 %v6152, %v6152
        %v6155 = vshll.u32 %v6153, 16
        %v6158 = vsel %vm639, 0, %v6155
        %vm6159 = vcmask 1040384
        %v6162 = vsel %vm6159, %v6158, 0
        %v6164 = vshrl.u32 %v6162, 16
        %v6168 = vrot.slane %v6162, 1
        %s6170 = scalar_lea.vmem [#allocation2], 2880
        %v6171 = vld [vmem:[%s6170] sm:$0xf]
        %v6172 = vld [vmem:[%s6170 + $0x4] sm:$0xf]
        %v6173 = vld [vmem:[%s6170 + $0x8] sm:$0xf]
        %v6174 = vld [vmem:[%s6170 + $0xc] sm:$0xf]
        %v6175 = vld [vmem:[%s6170 + $0x10] sm:$0xf]
        %v6176 = vld [vmem:[%s6170 + $0x14] sm:$0xf]
        %v6177 = vld [vmem:[%s6170 + $0x18] sm:$0xf]
        %v6178 = vld [vmem:[%s6170 + $0x1c] sm:$0xf]
        %v6179 = vld [vmem:[%s6170 + $0x20] sm:$0xf]
        %v6180 = vld [vmem:[%s6170 + $0x24] sm:$0xf]
        %v6181 = vld [vmem:[%s6170 + $0x28] sm:$0xf]
        %v6182 = vld [vmem:[%s6170 + $0x2c] sm:$0xf]
        %v6183 = vld [vmem:[%s6170 + $0x30] sm:$0xf]
        %v6184 = vld [vmem:[%s6170 + $0x34] sm:$0xf]
        %v6185 = vld [vmem:[%s6170 + $0x38] sm:$0xf]
        %v6186 = vld [vmem:[%s6170 + $0x3c] sm:$0xf]
        %v6187 = vld [vmem:[%s6170 + $0x40] sm:$0xf]
        %v6188 = vld [vmem:[%s6170 + $0x44] sm:$0xf]
        %v6189 = vld [vmem:[%s6170 + $0x48] sm:$0xf]
        %v6190 = vld [vmem:[%s6170 + $0x4c] sm:$0xf]
        %v6191 = vld [vmem:[%s6170 + $0x50] sm:$0xf]
        %v6192 = vld [vmem:[%s6170 + $0x54] sm:$0xf]
        %v6193 = vld [vmem:[%s6170 + $0x58] sm:$0xf]
        %v6194 = vld [vmem:[%s6170 + $0x5c] sm:$0xf]
        %v6195 = vld [vmem:[%s6170 + $0x60] sm:$0xf]
        %v6196 = vld [vmem:[%s6170 + $0x64] sm:$0xf]
        %v6197 = vld [vmem:[%s6170 + $0x68] sm:$0xf]
        %v6198 = vld [vmem:[%s6170 + $0x6c] sm:$0xf]
        %v6199 = vld [vmem:[%s6170 + $0x70] sm:$0xf]
        %v6200 = vld [vmem:[%s6170 + $0x74] sm:$0xf]
        %v6201 = vld [vmem:[%s6170 + $0x78] sm:$0xf]
        %v6202 = vld [vmem:[%s6170 + $0x7c] sm:$0xf]
        %v6203 = vld [vmem:[%s6170 + $0x80] sm:$0xf]
        %v6204 = vld [vmem:[%s6170 + $0x84] sm:$0xf]
        %v6205 = vld [vmem:[%s6170 + $0x88] sm:$0xf]
        %v6206 = vld [vmem:[%s6170 + $0x8c] sm:$0xf]
        %v6207 = vld [vmem:[%s6170 + $0x90] sm:$0xf]
        %v6208 = vld [vmem:[%s6170 + $0x94] sm:$0xf]
        %v6209 = vld [vmem:[%s6170 + $0x98] sm:$0xf]
        %v6210 = vld [vmem:[%s6170 + $0x9c] sm:$0xf]
        %v6211 = vld [vmem:[%s6170 + $0xa0] sm:$0xf]
        %v6212 = vld [vmem:[%s6170 + $0xa4] sm:$0xf]
        %v6213 = vld [vmem:[%s6170 + $0xa8] sm:$0xf]
        %v6214 = vld [vmem:[%s6170 + $0xac] sm:$0xf]
        %v6215 = vld [vmem:[%s6170 + $0xb0] sm:$0xf]
        %v6216 = vld [vmem:[%s6170 + $0xb4] sm:$0xf]
        %v6217 = vld [vmem:[%s6170 + $0xb8] sm:$0xf]
        %v6218 = vld [vmem:[%s6170 + $0xbc] sm:$0xf]
        %v6267 = vunpack.c.l.b16 %v6171
        %v6268 = vunpack.c.l.b16 %v6172
        %v6269 = vunpack.c.l.b16 %v6173
        %v6270 = vunpack.c.l.b16 %v6174
        %v6271 = vunpack.c.l.b16 %v6175
        %v6272 = vunpack.c.l.b16 %v6176
        %v6273 = vunpack.c.l.b16 %v6177
        %v6274 = vunpack.c.l.b16 %v6178
        %v6275 = vunpack.c.l.b16 %v6179
        %v6276 = vunpack.c.l.b16 %v6180
        %v6277 = vunpack.c.l.b16 %v6181
        %v6278 = vunpack.c.l.b16 %v6182
        %v6279 = vunpack.c.l.b16 %v6183
        %v6280 = vunpack.c.l.b16 %v6184
        %v6281 = vunpack.c.l.b16 %v6185
        %v6282 = vunpack.c.l.b16 %v6186
        %v6283 = vunpack.c.l.b16 %v6187
        %v6284 = vunpack.c.l.b16 %v6188
        %v6285 = vunpack.c.l.b16 %v6189
        %v6286 = vunpack.c.l.b16 %v6190
        %v6287 = vunpack.c.l.b16 %v6191
        %v6288 = vunpack.c.l.b16 %v6192
        %v6289 = vunpack.c.l.b16 %v6193
        %v6290 = vunpack.c.l.b16 %v6194
        %v6291 = vunpack.c.l.b16 %v6195
        %v6292 = vunpack.c.l.b16 %v6196
        %v6293 = vunpack.c.l.b16 %v6197
        %v6294 = vunpack.c.l.b16 %v6198
        %v6295 = vunpack.c.l.b16 %v6199
        %v6296 = vunpack.c.l.b16 %v6200
        %v6297 = vunpack.c.l.b16 %v6201
        %v6298 = vunpack.c.l.b16 %v6202
        %v6299 = vunpack.c.l.b16 %v6203
        %v6300 = vunpack.c.l.b16 %v6204
        %v6301 = vunpack.c.l.b16 %v6205
        %v6302 = vunpack.c.l.b16 %v6206
        %v6303 = vunpack.c.l.b16 %v6207
        %v6304 = vunpack.c.l.b16 %v6208
        %v6305 = vunpack.c.l.b16 %v6209
        %v6306 = vunpack.c.l.b16 %v6210
        %v6307 = vunpack.c.l.b16 %v6211
        %v6308 = vunpack.c.l.b16 %v6212
        %v6309 = vunpack.c.l.b16 %v6213
        %v6310 = vunpack.c.l.b16 %v6214
        %v6311 = vunpack.c.l.b16 %v6215
        %v6312 = vunpack.c.l.b16 %v6216
        %v6313 = vunpack.c.l.b16 %v6217
        %v6314 = vunpack.c.l.b16 %v6218
        %v6315 = vpack.c.b16 %v6268, %v6267
        %v6316 = vpack.c.b16 %v6270, %v6269
        %v6317 = vpack.c.b16 %v6272, %v6271
        %v6318 = vpack.c.b16 %v6274, %v6273
        %v6319 = vpack.c.b16 %v6276, %v6275
        %v6320 = vpack.c.b16 %v6278, %v6277
        %v6321 = vpack.c.b16 %v6280, %v6279
        %v6322 = vpack.c.b16 %v6282, %v6281
        %v6323 = vpack.c.b16 %v6284, %v6283
        %v6324 = vpack.c.b16 %v6286, %v6285
        %v6325 = vpack.c.b16 %v6288, %v6287
        %v6326 = vpack.c.b16 %v6290, %v6289
        %v6327 = vpack.c.b16 %v6292, %v6291
        %v6328 = vpack.c.b16 %v6294, %v6293
        %v6329 = vpack.c.b16 %v6296, %v6295
        %v6330 = vpack.c.b16 %v6298, %v6297
        %v6331 = vpack.c.b16 %v6300, %v6299
        %v6332 = vpack.c.b16 %v6302, %v6301
        %v6333 = vpack.c.b16 %v6304, %v6303
        %v6334 = vpack.c.b16 %v6306, %v6305
        %v6335 = vpack.c.b16 %v6308, %v6307
        %v6336 = vpack.c.b16 %v6310, %v6309
        %v6337 = vpack.c.b16 %v6312, %v6311
        %v6338 = vpack.c.b16 %v6314, %v6313
        %6363 = vmatprep.subr.bf16.mxu0 0
        %6364 = vmatpush1.bf16.msra.mxu0 %v6315
        %6365 = vmatprep.subr.bf16.mxu0 0
        %6366 = vmatpush1.bf16.msra.mxu0 %v6316
        %6367 = vmatprep.subr.bf16.mxu0 0
        %6368 = vmatpush1.bf16.msra.mxu0 %v6317
        %6369 = vmatprep.subr.bf16.mxu0 0
        %6370 = vmatpush1.bf16.msra.mxu0 %v6318
        %6371 = vmatprep.subr.bf16.mxu0 0
        %6372 = vmatpush1.bf16.msra.mxu0 %v6319
        %6373 = vmatprep.subr.bf16.mxu0 0
        %6374 = vmatpush1.bf16.msra.mxu0 %v6320
        %6375 = vmatprep.subr.bf16.mxu0 0
        %6376 = vmatpush1.bf16.msra.mxu0 %v6321
        %6377 = vmatprep.subr.bf16.mxu0 0
        %6378 = vmatpush1.bf16.msra.mxu0 %v6322
        %6379 = vmatprep.subr.bf16.mxu0 0
        %6380 = vmatpush1.bf16.msra.mxu0 %v6323
        %6381 = vmatprep.subr.bf16.mxu0 0
        %6382 = vmatpush1.bf16.msra.mxu0 %v6324
        %6383 = vmatprep.subr.bf16.mxu0 0
        %6384 = vmatpush1.bf16.msra.mxu0 %v6325
        %6385 = vmatprep.subr.bf16.mxu0 0
        %6386 = vmatpush1.bf16.msra.mxu0 %v6326
        %6387 = vmatprep.subr.bf16.mxu0 0
        %6388 = vmatpush1.bf16.msra.mxu0 %v6327
        %6389 = vmatprep.subr.bf16.mxu0 0
        %6390 = vmatpush1.bf16.msra.mxu0 %v6328
        %6391 = vmatprep.subr.bf16.mxu0 0
        %6392 = vmatpush1.bf16.msra.mxu0 %v6329
        %6393 = vmatprep.subr.bf16.mxu0 0
        %6394 = vmatpush1.bf16.msra.mxu0 %v6330
        %6395 = vmatprep.mubr.bf16.mxu0 %v6164
        %6396 = vmatmul.mubr.bf16.gmra.mrb[0].mxu0 %v6162
        %v6397 = vpop.f32.mrb[0].mxu0
        %v6398 = vadd.f32 0.0, %v6397
        %v6399 = vpop.f32.mrb[0].mxu0
        %v6400 = vpop.f32.mrb[0].mxu0
        %v6401 = vpop.f32.mrb[0].mxu0
        %6402 = vdwg.mxu0
        %6403 = vmatprep.subr.bf16.mxu0 0
        %6404 = vmatpush1.bf16.msra.mxu0 %v6331
        %6405 = vmatprep.subr.bf16.mxu0 0
        %6406 = vmatpush1.bf16.msra.mxu0 %v6332
        %6407 = vmatprep.subr.bf16.mxu0 0
        %6408 = vmatpush1.bf16.msra.mxu0 %v6333
        %6409 = vmatprep.subr.bf16.mxu0 0
        %6410 = vmatpush1.bf16.msra.mxu0 %v6334
        %6411 = vmatprep.subr.bf16.mxu0 0
        %6412 = vmatpush1.bf16.msra.mxu0 %v6335
        %6413 = vmatprep.subr.bf16.mxu0 0
        %6414 = vmatpush1.bf16.msra.mxu0 %v6336
        %6415 = vmatprep.subr.bf16.mxu0 0
        %6416 = vmatpush1.bf16.msra.mxu0 %v6337
        %6417 = vmatprep.subr.bf16.mxu0 0
        %6418 = vmatpush1.bf16.msra.mxu0 %v6338
        %6419 = vmatprep.subr.bf16.mxu0 0
        %6420 = vmatpush1.bf16.msra.mxu0 0
        %6421 = vmatprep.subr.bf16.mxu0 0
        %6422 = vmatpush1.bf16.msra.mxu0 0
        %6423 = vmatprep.subr.bf16.mxu0 0
        %6424 = vmatpush1.bf16.msra.mxu0 0
        %6425 = vmatprep.subr.bf16.mxu0 0
        %6426 = vmatpush1.bf16.msra.mxu0 0
        %6427 = vmatprep.subr.bf16.mxu0 0
        %6428 = vmatpush1.bf16.msra.mxu0 0
        %6429 = vmatprep.subr.bf16.mxu0 0
        %6430 = vmatpush1.bf16.msra.mxu0 0
        %6431 = vmatprep.subr.bf16.mxu0 0
        %6432 = vmatpush1.bf16.msra.mxu0 0
        %6433 = vmatprep.subr.bf16.mxu0 0
        %6434 = vmatpush1.bf16.msra.mxu0 0
        %6435 = vmatprep.mubr.bf16.mxu0 0
        %6436 = vmatmul.mubr.bf16.gmra.mrb[0].mxu0 %v6168
        %v6437 = vpop.f32.mrb[0].mxu0
        %v6438 = vadd.f32 %v6398, %v6437
        %v6439 = vpop.f32.mrb[0].mxu0
        %v6440 = vpop.f32.mrb[0].mxu0
        %v6441 = vpop.f32.mrb[0].mxu0
        %6442 = vdwg.mxu0
        %v6443 = vld [vmem:[#allocation6 + $0x3e] sm:$0x1]
        %v6444 = vmul.f32 %v6438, %v6443
        %v6445 = vld [vmem:[#allocation6 + $0x3f] sm:$0x1]
        %v6446 = vadd.f32 %v6444, %v6445
        %vm6447 = vcmp.ge.f32.partialorder %v6446, 0.0
        %v6448 = vld [vmem:[#allocation6 + $0x40] sm:$0x1]
        %v6449 = vmul.f32 %v6446, %v6448
        %v6450 = vsel %vm6447, %v6446, %v6449
        %v6451 = vpack.c.bf16 %v6450, %v6450
        %v6453 = vshll.u32 %v6451, 16
        %v6456 = vsel %vm639, 0, %v6453
        %v6458 = vsel %vm6159, %v6456, 0
        %v6460 = vshrl.u32 %v6458, 16
        %v6464 = vrot.slane %v6458, 1
        %s6466 = scalar_lea.vmem [#allocation2], 3072
        %v6467 = vld [vmem:[%s6466] sm:$0xf]
        %v6468 = vld [vmem:[%s6466 + $0x4] sm:$0xf]
        %v6469 = vld [vmem:[%s6466 + $0x8] sm:$0xf]
        %v6470 = vld [vmem:[%s6466 + $0xc] sm:$0xf]
        %v6471 = vld [vmem:[%s6466 + $0x10] sm:$0xf]
        %v6472 = vld [vmem:[%s6466 + $0x14] sm:$0xf]
        %v6473 = vld [vmem:[%s6466 + $0x18] sm:$0xf]
        %v6474 = vld [vmem:[%s6466 + $0x1c] sm:$0xf]
        %v6475 = vld [vmem:[%s6466 + $0x20] sm:$0xf]
        %v6476 = vld [vmem:[%s6466 + $0x24] sm:$0xf]
        %v6477 = vld [vmem:[%s6466 + $0x28] sm:$0xf]
        %v6478 = vld [vmem:[%s6466 + $0x2c] sm:$0xf]
        %v6479 = vld [vmem:[%s6466 + $0x30] sm:$0xf]
        %v6480 = vld [vmem:[%s6466 + $0x34] sm:$0xf]
        %v6481 = vld [vmem:[%s6466 + $0x38] sm:$0xf]
        %v6482 = vld [vmem:[%s6466 + $0x3c] sm:$0xf]
        %v6483 = vld [vmem:[%s6466 + $0x40] sm:$0xf]
        %v6484 = vld [vmem:[%s6466 + $0x44] sm:$0xf]
        %v6485 = vld [vmem:[%s6466 + $0x48] sm:$0xf]
        %v6486 = vld [vmem:[%s6466 + $0x4c] sm:$0xf]
        %v6487 = vld [vmem:[%s6466 + $0x50] sm:$0xf]
        %v6488 = vld [vmem:[%s6466 + $0x54] sm:$0xf]
        %v6489 = vld [vmem:[%s6466 + $0x58] sm:$0xf]
        %v6490 = vld [vmem:[%s6466 + $0x5c] sm:$0xf]
        %v6491 = vld [vmem:[%s6466 + $0x60] sm:$0xf]
        %v6492 = vld [vmem:[%s6466 + $0x64] sm:$0xf]
        %v6493 = vld [vmem:[%s6466 + $0x68] sm:$0xf]
        %v6494 = vld [vmem:[%s6466 + $0x6c] sm:$0xf]
        %v6495 = vld [vmem:[%s6466 + $0x70] sm:$0xf]
        %v6496 = vld [vmem:[%s6466 + $0x74] sm:$0xf]
        %v6497 = vld [vmem:[%s6466 + $0x78] sm:$0xf]
        %v6498 = vld [vmem:[%s6466 + $0x7c] sm:$0xf]
        %v6499 = vld [vmem:[%s6466 + $0x80] sm:$0xf]
        %v6500 = vld [vmem:[%s6466 + $0x84] sm:$0xf]
        %v6501 = vld [vmem:[%s6466 + $0x88] sm:$0xf]
        %v6502 = vld [vmem:[%s6466 + $0x8c] sm:$0xf]
        %v6503 = vld [vmem:[%s6466 + $0x90] sm:$0xf]
        %v6504 = vld [vmem:[%s6466 + $0x94] sm:$0xf]
        %v6505 = vld [vmem:[%s6466 + $0x98] sm:$0xf]
        %v6506 = vld [vmem:[%s6466 + $0x9c] sm:$0xf]
        %v6507 = vld [vmem:[%s6466 + $0xa0] sm:$0xf]
        %v6508 = vld [vmem:[%s6466 + $0xa4] sm:$0xf]
        %v6509 = vld [vmem:[%s6466 + $0xa8] sm:$0xf]
        %v6510 = vld [vmem:[%s6466 + $0xac] sm:$0xf]
        %v6511 = vld [vmem:[%s6466 + $0xb0] sm:$0xf]
        %v6512 = vld [vmem:[%s6466 + $0xb4] sm:$0xf]
        %v6513 = vld [vmem:[%s6466 + $0xb8] sm:$0xf]
        %v6514 = vld [vmem:[%s6466 + $0xbc] sm:$0xf]
        %v6563 = vunpack.c.l.b16 %v6467
        %v6564 = vunpack.c.l.b16 %v6468
        %v6565 = vunpack.c.l.b16 %v6469
        %v6566 = vunpack.c.l.b16 %v6470
        %v6567 = vunpack.c.l.b16 %v6471
        %v6568 = vunpack.c.l.b16 %v6472
        %v6569 = vunpack.c.l.b16 %v6473
        %v6570 = vunpack.c.l.b16 %v6474
        %v6571 = vunpack.c.l.b16 %v6475
        %v6572 = vunpack.c.l.b16 %v6476
        %v6573 = vunpack.c.l.b16 %v6477
        %v6574 = vunpack.c.l.b16 %v6478
        %v6575 = vunpack.c.l.b16 %v6479
        %v6576 = vunpack.c.l.b16 %v6480
        %v6577 = vunpack.c.l.b16 %v6481
        %v6578 = vunpack.c.l.b16 %v6482
        %v6579 = vunpack.c.l.b16 %v6483
        %v6580 = vunpack.c.l.b16 %v6484
        %v6581 = vunpack.c.l.b16 %v6485
        %v6582 = vunpack.c.l.b16 %v6486
        %v6583 = vunpack.c.l.b16 %v6487
        %v6584 = vunpack.c.l.b16 %v6488
        %v6585 = vunpack.c.l.b16 %v6489
        %v6586 = vunpack.c.l.b16 %v6490
        %v6587 = vunpack.c.l.b16 %v6491
        %v6588 = vunpack.c.l.b16 %v6492
        %v6589 = vunpack.c.l.b16 %v6493
        %v6590 = vunpack.c.l.b16 %v6494
        %v6591 = vunpack.c.l.b16 %v6495
        %v6592 = vunpack.c.l.b16 %v6496
        %v6593 = vunpack.c.l.b16 %v6497
        %v6594 = vunpack.c.l.b16 %v6498
        %v6595 = vunpack.c.l.b16 %v6499
        %v6596 = vunpack.c.l.b16 %v6500
        %v6597 = vunpack.c.l.b16 %v6501
        %v6598 = vunpack.c.l.b16 %v6502
        %v6599 = vunpack.c.l.b16 %v6503
        %v6600 = vunpack.c.l.b16 %v6504
        %v6601 = vunpack.c.l.b16 %v6505
        %v6602 = vunpack.c.l.b16 %v6506
        %v6603 = vunpack.c.l.b16 %v6507
        %v6604 = vunpack.c.l.b16 %v6508
        %v6605 = vunpack.c.l.b16 %v6509
        %v6606 = vunpack.c.l.b16 %v6510
        %v6607 = vunpack.c.l.b16 %v6511
        %v6608 = vunpack.c.l.b16 %v6512
        %v6609 = vunpack.c.l.b16 %v6513
        %v6610 = vunpack.c.l.b16 %v6514
        %v6611 = vpack.c.b16 %v6564, %v6563
        %v6612 = vpack.c.b16 %v6566, %v6565
        %v6613 = vpack.c.b16 %v6568, %v6567
        %v6614 = vpack.c.b16 %v6570, %v6569
        %v6615 = vpack.c.b16 %v6572, %v6571
        %v6616 = vpack.c.b16 %v6574, %v6573
        %v6617 = vpack.c.b16 %v6576, %v6575
        %v6618 = vpack.c.b16 %v6578, %v6577
        %v6619 = vpack.c.b16 %v6580, %v6579
        %v6620 = vpack.c.b16 %v6582, %v6581
        %v6621 = vpack.c.b16 %v6584, %v6583
        %v6622 = vpack.c.b16 %v6586, %v6585
        %v6623 = vpack.c.b16 %v6588, %v6587
        %v6624 = vpack.c.b16 %v6590, %v6589
        %v6625 = vpack.c.b16 %v6592, %v6591
        %v6626 = vpack.c.b16 %v6594, %v6593
        %v6627 = vpack.c.b16 %v6596, %v6595
        %v6628 = vpack.c.b16 %v6598, %v6597
        %v6629 = vpack.c.b16 %v6600, %v6599
        %v6630 = vpack.c.b16 %v6602, %v6601
        %v6631 = vpack.c.b16 %v6604, %v6603
        %v6632 = vpack.c.b16 %v6606, %v6605
        %v6633 = vpack.c.b16 %v6608, %v6607
        %v6634 = vpack.c.b16 %v6610, %v6609
        %6659 = vmatprep.subr.bf16.mxu0 0
        %6660 = vmatpush1.bf16.msra.mxu0 %v6611
        %6661 = vmatprep.subr.bf16.mxu0 0
        %6662 = vmatpush1.bf16.msra.mxu0 %v6612
        %6663 = vmatprep.subr.bf16.mxu0 0
        %6664 = vmatpush1.bf16.msra.mxu0 %v6613
        %6665 = vmatprep.subr.bf16.mxu0 0
        %6666 = vmatpush1.bf16.msra.mxu0 %v6614
        %6667 = vmatprep.subr.bf16.mxu0 0
        %6668 = vmatpush1.bf16.msra.mxu0 %v6615
        %6669 = vmatprep.subr.bf16.mxu0 0
        %6670 = vmatpush1.bf16.msra.mxu0 %v6616
        %6671 = vmatprep.subr.bf16.mxu0 0
        %6672 = vmatpush1.bf16.msra.mxu0 %v6617
        %6673 = vmatprep.subr.bf16.mxu0 0
        %6674 = vmatpush1.bf16.msra.mxu0 %v6618
        %6675 = vmatprep.subr.bf16.mxu0 0
        %6676 = vmatpush1.bf16.msra.mxu0 %v6619
        %6677 = vmatprep.subr.bf16.mxu0 0
        %6678 = vmatpush1.bf16.msra.mxu0 %v6620
        %6679 = vmatprep.subr.bf16.mxu0 0
        %6680 = vmatpush1.bf16.msra.mxu0 %v6621
        %6681 = vmatprep.subr.bf16.mxu0 0
        %6682 = vmatpush1.bf16.msra.mxu0 %v6622
        %6683 = vmatprep.subr.bf16.mxu0 0
        %6684 = vmatpush1.bf16.msra.mxu0 %v6623
        %6685 = vmatprep.subr.bf16.mxu0 0
        %6686 = vmatpush1.bf16.msra.mxu0 %v6624
        %6687 = vmatprep.subr.bf16.mxu0 0
        %6688 = vmatpush1.bf16.msra.mxu0 %v6625
        %6689 = vmatprep.subr.bf16.mxu0 0
        %6690 = vmatpush1.bf16.msra.mxu0 %v6626
        %6691 = vmatprep.mubr.bf16.mxu0 %v6460
        %6692 = vmatmul.mubr.bf16.gmra.mrb[0].mxu0 %v6458
        %v6693 = vpop.f32.mrb[0].mxu0
        %v6694 = vadd.f32 0.0, %v6693
        %v6695 = vpop.f32.mrb[0].mxu0
        %v6696 = vpop.f32.mrb[0].mxu0
        %v6697 = vpop.f32.mrb[0].mxu0
        %6698 = vdwg.mxu0
        %6699 = vmatprep.subr.bf16.mxu0 0
        %6700 = vmatpush1.bf16.msra.mxu0 %v6627
        %6701 = vmatprep.subr.bf16.mxu0 0
        %6702 = vmatpush1.bf16.msra.mxu0 %v6628
        %6703 = vmatprep.subr.bf16.mxu0 0
        %6704 = vmatpush1.bf16.msra.mxu0 %v6629
        %6705 = vmatprep.subr.bf16.mxu0 0
        %6706 = vmatpush1.bf16.msra.mxu0 %v6630
        %6707 = vmatprep.subr.bf16.mxu0 0
        %6708 = vmatpush1.bf16.msra.mxu0 %v6631
        %6709 = vmatprep.subr.bf16.mxu0 0
        %6710 = vmatpush1.bf16.msra.mxu0 %v6632
        %6711 = vmatprep.subr.bf16.mxu0 0
        %6712 = vmatpush1.bf16.msra.mxu0 %v6633
        %6713 = vmatprep.subr.bf16.mxu0 0
        %6714 = vmatpush1.bf16.msra.mxu0 %v6634
        %6715 = vmatprep.subr.bf16.mxu0 0
        %6716 = vmatpush1.bf16.msra.mxu0 0
        %6717 = vmatprep.subr.bf16.mxu0 0
        %6718 = vmatpush1.bf16.msra.mxu0 0
        %6719 = vmatprep.subr.bf16.mxu0 0
        %6720 = vmatpush1.bf16.msra.mxu0 0
        %6721 = vmatprep.subr.bf16.mxu0 0
        %6722 = vmatpush1.bf16.msra.mxu0 0
        %6723 = vmatprep.subr.bf16.mxu0 0
        %6724 = vmatpush1.bf16.msra.mxu0 0
        %6725 = vmatprep.subr.bf16.mxu0 0
        %6726 = vmatpush1.bf16.msra.mxu0 0
        %6727 = vmatprep.subr.bf16.mxu0 0
        %6728 = vmatpush1.bf16.msra.mxu0 0
        %6729 = vmatprep.subr.bf16.mxu0 0
        %6730 = vmatpush1.bf16.msra.mxu0 0
        %6731 = vmatprep.mubr.bf16.mxu0 0
        %6732 = vmatmul.mubr.bf16.gmra.mrb[0].mxu0 %v6464
        %v6733 = vpop.f32.mrb[0].mxu0
        %v6734 = vadd.f32 %v6694, %v6733
        %v6735 = vpop.f32.mrb[0].mxu0
        %v6736 = vpop.f32.mrb[0].mxu0
        %v6737 = vpop.f32.mrb[0].mxu0
        %6738 = vdwg.mxu0
        %v6739 = vld [vmem:[#allocation6 + $0x41] sm:$0x1]
        %v6740 = vmul.f32 %v6734, %v6739
        %v6741 = vld [vmem:[#allocation6 + $0x42] sm:$0x1]
        %v6742 = vadd.f32 %v6740, %v6741
        %v6743 = vadd.f32 %v6742, %v6148
        %v6744 = vld [vmem:[#allocation7] sm:$0xff]
        %v6745 = vld [vmem:[#allocation7 + $0x8] sm:$0xff]
        %v6746 = vld [vmem:[#allocation7 + $0x10] sm:$0xff]
        %v6747 = vld [vmem:[#allocation7 + $0x18] sm:$0xff]
        %v6748 = vld [vmem:[#allocation7 + $0x20] sm:$0xff]
        %v6749 = vld [vmem:[#allocation7 + $0x28] sm:$0xff]
        %v6750 = vld [vmem:[#allocation7 + $0x30] sm:$0xff]
        %v6751 = vld [vmem:[#allocation7 + $0x38] sm:$0xff]
        %v6752 = vld [vmem:[#allocation7 + $0x40] sm:$0xff]
        %v6753 = vld [vmem:[#allocation7 + $0x48] sm:$0xff]
        %v6754 = vld [vmem:[#allocation7 + $0x50] sm:$0xff]
        %v6755 = vld [vmem:[#allocation7 + $0x58] sm:$0xff]
        %v6756 = vld [vmem:[#allocation7 + $0x60] sm:$0xff]
        %v6757 = vld [vmem:[#allocation7 + $0x68] sm:$0xff]
        %v6758 = vld [vmem:[#allocation7 + $0x70] sm:$0xff]
        %v6759 = vld [vmem:[#allocation7 + $0x78] sm:$0xff]
        %v6760 = vld [vmem:[#allocation6 + $0x43] sm:$0x1]
        %6761 = vmatprep.subr.mxu0 0.0
        %6762 = vmatpush1.msra.mxu0 %v6744
        %6763 = vmatprep.subr.mxu0 0.0
        %6764 = vmatpush1.msra.mxu0 %v6745
        %6765 = vmatprep.subr.mxu0 0.0
        %6766 = vmatpush1.msra.mxu0 %v6746
        %6767 = vmatprep.subr.mxu0 0.0
        %6768 = vmatpush1.msra.mxu0 %v6747
        %6769 = vmatprep.subr.mxu0 0.0
        %6770 = vmatpush1.msra.mxu0 %v6748
        %6771 = vmatprep.subr.mxu0 0.0
        %6772 = vmatpush1.msra.mxu0 %v6749
        %6773 = vmatprep.subr.mxu0 0.0
        %6774 = vmatpush1.msra.mxu0 %v6750
        %6775 = vmatprep.subr.mxu0 0.0
        %6776 = vmatpush1.msra.mxu0 %v6751
        %6777 = vmatprep.subr.mxu0 0.0
        %6778 = vmatpush1.msra.mxu0 %v6752
        %6779 = vmatprep.subr.mxu0 0.0
        %6780 = vmatpush1.msra.mxu0 %v6753
        %6781 = vmatprep.subr.mxu0 0.0
        %6782 = vmatpush1.msra.mxu0 %v6754
        %6783 = vmatprep.subr.mxu0 0.0
        %6784 = vmatpush1.msra.mxu0 %v6755
        %6785 = vmatprep.subr.mxu0 0.0
        %6786 = vmatpush1.msra.mxu0 %v6756
        %6787 = vmatprep.subr.mxu0 0.0
        %6788 = vmatpush1.msra.mxu0 %v6757
        %6789 = vmatprep.subr.mxu0 0.0
        %6790 = vmatpush1.msra.mxu0 %v6758
        %6791 = vmatprep.subr.mxu0 0.0
        %6792 = vmatpush1.msra.mxu0 %v6759
        %6793 = vmatprep.subr.mxu0 0.0
        %6794 = vmatpush1.msra.mxu0 0.0
        %6795 = vmatprep.subr.mxu0 0.0
        %6796 = vmatpush1.msra.mxu0 0.0
        %6797 = vmatprep.subr.mxu0 0.0
        %6798 = vmatpush1.msra.mxu0 0.0
        %6799 = vmatprep.subr.mxu0 0.0
        %6800 = vmatpush1.msra.mxu0 0.0
        %6801 = vmatprep.subr.mxu0 0.0
        %6802 = vmatpush1.msra.mxu0 0.0
        %6803 = vmatprep.subr.mxu0 0.0
        %6804 = vmatpush1.msra.mxu0 0.0
        %6805 = vmatprep.subr.mxu0 0.0
        %6806 = vmatpush1.msra.mxu0 0.0
        %6807 = vmatprep.subr.mxu0 0.0
        %6808 = vmatpush1.msra.mxu0 0.0
        %6809 = vmatprep.subr.mxu0 0.0
        %6810 = vmatpush1.msra.mxu0 0.0
        %6811 = vmatprep.subr.mxu0 0.0
        %6812 = vmatpush1.msra.mxu0 0.0
        %6813 = vmatprep.subr.mxu0 0.0
        %6814 = vmatpush1.msra.mxu0 0.0
        %6815 = vmatprep.subr.mxu0 0.0
        %6816 = vmatpush1.msra.mxu0 0.0
        %6817 = vmatprep.subr.mxu0 0.0
        %6818 = vmatpush1.msra.mxu0 0.0
        %6819 = vmatprep.subr.mxu0 0.0
        %6820 = vmatpush1.msra.mxu0 0.0
        %6821 = vmatprep.subr.mxu0 0.0
        %6822 = vmatpush1.msra.mxu0 0.0
        %6823 = vmatprep.subr.mxu0 0.0
        %6824 = vmatpush1.msra.mxu0 0.0
        %6825 = vmatprep.mubr.f32.mxu0 0.0
        %6826 = vmatmul.mubr.f32.gmra.mrb[0].mxu0 %v6743
        %v6827 = vpop.f32.mrb[0].mxu0
        %v6828 = vadd.f32 %v6760, %v6827
        %v6829 = vpop.f32.mrb[0].mxu0
        %6830 = vdwg.mxu0
        %v6831 = vsel %vm6159, %v6828, 0.0
        %6832 = vst [vmem:[%s281] sm:$0xff] %v6831
        %p6833 = scmp.lt.s32.totalorder %s19, 1
        %s6834 = scalar_select %p6833, %s19, 1
        %s6835 = smul.addr %s6834, 8
        %s6836 = scalar_lea.vmem %s5, %s6835
        // Predicated region
        $region57: #{fr_feature_embedder_forward.1} parent=39 // pred_check
          %p6837 = pneg %p147
        $region58: #{fr_feature_embedder_forward.1} parent=39 // pred_check_branch
          %6839 = sbr.rel (%p6837) target = $region60
        $region59: #{fr_feature_embedder_forward.1} parent=39 // pred_region
          _
        $region60: #{fr_feature_embedder_forward.1} parent=39 // pred_fallthru
          _
      $region40: #{fr_feature_embedder_forward.1} parent=5 // pred_fallthru
        _
      %p6840 = scmp.le.s32.totalorder 2, %s14
      // Predicated region
      $region61: #{fr_feature_embedder_forward.1} parent=5 // pred_check
        %p6841 = pneg %p6840
      $region62: #{fr_feature_embedder_forward.1} parent=5 // pred_check_branch
        %6843 = sbr.rel (%p6841) target = $region64
      $region63: #{fr_feature_embedder_forward.1} parent=5 // pred_region
        %s6844 = ssub.s32 %s14, 2
        // Predicated region
        $region65: #{fr_feature_embedder_forward.1} parent=63 // pred_check
          %p6845 = pneg %p153
        $region66: #{fr_feature_embedder_forward.1} parent=63 // pred_check_branch
          %6847 = sbr.rel (%p6845) target = $region68
        $region67: #{fr_feature_embedder_forward.1} parent=63 // pred_region
          %p6848 = scmp.lt.s32.totalorder %s20, 1
          %s6849 = scalar_select %p6848, %s20, 1
          %s6850 = smul.addr %s6849, 8
          %s6851 = scalar_lea.vmem %s5, %s6850
        $region68: #{fr_feature_embedder_forward.1} parent=63 // pred_fallthru
          _
      $region64: #{fr_feature_embedder_forward.1} parent=5 // pred_fallthru
        _
    $region6: #{fr_feature_embedder_forward.1} parent=1 // loop_footer
      %s18 = sadd.s32 1, %s14
    $region7: #{fr_feature_embedder_forward.1} parent=1 // loop_footer_branch
      %13 = sbr.rel target = $region3
    $region8: #{fr_feature_embedder_forward.1} parent=1 // loop_exit
      _
    %6852 = vsyncpa [#allocation3], 1
    %s6853 = scalar_lea.sflag [#allocation3], 1
    %6854 = vsyncpa %s6853, 1
    %6855 = vsyncpa [#allocation5], 1
    %6856 = vsyncpa [#allocation8], 1

</llo_original>
